<compile_context>
chip_gen: v7x
topology: tpu7x:2x2x1
jax: 0.10.0
libtpu: 0.0.40
codegen_flags: <defaults>
</compile_context>

<pallas_src>
import functools

import jax
import jax.numpy as jnp
from jax import lax
from jax.experimental import pallas as pl
from jax.experimental.pallas import tpu as pltpu


def _round_up(a, b):
    return (a + b - 1) // b * b


# ----------------------------------------------------------------------------
# Pallas kernel: in-VMEM im2col -> 3x3 conv -> SiLU -> fused 1x1 convs
# (+ per-channel sigmoid) for ALL six heads, on one block of flattened rows.
# ----------------------------------------------------------------------------
def _fused_heads_kernel(xcur_ref, xnxt_ref, w3_ref, b3_ref, w1_ref, b1_ref,
                        sigmask_ref, o_ref, *, offsets):
    # xcur_ref   : (1, TM, Cin)   rows [m*TM, (m+1)*TM) of the padded, flattened x
    # xnxt_ref   : (1, TM, Cin)   rows [(m+1)*TM, (m+2)*TM)  (halo source)
    # w3_ref     : (9*Cin, Cmid)  fused 3x3 weights      (compute dtype)
    # b3_ref     : (1, Cmid)      f32
    # w1_ref     : (Cmid, Cpad)   block-diag 1x1 weights (compute dtype)
    # b1_ref     : (1, Cpad)      f32 (zero on padded channels)
    # sigmask_ref: (1, Cpad)      f32, 1.0 where sigmoid is applied
    # o_ref      : (1, TM, Cpad)
    tm = xcur_ref.shape[1]

    # Current block + following block => every tap (row offset <= 2*(W+2)+2 <= TM)
    # is a STATIC slice of this buffer.  This replaces the 9x-expanded HBM im2col.
    rows = jnp.concatenate([xcur_ref[0], xnxt_ref[0]], axis=0)       # (2*TM, Cin)

    # Build the (TM, 9*Cin) tap buffer in VMEM: 9 row-shifted views, lane-concat.
    taps = jnp.concatenate(
        [lax.slice_in_dim(rows, off, off + tm, axis=0) for off in offsets],
        axis=-1)                                                     # (TM, 9*Cin)

    # 3x3 conv for all heads: ONE K=576 matmul, f32 accumulation on the MXU.
    z = jnp.dot(taps, w3_ref[...], preferred_element_type=jnp.float32)
    z = z + b3_ref[...]                                              # (TM, Cmid)

    # SiLU (sigmoid on EUP, mul on VPU).
    act = (z * jax.nn.sigmoid(z)).astype(w1_ref.dtype)

    # All six 1x1 convs at once (block-diagonal, zero-padded to Cpad lanes).
    out = jnp.dot(act, w1_ref[...], preferred_element_type=jnp.float32)
    out = out + b1_ref[...]                                          # (TM, Cpad)

    # Heatmap / keypoint-heatmap channels get a sigmoid; others pass through.
    out = jnp.where(sigmask_ref[...] > 0.5, jax.nn.sigmoid(out), out)

    o_ref[0] = out.astype(o_ref.dtype)


def fused_heads_pallas(x_nhwc, fused, *, row_block=512,
                       compute_dtype=jnp.bfloat16, out_dtype=jnp.float32):
    """x_nhwc: (N, H, W, Cin). fused: dict of fused/stacked weights.

    Returns (N, H, W, Cpad) packed head outputs (real channels first).
    """
    N, H, W, Cin = x_nhwc.shape
    w3 = fused["w3"]                        # (9*Cin, Cmid)
    b3 = fused["b3"]                        # (1, Cmid) f32
    w1 = fused["w1"]                        # (Cmid, Cpad)
    b1 = fused["b1"]                        # (1, Cpad) f32
    sigmask = fused["sigmask"]              # (1, Cpad) f32
    K9, Cmid = w3.shape
    Cpad = w1.shape[1]
    assert K9 == 9 * Cin

    # We compute the conv over the flattened PADDED grid: one output row per
    # (h, w') with w' in [0, W+2); the 2 trailing columns per image row are
    # wrap-around garbage and are dropped by the wrapper.  This makes every tap
    # a constant row shift of the flattened input (off = dy*(W+2) + dx).
    Wp = W + 2
    M_out = H * Wp                              # rows actually computed
    halo = 2 * Wp + 2                           # largest tap row offset
    tm = _round_up(max(halo, min(row_block, M_out)), 256)
    M_pad = _round_up(M_out, tm)                # >= 1 full block, no tm=HW fallback
    P_x = M_pad + tm                            # always a full "next" block in bounds

    # 1x HBM footprint: cast to compute dtype FIRST, pad by one pixel, flatten.
    xc = x_nhwc.astype(compute_dtype)
    xp = jnp.pad(xc, ((0, 0), (1, 1), (1, 1), (0, 0)))      # (N, H+2, W+2, Cin)
    xflat = xp.reshape(N, (H + 2) * Wp, Cin)
    xflat = jnp.pad(xflat, ((0, 0), (0, P_x - (H + 2) * Wp), (0, 0)))

    offsets = tuple(dy * Wp + dx for dy in range(3) for dx in range(3))

    w3c = w3.astype(compute_dtype)
    w1c = w1.astype(compute_dtype)

    kernel = functools.partial(_fused_heads_kernel, offsets=offsets)
    grid = (N, M_pad // tm)

    cdt = jnp.dtype(compute_dtype).itemsize
    cost = pl.CostEstimate(
        flops=2 * N * M_pad * (K9 * Cmid + Cmid * Cpad),
        transcendentals=N * M_pad * (Cmid + Cpad),
        bytes_accessed=(2 * N * P_x * Cin * cdt            # x read twice (cur + halo)
                        + int(w3c.size) * cdt + int(w1c.size) * cdt
                        + N * M_pad * Cpad * jnp.dtype(out_dtype).itemsize),
    )

    out = pl.pallas_call(
        kernel,
        out_shape=jax.ShapeDtypeStruct((N, M_pad, Cpad), out_dtype),
        grid_spec=pltpu.PrefetchScalarGridSpec(
            num_scalar_prefetch=0,
            grid=grid,
            in_specs=[
                pl.BlockSpec((1, tm, Cin), lambda n, m: (n, m, 0)),      # current rows
                pl.BlockSpec((1, tm, Cin), lambda n, m: (n, m + 1, 0)),  # halo rows
                pl.BlockSpec((K9, Cmid), lambda n, m: (0, 0)),
                pl.BlockSpec((1, Cmid), lambda n, m: (0, 0)),
                pl.BlockSpec((Cmid, Cpad), lambda n, m: (0, 0)),
                pl.BlockSpec((1, Cpad), lambda n, m: (0, 0)),
                pl.BlockSpec((1, Cpad), lambda n, m: (0, 0)),
            ],
            out_specs=pl.BlockSpec((1, tm, Cpad), lambda n, m: (n, m, 0)),
        ),
        compiler_params=pltpu.CompilerParams(
            dimension_semantics=("parallel", "parallel")),
        cost_estimate=cost,
    )(xflat, xflat, w3c, b3, w1c, b1, sigmask)

    # Drop padded rows, drop the 2 wrap columns: single trim of the packed buffer.
    out = out[:, :M_out, :].reshape(N, H, Wp, Cpad)[:, :, :W, :]
    return out


# ----------------------------------------------------------------------------
# CenterNetHead: per-head parameters, fusion, forward.
# ----------------------------------------------------------------------------
def make_head_specs(num_classes, num_keypoints):
    # (output name, param name, out_channels, apply_sigmoid)
    return (
        ("heatmaps", "heatmap_head", num_classes, True),
        ("whs", "wh_head", 2, False),
        ("offsets", "offset_head", 2, False),
        ("xy_keypoints", "xy_keypoints_head", 2 * num_keypoints, False),
        ("heatmaps_keypoints", "heatmaps_keypoints_head", num_keypoints, True),
        ("offsets_keypoints", "offsets_keypoints_head", 2, False),
    )


def init_single_head(key, in_channels, out_channels, dtype=jnp.float32):
    k1, k2, k3, k4 = jax.random.split(key, 4)
    s3 = 1.0 / (in_channels * 9) ** 0.5
    s1 = 1.0 / in_channels ** 0.5
    return {
        "w3": jax.random.normal(k1, (3, 3, in_channels, in_channels), dtype) * s3,
        "b3": jax.random.normal(k2, (in_channels,), dtype) * s3,
        "w1": jax.random.normal(k3, (in_channels, out_channels), dtype) * s1,
        "b1": jax.random.normal(k4, (out_channels,), dtype) * s1,
    }


def init_centernet_head(key, in_channels, head_specs):
    keys = jax.random.split(key, len(head_specs))
    return {pname: init_single_head(k, in_channels, cout)
            for (_, pname, cout, _), k in zip(head_specs, keys)}


def fuse_centernet_params(params, head_specs, in_channels):
    """Fuse the six SingleHeads into one weight set for the fused kernel."""
    n_heads = len(head_specs)
    cmid = n_heads * in_channels
    ctot = sum(cout for (_, _, cout, _) in head_specs)
    cpad = ((ctot + 127) // 128) * 128          # lane-dense output channels

    w3 = jnp.concatenate([params[p]["w3"] for (_, p, _, _) in head_specs],
                         axis=-1)               # (3,3,Cin,Cmid)
    b3 = jnp.concatenate([params[p]["b3"] for (_, p, _, _) in head_specs],
                         axis=-1)               # (Cmid,)
    w3 = w3.reshape(9 * in_channels, cmid)      # tap-major rows, matches in-kernel im2col

    w1 = jnp.zeros((cmid, cpad), jnp.float32)   # block-diagonal
    b1 = jnp.zeros((cpad,), jnp.float32)
    sigmask = jnp.zeros((cpad,), jnp.float32)
    layout = []
    col = 0
    for i, (name, pname, cout, do_sig) in enumerate(head_specs):
        r0 = i * in_channels
        w1 = w1.at[r0:r0 + in_channels, col:col + cout].set(params[pname]["w1"])
        b1 = b1.at[col:col + cout].set(params[pname]["b1"])
        if do_sig:
            sigmask = sigmask.at[col:col + cout].set(1.0)
        layout.append((name, col, col + cout))
        col += cout

    fused = {
        "w3": w3.astype(jnp.float32),
        "b3": b3.reshape(1, cmid).astype(jnp.float32),
        "w1": w1,
        "b1": b1.reshape(1, cpad),
        "sigmask": sigmask.reshape(1, cpad),
    }
    return fused, tuple(layout)


def centernet_head_forward(fused, x_nhwc, *, layout, row_block=512,
                           compute_dtype=jnp.bfloat16, out_dtype=jnp.float32):
    out = fused_heads_pallas(x_nhwc, fused, row_block=row_block,
                             compute_dtype=compute_dtype, out_dtype=out_dtype)
    # Single packed (N, H, W, Cpad) buffer -> per-head channel slices (XLA fuses
    # these into one read of the packed result).
    return {name: out[..., c0:c1] for name, c0, c1 in layout}


# ----------------------------------------------------------------------------
# Pure-JAX reference (for correctness check), matching the compute dtype.
# ----------------------------------------------------------------------------
def _ref_single_head(x, p, apply_sigmoid, compute_dtype):
    cd = compute_dtype
    y = jax.lax.conv_general_dilated(
        x.astype(cd), p["w3"].astype(cd), window_strides=(1, 1), padding="SAME",
        dimension_numbers=("NHWC", "HWIO", "NHWC"),
        preferred_element_type=jnp.float32) + p["b3"]
    y = y * jax.nn.sigmoid(y)
    y = jnp.einsum("nhwc,co->nhwo", y.astype(cd), p["w1"].astype(cd),
                   preferred_element_type=jnp.float32) + p["b1"]
    return jax.nn.sigmoid(y) if apply_sigmoid else y


def _ref_forward(params, x, head_specs, compute_dtype):
    return {name: _ref_single_head(x, params[pname], do_sig, compute_dtype)
            for (name, pname, _, do_sig) in head_specs}


# ----------------------------------------------------------------------------
if __name__ == "__main__":
    # DECONV_CHANNEL[-1] must equal 64 (other heads hardcode in_channels=64),
    # NUM_CLASSES=4, NUM_KEYPOINTS=3.
    N, C, H, W = 2, 64, 16, 16
    NUM_CLASSES, NUM_KEYPOINTS = 4, 3

    key = jax.random.PRNGKey(0)
    kx, kp = jax.random.split(key)

    # PyTorch forward takes NCHW; we work in NHWC (see layout note above).
    x_nchw = jax.random.normal(kx, (N, C, H, W), jnp.float32)
    x_nhwc = jnp.transpose(x_nchw, (0, 2, 3, 1))

    head_specs = make_head_specs(NUM_CLASSES, NUM_KEYPOINTS)
    params = init_centernet_head(kp, C, head_specs)
    fused, layout = fuse_centernet_params(params, head_specs, C)

    # f32 (strict) and bf16 (default; f32-accumulated) compute paths.
    for cd, tol in ((jnp.float32, 1e-3), (jnp.bfloat16, 2e-2)):
        fwd = jax.jit(functools.partial(
            centernet_head_forward, layout=layout, compute_dtype=cd))
        preds = jax.block_until_ready(fwd(fused, x_nhwc))
        ref = jax.block_until_ready(_ref_forward(params, x_nhwc, head_specs, cd))
        for name, _, _ in layout:
            assert preds[name].shape == ref[name].shape, (
                name, preds[name].shape, ref[name].shape)
            err = float(jnp.max(jnp.abs(preds[name] - ref[name])))
            assert err < tol, (
                f"{name} [{jnp.dtype(cd).name}]: max abs err {err}")

    print("KERNEL_OK")
</pallas_src>

<mosaic_0001>
module attributes {stable_mosaic.version = 11 : i64} {
  func.func @_fused_heads_kernel(%arg0: i32, %arg1: i32, %arg2: memref<1x512x64xf32, #tpu.memory_space<vmem>>, %arg3: memref<1x512x64xf32, #tpu.memory_space<vmem>>, %arg4: memref<576x384xf32, #tpu.memory_space<vmem>>, %arg5: memref<1x384xf32, #tpu.memory_space<vmem>>, %arg6: memref<384x128xf32, #tpu.memory_space<vmem>>, %arg7: memref<1x128xf32, #tpu.memory_space<vmem>>, %arg8: memref<1x128xf32, #tpu.memory_space<vmem>>, %arg9: memref<1x512x128xf32, #tpu.memory_space<vmem>>) attributes {dimension_semantics = [#tpu.dimension_semantics<parallel>, #tpu.dimension_semantics<parallel>], iteration_bounds = array<i64: 2, 1>, scalar_prefetch = 0 : i64, scratch_operands = 0 : i64, tpu.core_type = #tpu.core_type<tc>, window_params = [{transform_indices = @transform_0, window_bounds = array<i64: 1, 512, 64>}, {transform_indices = @transform_1, window_bounds = array<i64: 1, 512, 64>}, {pipeline_mode = #tpu.pipeline_mode<synchronous>, transform_indices = @transform_2, window_bounds = array<i64: 576, 384>}, {pipeline_mode = #tpu.pipeline_mode<synchronous>, transform_indices = @transform_3, window_bounds = array<i64: 1, 384>}, {pipeline_mode = #tpu.pipeline_mode<synchronous>, transform_indices = @transform_4, window_bounds = array<i64: 384, 128>}, {pipeline_mode = #tpu.pipeline_mode<synchronous>, transform_indices = @transform_5, window_bounds = array<i64: 1, 128>}, {pipeline_mode = #tpu.pipeline_mode<synchronous>, transform_indices = @transform_6, window_bounds = array<i64: 1, 128>}, {transform_indices = @transform_7, window_bounds = array<i64: 1, 512, 128>}]} {
    %c0 = arith.constant 0 : index
    %c0_0 = arith.constant 0 : index
    %c0_1 = arith.constant 0 : index
    %0 = vector.load %arg2[%c0, %c0_0, %c0_1] : memref<1x512x64xf32, #tpu.memory_space<vmem>>, vector<1x512x64xf32>
    %1 = vector.shape_cast %0 : vector<1x512x64xf32> to vector<512x64xf32>
    %c0_2 = arith.constant 0 : index
    %c0_3 = arith.constant 0 : index
    %c0_4 = arith.constant 0 : index
    %2 = vector.load %arg3[%c0_2, %c0_3, %c0_4] : memref<1x512x64xf32, #tpu.memory_space<vmem>>, vector<1x512x64xf32>
    %3 = vector.shape_cast %2 : vector<1x512x64xf32> to vector<512x64xf32>
    %4 = tpu.concatenate %1, %3 in 0 : vector<512x64xf32>, vector<512x64xf32> -> vector<1024x64xf32>
    %5 = vector.extract_strided_slice %4 {offsets = [0, 0], sizes = [512, 64], strides = [1, 1]} : vector<1024x64xf32> to vector<512x64xf32>
    %6 = vector.extract_strided_slice %4 {offsets = [1, 0], sizes = [512, 64], strides = [1, 1]} : vector<1024x64xf32> to vector<512x64xf32>
    %7 = vector.extract_strided_slice %4 {offsets = [2, 0], sizes = [512, 64], strides = [1, 1]} : vector<1024x64xf32> to vector<512x64xf32>
    %8 = vector.extract_strided_slice %4 {offsets = [18, 0], sizes = [512, 64], strides = [1, 1]} : vector<1024x64xf32> to vector<512x64xf32>
    %9 = vector.extract_strided_slice %4 {offsets = [19, 0], sizes = [512, 64], strides = [1, 1]} : vector<1024x64xf32> to vector<512x64xf32>
    %10 = vector.extract_strided_slice %4 {offsets = [20, 0], sizes = [512, 64], strides = [1, 1]} : vector<1024x64xf32> to vector<512x64xf32>
    %11 = vector.extract_strided_slice %4 {offsets = [36, 0], sizes = [512, 64], strides = [1, 1]} : vector<1024x64xf32> to vector<512x64xf32>
    %12 = vector.extract_strided_slice %4 {offsets = [37, 0], sizes = [512, 64], strides = [1, 1]} : vector<1024x64xf32> to vector<512x64xf32>
    %13 = vector.extract_strided_slice %4 {offsets = [38, 0], sizes = [512, 64], strides = [1, 1]} : vector<1024x64xf32> to vector<512x64xf32>
    %14 = tpu.concatenate %5, %6, %7, %8, %9, %10, %11, %12, %13 in 1 : vector<512x64xf32>, vector<512x64xf32>, vector<512x64xf32>, vector<512x64xf32>, vector<512x64xf32>, vector<512x64xf32>, vector<512x64xf32>, vector<512x64xf32>, vector<512x64xf32> -> vector<512x576xf32>
    %c0_5 = arith.constant 0 : index
    %c0_6 = arith.constant 0 : index
    %15 = vector.load %arg4[%c0_5, %c0_6] : memref<576x384xf32, #tpu.memory_space<vmem>>, vector<576x384xf32>
    %cst = arith.constant dense<0.000000e+00> : vector<512x384xf32>
    %16 = tpu.matmul %14, %15, %cst {dimension_numbers = #tpu.dot_dimension_numbers<[1], [0], [0], [1], [0, 0, 1, 1], [], []>} : vector<512x576xf32>, vector<576x384xf32>, vector<512x384xf32> -> vector<512x384xf32>
    %c0_7 = arith.constant 0 : index
    %c0_8 = arith.constant 0 : index
    %17 = vector.load %arg5[%c0_7, %c0_8] : memref<1x384xf32, #tpu.memory_space<vmem>>, vector<1x384xf32>
    %18 = vector.broadcast %17 : vector<1x384xf32> to vector<512x384xf32>
    %19 = arith.addf %16, %18 : vector<512x384xf32>
    %20 = arith.negf %19 : vector<512x384xf32>
    %21 = math.exp %20 : vector<512x384xf32>
    %cst_9 = arith.constant 1.000000e+00 : f32
    %22 = vector.broadcast %cst_9 : f32 to vector<512x384xf32>
    %23 = arith.addf %22, %21 : vector<512x384xf32>
    %24 = arith.divf %22, %23 : vector<512x384xf32>
    %25 = arith.mulf %19, %24 : vector<512x384xf32>
    %c0_10 = arith.constant 0 : index
    %c0_11 = arith.constant 0 : index
    %26 = vector.load %arg6[%c0_10, %c0_11] : memref<384x128xf32, #tpu.memory_space<vmem>>, vector<384x128xf32>
    %cst_12 = arith.constant dense<0.000000e+00> : vector<512x128xf32>
    %27 = tpu.matmul %25, %26, %cst_12 {dimension_numbers = #tpu.dot_dimension_numbers<[1], [0], [0], [1], [0, 0, 1, 1], [], []>} : vector<512x384xf32>, vector<384x128xf32>, vector<512x128xf32> -> vector<512x128xf32>
    %c0_13 = arith.constant 0 : index
    %c0_14 = arith.constant 0 : index
    %28 = vector.load %arg7[%c0_13, %c0_14] : memref<1x128xf32, #tpu.memory_space<vmem>>, vector<1x128xf32>
    %29 = vector.broadcast %28 : vector<1x128xf32> to vector<512x128xf32>
    %30 = arith.addf %27, %29 : vector<512x128xf32>
    %c0_15 = arith.constant 0 : index
    %c0_16 = arith.constant 0 : index
    %31 = vector.load %arg8[%c0_15, %c0_16] : memref<1x128xf32, #tpu.memory_space<vmem>>, vector<1x128xf32>
    %cst_17 = arith.constant 5.000000e-01 : f32
    %32 = vector.broadcast %cst_17 : f32 to vector<1x128xf32>
    %33 = arith.cmpf ogt, %31, %32 : vector<1x128xf32>
    %34 = arith.negf %30 : vector<512x128xf32>
    %35 = math.exp %34 : vector<512x128xf32>
    %cst_18 = arith.constant 1.000000e+00 : f32
    %36 = vector.broadcast %cst_18 : f32 to vector<512x128xf32>
    %37 = arith.addf %36, %35 : vector<512x128xf32>
    %38 = arith.divf %36, %37 : vector<512x128xf32>
    %39 = vector.shape_cast %33 : vector<1x128xi1> to vector<1x128xi1>
    %40 = vector.broadcast %39 : vector<1x128xi1> to vector<512x128xi1>
    %41 = arith.select %40, %38, %30 : vector<512x128xi1>, vector<512x128xf32>
    %c0_19 = arith.constant 0 : index
    %c0_20 = arith.constant 0 : index
    %c0_21 = arith.constant 0 : index
    %42 = vector.load %arg9[%c0_19, %c0_20, %c0_21] : memref<1x512x128xf32, #tpu.memory_space<vmem>>, vector<1x512x128xf32>
    %43 = vector.shape_cast %42 : vector<1x512x128xf32> to vector<512x128xf32>
    %44 = vector.shape_cast %41 : vector<512x128xf32> to vector<1x512x128xf32>
    tpu.vector_store %arg9[%c0_19, %c0_20, %c0_21], %44 {strides = array<i32>} : memref<1x512x128xf32, #tpu.memory_space<vmem>>, vector<1x512x128xf32>,
    return
  }
  func.func @transform_0(%arg0: i32, %arg1: i32) -> (i32, i32, i32) {
    %c0_i32 = arith.constant 0 : i32
    %c0_i32_0 = arith.constant 0 : i32
    return %arg0, %arg1, %c0_i32 : i32, i32, i32
  }
  func.func @transform_1(%arg0: i32, %arg1: i32) -> (i32, i32, i32) {
    %c1_i32 = arith.constant 1 : i32
    %0 = arith.addi %arg1, %c1_i32 : i32
    %c0_i32 = arith.constant 0 : i32
    %c0_i32_0 = arith.constant 0 : i32
    return %arg0, %0, %c0_i32 : i32, i32, i32
  }
  func.func @transform_2(%arg0: i32, %arg1: i32) -> (i32, i32) {
    %c0_i32 = arith.constant 0 : i32
    %c0_i32_0 = arith.constant 0 : i32
    %c0_i32_1 = arith.constant 0 : i32
    return %c0_i32, %c0_i32_0 : i32, i32
  }
  func.func @transform_3(%arg0: i32, %arg1: i32) -> (i32, i32) {
    %c0_i32 = arith.constant 0 : i32
    %c0_i32_0 = arith.constant 0 : i32
    %c0_i32_1 = arith.constant 0 : i32
    return %c0_i32, %c0_i32_0 : i32, i32
  }
  func.func @transform_4(%arg0: i32, %arg1: i32) -> (i32, i32) {
    %c0_i32 = arith.constant 0 : i32
    %c0_i32_0 = arith.constant 0 : i32
    %c0_i32_1 = arith.constant 0 : i32
    return %c0_i32, %c0_i32_0 : i32, i32
  }
  func.func @transform_5(%arg0: i32, %arg1: i32) -> (i32, i32) {
    %c0_i32 = arith.constant 0 : i32
    %c0_i32_0 = arith.constant 0 : i32
    %c0_i32_1 = arith.constant 0 : i32
    return %c0_i32, %c0_i32_0 : i32, i32
  }
  func.func @transform_6(%arg0: i32, %arg1: i32) -> (i32, i32) {
    %c0_i32 = arith.constant 0 : i32
    %c0_i32_0 = arith.constant 0 : i32
    %c0_i32_1 = arith.constant 0 : i32
    return %c0_i32, %c0_i32_0 : i32, i32
  }
  func.func @transform_7(%arg0: i32, %arg1: i32) -> (i32, i32, i32) {
    %c0_i32 = arith.constant 0 : i32
    %c0_i32_0 = arith.constant 0 : i32
    return %arg0, %arg1, %c0_i32 : i32, i32, i32
  }
}

</mosaic_0001>

<llo_original>
// kernel: centernet_head_forward.1
$region0: #{centernet_head_forward.1}
  #allocation0 [shape = 'u32[]', space=smem, size = 0x4, offset = 0x4, fixed_abs, tag = 'smem constant byte address 0x4 - core index']
  #allocation1 [shape = 'u32[144,128]{1,0:T(1,128)}', space=vmem, size = 0x12000, scoped, tag = 'internal scratch']
  %s0 = inlined_call_operand.vmem [shape: f32[2,1024,64], index: 0, kind: input, shape index: {}, may-alias: {0,1}]
  %s1 = inlined_call_operand.vmem [shape: f32[2,1024,64], index: 1, kind: input, shape index: {}, may-alias: {0,1}]
  %s2 = inlined_call_operand.vmem [shape: f32[576,384], index: 2, kind: input, shape index: {}]
  %s3 = inlined_call_operand.vmem [shape: f32[1,384], index: 3, kind: input, shape index: {}]
  %s4 = inlined_call_operand.vmem [shape: f32[384,128], index: 4, kind: input, shape index: {}]
  %s5 = inlined_call_operand.vmem [shape: f32[1,128], index: 5, kind: input, shape index: {}]
  %s6 = inlined_call_operand.vmem [shape: f32[1,128], index: 6, kind: input, shape index: {}]
  %s7 = inlined_call_operand.vmem [shape: f32[2,512,128], index: 7, kind: output, shape index: {}]
  %s8 = sld [smem:[#allocation0]]
  $region61: #{centernet_head_forward.1} parent=0
    _
  %s10 = ssub.s32 1, %s8
  %s11 = scalar_select 0, %s10, %s8
  loop: start=0, step=1, limit=4
  $region2: #{centernet_head_forward.1} parent=0 // loop_pre_header
    _
  $region3: #{centernet_head_forward.1} parent=0 // loop_header
    %s13 = sphi 0, %s17
    %p14 = scmp.ge.s32.totalorder %s13, 4
    %s20 = sphi 0, %s32
    %s21 = sphi 0, %s28
    %s22 = sphi 0, %s20
    %s23 = sphi 0, %s21
    %s24 = sphi 0, %s22
    %s25 = sphi 0, %s23
    %s37 = sphi 0, %s39
    %s40 = sphi 0, %s37
    %s41 = sphi 0, %s40
    %s57 = sphi 0, %s41
    %s67 = sphi 0, %s69
    %s70 = sphi 0, %s67
    %s71 = sphi 0, %s70
    %s87 = sphi 0, %s71
    %s91 = sphi 0, %s91
    %s93 = sphi 0, %s91
    %s94 = sphi 0, %s93
    %s108 = sphi 0, %s94
    %s112 = sphi 0, %s112
    %s114 = sphi 0, %s112
    %s115 = sphi 0, %s114
    %s129 = sphi 0, %s115
    %s133 = sphi 0, %s133
    %s135 = sphi 0, %s133
    %s136 = sphi 0, %s135
    %s150 = sphi 0, %s136
    %s154 = sphi 0, %s154
    %s156 = sphi 0, %s154
    %s157 = sphi 0, %s156
    %s171 = sphi 0, %s157
    %s175 = sphi 0, %s175
    %s177 = sphi 0, %s175
    %s178 = sphi 0, %s177
    %s192 = sphi 0, %s178
    %s200 = sphi 0, %s202
    %s203 = sphi 0, %s200
    %s204 = sphi 0, %s203
    %s220 = sphi 0, %s204
  $region4: #{centernet_head_forward.1} parent=0 // loop_header_branch
    %16 = sbr.rel (%p14) target = $region8
  $region5: #{centernet_head_forward.1} parent=0 // loop_body
    %s18 = ssub.s32 %s13, 1
    %s19 = ssub.s32 %s13, 2
    %s26 = sadd.s32 1, %s21
    %p27 = scmp.ge.s32.totalorder %s26, 1
    %s28 = scalar_select %p27, 0, %s26
    %s29 = sadd.s32 1, %s20
    %s30 = scalar_select %p27, %s29, %s20
    %p31 = scmp.ge.s32.totalorder %s30, 2
    %s32 = scalar_select %p31, 0, %s30
    %s33 = ssub.s32 %s20, %s32
    %s34 = ssub.s32 %s21, %s28
    %s35 = sor.u32 %s33, %s34
    %p36 = scmp.eq.s32.totalorder %s35, 0
    %s38 = sadd.s32 %s37, 1
    %s39 = scalar_select %p36, %s37, %s38
    %p42 = pneg %p36
    %p43 = scmp.eq.s32.totalorder %s13, 1
    %p44 = por %p42, %p43
    %p45 = scmp.ne.s32.totalorder %s37, %s40
    %p46 = scmp.eq.s32.totalorder %s13, 0
    %p47 = por %p45, %p46
    %p48 = scmp.ne.s32.totalorder %s37, %s40
    %p49 = scmp.eq.s32.totalorder %s18, 1
    %p50 = por %p48, %p49
    %p51 = scmp.ne.s32.totalorder %s40, %s41
    %p52 = scmp.eq.s32.totalorder %s18, 0
    %p53 = por %p51, %p52
    %p54 = scmp.ne.s32.totalorder %s40, %s41
    %p55 = scmp.eq.s32.totalorder %s19, 1
    %p56 = por %p54, %p55
    %p58 = scmp.ne.s32.totalorder %s41, %s57
    %p59 = scmp.eq.s32.totalorder %s19, 0
    %p60 = por %p58, %p59
    %s61 = sadd.s32 %s21, 1
    %s62 = sadd.s32 %s28, 1
    %s63 = ssub.s32 %s20, %s32
    %s64 = ssub.s32 %s61, %s62
    %s65 = sor.u32 %s63, %s64
    %p66 = scmp.eq.s32.totalorder %s65, 0
    %s68 = sadd.s32 %s67, 1
    %s69 = scalar_select %p66, %s67, %s68
    %p72 = pneg %p66
    %p73 = scmp.eq.s32.totalorder %s13, 1
    %p74 = por %p72, %p73
    %p75 = scmp.ne.s32.totalorder %s67, %s70
    %p76 = scmp.eq.s32.totalorder %s13, 0
    %p77 = por %p75, %p76
    %p78 = scmp.ne.s32.totalorder %s67, %s70
    %p79 = scmp.eq.s32.totalorder %s18, 1
    %p80 = por %p78, %p79
    %p81 = scmp.ne.s32.totalorder %s70, %s71
    %p82 = scmp.eq.s32.totalorder %s18, 0
    %p83 = por %p81, %p82
    %p84 = scmp.ne.s32.totalorder %s70, %s71
    %p85 = scmp.eq.s32.totalorder %s19, 1
    %p86 = por %p84, %p85
    %p88 = scmp.ne.s32.totalorder %s71, %s87
    %p89 = scmp.eq.s32.totalorder %s19, 0
    %p90 = por %p88, %p89
    %s92 = sadd.s32 %s91, 1
    %p95 = scmp.eq.s32.totalorder %s13, 1
    %p96 = scmp.ne.s32.totalorder %s91, %s93
    %p97 = scmp.eq.s32.totalorder %s13, 0
    %p98 = por %p96, %p97
    %p99 = scmp.ne.s32.totalorder %s91, %s93
    %p100 = scmp.eq.s32.totalorder %s18, 1
    %p101 = por %p99, %p100
    %p102 = scmp.ne.s32.totalorder %s93, %s94
    %p103 = scmp.eq.s32.totalorder %s18, 0
    %p104 = por %p102, %p103
    %p105 = scmp.ne.s32.totalorder %s93, %s94
    %p106 = scmp.eq.s32.totalorder %s19, 1
    %p107 = por %p105, %p106
    %p109 = scmp.ne.s32.totalorder %s94, %s108
    %p110 = scmp.eq.s32.totalorder %s19, 0
    %p111 = por %p109, %p110
    %s113 = sadd.s32 %s112, 1
    %p116 = scmp.eq.s32.totalorder %s13, 1
    %p117 = scmp.ne.s32.totalorder %s112, %s114
    %p118 = scmp.eq.s32.totalorder %s13, 0
    %p119 = por %p117, %p118
    %p120 = scmp.ne.s32.totalorder %s112, %s114
    %p121 = scmp.eq.s32.totalorder %s18, 1
    %p122 = por %p120, %p121
    %p123 = scmp.ne.s32.totalorder %s114, %s115
    %p124 = scmp.eq.s32.totalorder %s18, 0
    %p125 = por %p123, %p124
    %p126 = scmp.ne.s32.totalorder %s114, %s115
    %p127 = scmp.eq.s32.totalorder %s19, 1
    %p128 = por %p126, %p127
    %p130 = scmp.ne.s32.totalorder %s115, %s129
    %p131 = scmp.eq.s32.totalorder %s19, 0
    %p132 = por %p130, %p131
    %s134 = sadd.s32 %s133, 1
    %p137 = scmp.eq.s32.totalorder %s13, 1
    %p138 = scmp.ne.s32.totalorder %s133, %s135
    %p139 = scmp.eq.s32.totalorder %s13, 0
    %p140 = por %p138, %p139
    %p141 = scmp.ne.s32.totalorder %s133, %s135
    %p142 = scmp.eq.s32.totalorder %s18, 1
    %p143 = por %p141, %p142
    %p144 = scmp.ne.s32.totalorder %s135, %s136
    %p145 = scmp.eq.s32.totalorder %s18, 0
    %p146 = por %p144, %p145
    %p147 = scmp.ne.s32.totalorder %s135, %s136
    %p148 = scmp.eq.s32.totalorder %s19, 1
    %p149 = por %p147, %p148
    %p151 = scmp.ne.s32.totalorder %s136, %s150
    %p152 = scmp.eq.s32.totalorder %s19, 0
    %p153 = por %p151, %p152
    %s155 = sadd.s32 %s154, 1
    %p158 = scmp.eq.s32.totalorder %s13, 1
    %p159 = scmp.ne.s32.totalorder %s154, %s156
    %p160 = scmp.eq.s32.totalorder %s13, 0
    %p161 = por %p159, %p160
    %p162 = scmp.ne.s32.totalorder %s154, %s156
    %p163 = scmp.eq.s32.totalorder %s18, 1
    %p164 = por %p162, %p163
    %p165 = scmp.ne.s32.totalorder %s156, %s157
    %p166 = scmp.eq.s32.totalorder %s18, 0
    %p167 = por %p165, %p166
    %p168 = scmp.ne.s32.totalorder %s156, %s157
    %p169 = scmp.eq.s32.totalorder %s19, 1
    %p170 = por %p168, %p169
    %p172 = scmp.ne.s32.totalorder %s157, %s171
    %p173 = scmp.eq.s32.totalorder %s19, 0
    %p174 = por %p172, %p173
    %s176 = sadd.s32 %s175, 1
    %p179 = scmp.eq.s32.totalorder %s13, 1
    %p180 = scmp.ne.s32.totalorder %s175, %s177
    %p181 = scmp.eq.s32.totalorder %s13, 0
    %p182 = por %p180, %p181
    %p183 = scmp.ne.s32.totalorder %s175, %s177
    %p184 = scmp.eq.s32.totalorder %s18, 1
    %p185 = por %p183, %p184
    %p186 = scmp.ne.s32.totalorder %s177, %s178
    %p187 = scmp.eq.s32.totalorder %s18, 0
    %p188 = por %p186, %p187
    %p189 = scmp.ne.s32.totalorder %s177, %s178
    %p190 = scmp.eq.s32.totalorder %s19, 1
    %p191 = por %p189, %p190
    %p193 = scmp.ne.s32.totalorder %s178, %s192
    %p194 = scmp.eq.s32.totalorder %s19, 0
    %p195 = por %p193, %p194
    %s196 = ssub.s32 %s20, %s32
    %s197 = ssub.s32 %s21, %s28
    %s198 = sor.u32 %s196, %s197
    %p199 = scmp.eq.s32.totalorder %s198, 0
    %s201 = sadd.s32 %s200, 1
    %s202 = scalar_select %p199, %s200, %s201
    %p205 = pneg %p199
    %p206 = scmp.eq.s32.totalorder %s13, 1
    %p207 = por %p205, %p206
    %p208 = scmp.ne.s32.totalorder %s200, %s203
    %p209 = scmp.eq.s32.totalorder %s13, 0
    %p210 = por %p208, %p209
    %p211 = scmp.ne.s32.totalorder %s200, %s203
    %p212 = scmp.eq.s32.totalorder %s18, 1
    %p213 = por %p211, %p212
    %p214 = scmp.ne.s32.totalorder %s203, %s204
    %p215 = scmp.eq.s32.totalorder %s18, 0
    %p216 = por %p214, %p215
    %p217 = scmp.ne.s32.totalorder %s203, %s204
    %p218 = scmp.eq.s32.totalorder %s19, 1
    %p219 = por %p217, %p218
    %p221 = scmp.ne.s32.totalorder %s204, %s220
    %p222 = scmp.eq.s32.totalorder %s19, 0
    %p223 = por %p221, %p222
    %p224 = scmp.le.s32.totalorder 1, %s13
    %p225 = scmp.lt.s32.totalorder %s13, 3
    %p226 = pnand %p224, %p225
    %p227 = pneg %p226
    // Predicated region
    $region9: #{centernet_head_forward.1} parent=5 // pred_check
      _
    $region10: #{centernet_head_forward.1} parent=5 // pred_check_branch
      %229 = sbr.rel (%p226) target = $region12
    $region11: #{centernet_head_forward.1} parent=5 // pred_region
      %s230 = ssub.s32 %s13, 1
      // Predicated region
      $region13: #{centernet_head_forward.1} parent=11 // pred_check
        %p231 = pneg %p104
      $region14: #{centernet_head_forward.1} parent=11 // pred_check_branch
        %233 = sbr.rel (%p231) target = $region16
      $region15: #{centernet_head_forward.1} parent=11 // pred_region
        _
      $region16: #{centernet_head_forward.1} parent=11 // pred_fallthru
        _
      // Predicated region
      $region17: #{centernet_head_forward.1} parent=11 // pred_check
        %p234 = pneg %p125
      $region18: #{centernet_head_forward.1} parent=11 // pred_check_branch
        %236 = sbr.rel (%p234) target = $region20
      $region19: #{centernet_head_forward.1} parent=11 // pred_region
        _
      $region20: #{centernet_head_forward.1} parent=11 // pred_fallthru
        _
      // Predicated region
      $region21: #{centernet_head_forward.1} parent=11 // pred_check
        %p237 = pneg %p146
      $region22: #{centernet_head_forward.1} parent=11 // pred_check_branch
        %239 = sbr.rel (%p237) target = $region24
      $region23: #{centernet_head_forward.1} parent=11 // pred_region
        _
      $region24: #{centernet_head_forward.1} parent=11 // pred_fallthru
        _
      // Predicated region
      $region25: #{centernet_head_forward.1} parent=11 // pred_check
        %p240 = pneg %p167
      $region26: #{centernet_head_forward.1} parent=11 // pred_check_branch
        %242 = sbr.rel (%p240) target = $region28
      $region27: #{centernet_head_forward.1} parent=11 // pred_region
        _
      $region28: #{centernet_head_forward.1} parent=11 // pred_fallthru
        _
      // Predicated region
      $region29: #{centernet_head_forward.1} parent=11 // pred_check
        %p243 = pneg %p188
      $region30: #{centernet_head_forward.1} parent=11 // pred_check_branch
        %245 = sbr.rel (%p243) target = $region32
      $region31: #{centernet_head_forward.1} parent=11 // pred_region
        _
      $region32: #{centernet_head_forward.1} parent=11 // pred_fallthru
        _
    $region12: #{centernet_head_forward.1} parent=5 // pred_fallthru
      _
    %p246 = scmp.lt.s32.totalorder %s13, 2
    // Predicated region
    $region33: #{centernet_head_forward.1} parent=5 // pred_check
      %p247 = pneg %p246
    $region34: #{centernet_head_forward.1} parent=5 // pred_check_branch
      %249 = sbr.rel (%p247) target = $region36
    $region35: #{centernet_head_forward.1} parent=5 // pred_region
      // Predicated region
      $region37: #{centernet_head_forward.1} parent=35 // pred_check
        %p250 = pneg %p47
      $region38: #{centernet_head_forward.1} parent=35 // pred_check_branch
        %252 = sbr.rel (%p250) target = $region40
      $region39: #{centernet_head_forward.1} parent=35 // pred_region
        %s253 = smul.u32 64, %s21
        %p254 = scmp.lt.s32.totalorder %s20, 1
        %s255 = scalar_select %p254, %s20, 1
        %p256 = scmp.lt.s32.totalorder %s253, 127
        %s257 = scalar_select %p256, %s253, 127
        %s258 = smul.addr %s255, 128
        %s259 = sadd.s32 %s257, %s258
        %s260 = smul.addr %s259, 8
        %s261 = scalar_lea.vmem %s0, %s260
        %s262 = smul.u32 64, %s21
      $region40: #{centernet_head_forward.1} parent=35 // pred_fallthru
        _
      // Predicated region
      $region41: #{centernet_head_forward.1} parent=35 // pred_check
        %p263 = pneg %p77
      $region42: #{centernet_head_forward.1} parent=35 // pred_check_branch
        %265 = sbr.rel (%p263) target = $region44
      $region43: #{centernet_head_forward.1} parent=35 // pred_region
        %s266 = sadd.s32 %s21, 1
        %s267 = smul.u32 64, %s266
        %p268 = scmp.lt.s32.totalorder %s20, 1
        %s269 = scalar_select %p268, %s20, 1
        %p270 = scmp.lt.s32.totalorder %s267, 127
        %s271 = scalar_select %p270, %s267, 127
        %s272 = smul.addr %s269, 128
        %s273 = sadd.s32 %s271, %s272
        %s274 = smul.addr %s273, 8
        %s275 = scalar_lea.vmem %s1, %s274
        %s276 = sadd.s32 %s21, 1
        %s277 = smul.u32 64, %s276
      $region44: #{centernet_head_forward.1} parent=35 // pred_fallthru
        _
    $region36: #{centernet_head_forward.1} parent=5 // pred_fallthru
      _
    %p278 = scmp.le.s32.totalorder 1, %s13
    %p279 = scmp.lt.s32.totalorder %s13, 3
    %p280 = pnand %p278, %p279
    %p281 = pneg %p280
    // Predicated region
    $region45: #{centernet_head_forward.1} parent=5 // pred_check
      _
    $region46: #{centernet_head_forward.1} parent=5 // pred_check_branch
      %283 = sbr.rel (%p280) target = $region48
    $region47: #{centernet_head_forward.1} parent=5 // pred_region
      %s284 = ssub.s32 %s13, 1
      %s285 = smul.u32 64, %s23
      %p286 = scmp.lt.s32.totalorder %s22, 1
      %s287 = scalar_select %p286, %s22, 1
      %p288 = scmp.lt.s32.totalorder %s285, 127
      %s289 = scalar_select %p288, %s285, 127
      %s290 = smul.addr %s287, 128
      %s291 = sadd.s32 %s289, %s290
      %s292 = smul.addr %s291, 8
      %s293 = scalar_lea.vmem %s0, %s292
      %p294 = pneg %p53
      %p295 = pneg %p50
      %s296 = sadd.s32 %s23, 1
      %s297 = smul.u32 64, %s296
      %p298 = scmp.lt.s32.totalorder %s22, 1
      %s299 = scalar_select %p298, %s22, 1
      %p300 = scmp.lt.s32.totalorder %s297, 127
      %s301 = scalar_select %p300, %s297, 127
      %s302 = smul.addr %s299, 128
      %s303 = sadd.s32 %s301, %s302
      %s304 = smul.addr %s303, 8
      %s305 = scalar_lea.vmem %s1, %s304
      %p306 = pneg %p83
      %p307 = pneg %p80
      %p308 = pneg %p104
      %p309 = pneg %p101
      %p310 = pneg %p125
      %p311 = pneg %p122
      %p312 = pneg %p146
      %p313 = pneg %p143
      %p314 = pneg %p167
      %p315 = pneg %p164
      %p316 = pneg %p188
      %p317 = pneg %p185
      %p318 = pneg %p216
      %p319 = pneg %p213
      %s320 = smul.u32 64, %s23
      %p321 = scmp.lt.s32.totalorder %s22, 1
      %s322 = scalar_select %p321, %s22, 1
      %p323 = scmp.lt.s32.totalorder %s320, 63
      %s324 = scalar_select %p323, %s320, 63
      %s325 = smul.addr %s322, 64
      %s326 = sadd.s32 %s324, %s325
      %s327 = smul.addr %s326, 8
      %s328 = scalar_lea.vmem %s7, %s327
      %s329 = smul.u32 64, %s23
      %p330 = scmp.lt.s32.totalorder %s22, 1
      %s331 = scalar_select %p330, %s22, 1
      %p332 = scmp.lt.s32.totalorder %s329, 127
      %s333 = scalar_select %p332, %s329, 127
      %s334 = smul.addr %s331, 128
      %s335 = sadd.s32 %s333, %s334
      %s336 = smul.addr %s335, 8
      %s337 = scalar_lea.vmem %s0, %s336
      %s338 = smul.u32 64, %s23
      %s339 = sadd.s32 %s23, 1
      %s340 = smul.u32 64, %s339
      %p341 = scmp.lt.s32.totalorder %s22, 1
      %s342 = scalar_select %p341, %s22, 1
      %p343 = scmp.lt.s32.totalorder %s340, 127
      %s344 = scalar_select %p343, %s340, 127
      %s345 = smul.addr %s342, 128
      %s346 = sadd.s32 %s344, %s345
      %s347 = smul.addr %s346, 8
      %s348 = scalar_lea.vmem %s1, %s347
      %s349 = sadd.s32 %s23, 1
      %s350 = smul.u32 64, %s349
      %s351 = smul.u32 64, %s23
      %p352 = scmp.lt.s32.totalorder %s22, 1
      %s353 = scalar_select %p352, %s22, 1
      %p354 = scmp.lt.s32.totalorder %s351, 63
      %s355 = scalar_select %p354, %s351, 63
      %s356 = smul.addr %s353, 64
      %s357 = sadd.s32 %s355, %s356
      %s358 = smul.addr %s357, 8
      %s359 = scalar_lea.vmem %s7, %s358
      %s360 = smul.u32 64, %s23
      %v361 = vld [vmem:[%s337] sm:$0xff]
      %v362 = vld [vmem:[%s337 + $0x8] sm:$0xff]
      %v363 = vld [vmem:[%s337 + $0x10] sm:$0xff]
      %v364 = vld [vmem:[%s337 + $0x18] sm:$0xff]
      %v365 = vld [vmem:[%s337 + $0x20] sm:$0xff]
      %v366 = vld [vmem:[%s337 + $0x28] sm:$0xff]
      %v367 = vld [vmem:[%s337 + $0x30] sm:$0xff]
      %v368 = vld [vmem:[%s337 + $0x38] sm:$0xff]
      %v369 = vld [vmem:[%s337 + $0x40] sm:$0xff]
      %v370 = vld [vmem:[%s337 + $0x48] sm:$0xff]
      %v371 = vld [vmem:[%s337 + $0x50] sm:$0xff]
      %v372 = vld [vmem:[%s337 + $0x58] sm:$0xff]
      %v373 = vld [vmem:[%s337 + $0x60] sm:$0xff]
      %v374 = vld [vmem:[%s337 + $0x68] sm:$0xff]
      %v375 = vld [vmem:[%s337 + $0x70] sm:$0xff]
      %v376 = vld [vmem:[%s337 + $0x78] sm:$0xff]
      %v377 = vld [vmem:[%s337 + $0x80] sm:$0xff]
      %v378 = vld [vmem:[%s337 + $0x88] sm:$0xff]
      %v379 = vld [vmem:[%s337 + $0x90] sm:$0xff]
      %v380 = vld [vmem:[%s337 + $0x98] sm:$0xff]
      %v381 = vld [vmem:[%s337 + $0xa0] sm:$0xff]
      %v382 = vld [vmem:[%s337 + $0xa8] sm:$0xff]
      %v383 = vld [vmem:[%s337 + $0xb0] sm:$0xff]
      %v384 = vld [vmem:[%s337 + $0xb8] sm:$0xff]
      %v385 = vld [vmem:[%s337 + $0xc0] sm:$0xff]
      %v386 = vld [vmem:[%s337 + $0xc8] sm:$0xff]
      %v387 = vld [vmem:[%s337 + $0xd0] sm:$0xff]
      %v388 = vld [vmem:[%s337 + $0xd8] sm:$0xff]
      %v389 = vld [vmem:[%s337 + $0xe0] sm:$0xff]
      %v390 = vld [vmem:[%s337 + $0xe8] sm:$0xff]
      %v391 = vld [vmem:[%s337 + $0xf0] sm:$0xff]
      %v392 = vld [vmem:[%s337 + $0xf8] sm:$0xff]
      %v393 = vld [vmem:[%s337 + $0x100] sm:$0xff]
      %v394 = vld [vmem:[%s337 + $0x108] sm:$0xff]
      %v395 = vld [vmem:[%s337 + $0x110] sm:$0xff]
      %v396 = vld [vmem:[%s337 + $0x118] sm:$0xff]
      %v397 = vld [vmem:[%s337 + $0x120] sm:$0xff]
      %v398 = vld [vmem:[%s337 + $0x128] sm:$0xff]
      %v399 = vld [vmem:[%s337 + $0x130] sm:$0xff]
      %v400 = vld [vmem:[%s337 + $0x138] sm:$0xff]
      %v401 = vld [vmem:[%s337 + $0x140] sm:$0xff]
      %v402 = vld [vmem:[%s337 + $0x148] sm:$0xff]
      %v403 = vld [vmem:[%s337 + $0x150] sm:$0xff]
      %v404 = vld [vmem:[%s337 + $0x158] sm:$0xff]
      %v405 = vld [vmem:[%s337 + $0x160] sm:$0xff]
      %v406 = vld [vmem:[%s337 + $0x168] sm:$0xff]
      %v407 = vld [vmem:[%s337 + $0x170] sm:$0xff]
      %v408 = vld [vmem:[%s337 + $0x178] sm:$0xff]
      %v409 = vld [vmem:[%s337 + $0x180] sm:$0xff]
      %v410 = vld [vmem:[%s337 + $0x188] sm:$0xff]
      %v411 = vld [vmem:[%s337 + $0x190] sm:$0xff]
      %v412 = vld [vmem:[%s337 + $0x198] sm:$0xff]
      %v413 = vld [vmem:[%s337 + $0x1a0] sm:$0xff]
      %v414 = vld [vmem:[%s337 + $0x1a8] sm:$0xff]
      %v415 = vld [vmem:[%s337 + $0x1b0] sm:$0xff]
      %v416 = vld [vmem:[%s337 + $0x1b8] sm:$0xff]
      %v417 = vld [vmem:[%s337 + $0x1c0] sm:$0xff]
      %v418 = vld [vmem:[%s337 + $0x1c8] sm:$0xff]
      %v419 = vld [vmem:[%s337 + $0x1d0] sm:$0xff]
      %v420 = vld [vmem:[%s337 + $0x1d8] sm:$0xff]
      %v421 = vld [vmem:[%s337 + $0x1e0] sm:$0xff]
      %v422 = vld [vmem:[%s337 + $0x1e8] sm:$0xff]
      %v423 = vld [vmem:[%s337 + $0x1f0] sm:$0xff]
      %v424 = vld [vmem:[%s337 + $0x1f8] sm:$0xff]
      %v425 = vld [vmem:[%s348] sm:$0xff]
      %v426 = vld [vmem:[%s348 + $0x8] sm:$0xff]
      %v427 = vld [vmem:[%s348 + $0x10] sm:$0xff]
      %v428 = vld [vmem:[%s348 + $0x18] sm:$0xff]
      %v429 = vld [vmem:[%s348 + $0x20] sm:$0xff]
      %vm495 = vcmask 1046528
      %v496 = vrot.slane %v361, 1
      %v497 = vrot.slane %v362, 1
      %v498 = vsel %vm495, %v496, %v497
      %v499 = vrot.slane %v363, 1
      %v500 = vsel %vm495, %v497, %v499
      %v501 = vrot.slane %v364, 1
      %v502 = vsel %vm495, %v499, %v501
      %v503 = vrot.slane %v365, 1
      %v504 = vsel %vm495, %v501, %v503
      %v505 = vrot.slane %v366, 1
      %v506 = vsel %vm495, %v503, %v505
      %v507 = vrot.slane %v367, 1
      %v508 = vsel %vm495, %v505, %v507
      %v509 = vrot.slane %v368, 1
      %v510 = vsel %vm495, %v507, %v509
      %v511 = vrot.slane %v369, 1
      %v512 = vsel %vm495, %v509, %v511
      %v513 = vrot.slane %v370, 1
      %v514 = vsel %vm495, %v511, %v513
      %v515 = vrot.slane %v371, 1
      %v516 = vsel %vm495, %v513, %v515
      %v517 = vrot.slane %v372, 1
      %v518 = vsel %vm495, %v515, %v517
      %v519 = vrot.slane %v373, 1
      %v520 = vsel %vm495, %v517, %v519
      %v521 = vrot.slane %v374, 1
      %v522 = vsel %vm495, %v519, %v521
      %v523 = vrot.slane %v375, 1
      %v524 = vsel %vm495, %v521, %v523
      %v525 = vrot.slane %v376, 1
      %v526 = vsel %vm495, %v523, %v525
      %v527 = vrot.slane %v377, 1
      %v528 = vsel %vm495, %v525, %v527
      %v529 = vrot.slane %v378, 1
      %v530 = vsel %vm495, %v527, %v529
      %v531 = vrot.slane %v379, 1
      %v532 = vsel %vm495, %v529, %v531
      %v533 = vrot.slane %v380, 1
      %v534 = vsel %vm495, %v531, %v533
      %v535 = vrot.slane %v381, 1
      %v536 = vsel %vm495, %v533, %v535
      %v537 = vrot.slane %v382, 1
      %v538 = vsel %vm495, %v535, %v537
      %v539 = vrot.slane %v383, 1
      %v540 = vsel %vm495, %v537, %v539
      %v541 = vrot.slane %v384, 1
      %v542 = vsel %vm495, %v539, %v541
      %v543 = vrot.slane %v385, 1
      %v544 = vsel %vm495, %v541, %v543
      %v545 = vrot.slane %v386, 1
      %v546 = vsel %vm495, %v543, %v545
      %v547 = vrot.slane %v387, 1
      %v548 = vsel %vm495, %v545, %v547
      %v549 = vrot.slane %v388, 1
      %v550 = vsel %vm495, %v547, %v549
      %v551 = vrot.slane %v389, 1
      %v552 = vsel %vm495, %v549, %v551
      %v553 = vrot.slane %v390, 1
      %v554 = vsel %vm495, %v551, %v553
      %v555 = vrot.slane %v391, 1
      %v556 = vsel %vm495, %v553, %v555
      %v557 = vrot.slane %v392, 1
      %v558 = vsel %vm495, %v555, %v557
      %v559 = vrot.slane %v393, 1
      %v560 = vsel %vm495, %v557, %v559
      %v561 = vrot.slane %v394, 1
      %v562 = vsel %vm495, %v559, %v561
      %v563 = vrot.slane %v395, 1
      %v564 = vsel %vm495, %v561, %v563
      %v565 = vrot.slane %v396, 1
      %v566 = vsel %vm495, %v563, %v565
      %v567 = vrot.slane %v397, 1
      %v568 = vsel %vm495, %v565, %v567
      %v569 = vrot.slane %v398, 1
      %v570 = vsel %vm495, %v567, %v569
      %v571 = vrot.slane %v399, 1
      %v572 = vsel %vm495, %v569, %v571
      %v573 = vrot.slane %v400, 1
      %v574 = vsel %vm495, %v571, %v573
      %v575 = vrot.slane %v401, 1
      %v576 = vsel %vm495, %v573, %v575
      %v577 = vrot.slane %v402, 1
      %v578 = vsel %vm495, %v575, %v577
      %v579 = vrot.slane %v403, 1
      %v580 = vsel %vm495, %v577, %v579
      %v581 = vrot.slane %v404, 1
      %v582 = vsel %vm495, %v579, %v581
      %v583 = vrot.slane %v405, 1
      %v584 = vsel %vm495, %v581, %v583
      %v585 = vrot.slane %v406, 1
      %v586 = vsel %vm495, %v583, %v585
      %v587 = vrot.slane %v407, 1
      %v588 = vsel %vm495, %v585, %v587
      %v589 = vrot.slane %v408, 1
      %v590 = vsel %vm495, %v587, %v589
      %v591 = vrot.slane %v409, 1
      %v592 = vsel %vm495, %v589, %v591
      %v593 = vrot.slane %v410, 1
      %v594 = vsel %vm495, %v591, %v593
      %v595 = vrot.slane %v411, 1
      %v596 = vsel %vm495, %v593, %v595
      %v597 = vrot.slane %v412, 1
      %v598 = vsel %vm495, %v595, %v597
      %v599 = vrot.slane %v413, 1
      %v600 = vsel %vm495, %v597, %v599
      %v601 = vrot.slane %v414, 1
      %v602 = vsel %vm495, %v599, %v601
      %v603 = vrot.slane %v415, 1
      %v604 = vsel %vm495, %v601, %v603
      %v605 = vrot.slane %v416, 1
      %v606 = vsel %vm495, %v603, %v605
      %v607 = vrot.slane %v417, 1
      %v608 = vsel %vm495, %v605, %v607
      %v609 = vrot.slane %v418, 1
      %v610 = vsel %vm495, %v607, %v609
      %v611 = vrot.slane %v419, 1
      %v612 = vsel %vm495, %v609, %v611
      %v613 = vrot.slane %v420, 1
      %v614 = vsel %vm495, %v611, %v613
      %v615 = vrot.slane %v421, 1
      %v616 = vsel %vm495, %v613, %v615
      %v617 = vrot.slane %v422, 1
      %v618 = vsel %vm495, %v615, %v617
      %v619 = vrot.slane %v423, 1
      %v620 = vsel %vm495, %v617, %v619
      %v621 = vrot.slane %v424, 1
      %v622 = vsel %vm495, %v619, %v621
      %v623 = vrot.slane %v425, 1
      %v624 = vsel %vm495, %v621, %v623
      %625 = vrot.lane.b32.xlu0 %v498, 64
      %v626 = vpop.permute.xlu0 %625
      %627 = vrot.lane.b32.xlu0 %v500, 64
      %v628 = vpop.permute.xlu0 %627
      %629 = vrot.lane.b32.xlu0 %v502, 64
      %v630 = vpop.permute.xlu0 %629
      %631 = vrot.lane.b32.xlu0 %v504, 64
      %v632 = vpop.permute.xlu0 %631
      %633 = vrot.lane.b32.xlu0 %v506, 64
      %v634 = vpop.permute.xlu0 %633
      %635 = vrot.lane.b32.xlu0 %v508, 64
      %v636 = vpop.permute.xlu0 %635
      %637 = vrot.lane.b32.xlu0 %v510, 64
      %v638 = vpop.permute.xlu0 %637
      %639 = vrot.lane.b32.xlu0 %v512, 64
      %v640 = vpop.permute.xlu0 %639
      %641 = vrot.lane.b32.xlu0 %v514, 64
      %v642 = vpop.permute.xlu0 %641
      %643 = vrot.lane.b32.xlu0 %v516, 64
      %v644 = vpop.permute.xlu0 %643
      %645 = vrot.lane.b32.xlu0 %v518, 64
      %v646 = vpop.permute.xlu0 %645
      %647 = vrot.lane.b32.xlu0 %v520, 64
      %v648 = vpop.permute.xlu0 %647
      %649 = vrot.lane.b32.xlu0 %v522, 64
      %v650 = vpop.permute.xlu0 %649
      %651 = vrot.lane.b32.xlu0 %v524, 64
      %v652 = vpop.permute.xlu0 %651
      %653 = vrot.lane.b32.xlu0 %v526, 64
      %v654 = vpop.permute.xlu0 %653
      %655 = vrot.lane.b32.xlu0 %v528, 64
      %v656 = vpop.permute.xlu0 %655
      %657 = vrot.lane.b32.xlu0 %v530, 64
      %v658 = vpop.permute.xlu0 %657
      %659 = vrot.lane.b32.xlu0 %v532, 64
      %v660 = vpop.permute.xlu0 %659
      %661 = vrot.lane.b32.xlu0 %v534, 64
      %v662 = vpop.permute.xlu0 %661
      %663 = vrot.lane.b32.xlu0 %v536, 64
      %v664 = vpop.permute.xlu0 %663
      %665 = vrot.lane.b32.xlu0 %v538, 64
      %v666 = vpop.permute.xlu0 %665
      %667 = vrot.lane.b32.xlu0 %v540, 64
      %v668 = vpop.permute.xlu0 %667
      %669 = vrot.lane.b32.xlu0 %v542, 64
      %v670 = vpop.permute.xlu0 %669
      %671 = vrot.lane.b32.xlu0 %v544, 64
      %v672 = vpop.permute.xlu0 %671
      %673 = vrot.lane.b32.xlu0 %v546, 64
      %v674 = vpop.permute.xlu0 %673
      %675 = vrot.lane.b32.xlu0 %v548, 64
      %v676 = vpop.permute.xlu0 %675
      %677 = vrot.lane.b32.xlu0 %v550, 64
      %v678 = vpop.permute.xlu0 %677
      %679 = vrot.lane.b32.xlu0 %v552, 64
      %v680 = vpop.permute.xlu0 %679
      %681 = vrot.lane.b32.xlu0 %v554, 64
      %v682 = vpop.permute.xlu0 %681
      %683 = vrot.lane.b32.xlu0 %v556, 64
      %v684 = vpop.permute.xlu0 %683
      %685 = vrot.lane.b32.xlu0 %v558, 64
      %v686 = vpop.permute.xlu0 %685
      %687 = vrot.lane.b32.xlu0 %v560, 64
      %v688 = vpop.permute.xlu0 %687
      %689 = vrot.lane.b32.xlu0 %v562, 64
      %v690 = vpop.permute.xlu0 %689
      %691 = vrot.lane.b32.xlu0 %v564, 64
      %v692 = vpop.permute.xlu0 %691
      %693 = vrot.lane.b32.xlu0 %v566, 64
      %v694 = vpop.permute.xlu0 %693
      %695 = vrot.lane.b32.xlu0 %v568, 64
      %v696 = vpop.permute.xlu0 %695
      %697 = vrot.lane.b32.xlu0 %v570, 64
      %v698 = vpop.permute.xlu0 %697
      %699 = vrot.lane.b32.xlu0 %v572, 64
      %v700 = vpop.permute.xlu0 %699
      %701 = vrot.lane.b32.xlu0 %v574, 64
      %v702 = vpop.permute.xlu0 %701
      %703 = vrot.lane.b32.xlu0 %v576, 64
      %v704 = vpop.permute.xlu0 %703
      %705 = vrot.lane.b32.xlu0 %v578, 64
      %v706 = vpop.permute.xlu0 %705
      %707 = vrot.lane.b32.xlu0 %v580, 64
      %v708 = vpop.permute.xlu0 %707
      %709 = vrot.lane.b32.xlu0 %v582, 64
      %v710 = vpop.permute.xlu0 %709
      %711 = vrot.lane.b32.xlu0 %v584, 64
      %v712 = vpop.permute.xlu0 %711
      %713 = vrot.lane.b32.xlu0 %v586, 64
      %v714 = vpop.permute.xlu0 %713
      %715 = vrot.lane.b32.xlu0 %v588, 64
      %v716 = vpop.permute.xlu0 %715
      %717 = vrot.lane.b32.xlu0 %v590, 64
      %v718 = vpop.permute.xlu0 %717
      %719 = vrot.lane.b32.xlu0 %v592, 64
      %v720 = vpop.permute.xlu0 %719
      %721 = vrot.lane.b32.xlu0 %v594, 64
      %v722 = vpop.permute.xlu0 %721
      %723 = vrot.lane.b32.xlu0 %v596, 64
      %v724 = vpop.permute.xlu0 %723
      %725 = vrot.lane.b32.xlu0 %v598, 64
      %v726 = vpop.permute.xlu0 %725
      %727 = vrot.lane.b32.xlu0 %v600, 64
      %v728 = vpop.permute.xlu0 %727
      %729 = vrot.lane.b32.xlu0 %v602, 64
      %v730 = vpop.permute.xlu0 %729
      %731 = vrot.lane.b32.xlu0 %v604, 64
      %v732 = vpop.permute.xlu0 %731
      %733 = vrot.lane.b32.xlu0 %v606, 64
      %v734 = vpop.permute.xlu0 %733
      %735 = vrot.lane.b32.xlu0 %v608, 64
      %v736 = vpop.permute.xlu0 %735
      %737 = vrot.lane.b32.xlu0 %v610, 64
      %v738 = vpop.permute.xlu0 %737
      %739 = vrot.lane.b32.xlu0 %v612, 64
      %v740 = vpop.permute.xlu0 %739
      %741 = vrot.lane.b32.xlu0 %v614, 64
      %v742 = vpop.permute.xlu0 %741
      %743 = vrot.lane.b32.xlu0 %v616, 64
      %v744 = vpop.permute.xlu0 %743
      %745 = vrot.lane.b32.xlu0 %v618, 64
      %v746 = vpop.permute.xlu0 %745
      %747 = vrot.lane.b32.xlu0 %v620, 64
      %v748 = vpop.permute.xlu0 %747
      %749 = vrot.lane.b32.xlu0 %v622, 64
      %v750 = vpop.permute.xlu0 %749
      %751 = vrot.lane.b32.xlu0 %v624, 64
      %v752 = vpop.permute.xlu0 %751
      %vm817 = vcmask 1045504
      %v818 = vrot.slane %v361, 2
      %v819 = vrot.slane %v362, 2
      %v820 = vsel %vm817, %v818, %v819
      %v821 = vrot.slane %v363, 2
      %v822 = vsel %vm817, %v819, %v821
      %v823 = vrot.slane %v364, 2
      %v824 = vsel %vm817, %v821, %v823
      %v825 = vrot.slane %v365, 2
      %v826 = vsel %vm817, %v823, %v825
      %v827 = vrot.slane %v366, 2
      %v828 = vsel %vm817, %v825, %v827
      %v829 = vrot.slane %v367, 2
      %v830 = vsel %vm817, %v827, %v829
      %v831 = vrot.slane %v368, 2
      %v832 = vsel %vm817, %v829, %v831
      %v833 = vrot.slane %v369, 2
      %v834 = vsel %vm817, %v831, %v833
      %v835 = vrot.slane %v370, 2
      %v836 = vsel %vm817, %v833, %v835
      %v837 = vrot.slane %v371, 2
      %v838 = vsel %vm817, %v835, %v837
      %v839 = vrot.slane %v372, 2
      %v840 = vsel %vm817, %v837, %v839
      %v841 = vrot.slane %v373, 2
      %v842 = vsel %vm817, %v839, %v841
      %v843 = vrot.slane %v374, 2
      %v844 = vsel %vm817, %v841, %v843
      %v845 = vrot.slane %v375, 2
      %v846 = vsel %vm817, %v843, %v845
      %v847 = vrot.slane %v376, 2
      %v848 = vsel %vm817, %v845, %v847
      %v849 = vrot.slane %v377, 2
      %v850 = vsel %vm817, %v847, %v849
      %v851 = vrot.slane %v378, 2
      %v852 = vsel %vm817, %v849, %v851
      %v853 = vrot.slane %v379, 2
      %v854 = vsel %vm817, %v851, %v853
      %v855 = vrot.slane %v380, 2
      %v856 = vsel %vm817, %v853, %v855
      %v857 = vrot.slane %v381, 2
      %v858 = vsel %vm817, %v855, %v857
      %v859 = vrot.slane %v382, 2
      %v860 = vsel %vm817, %v857, %v859
      %v861 = vrot.slane %v383, 2
      %v862 = vsel %vm817, %v859, %v861
      %v863 = vrot.slane %v384, 2
      %v864 = vsel %vm817, %v861, %v863
      %v865 = vrot.slane %v385, 2
      %v866 = vsel %vm817, %v863, %v865
      %v867 = vrot.slane %v386, 2
      %v868 = vsel %vm817, %v865, %v867
      %v869 = vrot.slane %v387, 2
      %v870 = vsel %vm817, %v867, %v869
      %v871 = vrot.slane %v388, 2
      %v872 = vsel %vm817, %v869, %v871
      %v873 = vrot.slane %v389, 2
      %v874 = vsel %vm817, %v871, %v873
      %v875 = vrot.slane %v390, 2
      %v876 = vsel %vm817, %v873, %v875
      %v877 = vrot.slane %v391, 2
      %v878 = vsel %vm817, %v875, %v877
      %v879 = vrot.slane %v392, 2
      %v880 = vsel %vm817, %v877, %v879
      %v881 = vrot.slane %v393, 2
      %v882 = vsel %vm817, %v879, %v881
      %v883 = vrot.slane %v394, 2
      %v884 = vsel %vm817, %v881, %v883
      %v885 = vrot.slane %v395, 2
      %v886 = vsel %vm817, %v883, %v885
      %v887 = vrot.slane %v396, 2
      %v888 = vsel %vm817, %v885, %v887
      %v889 = vrot.slane %v397, 2
      %v890 = vsel %vm817, %v887, %v889
      %v891 = vrot.slane %v398, 2
      %v892 = vsel %vm817, %v889, %v891
      %v893 = vrot.slane %v399, 2
      %v894 = vsel %vm817, %v891, %v893
      %v895 = vrot.slane %v400, 2
      %v896 = vsel %vm817, %v893, %v895
      %v897 = vrot.slane %v401, 2
      %v898 = vsel %vm817, %v895, %v897
      %v899 = vrot.slane %v402, 2
      %v900 = vsel %vm817, %v897, %v899
      %v901 = vrot.slane %v403, 2
      %v902 = vsel %vm817, %v899, %v901
      %v903 = vrot.slane %v404, 2
      %v904 = vsel %vm817, %v901, %v903
      %v905 = vrot.slane %v405, 2
      %v906 = vsel %vm817, %v903, %v905
      %v907 = vrot.slane %v406, 2
      %v908 = vsel %vm817, %v905, %v907
      %v909 = vrot.slane %v407, 2
      %v910 = vsel %vm817, %v907, %v909
      %v911 = vrot.slane %v408, 2
      %v912 = vsel %vm817, %v909, %v911
      %v913 = vrot.slane %v409, 2
      %v914 = vsel %vm817, %v911, %v913
      %v915 = vrot.slane %v410, 2
      %v916 = vsel %vm817, %v913, %v915
      %v917 = vrot.slane %v411, 2
      %v918 = vsel %vm817, %v915, %v917
      %v919 = vrot.slane %v412, 2
      %v920 = vsel %vm817, %v917, %v919
      %v921 = vrot.slane %v413, 2
      %v922 = vsel %vm817, %v919, %v921
      %v923 = vrot.slane %v414, 2
      %v924 = vsel %vm817, %v921, %v923
      %v925 = vrot.slane %v415, 2
      %v926 = vsel %vm817, %v923, %v925
      %v927 = vrot.slane %v416, 2
      %v928 = vsel %vm817, %v925, %v927
      %v929 = vrot.slane %v417, 2
      %v930 = vsel %vm817, %v927, %v929
      %v931 = vrot.slane %v418, 2
      %v932 = vsel %vm817, %v929, %v931
      %v933 = vrot.slane %v419, 2
      %v934 = vsel %vm817, %v931, %v933
      %v935 = vrot.slane %v420, 2
      %v936 = vsel %vm817, %v933, %v935
      %v937 = vrot.slane %v421, 2
      %v938 = vsel %vm817, %v935, %v937
      %v939 = vrot.slane %v422, 2
      %v940 = vsel %vm817, %v937, %v939
      %v941 = vrot.slane %v423, 2
      %v942 = vsel %vm817, %v939, %v941
      %v943 = vrot.slane %v424, 2
      %v944 = vsel %vm817, %v941, %v943
      %v945 = vrot.slane %v425, 2
      %v946 = vsel %vm817, %v943, %v945
      %v1013 = vrot.slane %v426, 2
      %v1014 = vsel %vm817, %v945, %v1013
      %v1015 = vrot.slane %v427, 2
      %v1016 = vsel %vm817, %v1013, %v1015
      %1017 = vrot.lane.b32.xlu0 %v824, 64
      %v1018 = vpop.permute.xlu0 %1017
      %1019 = vrot.lane.b32.xlu0 %v826, 64
      %v1020 = vpop.permute.xlu0 %1019
      %1021 = vrot.lane.b32.xlu0 %v828, 64
      %v1022 = vpop.permute.xlu0 %1021
      %1023 = vrot.lane.b32.xlu0 %v830, 64
      %v1024 = vpop.permute.xlu0 %1023
      %1025 = vrot.lane.b32.xlu0 %v832, 64
      %v1026 = vpop.permute.xlu0 %1025
      %1027 = vrot.lane.b32.xlu0 %v834, 64
      %v1028 = vpop.permute.xlu0 %1027
      %1029 = vrot.lane.b32.xlu0 %v836, 64
      %v1030 = vpop.permute.xlu0 %1029
      %1031 = vrot.lane.b32.xlu0 %v838, 64
      %v1032 = vpop.permute.xlu0 %1031
      %1033 = vrot.lane.b32.xlu0 %v840, 64
      %v1034 = vpop.permute.xlu0 %1033
      %1035 = vrot.lane.b32.xlu0 %v842, 64
      %v1036 = vpop.permute.xlu0 %1035
      %1037 = vrot.lane.b32.xlu0 %v844, 64
      %v1038 = vpop.permute.xlu0 %1037
      %1039 = vrot.lane.b32.xlu0 %v846, 64
      %v1040 = vpop.permute.xlu0 %1039
      %1041 = vrot.lane.b32.xlu0 %v848, 64
      %v1042 = vpop.permute.xlu0 %1041
      %1043 = vrot.lane.b32.xlu0 %v850, 64
      %v1044 = vpop.permute.xlu0 %1043
      %1045 = vrot.lane.b32.xlu0 %v852, 64
      %v1046 = vpop.permute.xlu0 %1045
      %1047 = vrot.lane.b32.xlu0 %v854, 64
      %v1048 = vpop.permute.xlu0 %1047
      %1049 = vrot.lane.b32.xlu0 %v856, 64
      %v1050 = vpop.permute.xlu0 %1049
      %1051 = vrot.lane.b32.xlu0 %v858, 64
      %v1052 = vpop.permute.xlu0 %1051
      %1053 = vrot.lane.b32.xlu0 %v860, 64
      %v1054 = vpop.permute.xlu0 %1053
      %1055 = vrot.lane.b32.xlu0 %v862, 64
      %v1056 = vpop.permute.xlu0 %1055
      %1057 = vrot.lane.b32.xlu0 %v864, 64
      %v1058 = vpop.permute.xlu0 %1057
      %1059 = vrot.lane.b32.xlu0 %v866, 64
      %v1060 = vpop.permute.xlu0 %1059
      %1061 = vrot.lane.b32.xlu0 %v868, 64
      %v1062 = vpop.permute.xlu0 %1061
      %1063 = vrot.lane.b32.xlu0 %v870, 64
      %v1064 = vpop.permute.xlu0 %1063
      %1065 = vrot.lane.b32.xlu0 %v872, 64
      %v1066 = vpop.permute.xlu0 %1065
      %1067 = vrot.lane.b32.xlu0 %v874, 64
      %v1068 = vpop.permute.xlu0 %1067
      %1069 = vrot.lane.b32.xlu0 %v876, 64
      %v1070 = vpop.permute.xlu0 %1069
      %1071 = vrot.lane.b32.xlu0 %v878, 64
      %v1072 = vpop.permute.xlu0 %1071
      %1073 = vrot.lane.b32.xlu0 %v880, 64
      %v1074 = vpop.permute.xlu0 %1073
      %1075 = vrot.lane.b32.xlu0 %v882, 64
      %v1076 = vpop.permute.xlu0 %1075
      %1077 = vrot.lane.b32.xlu0 %v884, 64
      %v1078 = vpop.permute.xlu0 %1077
      %1079 = vrot.lane.b32.xlu0 %v886, 64
      %v1080 = vpop.permute.xlu0 %1079
      %1081 = vrot.lane.b32.xlu0 %v888, 64
      %v1082 = vpop.permute.xlu0 %1081
      %1083 = vrot.lane.b32.xlu0 %v890, 64
      %v1084 = vpop.permute.xlu0 %1083
      %1085 = vrot.lane.b32.xlu0 %v892, 64
      %v1086 = vpop.permute.xlu0 %1085
      %1087 = vrot.lane.b32.xlu0 %v894, 64
      %v1088 = vpop.permute.xlu0 %1087
      %1089 = vrot.lane.b32.xlu0 %v896, 64
      %v1090 = vpop.permute.xlu0 %1089
      %1091 = vrot.lane.b32.xlu0 %v898, 64
      %v1092 = vpop.permute.xlu0 %1091
      %1093 = vrot.lane.b32.xlu0 %v900, 64
      %v1094 = vpop.permute.xlu0 %1093
      %1095 = vrot.lane.b32.xlu0 %v902, 64
      %v1096 = vpop.permute.xlu0 %1095
      %1097 = vrot.lane.b32.xlu0 %v904, 64
      %v1098 = vpop.permute.xlu0 %1097
      %1099 = vrot.lane.b32.xlu0 %v906, 64
      %v1100 = vpop.permute.xlu0 %1099
      %1101 = vrot.lane.b32.xlu0 %v908, 64
      %v1102 = vpop.permute.xlu0 %1101
      %1103 = vrot.lane.b32.xlu0 %v910, 64
      %v1104 = vpop.permute.xlu0 %1103
      %1105 = vrot.lane.b32.xlu0 %v912, 64
      %v1106 = vpop.permute.xlu0 %1105
      %1107 = vrot.lane.b32.xlu0 %v914, 64
      %v1108 = vpop.permute.xlu0 %1107
      %1109 = vrot.lane.b32.xlu0 %v916, 64
      %v1110 = vpop.permute.xlu0 %1109
      %1111 = vrot.lane.b32.xlu0 %v918, 64
      %v1112 = vpop.permute.xlu0 %1111
      %1113 = vrot.lane.b32.xlu0 %v920, 64
      %v1114 = vpop.permute.xlu0 %1113
      %1115 = vrot.lane.b32.xlu0 %v922, 64
      %v1116 = vpop.permute.xlu0 %1115
      %1117 = vrot.lane.b32.xlu0 %v924, 64
      %v1118 = vpop.permute.xlu0 %1117
      %1119 = vrot.lane.b32.xlu0 %v926, 64
      %v1120 = vpop.permute.xlu0 %1119
      %1121 = vrot.lane.b32.xlu0 %v928, 64
      %v1122 = vpop.permute.xlu0 %1121
      %1123 = vrot.lane.b32.xlu0 %v930, 64
      %v1124 = vpop.permute.xlu0 %1123
      %1125 = vrot.lane.b32.xlu0 %v932, 64
      %v1126 = vpop.permute.xlu0 %1125
      %1127 = vrot.lane.b32.xlu0 %v934, 64
      %v1128 = vpop.permute.xlu0 %1127
      %1129 = vrot.lane.b32.xlu0 %v936, 64
      %v1130 = vpop.permute.xlu0 %1129
      %1131 = vrot.lane.b32.xlu0 %v938, 64
      %v1132 = vpop.permute.xlu0 %1131
      %1133 = vrot.lane.b32.xlu0 %v940, 64
      %v1134 = vpop.permute.xlu0 %1133
      %1135 = vrot.lane.b32.xlu0 %v942, 64
      %v1136 = vpop.permute.xlu0 %1135
      %1137 = vrot.lane.b32.xlu0 %v944, 64
      %v1138 = vpop.permute.xlu0 %1137
      %1139 = vrot.lane.b32.xlu0 %v946, 64
      %v1140 = vpop.permute.xlu0 %1139
      %1141 = vrot.lane.b32.xlu0 %v1014, 64
      %v1142 = vpop.permute.xlu0 %1141
      %1143 = vrot.lane.b32.xlu0 %v1016, 64
      %v1144 = vpop.permute.xlu0 %1143
      %vm1209 = vcmask 1044480
      %v1210 = vrot.slane %v363, 3
      %v1211 = vrot.slane %v364, 3
      %v1212 = vsel %vm1209, %v1210, %v1211
      %v1213 = vrot.slane %v365, 3
      %v1214 = vsel %vm1209, %v1211, %v1213
      %v1215 = vrot.slane %v366, 3
      %v1216 = vsel %vm1209, %v1213, %v1215
      %v1217 = vrot.slane %v367, 3
      %v1218 = vsel %vm1209, %v1215, %v1217
      %v1219 = vrot.slane %v368, 3
      %v1220 = vsel %vm1209, %v1217, %v1219
      %v1221 = vrot.slane %v369, 3
      %v1222 = vsel %vm1209, %v1219, %v1221
      %v1223 = vrot.slane %v370, 3
      %v1224 = vsel %vm1209, %v1221, %v1223
      %v1225 = vrot.slane %v371, 3
      %v1226 = vsel %vm1209, %v1223, %v1225
      %v1227 = vrot.slane %v372, 3
      %v1228 = vsel %vm1209, %v1225, %v1227
      %v1229 = vrot.slane %v373, 3
      %v1230 = vsel %vm1209, %v1227, %v1229
      %v1231 = vrot.slane %v374, 3
      %v1232 = vsel %vm1209, %v1229, %v1231
      %v1233 = vrot.slane %v375, 3
      %v1234 = vsel %vm1209, %v1231, %v1233
      %v1235 = vrot.slane %v376, 3
      %v1236 = vsel %vm1209, %v1233, %v1235
      %v1237 = vrot.slane %v377, 3
      %v1238 = vsel %vm1209, %v1235, %v1237
      %v1239 = vrot.slane %v378, 3
      %v1240 = vsel %vm1209, %v1237, %v1239
      %v1241 = vrot.slane %v379, 3
      %v1242 = vsel %vm1209, %v1239, %v1241
      %v1243 = vrot.slane %v380, 3
      %v1244 = vsel %vm1209, %v1241, %v1243
      %v1245 = vrot.slane %v381, 3
      %v1246 = vsel %vm1209, %v1243, %v1245
      %v1247 = vrot.slane %v382, 3
      %v1248 = vsel %vm1209, %v1245, %v1247
      %v1249 = vrot.slane %v383, 3
      %v1250 = vsel %vm1209, %v1247, %v1249
      %v1251 = vrot.slane %v384, 3
      %v1252 = vsel %vm1209, %v1249, %v1251
      %v1253 = vrot.slane %v385, 3
      %v1254 = vsel %vm1209, %v1251, %v1253
      %v1255 = vrot.slane %v386, 3
      %v1256 = vsel %vm1209, %v1253, %v1255
      %v1257 = vrot.slane %v387, 3
      %v1258 = vsel %vm1209, %v1255, %v1257
      %v1259 = vrot.slane %v388, 3
      %v1260 = vsel %vm1209, %v1257, %v1259
      %v1261 = vrot.slane %v389, 3
      %v1262 = vsel %vm1209, %v1259, %v1261
      %v1263 = vrot.slane %v390, 3
      %v1264 = vsel %vm1209, %v1261, %v1263
      %v1265 = vrot.slane %v391, 3
      %v1266 = vsel %vm1209, %v1263, %v1265
      %v1267 = vrot.slane %v392, 3
      %v1268 = vsel %vm1209, %v1265, %v1267
      %v1269 = vrot.slane %v393, 3
      %v1270 = vsel %vm1209, %v1267, %v1269
      %v1271 = vrot.slane %v394, 3
      %v1272 = vsel %vm1209, %v1269, %v1271
      %v1273 = vrot.slane %v395, 3
      %v1274 = vsel %vm1209, %v1271, %v1273
      %v1275 = vrot.slane %v396, 3
      %v1276 = vsel %vm1209, %v1273, %v1275
      %v1277 = vrot.slane %v397, 3
      %v1278 = vsel %vm1209, %v1275, %v1277
      %v1279 = vrot.slane %v398, 3
      %v1280 = vsel %vm1209, %v1277, %v1279
      %v1281 = vrot.slane %v399, 3
      %v1282 = vsel %vm1209, %v1279, %v1281
      %v1283 = vrot.slane %v400, 3
      %v1284 = vsel %vm1209, %v1281, %v1283
      %v1285 = vrot.slane %v401, 3
      %v1286 = vsel %vm1209, %v1283, %v1285
      %v1287 = vrot.slane %v402, 3
      %v1288 = vsel %vm1209, %v1285, %v1287
      %v1289 = vrot.slane %v403, 3
      %v1290 = vsel %vm1209, %v1287, %v1289
      %v1291 = vrot.slane %v404, 3
      %v1292 = vsel %vm1209, %v1289, %v1291
      %v1293 = vrot.slane %v405, 3
      %v1294 = vsel %vm1209, %v1291, %v1293
      %v1295 = vrot.slane %v406, 3
      %v1296 = vsel %vm1209, %v1293, %v1295
      %v1297 = vrot.slane %v407, 3
      %v1298 = vsel %vm1209, %v1295, %v1297
      %v1299 = vrot.slane %v408, 3
      %v1300 = vsel %vm1209, %v1297, %v1299
      %v1301 = vrot.slane %v409, 3
      %v1302 = vsel %vm1209, %v1299, %v1301
      %v1303 = vrot.slane %v410, 3
      %v1304 = vsel %vm1209, %v1301, %v1303
      %v1305 = vrot.slane %v411, 3
      %v1306 = vsel %vm1209, %v1303, %v1305
      %v1307 = vrot.slane %v412, 3
      %v1308 = vsel %vm1209, %v1305, %v1307
      %v1309 = vrot.slane %v413, 3
      %v1310 = vsel %vm1209, %v1307, %v1309
      %v1311 = vrot.slane %v414, 3
      %v1312 = vsel %vm1209, %v1309, %v1311
      %v1313 = vrot.slane %v415, 3
      %v1314 = vsel %vm1209, %v1311, %v1313
      %v1315 = vrot.slane %v416, 3
      %v1316 = vsel %vm1209, %v1313, %v1315
      %v1317 = vrot.slane %v417, 3
      %v1318 = vsel %vm1209, %v1315, %v1317
      %v1319 = vrot.slane %v418, 3
      %v1320 = vsel %vm1209, %v1317, %v1319
      %v1321 = vrot.slane %v419, 3
      %v1322 = vsel %vm1209, %v1319, %v1321
      %v1323 = vrot.slane %v420, 3
      %v1324 = vsel %vm1209, %v1321, %v1323
      %v1325 = vrot.slane %v421, 3
      %v1326 = vsel %vm1209, %v1323, %v1325
      %v1327 = vrot.slane %v422, 3
      %v1328 = vsel %vm1209, %v1325, %v1327
      %v1329 = vrot.slane %v423, 3
      %v1330 = vsel %vm1209, %v1327, %v1329
      %v1331 = vrot.slane %v424, 3
      %v1332 = vsel %vm1209, %v1329, %v1331
      %v1333 = vrot.slane %v425, 3
      %v1334 = vsel %vm1209, %v1331, %v1333
      %v1335 = vrot.slane %v426, 3
      %v1336 = vsel %vm1209, %v1333, %v1335
      %v1337 = vrot.slane %v427, 3
      %v1338 = vsel %vm1209, %v1335, %v1337
      %vm1403 = vcmask 1043456
      %v1404 = vrot.slane %v363, 4
      %v1405 = vrot.slane %v364, 4
      %v1406 = vsel %vm1403, %v1404, %v1405
      %v1407 = vrot.slane %v365, 4
      %v1408 = vsel %vm1403, %v1405, %v1407
      %v1409 = vrot.slane %v366, 4
      %v1410 = vsel %vm1403, %v1407, %v1409
      %v1411 = vrot.slane %v367, 4
      %v1412 = vsel %vm1403, %v1409, %v1411
      %v1413 = vrot.slane %v368, 4
      %v1414 = vsel %vm1403, %v1411, %v1413
      %v1415 = vrot.slane %v369, 4
      %v1416 = vsel %vm1403, %v1413, %v1415
      %v1417 = vrot.slane %v370, 4
      %v1418 = vsel %vm1403, %v1415, %v1417
      %v1419 = vrot.slane %v371, 4
      %v1420 = vsel %vm1403, %v1417, %v1419
      %v1421 = vrot.slane %v372, 4
      %v1422 = vsel %vm1403, %v1419, %v1421
      %v1423 = vrot.slane %v373, 4
      %v1424 = vsel %vm1403, %v1421, %v1423
      %v1425 = vrot.slane %v374, 4
      %v1426 = vsel %vm1403, %v1423, %v1425
      %v1427 = vrot.slane %v375, 4
      %v1428 = vsel %vm1403, %v1425, %v1427
      %v1429 = vrot.slane %v376, 4
      %v1430 = vsel %vm1403, %v1427, %v1429
      %v1431 = vrot.slane %v377, 4
      %v1432 = vsel %vm1403, %v1429, %v1431
      %v1433 = vrot.slane %v378, 4
      %v1434 = vsel %vm1403, %v1431, %v1433
      %v1435 = vrot.slane %v379, 4
      %v1436 = vsel %vm1403, %v1433, %v1435
      %v1437 = vrot.slane %v380, 4
      %v1438 = vsel %vm1403, %v1435, %v1437
      %v1439 = vrot.slane %v381, 4
      %v1440 = vsel %vm1403, %v1437, %v1439
      %v1441 = vrot.slane %v382, 4
      %v1442 = vsel %vm1403, %v1439, %v1441
      %v1443 = vrot.slane %v383, 4
      %v1444 = vsel %vm1403, %v1441, %v1443
      %v1445 = vrot.slane %v384, 4
      %v1446 = vsel %vm1403, %v1443, %v1445
      %v1447 = vrot.slane %v385, 4
      %v1448 = vsel %vm1403, %v1445, %v1447
      %v1449 = vrot.slane %v386, 4
      %v1450 = vsel %vm1403, %v1447, %v1449
      %v1451 = vrot.slane %v387, 4
      %v1452 = vsel %vm1403, %v1449, %v1451
      %v1453 = vrot.slane %v388, 4
      %v1454 = vsel %vm1403, %v1451, %v1453
      %v1455 = vrot.slane %v389, 4
      %v1456 = vsel %vm1403, %v1453, %v1455
      %v1457 = vrot.slane %v390, 4
      %v1458 = vsel %vm1403, %v1455, %v1457
      %v1459 = vrot.slane %v391, 4
      %v1460 = vsel %vm1403, %v1457, %v1459
      %v1461 = vrot.slane %v392, 4
      %v1462 = vsel %vm1403, %v1459, %v1461
      %v1463 = vrot.slane %v393, 4
      %v1464 = vsel %vm1403, %v1461, %v1463
      %v1465 = vrot.slane %v394, 4
      %v1466 = vsel %vm1403, %v1463, %v1465
      %v1467 = vrot.slane %v395, 4
      %v1468 = vsel %vm1403, %v1465, %v1467
      %v1469 = vrot.slane %v396, 4
      %v1470 = vsel %vm1403, %v1467, %v1469
      %v1471 = vrot.slane %v397, 4
      %v1472 = vsel %vm1403, %v1469, %v1471
      %v1473 = vrot.slane %v398, 4
      %v1474 = vsel %vm1403, %v1471, %v1473
      %v1475 = vrot.slane %v399, 4
      %v1476 = vsel %vm1403, %v1473, %v1475
      %v1477 = vrot.slane %v400, 4
      %v1478 = vsel %vm1403, %v1475, %v1477
      %v1479 = vrot.slane %v401, 4
      %v1480 = vsel %vm1403, %v1477, %v1479
      %v1481 = vrot.slane %v402, 4
      %v1482 = vsel %vm1403, %v1479, %v1481
      %v1483 = vrot.slane %v403, 4
      %v1484 = vsel %vm1403, %v1481, %v1483
      %v1485 = vrot.slane %v404, 4
      %v1486 = vsel %vm1403, %v1483, %v1485
      %v1487 = vrot.slane %v405, 4
      %v1488 = vsel %vm1403, %v1485, %v1487
      %v1489 = vrot.slane %v406, 4
      %v1490 = vsel %vm1403, %v1487, %v1489
      %v1491 = vrot.slane %v407, 4
      %v1492 = vsel %vm1403, %v1489, %v1491
      %v1493 = vrot.slane %v408, 4
      %v1494 = vsel %vm1403, %v1491, %v1493
      %v1495 = vrot.slane %v409, 4
      %v1496 = vsel %vm1403, %v1493, %v1495
      %v1497 = vrot.slane %v410, 4
      %v1498 = vsel %vm1403, %v1495, %v1497
      %v1499 = vrot.slane %v411, 4
      %v1500 = vsel %vm1403, %v1497, %v1499
      %v1501 = vrot.slane %v412, 4
      %v1502 = vsel %vm1403, %v1499, %v1501
      %v1503 = vrot.slane %v413, 4
      %v1504 = vsel %vm1403, %v1501, %v1503
      %v1505 = vrot.slane %v414, 4
      %v1506 = vsel %vm1403, %v1503, %v1505
      %v1507 = vrot.slane %v415, 4
      %v1508 = vsel %vm1403, %v1505, %v1507
      %v1509 = vrot.slane %v416, 4
      %v1510 = vsel %vm1403, %v1507, %v1509
      %v1511 = vrot.slane %v417, 4
      %v1512 = vsel %vm1403, %v1509, %v1511
      %v1513 = vrot.slane %v418, 4
      %v1514 = vsel %vm1403, %v1511, %v1513
      %v1515 = vrot.slane %v419, 4
      %v1516 = vsel %vm1403, %v1513, %v1515
      %v1517 = vrot.slane %v420, 4
      %v1518 = vsel %vm1403, %v1515, %v1517
      %v1519 = vrot.slane %v421, 4
      %v1520 = vsel %vm1403, %v1517, %v1519
      %v1521 = vrot.slane %v422, 4
      %v1522 = vsel %vm1403, %v1519, %v1521
      %v1523 = vrot.slane %v423, 4
      %v1524 = vsel %vm1403, %v1521, %v1523
      %v1525 = vrot.slane %v424, 4
      %v1526 = vsel %vm1403, %v1523, %v1525
      %v1527 = vrot.slane %v425, 4
      %v1528 = vsel %vm1403, %v1525, %v1527
      %v1529 = vrot.slane %v426, 4
      %v1530 = vsel %vm1403, %v1527, %v1529
      %v1531 = vrot.slane %v427, 4
      %v1532 = vsel %vm1403, %v1529, %v1531
      %1533 = vrot.lane.b32.xlu0 %v1406, 64
      %v1534 = vpop.permute.xlu0 %1533
      %1535 = vrot.lane.b32.xlu0 %v1408, 64
      %v1536 = vpop.permute.xlu0 %1535
      %1537 = vrot.lane.b32.xlu0 %v1410, 64
      %v1538 = vpop.permute.xlu0 %1537
      %1539 = vrot.lane.b32.xlu0 %v1412, 64
      %v1540 = vpop.permute.xlu0 %1539
      %1541 = vrot.lane.b32.xlu0 %v1414, 64
      %v1542 = vpop.permute.xlu0 %1541
      %1543 = vrot.lane.b32.xlu0 %v1416, 64
      %v1544 = vpop.permute.xlu0 %1543
      %1545 = vrot.lane.b32.xlu0 %v1418, 64
      %v1546 = vpop.permute.xlu0 %1545
      %1547 = vrot.lane.b32.xlu0 %v1420, 64
      %v1548 = vpop.permute.xlu0 %1547
      %1549 = vrot.lane.b32.xlu0 %v1422, 64
      %v1550 = vpop.permute.xlu0 %1549
      %1551 = vrot.lane.b32.xlu0 %v1424, 64
      %v1552 = vpop.permute.xlu0 %1551
      %1553 = vrot.lane.b32.xlu0 %v1426, 64
      %v1554 = vpop.permute.xlu0 %1553
      %1555 = vrot.lane.b32.xlu0 %v1428, 64
      %v1556 = vpop.permute.xlu0 %1555
      %1557 = vrot.lane.b32.xlu0 %v1430, 64
      %v1558 = vpop.permute.xlu0 %1557
      %1559 = vrot.lane.b32.xlu0 %v1432, 64
      %v1560 = vpop.permute.xlu0 %1559
      %1561 = vrot.lane.b32.xlu0 %v1434, 64
      %v1562 = vpop.permute.xlu0 %1561
      %1563 = vrot.lane.b32.xlu0 %v1436, 64
      %v1564 = vpop.permute.xlu0 %1563
      %1565 = vrot.lane.b32.xlu0 %v1438, 64
      %v1566 = vpop.permute.xlu0 %1565
      %1567 = vrot.lane.b32.xlu0 %v1440, 64
      %v1568 = vpop.permute.xlu0 %1567
      %1569 = vrot.lane.b32.xlu0 %v1442, 64
      %v1570 = vpop.permute.xlu0 %1569
      %1571 = vrot.lane.b32.xlu0 %v1444, 64
      %v1572 = vpop.permute.xlu0 %1571
      %1573 = vrot.lane.b32.xlu0 %v1446, 64
      %v1574 = vpop.permute.xlu0 %1573
      %1575 = vrot.lane.b32.xlu0 %v1448, 64
      %v1576 = vpop.permute.xlu0 %1575
      %1577 = vrot.lane.b32.xlu0 %v1450, 64
      %v1578 = vpop.permute.xlu0 %1577
      %1579 = vrot.lane.b32.xlu0 %v1452, 64
      %v1580 = vpop.permute.xlu0 %1579
      %1581 = vrot.lane.b32.xlu0 %v1454, 64
      %v1582 = vpop.permute.xlu0 %1581
      %1583 = vrot.lane.b32.xlu0 %v1456, 64
      %v1584 = vpop.permute.xlu0 %1583
      %1585 = vrot.lane.b32.xlu0 %v1458, 64
      %v1586 = vpop.permute.xlu0 %1585
      %1587 = vrot.lane.b32.xlu0 %v1460, 64
      %v1588 = vpop.permute.xlu0 %1587
      %1589 = vrot.lane.b32.xlu0 %v1462, 64
      %v1590 = vpop.permute.xlu0 %1589
      %1591 = vrot.lane.b32.xlu0 %v1464, 64
      %v1592 = vpop.permute.xlu0 %1591
      %1593 = vrot.lane.b32.xlu0 %v1466, 64
      %v1594 = vpop.permute.xlu0 %1593
      %1595 = vrot.lane.b32.xlu0 %v1468, 64
      %v1596 = vpop.permute.xlu0 %1595
      %1597 = vrot.lane.b32.xlu0 %v1470, 64
      %v1598 = vpop.permute.xlu0 %1597
      %1599 = vrot.lane.b32.xlu0 %v1472, 64
      %v1600 = vpop.permute.xlu0 %1599
      %1601 = vrot.lane.b32.xlu0 %v1474, 64
      %v1602 = vpop.permute.xlu0 %1601
      %1603 = vrot.lane.b32.xlu0 %v1476, 64
      %v1604 = vpop.permute.xlu0 %1603
      %1605 = vrot.lane.b32.xlu0 %v1478, 64
      %v1606 = vpop.permute.xlu0 %1605
      %1607 = vrot.lane.b32.xlu0 %v1480, 64
      %v1608 = vpop.permute.xlu0 %1607
      %1609 = vrot.lane.b32.xlu0 %v1482, 64
      %v1610 = vpop.permute.xlu0 %1609
      %1611 = vrot.lane.b32.xlu0 %v1484, 64
      %v1612 = vpop.permute.xlu0 %1611
      %1613 = vrot.lane.b32.xlu0 %v1486, 64
      %v1614 = vpop.permute.xlu0 %1613
      %1615 = vrot.lane.b32.xlu0 %v1488, 64
      %v1616 = vpop.permute.xlu0 %1615
      %1617 = vrot.lane.b32.xlu0 %v1490, 64
      %v1618 = vpop.permute.xlu0 %1617
      %1619 = vrot.lane.b32.xlu0 %v1492, 64
      %v1620 = vpop.permute.xlu0 %1619
      %1621 = vrot.lane.b32.xlu0 %v1494, 64
      %v1622 = vpop.permute.xlu0 %1621
      %1623 = vrot.lane.b32.xlu0 %v1496, 64
      %v1624 = vpop.permute.xlu0 %1623
      %1625 = vrot.lane.b32.xlu0 %v1498, 64
      %v1626 = vpop.permute.xlu0 %1625
      %1627 = vrot.lane.b32.xlu0 %v1500, 64
      %v1628 = vpop.permute.xlu0 %1627
      %1629 = vrot.lane.b32.xlu0 %v1502, 64
      %v1630 = vpop.permute.xlu0 %1629
      %1631 = vrot.lane.b32.xlu0 %v1504, 64
      %v1632 = vpop.permute.xlu0 %1631
      %1633 = vrot.lane.b32.xlu0 %v1506, 64
      %v1634 = vpop.permute.xlu0 %1633
      %1635 = vrot.lane.b32.xlu0 %v1508, 64
      %v1636 = vpop.permute.xlu0 %1635
      %1637 = vrot.lane.b32.xlu0 %v1510, 64
      %v1638 = vpop.permute.xlu0 %1637
      %1639 = vrot.lane.b32.xlu0 %v1512, 64
      %v1640 = vpop.permute.xlu0 %1639
      %1641 = vrot.lane.b32.xlu0 %v1514, 64
      %v1642 = vpop.permute.xlu0 %1641
      %1643 = vrot.lane.b32.xlu0 %v1516, 64
      %v1644 = vpop.permute.xlu0 %1643
      %1645 = vrot.lane.b32.xlu0 %v1518, 64
      %v1646 = vpop.permute.xlu0 %1645
      %1647 = vrot.lane.b32.xlu0 %v1520, 64
      %v1648 = vpop.permute.xlu0 %1647
      %1649 = vrot.lane.b32.xlu0 %v1522, 64
      %v1650 = vpop.permute.xlu0 %1649
      %1651 = vrot.lane.b32.xlu0 %v1524, 64
      %v1652 = vpop.permute.xlu0 %1651
      %1653 = vrot.lane.b32.xlu0 %v1526, 64
      %v1654 = vpop.permute.xlu0 %1653
      %1655 = vrot.lane.b32.xlu0 %v1528, 64
      %v1656 = vpop.permute.xlu0 %1655
      %1657 = vrot.lane.b32.xlu0 %v1530, 64
      %v1658 = vpop.permute.xlu0 %1657
      %1659 = vrot.lane.b32.xlu0 %v1532, 64
      %v1660 = vpop.permute.xlu0 %1659
      %v1727 = vrot.slane %v428, 4
      %v1728 = vsel %vm1403, %v1531, %v1727
      %v1729 = vrot.slane %v429, 4
      %v1730 = vsel %vm1403, %v1727, %v1729
      %vm1795 = vcmask 1042432
      %v1796 = vrot.slane %v365, 5
      %v1797 = vrot.slane %v366, 5
      %v1798 = vsel %vm1795, %v1796, %v1797
      %v1799 = vrot.slane %v367, 5
      %v1800 = vsel %vm1795, %v1797, %v1799
      %v1801 = vrot.slane %v368, 5
      %v1802 = vsel %vm1795, %v1799, %v1801
      %v1803 = vrot.slane %v369, 5
      %v1804 = vsel %vm1795, %v1801, %v1803
      %v1805 = vrot.slane %v370, 5
      %v1806 = vsel %vm1795, %v1803, %v1805
      %v1807 = vrot.slane %v371, 5
      %v1808 = vsel %vm1795, %v1805, %v1807
      %v1809 = vrot.slane %v372, 5
      %v1810 = vsel %vm1795, %v1807, %v1809
      %v1811 = vrot.slane %v373, 5
      %v1812 = vsel %vm1795, %v1809, %v1811
      %v1813 = vrot.slane %v374, 5
      %v1814 = vsel %vm1795, %v1811, %v1813
      %v1815 = vrot.slane %v375, 5
      %v1816 = vsel %vm1795, %v1813, %v1815
      %v1817 = vrot.slane %v376, 5
      %v1818 = vsel %vm1795, %v1815, %v1817
      %v1819 = vrot.slane %v377, 5
      %v1820 = vsel %vm1795, %v1817, %v1819
      %v1821 = vrot.slane %v378, 5
      %v1822 = vsel %vm1795, %v1819, %v1821
      %v1823 = vrot.slane %v379, 5
      %v1824 = vsel %vm1795, %v1821, %v1823
      %v1825 = vrot.slane %v380, 5
      %v1826 = vsel %vm1795, %v1823, %v1825
      %v1827 = vrot.slane %v381, 5
      %v1828 = vsel %vm1795, %v1825, %v1827
      %v1829 = vrot.slane %v382, 5
      %v1830 = vsel %vm1795, %v1827, %v1829
      %v1831 = vrot.slane %v383, 5
      %v1832 = vsel %vm1795, %v1829, %v1831
      %v1833 = vrot.slane %v384, 5
      %v1834 = vsel %vm1795, %v1831, %v1833
      %v1835 = vrot.slane %v385, 5
      %v1836 = vsel %vm1795, %v1833, %v1835
      %v1837 = vrot.slane %v386, 5
      %v1838 = vsel %vm1795, %v1835, %v1837
      %v1839 = vrot.slane %v387, 5
      %v1840 = vsel %vm1795, %v1837, %v1839
      %v1841 = vrot.slane %v388, 5
      %v1842 = vsel %vm1795, %v1839, %v1841
      %v1843 = vrot.slane %v389, 5
      %v1844 = vsel %vm1795, %v1841, %v1843
      %v1845 = vrot.slane %v390, 5
      %v1846 = vsel %vm1795, %v1843, %v1845
      %v1847 = vrot.slane %v391, 5
      %v1848 = vsel %vm1795, %v1845, %v1847
      %v1849 = vrot.slane %v392, 5
      %v1850 = vsel %vm1795, %v1847, %v1849
      %v1851 = vrot.slane %v393, 5
      %v1852 = vsel %vm1795, %v1849, %v1851
      %v1853 = vrot.slane %v394, 5
      %v1854 = vsel %vm1795, %v1851, %v1853
      %v1855 = vrot.slane %v395, 5
      %v1856 = vsel %vm1795, %v1853, %v1855
      %v1857 = vrot.slane %v396, 5
      %v1858 = vsel %vm1795, %v1855, %v1857
      %v1859 = vrot.slane %v397, 5
      %v1860 = vsel %vm1795, %v1857, %v1859
      %v1861 = vrot.slane %v398, 5
      %v1862 = vsel %vm1795, %v1859, %v1861
      %v1863 = vrot.slane %v399, 5
      %v1864 = vsel %vm1795, %v1861, %v1863
      %v1865 = vrot.slane %v400, 5
      %v1866 = vsel %vm1795, %v1863, %v1865
      %v1867 = vrot.slane %v401, 5
      %v1868 = vsel %vm1795, %v1865, %v1867
      %v1869 = vrot.slane %v402, 5
      %v1870 = vsel %vm1795, %v1867, %v1869
      %v1871 = vrot.slane %v403, 5
      %v1872 = vsel %vm1795, %v1869, %v1871
      %v1873 = vrot.slane %v404, 5
      %v1874 = vsel %vm1795, %v1871, %v1873
      %v1875 = vrot.slane %v405, 5
      %v1876 = vsel %vm1795, %v1873, %v1875
      %v1877 = vrot.slane %v406, 5
      %v1878 = vsel %vm1795, %v1875, %v1877
      %v1879 = vrot.slane %v407, 5
      %v1880 = vsel %vm1795, %v1877, %v1879
      %v1881 = vrot.slane %v408, 5
      %v1882 = vsel %vm1795, %v1879, %v1881
      %v1883 = vrot.slane %v409, 5
      %v1884 = vsel %vm1795, %v1881, %v1883
      %v1885 = vrot.slane %v410, 5
      %v1886 = vsel %vm1795, %v1883, %v1885
      %v1887 = vrot.slane %v411, 5
      %v1888 = vsel %vm1795, %v1885, %v1887
      %v1889 = vrot.slane %v412, 5
      %v1890 = vsel %vm1795, %v1887, %v1889
      %v1891 = vrot.slane %v413, 5
      %v1892 = vsel %vm1795, %v1889, %v1891
      %v1893 = vrot.slane %v414, 5
      %v1894 = vsel %vm1795, %v1891, %v1893
      %v1895 = vrot.slane %v415, 5
      %v1896 = vsel %vm1795, %v1893, %v1895
      %v1897 = vrot.slane %v416, 5
      %v1898 = vsel %vm1795, %v1895, %v1897
      %v1899 = vrot.slane %v417, 5
      %v1900 = vsel %vm1795, %v1897, %v1899
      %v1901 = vrot.slane %v418, 5
      %v1902 = vsel %vm1795, %v1899, %v1901
      %v1903 = vrot.slane %v419, 5
      %v1904 = vsel %vm1795, %v1901, %v1903
      %v1905 = vrot.slane %v420, 5
      %v1906 = vsel %vm1795, %v1903, %v1905
      %v1907 = vrot.slane %v421, 5
      %v1908 = vsel %vm1795, %v1905, %v1907
      %v1909 = vrot.slane %v422, 5
      %v1910 = vsel %vm1795, %v1907, %v1909
      %v1911 = vrot.slane %v423, 5
      %v1912 = vsel %vm1795, %v1909, %v1911
      %v1913 = vrot.slane %v424, 5
      %v1914 = vsel %vm1795, %v1911, %v1913
      %v1915 = vrot.slane %v425, 5
      %v1916 = vsel %vm1795, %v1913, %v1915
      %v1917 = vrot.slane %v426, 5
      %v1918 = vsel %vm1795, %v1915, %v1917
      %v1919 = vrot.slane %v427, 5
      %v1920 = vsel %vm1795, %v1917, %v1919
      %v1921 = vrot.slane %v428, 5
      %v1922 = vsel %vm1795, %v1919, %v1921
      %v1923 = vrot.slane %v429, 5
      %v1924 = vsel %vm1795, %v1921, %v1923
      %1925 = vrot.lane.b32.xlu0 %v1798, 64
      %v1926 = vpop.permute.xlu0 %1925
      %1927 = vrot.lane.b32.xlu0 %v1800, 64
      %v1928 = vpop.permute.xlu0 %1927
      %1929 = vrot.lane.b32.xlu0 %v1802, 64
      %v1930 = vpop.permute.xlu0 %1929
      %1931 = vrot.lane.b32.xlu0 %v1804, 64
      %v1932 = vpop.permute.xlu0 %1931
      %1933 = vrot.lane.b32.xlu0 %v1806, 64
      %v1934 = vpop.permute.xlu0 %1933
      %1935 = vrot.lane.b32.xlu0 %v1808, 64
      %v1936 = vpop.permute.xlu0 %1935
      %1937 = vrot.lane.b32.xlu0 %v1810, 64
      %v1938 = vpop.permute.xlu0 %1937
      %1939 = vrot.lane.b32.xlu0 %v1812, 64
      %v1940 = vpop.permute.xlu0 %1939
      %1941 = vrot.lane.b32.xlu0 %v1814, 64
      %v1942 = vpop.permute.xlu0 %1941
      %1943 = vrot.lane.b32.xlu0 %v1816, 64
      %v1944 = vpop.permute.xlu0 %1943
      %1945 = vrot.lane.b32.xlu0 %v1818, 64
      %v1946 = vpop.permute.xlu0 %1945
      %1947 = vrot.lane.b32.xlu0 %v1820, 64
      %v1948 = vpop.permute.xlu0 %1947
      %1949 = vrot.lane.b32.xlu0 %v1822, 64
      %v1950 = vpop.permute.xlu0 %1949
      %1951 = vrot.lane.b32.xlu0 %v1824, 64
      %v1952 = vpop.permute.xlu0 %1951
      %1953 = vrot.lane.b32.xlu0 %v1826, 64
      %v1954 = vpop.permute.xlu0 %1953
      %1955 = vrot.lane.b32.xlu0 %v1828, 64
      %v1956 = vpop.permute.xlu0 %1955
      %1957 = vrot.lane.b32.xlu0 %v1830, 64
      %v1958 = vpop.permute.xlu0 %1957
      %1959 = vrot.lane.b32.xlu0 %v1832, 64
      %v1960 = vpop.permute.xlu0 %1959
      %1961 = vrot.lane.b32.xlu0 %v1834, 64
      %v1962 = vpop.permute.xlu0 %1961
      %1963 = vrot.lane.b32.xlu0 %v1836, 64
      %v1964 = vpop.permute.xlu0 %1963
      %1965 = vrot.lane.b32.xlu0 %v1838, 64
      %v1966 = vpop.permute.xlu0 %1965
      %1967 = vrot.lane.b32.xlu0 %v1840, 64
      %v1968 = vpop.permute.xlu0 %1967
      %1969 = vrot.lane.b32.xlu0 %v1842, 64
      %v1970 = vpop.permute.xlu0 %1969
      %1971 = vrot.lane.b32.xlu0 %v1844, 64
      %v1972 = vpop.permute.xlu0 %1971
      %1973 = vrot.lane.b32.xlu0 %v1846, 64
      %v1974 = vpop.permute.xlu0 %1973
      %1975 = vrot.lane.b32.xlu0 %v1848, 64
      %v1976 = vpop.permute.xlu0 %1975
      %1977 = vrot.lane.b32.xlu0 %v1850, 64
      %v1978 = vpop.permute.xlu0 %1977
      %1979 = vrot.lane.b32.xlu0 %v1852, 64
      %v1980 = vpop.permute.xlu0 %1979
      %1981 = vrot.lane.b32.xlu0 %v1854, 64
      %v1982 = vpop.permute.xlu0 %1981
      %1983 = vrot.lane.b32.xlu0 %v1856, 64
      %v1984 = vpop.permute.xlu0 %1983
      %1985 = vrot.lane.b32.xlu0 %v1858, 64
      %v1986 = vpop.permute.xlu0 %1985
      %1987 = vrot.lane.b32.xlu0 %v1860, 64
      %v1988 = vpop.permute.xlu0 %1987
      %1989 = vrot.lane.b32.xlu0 %v1862, 64
      %v1990 = vpop.permute.xlu0 %1989
      %1991 = vrot.lane.b32.xlu0 %v1864, 64
      %v1992 = vpop.permute.xlu0 %1991
      %1993 = vrot.lane.b32.xlu0 %v1866, 64
      %v1994 = vpop.permute.xlu0 %1993
      %1995 = vrot.lane.b32.xlu0 %v1868, 64
      %v1996 = vpop.permute.xlu0 %1995
      %1997 = vrot.lane.b32.xlu0 %v1870, 64
      %v1998 = vpop.permute.xlu0 %1997
      %1999 = vrot.lane.b32.xlu0 %v1872, 64
      %v2000 = vpop.permute.xlu0 %1999
      %2001 = vrot.lane.b32.xlu0 %v1874, 64
      %v2002 = vpop.permute.xlu0 %2001
      %2003 = vrot.lane.b32.xlu0 %v1876, 64
      %v2004 = vpop.permute.xlu0 %2003
      %2005 = vrot.lane.b32.xlu0 %v1878, 64
      %v2006 = vpop.permute.xlu0 %2005
      %2007 = vrot.lane.b32.xlu0 %v1880, 64
      %v2008 = vpop.permute.xlu0 %2007
      %2009 = vrot.lane.b32.xlu0 %v1882, 64
      %v2010 = vpop.permute.xlu0 %2009
      %2011 = vrot.lane.b32.xlu0 %v1884, 64
      %v2012 = vpop.permute.xlu0 %2011
      %2013 = vrot.lane.b32.xlu0 %v1886, 64
      %v2014 = vpop.permute.xlu0 %2013
      %2015 = vrot.lane.b32.xlu0 %v1888, 64
      %v2016 = vpop.permute.xlu0 %2015
      %2017 = vrot.lane.b32.xlu0 %v1890, 64
      %v2018 = vpop.permute.xlu0 %2017
      %2019 = vrot.lane.b32.xlu0 %v1892, 64
      %v2020 = vpop.permute.xlu0 %2019
      %2021 = vrot.lane.b32.xlu0 %v1894, 64
      %v2022 = vpop.permute.xlu0 %2021
      %2023 = vrot.lane.b32.xlu0 %v1896, 64
      %v2024 = vpop.permute.xlu0 %2023
      %2025 = vrot.lane.b32.xlu0 %v1898, 64
      %v2026 = vpop.permute.xlu0 %2025
      %2027 = vrot.lane.b32.xlu0 %v1900, 64
      %v2028 = vpop.permute.xlu0 %2027
      %2029 = vrot.lane.b32.xlu0 %v1902, 64
      %v2030 = vpop.permute.xlu0 %2029
      %2031 = vrot.lane.b32.xlu0 %v1904, 64
      %v2032 = vpop.permute.xlu0 %2031
      %2033 = vrot.lane.b32.xlu0 %v1906, 64
      %v2034 = vpop.permute.xlu0 %2033
      %2035 = vrot.lane.b32.xlu0 %v1908, 64
      %v2036 = vpop.permute.xlu0 %2035
      %2037 = vrot.lane.b32.xlu0 %v1910, 64
      %v2038 = vpop.permute.xlu0 %2037
      %2039 = vrot.lane.b32.xlu0 %v1912, 64
      %v2040 = vpop.permute.xlu0 %2039
      %2041 = vrot.lane.b32.xlu0 %v1914, 64
      %v2042 = vpop.permute.xlu0 %2041
      %2043 = vrot.lane.b32.xlu0 %v1916, 64
      %v2044 = vpop.permute.xlu0 %2043
      %2045 = vrot.lane.b32.xlu0 %v1918, 64
      %v2046 = vpop.permute.xlu0 %2045
      %2047 = vrot.lane.b32.xlu0 %v1920, 64
      %v2048 = vpop.permute.xlu0 %2047
      %2049 = vrot.lane.b32.xlu0 %v1922, 64
      %v2050 = vpop.permute.xlu0 %2049
      %2051 = vrot.lane.b32.xlu0 %v1924, 64
      %v2052 = vpop.permute.xlu0 %2051
      %vm2117 = vcmask 1041408
      %v2118 = vrot.slane %v365, 6
      %v2119 = vrot.slane %v366, 6
      %v2120 = vsel %vm2117, %v2118, %v2119
      %v2121 = vrot.slane %v367, 6
      %v2122 = vsel %vm2117, %v2119, %v2121
      %v2123 = vrot.slane %v368, 6
      %v2124 = vsel %vm2117, %v2121, %v2123
      %v2125 = vrot.slane %v369, 6
      %v2126 = vsel %vm2117, %v2123, %v2125
      %v2127 = vrot.slane %v370, 6
      %v2128 = vsel %vm2117, %v2125, %v2127
      %v2129 = vrot.slane %v371, 6
      %v2130 = vsel %vm2117, %v2127, %v2129
      %v2131 = vrot.slane %v372, 6
      %v2132 = vsel %vm2117, %v2129, %v2131
      %v2133 = vrot.slane %v373, 6
      %v2134 = vsel %vm2117, %v2131, %v2133
      %v2135 = vrot.slane %v374, 6
      %v2136 = vsel %vm2117, %v2133, %v2135
      %v2137 = vrot.slane %v375, 6
      %v2138 = vsel %vm2117, %v2135, %v2137
      %v2139 = vrot.slane %v376, 6
      %v2140 = vsel %vm2117, %v2137, %v2139
      %v2141 = vrot.slane %v377, 6
      %v2142 = vsel %vm2117, %v2139, %v2141
      %v2143 = vrot.slane %v378, 6
      %v2144 = vsel %vm2117, %v2141, %v2143
      %v2145 = vrot.slane %v379, 6
      %v2146 = vsel %vm2117, %v2143, %v2145
      %v2147 = vrot.slane %v380, 6
      %v2148 = vsel %vm2117, %v2145, %v2147
      %v2149 = vrot.slane %v381, 6
      %v2150 = vsel %vm2117, %v2147, %v2149
      %v2151 = vrot.slane %v382, 6
      %v2152 = vsel %vm2117, %v2149, %v2151
      %v2153 = vrot.slane %v383, 6
      %v2154 = vsel %vm2117, %v2151, %v2153
      %v2155 = vrot.slane %v384, 6
      %v2156 = vsel %vm2117, %v2153, %v2155
      %v2157 = vrot.slane %v385, 6
      %v2158 = vsel %vm2117, %v2155, %v2157
      %v2159 = vrot.slane %v386, 6
      %v2160 = vsel %vm2117, %v2157, %v2159
      %v2161 = vrot.slane %v387, 6
      %v2162 = vsel %vm2117, %v2159, %v2161
      %v2163 = vrot.slane %v388, 6
      %v2164 = vsel %vm2117, %v2161, %v2163
      %v2165 = vrot.slane %v389, 6
      %v2166 = vsel %vm2117, %v2163, %v2165
      %v2167 = vrot.slane %v390, 6
      %v2168 = vsel %vm2117, %v2165, %v2167
      %v2169 = vrot.slane %v391, 6
      %v2170 = vsel %vm2117, %v2167, %v2169
      %v2171 = vrot.slane %v392, 6
      %v2172 = vsel %vm2117, %v2169, %v2171
      %v2173 = vrot.slane %v393, 6
      %v2174 = vsel %vm2117, %v2171, %v2173
      %v2175 = vrot.slane %v394, 6
      %v2176 = vsel %vm2117, %v2173, %v2175
      %v2177 = vrot.slane %v395, 6
      %v2178 = vsel %vm2117, %v2175, %v2177
      %v2179 = vrot.slane %v396, 6
      %v2180 = vsel %vm2117, %v2177, %v2179
      %v2181 = vrot.slane %v397, 6
      %v2182 = vsel %vm2117, %v2179, %v2181
      %v2183 = vrot.slane %v398, 6
      %v2184 = vsel %vm2117, %v2181, %v2183
      %v2185 = vrot.slane %v399, 6
      %v2186 = vsel %vm2117, %v2183, %v2185
      %v2187 = vrot.slane %v400, 6
      %v2188 = vsel %vm2117, %v2185, %v2187
      %v2189 = vrot.slane %v401, 6
      %v2190 = vsel %vm2117, %v2187, %v2189
      %v2191 = vrot.slane %v402, 6
      %v2192 = vsel %vm2117, %v2189, %v2191
      %v2193 = vrot.slane %v403, 6
      %v2194 = vsel %vm2117, %v2191, %v2193
      %v2195 = vrot.slane %v404, 6
      %v2196 = vsel %vm2117, %v2193, %v2195
      %v2197 = vrot.slane %v405, 6
      %v2198 = vsel %vm2117, %v2195, %v2197
      %v2199 = vrot.slane %v406, 6
      %v2200 = vsel %vm2117, %v2197, %v2199
      %v2201 = vrot.slane %v407, 6
      %v2202 = vsel %vm2117, %v2199, %v2201
      %v2203 = vrot.slane %v408, 6
      %v2204 = vsel %vm2117, %v2201, %v2203
      %v2205 = vrot.slane %v409, 6
      %v2206 = vsel %vm2117, %v2203, %v2205
      %v2207 = vrot.slane %v410, 6
      %v2208 = vsel %vm2117, %v2205, %v2207
      %v2209 = vrot.slane %v411, 6
      %v2210 = vsel %vm2117, %v2207, %v2209
      %v2211 = vrot.slane %v412, 6
      %v2212 = vsel %vm2117, %v2209, %v2211
      %v2213 = vrot.slane %v413, 6
      %v2214 = vsel %vm2117, %v2211, %v2213
      %v2215 = vrot.slane %v414, 6
      %v2216 = vsel %vm2117, %v2213, %v2215
      %v2217 = vrot.slane %v415, 6
      %v2218 = vsel %vm2117, %v2215, %v2217
      %v2219 = vrot.slane %v416, 6
      %v2220 = vsel %vm2117, %v2217, %v2219
      %v2221 = vrot.slane %v417, 6
      %v2222 = vsel %vm2117, %v2219, %v2221
      %v2223 = vrot.slane %v418, 6
      %v2224 = vsel %vm2117, %v2221, %v2223
      %v2225 = vrot.slane %v419, 6
      %v2226 = vsel %vm2117, %v2223, %v2225
      %v2227 = vrot.slane %v420, 6
      %v2228 = vsel %vm2117, %v2225, %v2227
      %v2229 = vrot.slane %v421, 6
      %v2230 = vsel %vm2117, %v2227, %v2229
      %v2231 = vrot.slane %v422, 6
      %v2232 = vsel %vm2117, %v2229, %v2231
      %v2233 = vrot.slane %v423, 6
      %v2234 = vsel %vm2117, %v2231, %v2233
      %v2235 = vrot.slane %v424, 6
      %v2236 = vsel %vm2117, %v2233, %v2235
      %v2237 = vrot.slane %v425, 6
      %v2238 = vsel %vm2117, %v2235, %v2237
      %v2239 = vrot.slane %v426, 6
      %v2240 = vsel %vm2117, %v2237, %v2239
      %v2241 = vrot.slane %v427, 6
      %v2242 = vsel %vm2117, %v2239, %v2241
      %v2243 = vrot.slane %v428, 6
      %v2244 = vsel %vm2117, %v2241, %v2243
      %v2245 = vrot.slane %v429, 6
      %v2246 = vsel %vm2117, %v2243, %v2245
      %vm2247 = vcmask 523264
      %v2248 = vsel %vm2247, %v361, %v626
      %v2249 = vsel %vm2247, %v362, %v628
      %v2250 = vsel %vm2247, %v363, %v630
      %v2251 = vsel %vm2247, %v364, %v632
      %v2252 = vsel %vm2247, %v365, %v634
      %v2253 = vsel %vm2247, %v366, %v636
      %v2254 = vsel %vm2247, %v367, %v638
      %v2255 = vsel %vm2247, %v368, %v640
      %v2256 = vsel %vm2247, %v369, %v642
      %v2257 = vsel %vm2247, %v370, %v644
      %v2258 = vsel %vm2247, %v371, %v646
      %v2259 = vsel %vm2247, %v372, %v648
      %v2260 = vsel %vm2247, %v373, %v650
      %v2261 = vsel %vm2247, %v374, %v652
      %v2262 = vsel %vm2247, %v375, %v654
      %v2263 = vsel %vm2247, %v376, %v656
      %v2264 = vsel %vm2247, %v377, %v658
      %v2265 = vsel %vm2247, %v378, %v660
      %v2266 = vsel %vm2247, %v379, %v662
      %v2267 = vsel %vm2247, %v380, %v664
      %v2268 = vsel %vm2247, %v381, %v666
      %v2269 = vsel %vm2247, %v382, %v668
      %v2270 = vsel %vm2247, %v383, %v670
      %v2271 = vsel %vm2247, %v384, %v672
      %v2272 = vsel %vm2247, %v385, %v674
      %v2273 = vsel %vm2247, %v386, %v676
      %v2274 = vsel %vm2247, %v387, %v678
      %v2275 = vsel %vm2247, %v388, %v680
      %v2276 = vsel %vm2247, %v389, %v682
      %v2277 = vsel %vm2247, %v390, %v684
      %v2278 = vsel %vm2247, %v391, %v686
      %v2279 = vsel %vm2247, %v392, %v688
      %v2280 = vsel %vm2247, %v393, %v690
      %v2281 = vsel %vm2247, %v394, %v692
      %v2282 = vsel %vm2247, %v395, %v694
      %v2283 = vsel %vm2247, %v396, %v696
      %v2284 = vsel %vm2247, %v397, %v698
      %v2285 = vsel %vm2247, %v398, %v700
      %v2286 = vsel %vm2247, %v399, %v702
      %v2287 = vsel %vm2247, %v400, %v704
      %v2288 = vsel %vm2247, %v401, %v706
      %v2289 = vsel %vm2247, %v402, %v708
      %v2290 = vsel %vm2247, %v403, %v710
      %v2291 = vsel %vm2247, %v404, %v712
      %v2292 = vsel %vm2247, %v405, %v714
      %v2293 = vsel %vm2247, %v406, %v716
      %v2294 = vsel %vm2247, %v407, %v718
      %v2295 = vsel %vm2247, %v408, %v720
      %v2296 = vsel %vm2247, %v409, %v722
      %v2297 = vsel %vm2247, %v410, %v724
      %v2298 = vsel %vm2247, %v411, %v726
      %v2299 = vsel %vm2247, %v412, %v728
      %v2300 = vsel %vm2247, %v413, %v730
      %v2301 = vsel %vm2247, %v414, %v732
      %v2302 = vsel %vm2247, %v415, %v734
      %v2303 = vsel %vm2247, %v416, %v736
      %v2304 = vsel %vm2247, %v417, %v738
      %v2305 = vsel %vm2247, %v418, %v740
      %v2306 = vsel %vm2247, %v419, %v742
      %v2307 = vsel %vm2247, %v420, %v744
      %v2308 = vsel %vm2247, %v421, %v746
      %v2309 = vsel %vm2247, %v422, %v748
      %v2310 = vsel %vm2247, %v423, %v750
      %v2311 = vsel %vm2247, %v424, %v752
      %v2312 = vsel %vm2247, %v820, %v1018
      %v2313 = vsel %vm2247, %v822, %v1020
      %v2314 = vsel %vm2247, %v824, %v1022
      %v2315 = vsel %vm2247, %v826, %v1024
      %v2316 = vsel %vm2247, %v828, %v1026
      %v2317 = vsel %vm2247, %v830, %v1028
      %v2318 = vsel %vm2247, %v832, %v1030
      %v2319 = vsel %vm2247, %v834, %v1032
      %v2320 = vsel %vm2247, %v836, %v1034
      %v2321 = vsel %vm2247, %v838, %v1036
      %v2322 = vsel %vm2247, %v840, %v1038
      %v2323 = vsel %vm2247, %v842, %v1040
      %v2324 = vsel %vm2247, %v844, %v1042
      %v2325 = vsel %vm2247, %v846, %v1044
      %v2326 = vsel %vm2247, %v848, %v1046
      %v2327 = vsel %vm2247, %v850, %v1048
      %v2328 = vsel %vm2247, %v852, %v1050
      %v2329 = vsel %vm2247, %v854, %v1052
      %v2330 = vsel %vm2247, %v856, %v1054
      %v2331 = vsel %vm2247, %v858, %v1056
      %v2332 = vsel %vm2247, %v860, %v1058
      %v2333 = vsel %vm2247, %v862, %v1060
      %v2334 = vsel %vm2247, %v864, %v1062
      %v2335 = vsel %vm2247, %v866, %v1064
      %v2336 = vsel %vm2247, %v868, %v1066
      %v2337 = vsel %vm2247, %v870, %v1068
      %v2338 = vsel %vm2247, %v872, %v1070
      %v2339 = vsel %vm2247, %v874, %v1072
      %v2340 = vsel %vm2247, %v876, %v1074
      %v2341 = vsel %vm2247, %v878, %v1076
      %v2342 = vsel %vm2247, %v880, %v1078
      %v2343 = vsel %vm2247, %v882, %v1080
      %v2344 = vsel %vm2247, %v884, %v1082
      %v2345 = vsel %vm2247, %v886, %v1084
      %v2346 = vsel %vm2247, %v888, %v1086
      %v2347 = vsel %vm2247, %v890, %v1088
      %v2348 = vsel %vm2247, %v892, %v1090
      %v2349 = vsel %vm2247, %v894, %v1092
      %v2350 = vsel %vm2247, %v896, %v1094
      %v2351 = vsel %vm2247, %v898, %v1096
      %v2352 = vsel %vm2247, %v900, %v1098
      %v2353 = vsel %vm2247, %v902, %v1100
      %v2354 = vsel %vm2247, %v904, %v1102
      %v2355 = vsel %vm2247, %v906, %v1104
      %v2356 = vsel %vm2247, %v908, %v1106
      %v2357 = vsel %vm2247, %v910, %v1108
      %v2358 = vsel %vm2247, %v912, %v1110
      %v2359 = vsel %vm2247, %v914, %v1112
      %v2360 = vsel %vm2247, %v916, %v1114
      %v2361 = vsel %vm2247, %v918, %v1116
      %v2362 = vsel %vm2247, %v920, %v1118
      %v2363 = vsel %vm2247, %v922, %v1120
      %v2364 = vsel %vm2247, %v924, %v1122
      %v2365 = vsel %vm2247, %v926, %v1124
      %v2366 = vsel %vm2247, %v928, %v1126
      %v2367 = vsel %vm2247, %v930, %v1128
      %v2368 = vsel %vm2247, %v932, %v1130
      %v2369 = vsel %vm2247, %v934, %v1132
      %v2370 = vsel %vm2247, %v936, %v1134
      %v2371 = vsel %vm2247, %v938, %v1136
      %v2372 = vsel %vm2247, %v940, %v1138
      %v2373 = vsel %vm2247, %v942, %v1140
      %v2374 = vsel %vm2247, %v944, %v1142
      %v2375 = vsel %vm2247, %v946, %v1144
      %v2376 = vsel %vm2247, %v1212, %v1534
      %v2377 = vsel %vm2247, %v1214, %v1536
      %v2378 = vsel %vm2247, %v1216, %v1538
      %v2379 = vsel %vm2247, %v1218, %v1540
      %v2380 = vsel %vm2247, %v1220, %v1542
      %v2381 = vsel %vm2247, %v1222, %v1544
      %v2382 = vsel %vm2247, %v1224, %v1546
      %v2383 = vsel %vm2247, %v1226, %v1548
      %v2384 = vsel %vm2247, %v1228, %v1550
      %v2385 = vsel %vm2247, %v1230, %v1552
      %v2386 = vsel %vm2247, %v1232, %v1554
      %v2387 = vsel %vm2247, %v1234, %v1556
      %v2388 = vsel %vm2247, %v1236, %v1558
      %v2389 = vsel %vm2247, %v1238, %v1560
      %v2390 = vsel %vm2247, %v1240, %v1562
      %v2391 = vsel %vm2247, %v1242, %v1564
      %v2392 = vsel %vm2247, %v1244, %v1566
      %v2393 = vsel %vm2247, %v1246, %v1568
      %v2394 = vsel %vm2247, %v1248, %v1570
      %v2395 = vsel %vm2247, %v1250, %v1572
      %v2396 = vsel %vm2247, %v1252, %v1574
      %v2397 = vsel %vm2247, %v1254, %v1576
      %v2398 = vsel %vm2247, %v1256, %v1578
      %v2399 = vsel %vm2247, %v1258, %v1580
      %v2400 = vsel %vm2247, %v1260, %v1582
      %v2401 = vsel %vm2247, %v1262, %v1584
      %v2402 = vsel %vm2247, %v1264, %v1586
      %v2403 = vsel %vm2247, %v1266, %v1588
      %v2404 = vsel %vm2247, %v1268, %v1590
      %v2405 = vsel %vm2247, %v1270, %v1592
      %v2406 = vsel %vm2247, %v1272, %v1594
      %v2407 = vsel %vm2247, %v1274, %v1596
      %v2408 = vsel %vm2247, %v1276, %v1598
      %v2409 = vsel %vm2247, %v1278, %v1600
      %v2410 = vsel %vm2247, %v1280, %v1602
      %v2411 = vsel %vm2247, %v1282, %v1604
      %v2412 = vsel %vm2247, %v1284, %v1606
      %v2413 = vsel %vm2247, %v1286, %v1608
      %v2414 = vsel %vm2247, %v1288, %v1610
      %v2415 = vsel %vm2247, %v1290, %v1612
      %v2416 = vsel %vm2247, %v1292, %v1614
      %v2417 = vsel %vm2247, %v1294, %v1616
      %v2418 = vsel %vm2247, %v1296, %v1618
      %v2419 = vsel %vm2247, %v1298, %v1620
      %v2420 = vsel %vm2247, %v1300, %v1622
      %v2421 = vsel %vm2247, %v1302, %v1624
      %v2422 = vsel %vm2247, %v1304, %v1626
      %v2423 = vsel %vm2247, %v1306, %v1628
      %v2424 = vsel %vm2247, %v1308, %v1630
      %v2425 = vsel %vm2247, %v1310, %v1632
      %v2426 = vsel %vm2247, %v1312, %v1634
      %v2427 = vsel %vm2247, %v1314, %v1636
      %v2428 = vsel %vm2247, %v1316, %v1638
      %v2429 = vsel %vm2247, %v1318, %v1640
      %v2430 = vsel %vm2247, %v1320, %v1642
      %v2431 = vsel %vm2247, %v1322, %v1644
      %v2432 = vsel %vm2247, %v1324, %v1646
      %v2433 = vsel %vm2247, %v1326, %v1648
      %v2434 = vsel %vm2247, %v1328, %v1650
      %v2435 = vsel %vm2247, %v1330, %v1652
      %v2436 = vsel %vm2247, %v1332, %v1654
      %v2437 = vsel %vm2247, %v1334, %v1656
      %v2438 = vsel %vm2247, %v1336, %v1658
      %v2439 = vsel %vm2247, %v1338, %v1660
      %v2440 = vsel %vm2247, %v1410, %v1926
      %v2441 = vsel %vm2247, %v1412, %v1928
      %v2442 = vsel %vm2247, %v1414, %v1930
      %v2443 = vsel %vm2247, %v1416, %v1932
      %v2444 = vsel %vm2247, %v1418, %v1934
      %v2445 = vsel %vm2247, %v1420, %v1936
      %v2446 = vsel %vm2247, %v1422, %v1938
      %v2447 = vsel %vm2247, %v1424, %v1940
      %v2448 = vsel %vm2247, %v1426, %v1942
      %v2449 = vsel %vm2247, %v1428, %v1944
      %v2450 = vsel %vm2247, %v1430, %v1946
      %v2451 = vsel %vm2247, %v1432, %v1948
      %v2452 = vsel %vm2247, %v1434, %v1950
      %v2453 = vsel %vm2247, %v1436, %v1952
      %v2454 = vsel %vm2247, %v1438, %v1954
      %v2455 = vsel %vm2247, %v1440, %v1956
      %v2456 = vsel %vm2247, %v1442, %v1958
      %v2457 = vsel %vm2247, %v1444, %v1960
      %v2458 = vsel %vm2247, %v1446, %v1962
      %v2459 = vsel %vm2247, %v1448, %v1964
      %v2460 = vsel %vm2247, %v1450, %v1966
      %v2461 = vsel %vm2247, %v1452, %v1968
      %v2462 = vsel %vm2247, %v1454, %v1970
      %v2463 = vsel %vm2247, %v1456, %v1972
      %v2464 = vsel %vm2247, %v1458, %v1974
      %v2465 = vsel %vm2247, %v1460, %v1976
      %v2466 = vsel %vm2247, %v1462, %v1978
      %v2467 = vsel %vm2247, %v1464, %v1980
      %v2468 = vsel %vm2247, %v1466, %v1982
      %v2469 = vsel %vm2247, %v1468, %v1984
      %v2470 = vsel %vm2247, %v1470, %v1986
      %v2471 = vsel %vm2247, %v1472, %v1988
      %v2472 = vsel %vm2247, %v1474, %v1990
      %v2473 = vsel %vm2247, %v1476, %v1992
      %v2474 = vsel %vm2247, %v1478, %v1994
      %v2475 = vsel %vm2247, %v1480, %v1996
      %v2476 = vsel %vm2247, %v1482, %v1998
      %v2477 = vsel %vm2247, %v1484, %v2000
      %v2478 = vsel %vm2247, %v1486, %v2002
      %v2479 = vsel %vm2247, %v1488, %v2004
      %v2480 = vsel %vm2247, %v1490, %v2006
      %v2481 = vsel %vm2247, %v1492, %v2008
      %v2482 = vsel %vm2247, %v1494, %v2010
      %v2483 = vsel %vm2247, %v1496, %v2012
      %v2484 = vsel %vm2247, %v1498, %v2014
      %v2485 = vsel %vm2247, %v1500, %v2016
      %v2486 = vsel %vm2247, %v1502, %v2018
      %v2487 = vsel %vm2247, %v1504, %v2020
      %v2488 = vsel %vm2247, %v1506, %v2022
      %v2489 = vsel %vm2247, %v1508, %v2024
      %v2490 = vsel %vm2247, %v1510, %v2026
      %v2491 = vsel %vm2247, %v1512, %v2028
      %v2492 = vsel %vm2247, %v1514, %v2030
      %v2493 = vsel %vm2247, %v1516, %v2032
      %v2494 = vsel %vm2247, %v1518, %v2034
      %v2495 = vsel %vm2247, %v1520, %v2036
      %v2496 = vsel %vm2247, %v1522, %v2038
      %v2497 = vsel %vm2247, %v1524, %v2040
      %v2498 = vsel %vm2247, %v1526, %v2042
      %v2499 = vsel %vm2247, %v1528, %v2044
      %v2500 = vsel %vm2247, %v1530, %v2046
      %v2501 = vsel %vm2247, %v1532, %v2048
      %v2502 = vsel %vm2247, %v1728, %v2050
      %v2503 = vsel %vm2247, %v1730, %v2052
      %v2504 = vld [vmem:[%s2] sm:$0xff]
      %v2505 = vld [vmem:[%s2 + $0x8] sm:$0xff]
      %v2506 = vld [vmem:[%s2 + $0x10] sm:$0xff]
      %v2507 = vld [vmem:[%s2 + $0x18] sm:$0xff]
      %v2508 = vld [vmem:[%s2 + $0x20] sm:$0xff]
      %v2509 = vld [vmem:[%s2 + $0x28] sm:$0xff]
      %v2510 = vld [vmem:[%s2 + $0x30] sm:$0xff]
      %v2511 = vld [vmem:[%s2 + $0x38] sm:$0xff]
      %v2512 = vld [vmem:[%s2 + $0x40] sm:$0xff]
      %v2513 = vld [vmem:[%s2 + $0x48] sm:$0xff]
      %v2514 = vld [vmem:[%s2 + $0x50] sm:$0xff]
      %v2515 = vld [vmem:[%s2 + $0x58] sm:$0xff]
      %v2516 = vld [vmem:[%s2 + $0x60] sm:$0xff]
      %v2517 = vld [vmem:[%s2 + $0x68] sm:$0xff]
      %v2518 = vld [vmem:[%s2 + $0x70] sm:$0xff]
      %v2519 = vld [vmem:[%s2 + $0x78] sm:$0xff]
      %v2520 = vld [vmem:[%s2 + $0x80] sm:$0xff]
      %v2521 = vld [vmem:[%s2 + $0x88] sm:$0xff]
      %v2522 = vld [vmem:[%s2 + $0x90] sm:$0xff]
      %v2523 = vld [vmem:[%s2 + $0x98] sm:$0xff]
      %v2524 = vld [vmem:[%s2 + $0xa0] sm:$0xff]
      %v2525 = vld [vmem:[%s2 + $0xa8] sm:$0xff]
      %v2526 = vld [vmem:[%s2 + $0xb0] sm:$0xff]
      %v2527 = vld [vmem:[%s2 + $0xb8] sm:$0xff]
      %v2528 = vld [vmem:[%s2 + $0xc0] sm:$0xff]
      %v2529 = vld [vmem:[%s2 + $0xc8] sm:$0xff]
      %v2530 = vld [vmem:[%s2 + $0xd0] sm:$0xff]
      %v2531 = vld [vmem:[%s2 + $0xd8] sm:$0xff]
      %v2532 = vld [vmem:[%s2 + $0xe0] sm:$0xff]
      %v2533 = vld [vmem:[%s2 + $0xe8] sm:$0xff]
      %v2534 = vld [vmem:[%s2 + $0xf0] sm:$0xff]
      %v2535 = vld [vmem:[%s2 + $0xf8] sm:$0xff]
      %v2536 = vld [vmem:[%s2 + $0x100] sm:$0xff]
      %v2537 = vld [vmem:[%s2 + $0x108] sm:$0xff]
      %v2538 = vld [vmem:[%s2 + $0x110] sm:$0xff]
      %v2539 = vld [vmem:[%s2 + $0x118] sm:$0xff]
      %v2540 = vld [vmem:[%s2 + $0x120] sm:$0xff]
      %v2541 = vld [vmem:[%s2 + $0x128] sm:$0xff]
      %v2542 = vld [vmem:[%s2 + $0x130] sm:$0xff]
      %v2543 = vld [vmem:[%s2 + $0x138] sm:$0xff]
      %v2544 = vld [vmem:[%s2 + $0x140] sm:$0xff]
      %v2545 = vld [vmem:[%s2 + $0x148] sm:$0xff]
      %v2546 = vld [vmem:[%s2 + $0x150] sm:$0xff]
      %v2547 = vld [vmem:[%s2 + $0x158] sm:$0xff]
      %v2548 = vld [vmem:[%s2 + $0x160] sm:$0xff]
      %v2549 = vld [vmem:[%s2 + $0x168] sm:$0xff]
      %v2550 = vld [vmem:[%s2 + $0x170] sm:$0xff]
      %v2551 = vld [vmem:[%s2 + $0x178] sm:$0xff]
      %v2552 = vld [vmem:[%s2 + $0x180] sm:$0xff]
      %v2553 = vld [vmem:[%s2 + $0x188] sm:$0xff]
      %v2554 = vld [vmem:[%s2 + $0x190] sm:$0xff]
      %v2555 = vld [vmem:[%s2 + $0x198] sm:$0xff]
      %v2556 = vld [vmem:[%s2 + $0x1a0] sm:$0xff]
      %v2557 = vld [vmem:[%s2 + $0x1a8] sm:$0xff]
      %v2558 = vld [vmem:[%s2 + $0x1b0] sm:$0xff]
      %v2559 = vld [vmem:[%s2 + $0x1b8] sm:$0xff]
      %v2560 = vld [vmem:[%s2 + $0x1c0] sm:$0xff]
      %v2561 = vld [vmem:[%s2 + $0x1c8] sm:$0xff]
      %v2562 = vld [vmem:[%s2 + $0x1d0] sm:$0xff]
      %v2563 = vld [vmem:[%s2 + $0x1d8] sm:$0xff]
      %v2564 = vld [vmem:[%s2 + $0x1e0] sm:$0xff]
      %v2565 = vld [vmem:[%s2 + $0x1e8] sm:$0xff]
      %v2566 = vld [vmem:[%s2 + $0x1f0] sm:$0xff]
      %v2567 = vld [vmem:[%s2 + $0x1f8] sm:$0xff]
      %v2568 = vld [vmem:[%s2 + $0x200] sm:$0xff]
      %v2569 = vld [vmem:[%s2 + $0x208] sm:$0xff]
      %v2570 = vld [vmem:[%s2 + $0x210] sm:$0xff]
      %v2571 = vld [vmem:[%s2 + $0x218] sm:$0xff]
      %v2572 = vld [vmem:[%s2 + $0x220] sm:$0xff]
      %v2573 = vld [vmem:[%s2 + $0x228] sm:$0xff]
      %v2574 = vld [vmem:[%s2 + $0x230] sm:$0xff]
      %v2575 = vld [vmem:[%s2 + $0x238] sm:$0xff]
      %v2576 = vld [vmem:[%s2 + $0x240] sm:$0xff]
      %v2577 = vld [vmem:[%s2 + $0x248] sm:$0xff]
      %v2578 = vld [vmem:[%s2 + $0x250] sm:$0xff]
      %v2579 = vld [vmem:[%s2 + $0x258] sm:$0xff]
      %v2580 = vld [vmem:[%s2 + $0x260] sm:$0xff]
      %v2581 = vld [vmem:[%s2 + $0x268] sm:$0xff]
      %v2582 = vld [vmem:[%s2 + $0x270] sm:$0xff]
      %v2583 = vld [vmem:[%s2 + $0x278] sm:$0xff]
      %v2584 = vld [vmem:[%s2 + $0x280] sm:$0xff]
      %v2585 = vld [vmem:[%s2 + $0x288] sm:$0xff]
      %v2586 = vld [vmem:[%s2 + $0x290] sm:$0xff]
      %v2587 = vld [vmem:[%s2 + $0x298] sm:$0xff]
      %v2588 = vld [vmem:[%s2 + $0x2a0] sm:$0xff]
      %v2589 = vld [vmem:[%s2 + $0x2a8] sm:$0xff]
      %v2590 = vld [vmem:[%s2 + $0x2b0] sm:$0xff]
      %v2591 = vld [vmem:[%s2 + $0x2b8] sm:$0xff]
      %v2592 = vld [vmem:[%s2 + $0x2c0] sm:$0xff]
      %v2593 = vld [vmem:[%s2 + $0x2c8] sm:$0xff]
      %v2594 = vld [vmem:[%s2 + $0x2d0] sm:$0xff]
      %v2595 = vld [vmem:[%s2 + $0x2d8] sm:$0xff]
      %v2596 = vld [vmem:[%s2 + $0x2e0] sm:$0xff]
      %v2597 = vld [vmem:[%s2 + $0x2e8] sm:$0xff]
      %v2598 = vld [vmem:[%s2 + $0x2f0] sm:$0xff]
      %v2599 = vld [vmem:[%s2 + $0x2f8] sm:$0xff]
      %v2600 = vld [vmem:[%s2 + $0x300] sm:$0xff]
      %v2601 = vld [vmem:[%s2 + $0x308] sm:$0xff]
      %v2602 = vld [vmem:[%s2 + $0x310] sm:$0xff]
      %v2603 = vld [vmem:[%s2 + $0x318] sm:$0xff]
      %v2604 = vld [vmem:[%s2 + $0x320] sm:$0xff]
      %v2605 = vld [vmem:[%s2 + $0x328] sm:$0xff]
      %v2606 = vld [vmem:[%s2 + $0x330] sm:$0xff]
      %v2607 = vld [vmem:[%s2 + $0x338] sm:$0xff]
      %v2608 = vld [vmem:[%s2 + $0x340] sm:$0xff]
      %v2609 = vld [vmem:[%s2 + $0x348] sm:$0xff]
      %v2610 = vld [vmem:[%s2 + $0x350] sm:$0xff]
      %v2611 = vld [vmem:[%s2 + $0x358] sm:$0xff]
      %v2612 = vld [vmem:[%s2 + $0x360] sm:$0xff]
      %v2613 = vld [vmem:[%s2 + $0x368] sm:$0xff]
      %v2614 = vld [vmem:[%s2 + $0x370] sm:$0xff]
      %v2615 = vld [vmem:[%s2 + $0x378] sm:$0xff]
      %v2616 = vld [vmem:[%s2 + $0x380] sm:$0xff]
      %v2617 = vld [vmem:[%s2 + $0x388] sm:$0xff]
      %v2618 = vld [vmem:[%s2 + $0x390] sm:$0xff]
      %v2619 = vld [vmem:[%s2 + $0x398] sm:$0xff]
      %v2620 = vld [vmem:[%s2 + $0x3a0] sm:$0xff]
      %v2621 = vld [vmem:[%s2 + $0x3a8] sm:$0xff]
      %v2622 = vld [vmem:[%s2 + $0x3b0] sm:$0xff]
      %v2623 = vld [vmem:[%s2 + $0x3b8] sm:$0xff]
      %v2624 = vld [vmem:[%s2 + $0x3c0] sm:$0xff]
      %v2625 = vld [vmem:[%s2 + $0x3c8] sm:$0xff]
      %v2626 = vld [vmem:[%s2 + $0x3d0] sm:$0xff]
      %v2627 = vld [vmem:[%s2 + $0x3d8] sm:$0xff]
      %v2628 = vld [vmem:[%s2 + $0x3e0] sm:$0xff]
      %v2629 = vld [vmem:[%s2 + $0x3e8] sm:$0xff]
      %v2630 = vld [vmem:[%s2 + $0x3f0] sm:$0xff]
      %v2631 = vld [vmem:[%s2 + $0x3f8] sm:$0xff]
      %v2632 = vld [vmem:[%s2 + $0x400] sm:$0xff]
      %v2633 = vld [vmem:[%s2 + $0x408] sm:$0xff]
      %v2634 = vld [vmem:[%s2 + $0x410] sm:$0xff]
      %v2635 = vld [vmem:[%s2 + $0x418] sm:$0xff]
      %v2636 = vld [vmem:[%s2 + $0x420] sm:$0xff]
      %v2637 = vld [vmem:[%s2 + $0x428] sm:$0xff]
      %v2638 = vld [vmem:[%s2 + $0x430] sm:$0xff]
      %v2639 = vld [vmem:[%s2 + $0x438] sm:$0xff]
      %v2640 = vld [vmem:[%s2 + $0x440] sm:$0xff]
      %v2641 = vld [vmem:[%s2 + $0x448] sm:$0xff]
      %v2642 = vld [vmem:[%s2 + $0x450] sm:$0xff]
      %v2643 = vld [vmem:[%s2 + $0x458] sm:$0xff]
      %v2644 = vld [vmem:[%s2 + $0x460] sm:$0xff]
      %v2645 = vld [vmem:[%s2 + $0x468] sm:$0xff]
      %v2646 = vld [vmem:[%s2 + $0x470] sm:$0xff]
      %v2647 = vld [vmem:[%s2 + $0x478] sm:$0xff]
      %v2648 = vld [vmem:[%s2 + $0x480] sm:$0xff]
      %v2649 = vld [vmem:[%s2 + $0x488] sm:$0xff]
      %v2650 = vld [vmem:[%s2 + $0x490] sm:$0xff]
      %v2651 = vld [vmem:[%s2 + $0x498] sm:$0xff]
      %v2652 = vld [vmem:[%s2 + $0x4a0] sm:$0xff]
      %v2653 = vld [vmem:[%s2 + $0x4a8] sm:$0xff]
      %v2654 = vld [vmem:[%s2 + $0x4b0] sm:$0xff]
      %v2655 = vld [vmem:[%s2 + $0x4b8] sm:$0xff]
      %v2656 = vld [vmem:[%s2 + $0x4c0] sm:$0xff]
      %v2657 = vld [vmem:[%s2 + $0x4c8] sm:$0xff]
      %v2658 = vld [vmem:[%s2 + $0x4d0] sm:$0xff]
      %v2659 = vld [vmem:[%s2 + $0x4d8] sm:$0xff]
      %v2660 = vld [vmem:[%s2 + $0x4e0] sm:$0xff]
      %v2661 = vld [vmem:[%s2 + $0x4e8] sm:$0xff]
      %v2662 = vld [vmem:[%s2 + $0x4f0] sm:$0xff]
      %v2663 = vld [vmem:[%s2 + $0x4f8] sm:$0xff]
      %v2664 = vld [vmem:[%s2 + $0x500] sm:$0xff]
      %v2665 = vld [vmem:[%s2 + $0x508] sm:$0xff]
      %v2666 = vld [vmem:[%s2 + $0x510] sm:$0xff]
      %v2667 = vld [vmem:[%s2 + $0x518] sm:$0xff]
      %v2668 = vld [vmem:[%s2 + $0x520] sm:$0xff]
      %v2669 = vld [vmem:[%s2 + $0x528] sm:$0xff]
      %v2670 = vld [vmem:[%s2 + $0x530] sm:$0xff]
      %v2671 = vld [vmem:[%s2 + $0x538] sm:$0xff]
      %v2672 = vld [vmem:[%s2 + $0x540] sm:$0xff]
      %v2673 = vld [vmem:[%s2 + $0x548] sm:$0xff]
      %v2674 = vld [vmem:[%s2 + $0x550] sm:$0xff]
      %v2675 = vld [vmem:[%s2 + $0x558] sm:$0xff]
      %v2676 = vld [vmem:[%s2 + $0x560] sm:$0xff]
      %v2677 = vld [vmem:[%s2 + $0x568] sm:$0xff]
      %v2678 = vld [vmem:[%s2 + $0x570] sm:$0xff]
      %v2679 = vld [vmem:[%s2 + $0x578] sm:$0xff]
      %v2680 = vld [vmem:[%s2 + $0x580] sm:$0xff]
      %v2681 = vld [vmem:[%s2 + $0x588] sm:$0xff]
      %v2682 = vld [vmem:[%s2 + $0x590] sm:$0xff]
      %v2683 = vld [vmem:[%s2 + $0x598] sm:$0xff]
      %v2684 = vld [vmem:[%s2 + $0x5a0] sm:$0xff]
      %v2685 = vld [vmem:[%s2 + $0x5a8] sm:$0xff]
      %v2686 = vld [vmem:[%s2 + $0x5b0] sm:$0xff]
      %v2687 = vld [vmem:[%s2 + $0x5b8] sm:$0xff]
      %v2688 = vld [vmem:[%s2 + $0x5c0] sm:$0xff]
      %v2689 = vld [vmem:[%s2 + $0x5c8] sm:$0xff]
      %v2690 = vld [vmem:[%s2 + $0x5d0] sm:$0xff]
      %v2691 = vld [vmem:[%s2 + $0x5d8] sm:$0xff]
      %v2692 = vld [vmem:[%s2 + $0x5e0] sm:$0xff]
      %v2693 = vld [vmem:[%s2 + $0x5e8] sm:$0xff]
      %v2694 = vld [vmem:[%s2 + $0x5f0] sm:$0xff]
      %v2695 = vld [vmem:[%s2 + $0x5f8] sm:$0xff]
      %v2696 = vld [vmem:[%s2 + $0x600] sm:$0xff]
      %v2697 = vld [vmem:[%s2 + $0x608] sm:$0xff]
      %v2698 = vld [vmem:[%s2 + $0x610] sm:$0xff]
      %v2699 = vld [vmem:[%s2 + $0x618] sm:$0xff]
      %v2700 = vld [vmem:[%s2 + $0x620] sm:$0xff]
      %v2701 = vld [vmem:[%s2 + $0x628] sm:$0xff]
      %v2702 = vld [vmem:[%s2 + $0x630] sm:$0xff]
      %v2703 = vld [vmem:[%s2 + $0x638] sm:$0xff]
      %v2704 = vld [vmem:[%s2 + $0x640] sm:$0xff]
      %v2705 = vld [vmem:[%s2 + $0x648] sm:$0xff]
      %v2706 = vld [vmem:[%s2 + $0x650] sm:$0xff]
      %v2707 = vld [vmem:[%s2 + $0x658] sm:$0xff]
      %v2708 = vld [vmem:[%s2 + $0x660] sm:$0xff]
      %v2709 = vld [vmem:[%s2 + $0x668] sm:$0xff]
      %v2710 = vld [vmem:[%s2 + $0x670] sm:$0xff]
      %v2711 = vld [vmem:[%s2 + $0x678] sm:$0xff]
      %v2712 = vld [vmem:[%s2 + $0x680] sm:$0xff]
      %v2713 = vld [vmem:[%s2 + $0x688] sm:$0xff]
      %v2714 = vld [vmem:[%s2 + $0x690] sm:$0xff]
      %v2715 = vld [vmem:[%s2 + $0x698] sm:$0xff]
      %v2716 = vld [vmem:[%s2 + $0x6a0] sm:$0xff]
      %v2717 = vld [vmem:[%s2 + $0x6a8] sm:$0xff]
      %v2718 = vld [vmem:[%s2 + $0x6b0] sm:$0xff]
      %v2719 = vld [vmem:[%s2 + $0x6b8] sm:$0xff]
      %v2720 = vld [vmem:[%s3] sm:$0x7]
      %v2722 = vlaneseq
      %v2723 = vshrl.u32 %v2722, 7
      %v2724 = vsub.s32 0, %v2723
      %v2725 = vrot.slane %v2720, %v2724
      %v2726 = vlaneseq
      %v2727 = vshrl.u32 %v2726, 7
      %v2728 = vsub.s32 1, %v2727
      %v2729 = vrot.slane %v2720, %v2728
      %v2730 = vlaneseq
      %v2731 = vshrl.u32 %v2730, 7
      %v2732 = vsub.s32 2, %v2731
      %v2733 = vrot.slane %v2720, %v2732
      %v2737 = vsel %vm2247, %v2120, 0
      %v2739 = vsel %vm2247, %v2122, 0
      %v2741 = vsel %vm2247, %v2124, 0
      %v2743 = vsel %vm2247, %v2126, 0
      %v2745 = vsel %vm2247, %v2128, 0
      %v2747 = vsel %vm2247, %v2130, 0
      %v2749 = vsel %vm2247, %v2132, 0
      %v2751 = vsel %vm2247, %v2134, 0
      %v2753 = vsel %vm2247, %v2136, 0
      %v2755 = vsel %vm2247, %v2138, 0
      %v2757 = vsel %vm2247, %v2140, 0
      %v2759 = vsel %vm2247, %v2142, 0
      %v2761 = vsel %vm2247, %v2144, 0
      %v2763 = vsel %vm2247, %v2146, 0
      %v2765 = vsel %vm2247, %v2148, 0
      %v2767 = vsel %vm2247, %v2150, 0
      %v2769 = vsel %vm2247, %v2152, 0
      %v2771 = vsel %vm2247, %v2154, 0
      %v2773 = vsel %vm2247, %v2156, 0
      %v2775 = vsel %vm2247, %v2158, 0
      %v2777 = vsel %vm2247, %v2160, 0
      %v2779 = vsel %vm2247, %v2162, 0
      %v2781 = vsel %vm2247, %v2164, 0
      %v2783 = vsel %vm2247, %v2166, 0
      %v2785 = vsel %vm2247, %v2168, 0
      %v2787 = vsel %vm2247, %v2170, 0
      %v2789 = vsel %vm2247, %v2172, 0
      %v2791 = vsel %vm2247, %v2174, 0
      %v2793 = vsel %vm2247, %v2176, 0
      %v2795 = vsel %vm2247, %v2178, 0
      %v2797 = vsel %vm2247, %v2180, 0
      %v2799 = vsel %vm2247, %v2182, 0
      %v2801 = vsel %vm2247, %v2184, 0
      %v2803 = vsel %vm2247, %v2186, 0
      %v2805 = vsel %vm2247, %v2188, 0
      %v2807 = vsel %vm2247, %v2190, 0
      %v2809 = vsel %vm2247, %v2192, 0
      %v2811 = vsel %vm2247, %v2194, 0
      %v2813 = vsel %vm2247, %v2196, 0
      %v2815 = vsel %vm2247, %v2198, 0
      %v2817 = vsel %vm2247, %v2200, 0
      %v2819 = vsel %vm2247, %v2202, 0
      %v2821 = vsel %vm2247, %v2204, 0
      %v2823 = vsel %vm2247, %v2206, 0
      %v2825 = vsel %vm2247, %v2208, 0
      %v2827 = vsel %vm2247, %v2210, 0
      %v2829 = vsel %vm2247, %v2212, 0
      %v2831 = vsel %vm2247, %v2214, 0
      %v2833 = vsel %vm2247, %v2216, 0
      %v2835 = vsel %vm2247, %v2218, 0
      %v2837 = vsel %vm2247, %v2220, 0
      %v2839 = vsel %vm2247, %v2222, 0
      %v2841 = vsel %vm2247, %v2224, 0
      %v2843 = vsel %vm2247, %v2226, 0
      %v2845 = vsel %vm2247, %v2228, 0
      %v2847 = vsel %vm2247, %v2230, 0
      %v2849 = vsel %vm2247, %v2232, 0
      %v2851 = vsel %vm2247, %v2234, 0
      %v2853 = vsel %vm2247, %v2236, 0
      %v2855 = vsel %vm2247, %v2238, 0
      %v2857 = vsel %vm2247, %v2240, 0
      %v2859 = vsel %vm2247, %v2242, 0
      %v2861 = vsel %vm2247, %v2244, 0
      %v2863 = vsel %vm2247, %v2246, 0
      %2865 = vmatprep.subr.mxu0 %v2505
      %2866 = vmatpush1.msra.mxu0 %v2504
      %2867 = vmatprep.subr.mxu0 %v2508
      %2868 = vmatpush1.msra.mxu0 %v2507
      %2869 = vmatprep.subr.mxu0 %v2511
      %2870 = vmatpush1.msra.mxu0 %v2510
      %2871 = vmatprep.subr.mxu0 %v2514
      %2872 = vmatpush1.msra.mxu0 %v2513
      %2873 = vmatprep.subr.mxu0 %v2517
      %2874 = vmatpush1.msra.mxu0 %v2516
      %2875 = vmatprep.subr.mxu0 %v2520
      %2876 = vmatpush1.msra.mxu0 %v2519
      %2877 = vmatprep.subr.mxu0 %v2523
      %2878 = vmatpush1.msra.mxu0 %v2522
      %2879 = vmatprep.subr.mxu0 %v2526
      %2880 = vmatpush1.msra.mxu0 %v2525
      %2881 = vmatprep.subr.mxu0 %v2529
      %2882 = vmatpush1.msra.mxu0 %v2528
      %2883 = vmatprep.subr.mxu0 %v2532
      %2884 = vmatpush1.msra.mxu0 %v2531
      %2885 = vmatprep.subr.mxu0 %v2535
      %2886 = vmatpush1.msra.mxu0 %v2534
      %2887 = vmatprep.subr.mxu0 %v2538
      %2888 = vmatpush1.msra.mxu0 %v2537
      %2889 = vmatprep.subr.mxu0 %v2541
      %2890 = vmatpush1.msra.mxu0 %v2540
      %2891 = vmatprep.subr.mxu0 %v2544
      %2892 = vmatpush1.msra.mxu0 %v2543
      %2893 = vmatprep.subr.mxu0 %v2547
      %2894 = vmatpush1.msra.mxu0 %v2546
      %2895 = vmatprep.subr.mxu0 %v2550
      %2896 = vmatpush1.msra.mxu0 %v2549
      %2897 = vmatprep.subr.mxu0 %v2553
      %2898 = vmatpush1.msra.mxu0 %v2552
      %2899 = vmatprep.subr.mxu0 %v2556
      %2900 = vmatpush1.msra.mxu0 %v2555
      %2901 = vmatprep.subr.mxu0 %v2559
      %2902 = vmatpush1.msra.mxu0 %v2558
      %2903 = vmatprep.subr.mxu0 %v2562
      %2904 = vmatpush1.msra.mxu0 %v2561
      %2905 = vmatprep.subr.mxu0 %v2565
      %2906 = vmatpush1.msra.mxu0 %v2564
      %2907 = vmatprep.subr.mxu0 %v2568
      %2908 = vmatpush1.msra.mxu0 %v2567
      %2909 = vmatprep.subr.mxu0 %v2571
      %2910 = vmatpush1.msra.mxu0 %v2570
      %2911 = vmatprep.subr.mxu0 %v2574
      %2912 = vmatpush1.msra.mxu0 %v2573
      %2913 = vmatprep.subr.mxu0 %v2577
      %2914 = vmatpush1.msra.mxu0 %v2576
      %2915 = vmatprep.subr.mxu0 %v2580
      %2916 = vmatpush1.msra.mxu0 %v2579
      %2917 = vmatprep.subr.mxu0 %v2583
      %2918 = vmatpush1.msra.mxu0 %v2582
      %2919 = vmatprep.subr.mxu0 %v2586
      %2920 = vmatpush1.msra.mxu0 %v2585
      %2921 = vmatprep.subr.mxu0 %v2589
      %2922 = vmatpush1.msra.mxu0 %v2588
      %2923 = vmatprep.subr.mxu0 %v2592
      %2924 = vmatpush1.msra.mxu0 %v2591
      %2925 = vmatprep.subr.mxu0 %v2595
      %2926 = vmatpush1.msra.mxu0 %v2594
      %2927 = vmatprep.subr.mxu0 %v2598
      %2928 = vmatpush1.msra.mxu0 %v2597
      %2929 = vmatprep.mubr.f32.mxu0 %v2312
      %2930 = vmatmul.mubr.f32.gmra.mrb[0].mxu0 %v2248
      %v2931 = vpop.f32.mrb[0].mxu0
      %v2932 = vadd.f32 %v2725, %v2931
      %v2933 = vpop.f32.mrb[0].mxu0
      %v2934 = vadd.f32 %v2729, %v2933
      %2935 = vmatprep.mubr.f32.mxu0 %v2313
      %2936 = vmatmul.mubr.f32.gmra.mrb[0].mxu0 %v2249
      %v2937 = vpop.f32.mrb[0].mxu0
      %v2938 = vadd.f32 %v2725, %v2937
      %v2939 = vpop.f32.mrb[0].mxu0
      %v2940 = vadd.f32 %v2729, %v2939
      %2941 = vmatprep.mubr.f32.mxu0 %v2314
      %2942 = vmatmul.mubr.f32.gmra.mrb[0].mxu0 %v2250
      %v2943 = vpop.f32.mrb[0].mxu0
      %v2944 = vadd.f32 %v2725, %v2943
      %v2945 = vpop.f32.mrb[0].mxu0
      %v2946 = vadd.f32 %v2729, %v2945
      %2947 = vmatprep.mubr.f32.mxu0 %v2315
      %2948 = vmatmul.mubr.f32.gmra.mrb[0].mxu0 %v2251
      %v2949 = vpop.f32.mrb[0].mxu0
      %v2950 = vadd.f32 %v2725, %v2949
      %v2951 = vpop.f32.mrb[0].mxu0
      %v2952 = vadd.f32 %v2729, %v2951
      %2953 = vmatprep.mubr.f32.mxu0 %v2316
      %2954 = vmatmul.mubr.f32.gmra.mrb[0].mxu0 %v2252
      %v2955 = vpop.f32.mrb[0].mxu0
      %v2956 = vadd.f32 %v2725, %v2955
      %v2957 = vpop.f32.mrb[0].mxu0
      %v2958 = vadd.f32 %v2729, %v2957
      %2959 = vmatprep.mubr.f32.mxu0 %v2317
      %2960 = vmatmul.mubr.f32.gmra.mrb[0].mxu0 %v2253
      %v2961 = vpop.f32.mrb[0].mxu0
      %v2962 = vadd.f32 %v2725, %v2961
      %v2963 = vpop.f32.mrb[0].mxu0
      %v2964 = vadd.f32 %v2729, %v2963
      %2965 = vmatprep.mubr.f32.mxu0 %v2318
      %2966 = vmatmul.mubr.f32.gmra.mrb[0].mxu0 %v2254
      %v2967 = vpop.f32.mrb[0].mxu0
      %v2968 = vadd.f32 %v2725, %v2967
      %v2969 = vpop.f32.mrb[0].mxu0
      %v2970 = vadd.f32 %v2729, %v2969
      %2971 = vmatprep.mubr.f32.mxu0 %v2319
      %2972 = vmatmul.mubr.f32.gmra.mrb[0].mxu0 %v2255
      %v2973 = vpop.f32.mrb[0].mxu0
      %v2974 = vadd.f32 %v2725, %v2973
      %v2975 = vpop.f32.mrb[0].mxu0
      %v2976 = vadd.f32 %v2729, %v2975
      %2977 = vmatprep.mubr.f32.mxu0 %v2320
      %2978 = vmatmul.mubr.f32.gmra.mrb[0].mxu0 %v2256
      %v2979 = vpop.f32.mrb[0].mxu0
      %v2980 = vadd.f32 %v2725, %v2979
      %v2981 = vpop.f32.mrb[0].mxu0
      %v2982 = vadd.f32 %v2729, %v2981
      %2983 = vmatprep.mubr.f32.mxu0 %v2321
      %2984 = vmatmul.mubr.f32.gmra.mrb[0].mxu0 %v2257
      %v2985 = vpop.f32.mrb[0].mxu0
      %v2986 = vadd.f32 %v2725, %v2985
      %v2987 = vpop.f32.mrb[0].mxu0
      %v2988 = vadd.f32 %v2729, %v2987
      %2989 = vmatprep.mubr.f32.mxu0 %v2322
      %2990 = vmatmul.mubr.f32.gmra.mrb[0].mxu0 %v2258
      %v2991 = vpop.f32.mrb[0].mxu0
      %v2992 = vadd.f32 %v2725, %v2991
      %v2993 = vpop.f32.mrb[0].mxu0
      %v2994 = vadd.f32 %v2729, %v2993
      %2995 = vmatprep.mubr.f32.mxu0 %v2323
      %2996 = vmatmul.mubr.f32.gmra.mrb[0].mxu0 %v2259
      %v2997 = vpop.f32.mrb[0].mxu0
      %v2998 = vadd.f32 %v2725, %v2997
      %v2999 = vpop.f32.mrb[0].mxu0
      %v3000 = vadd.f32 %v2729, %v2999
      %3001 = vmatprep.mubr.f32.mxu0 %v2324
      %3002 = vmatmul.mubr.f32.gmra.mrb[0].mxu0 %v2260
      %v3003 = vpop.f32.mrb[0].mxu0
      %v3004 = vadd.f32 %v2725, %v3003
      %v3005 = vpop.f32.mrb[0].mxu0
      %v3006 = vadd.f32 %v2729, %v3005
      %3007 = vmatprep.mubr.f32.mxu0 %v2325
      %3008 = vmatmul.mubr.f32.gmra.mrb[0].mxu0 %v2261
      %v3009 = vpop.f32.mrb[0].mxu0
      %v3010 = vadd.f32 %v2725, %v3009
      %v3011 = vpop.f32.mrb[0].mxu0
      %v3012 = vadd.f32 %v2729, %v3011
      %3013 = vmatprep.mubr.f32.mxu0 %v2326
      %3014 = vmatmul.mubr.f32.gmra.mrb[0].mxu0 %v2262
      %v3015 = vpop.f32.mrb[0].mxu0
      %v3016 = vadd.f32 %v2725, %v3015
      %v3017 = vpop.f32.mrb[0].mxu0
      %v3018 = vadd.f32 %v2729, %v3017
      %3019 = vmatprep.mubr.f32.mxu0 %v2327
      %3020 = vmatmul.mubr.f32.gmra.mrb[0].mxu0 %v2263
      %v3021 = vpop.f32.mrb[0].mxu0
      %v3022 = vadd.f32 %v2725, %v3021
      %v3023 = vpop.f32.mrb[0].mxu0
      %v3024 = vadd.f32 %v2729, %v3023
      %3025 = vmatprep.mubr.f32.mxu0 %v2328
      %3026 = vmatmul.mubr.f32.gmra.mrb[0].mxu0 %v2264
      %v3027 = vpop.f32.mrb[0].mxu0
      %v3028 = vadd.f32 %v2725, %v3027
      %v3029 = vpop.f32.mrb[0].mxu0
      %v3030 = vadd.f32 %v2729, %v3029
      %3031 = vmatprep.mubr.f32.mxu0 %v2329
      %3032 = vmatmul.mubr.f32.gmra.mrb[0].mxu0 %v2265
      %v3033 = vpop.f32.mrb[0].mxu0
      %v3034 = vadd.f32 %v2725, %v3033
      %v3035 = vpop.f32.mrb[0].mxu0
      %v3036 = vadd.f32 %v2729, %v3035
      %3037 = vmatprep.mubr.f32.mxu0 %v2330
      %3038 = vmatmul.mubr.f32.gmra.mrb[0].mxu0 %v2266
      %v3039 = vpop.f32.mrb[0].mxu0
      %v3040 = vadd.f32 %v2725, %v3039
      %v3041 = vpop.f32.mrb[0].mxu0
      %v3042 = vadd.f32 %v2729, %v3041
      %3043 = vmatprep.mubr.f32.mxu0 %v2331
      %3044 = vmatmul.mubr.f32.gmra.mrb[0].mxu0 %v2267
      %v3045 = vpop.f32.mrb[0].mxu0
      %v3046 = vadd.f32 %v2725, %v3045
      %v3047 = vpop.f32.mrb[0].mxu0
      %v3048 = vadd.f32 %v2729, %v3047
      %3049 = vmatprep.mubr.f32.mxu0 %v2332
      %3050 = vmatmul.mubr.f32.gmra.mrb[0].mxu0 %v2268
      %v3051 = vpop.f32.mrb[0].mxu0
      %v3052 = vadd.f32 %v2725, %v3051
      %v3053 = vpop.f32.mrb[0].mxu0
      %v3054 = vadd.f32 %v2729, %v3053
      %3055 = vmatprep.mubr.f32.mxu0 %v2333
      %3056 = vmatmul.mubr.f32.gmra.mrb[0].mxu0 %v2269
      %v3057 = vpop.f32.mrb[0].mxu0
      %v3058 = vadd.f32 %v2725, %v3057
      %v3059 = vpop.f32.mrb[0].mxu0
      %v3060 = vadd.f32 %v2729, %v3059
      %3061 = vmatprep.mubr.f32.mxu0 %v2334
      %3062 = vmatmul.mubr.f32.gmra.mrb[0].mxu0 %v2270
      %v3063 = vpop.f32.mrb[0].mxu0
      %v3064 = vadd.f32 %v2725, %v3063
      %v3065 = vpop.f32.mrb[0].mxu0
      %v3066 = vadd.f32 %v2729, %v3065
      %3067 = vmatprep.mubr.f32.mxu0 %v2335
      %3068 = vmatmul.mubr.f32.gmra.mrb[0].mxu0 %v2271
      %v3069 = vpop.f32.mrb[0].mxu0
      %v3070 = vadd.f32 %v2725, %v3069
      %v3071 = vpop.f32.mrb[0].mxu0
      %v3072 = vadd.f32 %v2729, %v3071
      %3073 = vmatprep.mubr.f32.mxu0 %v2336
      %3074 = vmatmul.mubr.f32.gmra.mrb[0].mxu0 %v2272
      %v3075 = vpop.f32.mrb[0].mxu0
      %v3076 = vadd.f32 %v2725, %v3075
      %v3077 = vpop.f32.mrb[0].mxu0
      %v3078 = vadd.f32 %v2729, %v3077
      %3079 = vmatprep.mubr.f32.mxu0 %v2337
      %3080 = vmatmul.mubr.f32.gmra.mrb[0].mxu0 %v2273
      %v3081 = vpop.f32.mrb[0].mxu0
      %v3082 = vadd.f32 %v2725, %v3081
      %v3083 = vpop.f32.mrb[0].mxu0
      %v3084 = vadd.f32 %v2729, %v3083
      %3085 = vmatprep.mubr.f32.mxu0 %v2338
      %3086 = vmatmul.mubr.f32.gmra.mrb[0].mxu0 %v2274
      %v3087 = vpop.f32.mrb[0].mxu0
      %v3088 = vadd.f32 %v2725, %v3087
      %v3089 = vpop.f32.mrb[0].mxu0
      %v3090 = vadd.f32 %v2729, %v3089
      %3091 = vmatprep.mubr.f32.mxu0 %v2339
      %3092 = vmatmul.mubr.f32.gmra.mrb[0].mxu0 %v2275
      %v3093 = vpop.f32.mrb[0].mxu0
      %v3094 = vadd.f32 %v2725, %v3093
      %v3095 = vpop.f32.mrb[0].mxu0
      %v3096 = vadd.f32 %v2729, %v3095
      %3097 = vmatprep.mubr.f32.mxu0 %v2340
      %3098 = vmatmul.mubr.f32.gmra.mrb[0].mxu0 %v2276
      %v3099 = vpop.f32.mrb[0].mxu0
      %v3100 = vadd.f32 %v2725, %v3099
      %v3101 = vpop.f32.mrb[0].mxu0
      %v3102 = vadd.f32 %v2729, %v3101
      %3103 = vmatprep.mubr.f32.mxu0 %v2341
      %3104 = vmatmul.mubr.f32.gmra.mrb[0].mxu0 %v2277
      %v3105 = vpop.f32.mrb[0].mxu0
      %v3106 = vadd.f32 %v2725, %v3105
      %v3107 = vpop.f32.mrb[0].mxu0
      %v3108 = vadd.f32 %v2729, %v3107
      %3109 = vmatprep.mubr.f32.mxu0 %v2342
      %3110 = vmatmul.mubr.f32.gmra.mrb[0].mxu0 %v2278
      %v3111 = vpop.f32.mrb[0].mxu0
      %v3112 = vadd.f32 %v2725, %v3111
      %v3113 = vpop.f32.mrb[0].mxu0
      %v3114 = vadd.f32 %v2729, %v3113
      %3115 = vmatprep.mubr.f32.mxu0 %v2343
      %3116 = vmatmul.mubr.f32.gmra.mrb[0].mxu0 %v2279
      %v3117 = vpop.f32.mrb[0].mxu0
      %v3118 = vadd.f32 %v2725, %v3117
      %v3119 = vpop.f32.mrb[0].mxu0
      %v3120 = vadd.f32 %v2729, %v3119
      %3121 = vmatprep.mubr.f32.mxu0 %v2344
      %3122 = vmatmul.mubr.f32.gmra.mrb[0].mxu0 %v2280
      %v3123 = vpop.f32.mrb[0].mxu0
      %v3124 = vadd.f32 %v2725, %v3123
      %v3125 = vpop.f32.mrb[0].mxu0
      %v3126 = vadd.f32 %v2729, %v3125
      %3127 = vmatprep.mubr.f32.mxu0 %v2345
      %3128 = vmatmul.mubr.f32.gmra.mrb[0].mxu0 %v2281
      %v3129 = vpop.f32.mrb[0].mxu0
      %v3130 = vadd.f32 %v2725, %v3129
      %v3131 = vpop.f32.mrb[0].mxu0
      %v3132 = vadd.f32 %v2729, %v3131
      %3133 = vmatprep.mubr.f32.mxu0 %v2346
      %3134 = vmatmul.mubr.f32.gmra.mrb[0].mxu0 %v2282
      %v3135 = vpop.f32.mrb[0].mxu0
      %v3136 = vadd.f32 %v2725, %v3135
      %v3137 = vpop.f32.mrb[0].mxu0
      %v3138 = vadd.f32 %v2729, %v3137
      %3139 = vmatprep.mubr.f32.mxu0 %v2347
      %3140 = vmatmul.mubr.f32.gmra.mrb[0].mxu0 %v2283
      %v3141 = vpop.f32.mrb[0].mxu0
      %v3142 = vadd.f32 %v2725, %v3141
      %v3143 = vpop.f32.mrb[0].mxu0
      %v3144 = vadd.f32 %v2729, %v3143
      %3145 = vmatprep.mubr.f32.mxu0 %v2348
      %3146 = vmatmul.mubr.f32.gmra.mrb[0].mxu0 %v2284
      %v3147 = vpop.f32.mrb[0].mxu0
      %v3148 = vadd.f32 %v2725, %v3147
      %v3149 = vpop.f32.mrb[0].mxu0
      %v3150 = vadd.f32 %v2729, %v3149
      %3151 = vmatprep.mubr.f32.mxu0 %v2349
      %3152 = vmatmul.mubr.f32.gmra.mrb[0].mxu0 %v2285
      %v3153 = vpop.f32.mrb[0].mxu0
      %v3154 = vadd.f32 %v2725, %v3153
      %v3155 = vpop.f32.mrb[0].mxu0
      %v3156 = vadd.f32 %v2729, %v3155
      %3157 = vmatprep.mubr.f32.mxu0 %v2350
      %3158 = vmatmul.mubr.f32.gmra.mrb[0].mxu0 %v2286
      %v3159 = vpop.f32.mrb[0].mxu0
      %v3160 = vadd.f32 %v2725, %v3159
      %v3161 = vpop.f32.mrb[0].mxu0
      %v3162 = vadd.f32 %v2729, %v3161
      %3163 = vmatprep.mubr.f32.mxu0 %v2351
      %3164 = vmatmul.mubr.f32.gmra.mrb[0].mxu0 %v2287
      %v3165 = vpop.f32.mrb[0].mxu0
      %v3166 = vadd.f32 %v2725, %v3165
      %v3167 = vpop.f32.mrb[0].mxu0
      %v3168 = vadd.f32 %v2729, %v3167
      %3169 = vmatprep.mubr.f32.mxu0 %v2352
      %3170 = vmatmul.mubr.f32.gmra.mrb[0].mxu0 %v2288
      %v3171 = vpop.f32.mrb[0].mxu0
      %v3172 = vadd.f32 %v2725, %v3171
      %v3173 = vpop.f32.mrb[0].mxu0
      %v3174 = vadd.f32 %v2729, %v3173
      %3175 = vmatprep.mubr.f32.mxu0 %v2353
      %3176 = vmatmul.mubr.f32.gmra.mrb[0].mxu0 %v2289
      %v3177 = vpop.f32.mrb[0].mxu0
      %v3178 = vadd.f32 %v2725, %v3177
      %v3179 = vpop.f32.mrb[0].mxu0
      %v3180 = vadd.f32 %v2729, %v3179
      %3181 = vmatprep.mubr.f32.mxu0 %v2354
      %3182 = vmatmul.mubr.f32.gmra.mrb[0].mxu0 %v2290
      %v3183 = vpop.f32.mrb[0].mxu0
      %v3184 = vadd.f32 %v2725, %v3183
      %v3185 = vpop.f32.mrb[0].mxu0
      %v3186 = vadd.f32 %v2729, %v3185
      %3187 = vmatprep.mubr.f32.mxu0 %v2355
      %3188 = vmatmul.mubr.f32.gmra.mrb[0].mxu0 %v2291
      %v3189 = vpop.f32.mrb[0].mxu0
      %v3190 = vadd.f32 %v2725, %v3189
      %v3191 = vpop.f32.mrb[0].mxu0
      %v3192 = vadd.f32 %v2729, %v3191
      %3193 = vmatprep.mubr.f32.mxu0 %v2356
      %3194 = vmatmul.mubr.f32.gmra.mrb[0].mxu0 %v2292
      %v3195 = vpop.f32.mrb[0].mxu0
      %v3196 = vadd.f32 %v2725, %v3195
      %v3197 = vpop.f32.mrb[0].mxu0
      %v3198 = vadd.f32 %v2729, %v3197
      %3199 = vmatprep.mubr.f32.mxu0 %v2357
      %3200 = vmatmul.mubr.f32.gmra.mrb[0].mxu0 %v2293
      %v3201 = vpop.f32.mrb[0].mxu0
      %v3202 = vadd.f32 %v2725, %v3201
      %v3203 = vpop.f32.mrb[0].mxu0
      %v3204 = vadd.f32 %v2729, %v3203
      %3205 = vmatprep.mubr.f32.mxu0 %v2358
      %3206 = vmatmul.mubr.f32.gmra.mrb[0].mxu0 %v2294
      %v3207 = vpop.f32.mrb[0].mxu0
      %v3208 = vadd.f32 %v2725, %v3207
      %v3209 = vpop.f32.mrb[0].mxu0
      %v3210 = vadd.f32 %v2729, %v3209
      %3211 = vmatprep.mubr.f32.mxu0 %v2359
      %3212 = vmatmul.mubr.f32.gmra.mrb[0].mxu0 %v2295
      %v3213 = vpop.f32.mrb[0].mxu0
      %v3214 = vadd.f32 %v2725, %v3213
      %v3215 = vpop.f32.mrb[0].mxu0
      %v3216 = vadd.f32 %v2729, %v3215
      %3217 = vmatprep.mubr.f32.mxu0 %v2360
      %3218 = vmatmul.mubr.f32.gmra.mrb[0].mxu0 %v2296
      %v3219 = vpop.f32.mrb[0].mxu0
      %v3220 = vadd.f32 %v2725, %v3219
      %v3221 = vpop.f32.mrb[0].mxu0
      %v3222 = vadd.f32 %v2729, %v3221
      %3223 = vmatprep.mubr.f32.mxu0 %v2361
      %3224 = vmatmul.mubr.f32.gmra.mrb[0].mxu0 %v2297
      %v3225 = vpop.f32.mrb[0].mxu0
      %v3226 = vadd.f32 %v2725, %v3225
      %v3227 = vpop.f32.mrb[0].mxu0
      %v3228 = vadd.f32 %v2729, %v3227
      %3229 = vmatprep.mubr.f32.mxu0 %v2362
      %3230 = vmatmul.mubr.f32.gmra.mrb[0].mxu0 %v2298
      %v3231 = vpop.f32.mrb[0].mxu0
      %v3232 = vadd.f32 %v2725, %v3231
      %v3233 = vpop.f32.mrb[0].mxu0
      %v3234 = vadd.f32 %v2729, %v3233
      %3235 = vmatprep.mubr.f32.mxu0 %v2363
      %3236 = vmatmul.mubr.f32.gmra.mrb[0].mxu0 %v2299
      %v3237 = vpop.f32.mrb[0].mxu0
      %v3238 = vadd.f32 %v2725, %v3237
      %v3239 = vpop.f32.mrb[0].mxu0
      %v3240 = vadd.f32 %v2729, %v3239
      %3241 = vmatprep.mubr.f32.mxu0 %v2364
      %3242 = vmatmul.mubr.f32.gmra.mrb[0].mxu0 %v2300
      %v3243 = vpop.f32.mrb[0].mxu0
      %v3244 = vadd.f32 %v2725, %v3243
      %v3245 = vpop.f32.mrb[0].mxu0
      %v3246 = vadd.f32 %v2729, %v3245
      %3247 = vmatprep.mubr.f32.mxu0 %v2365
      %3248 = vmatmul.mubr.f32.gmra.mrb[0].mxu0 %v2301
      %v3249 = vpop.f32.mrb[0].mxu0
      %v3250 = vadd.f32 %v2725, %v3249
      %v3251 = vpop.f32.mrb[0].mxu0
      %v3252 = vadd.f32 %v2729, %v3251
      %3253 = vmatprep.mubr.f32.mxu0 %v2366
      %3254 = vmatmul.mubr.f32.gmra.mrb[0].mxu0 %v2302
      %v3255 = vpop.f32.mrb[0].mxu0
      %v3256 = vadd.f32 %v2725, %v3255
      %v3257 = vpop.f32.mrb[0].mxu0
      %v3258 = vadd.f32 %v2729, %v3257
      %3259 = vmatprep.mubr.f32.mxu0 %v2367
      %3260 = vmatmul.mubr.f32.gmra.mrb[0].mxu0 %v2303
      %v3261 = vpop.f32.mrb[0].mxu0
      %v3262 = vadd.f32 %v2725, %v3261
      %v3263 = vpop.f32.mrb[0].mxu0
      %v3264 = vadd.f32 %v2729, %v3263
      %3265 = vmatprep.mubr.f32.mxu0 %v2368
      %3266 = vmatmul.mubr.f32.gmra.mrb[0].mxu0 %v2304
      %v3267 = vpop.f32.mrb[0].mxu0
      %v3268 = vadd.f32 %v2725, %v3267
      %v3269 = vpop.f32.mrb[0].mxu0
      %v3270 = vadd.f32 %v2729, %v3269
      %3271 = vmatprep.mubr.f32.mxu0 %v2369
      %3272 = vmatmul.mubr.f32.gmra.mrb[0].mxu0 %v2305
      %v3273 = vpop.f32.mrb[0].mxu0
      %v3274 = vadd.f32 %v2725, %v3273
      %v3275 = vpop.f32.mrb[0].mxu0
      %v3276 = vadd.f32 %v2729, %v3275
      %3277 = vmatprep.mubr.f32.mxu0 %v2370
      %3278 = vmatmul.mubr.f32.gmra.mrb[0].mxu0 %v2306
      %v3279 = vpop.f32.mrb[0].mxu0
      %v3280 = vadd.f32 %v2725, %v3279
      %v3281 = vpop.f32.mrb[0].mxu0
      %v3282 = vadd.f32 %v2729, %v3281
      %3283 = vmatprep.mubr.f32.mxu0 %v2371
      %3284 = vmatmul.mubr.f32.gmra.mrb[0].mxu0 %v2307
      %v3285 = vpop.f32.mrb[0].mxu0
      %v3286 = vadd.f32 %v2725, %v3285
      %v3287 = vpop.f32.mrb[0].mxu0
      %v3288 = vadd.f32 %v2729, %v3287
      %3289 = vmatprep.mubr.f32.mxu0 %v2372
      %3290 = vmatmul.mubr.f32.gmra.mrb[0].mxu0 %v2308
      %v3291 = vpop.f32.mrb[0].mxu0
      %v3292 = vadd.f32 %v2725, %v3291
      %v3293 = vpop.f32.mrb[0].mxu0
      %v3294 = vadd.f32 %v2729, %v3293
      %3295 = vmatprep.mubr.f32.mxu0 %v2373
      %3296 = vmatmul.mubr.f32.gmra.mrb[0].mxu0 %v2309
      %v3297 = vpop.f32.mrb[0].mxu0
      %v3298 = vadd.f32 %v2725, %v3297
      %v3299 = vpop.f32.mrb[0].mxu0
      %v3300 = vadd.f32 %v2729, %v3299
      %3301 = vmatprep.mubr.f32.mxu0 %v2374
      %3302 = vmatmul.mubr.f32.gmra.mrb[0].mxu0 %v2310
      %v3303 = vpop.f32.mrb[0].mxu0
      %v3304 = vadd.f32 %v2725, %v3303
      %v3305 = vpop.f32.mrb[0].mxu0
      %v3306 = vadd.f32 %v2729, %v3305
      %3307 = vmatprep.mubr.f32.mxu0 %v2375
      %3308 = vmatmul.mubr.f32.gmra.mrb[0].mxu0 %v2311
      %v3309 = vpop.f32.mrb[0].mxu0
      %v3310 = vadd.f32 %v2725, %v3309
      %v3311 = vpop.f32.mrb[0].mxu0
      %v3312 = vadd.f32 %v2729, %v3311
      %3313 = vdwg.mxu0
      %3314 = vmatprep.subr.mxu0 %v2601
      %3315 = vmatpush1.msra.mxu0 %v2600
      %3316 = vmatprep.subr.mxu0 %v2604
      %3317 = vmatpush1.msra.mxu0 %v2603
      %3318 = vmatprep.subr.mxu0 %v2607
      %3319 = vmatpush1.msra.mxu0 %v2606
      %3320 = vmatprep.subr.mxu0 %v2610
      %3321 = vmatpush1.msra.mxu0 %v2609
      %3322 = vmatprep.subr.mxu0 %v2613
      %3323 = vmatpush1.msra.mxu0 %v2612
      %3324 = vmatprep.subr.mxu0 %v2616
      %3325 = vmatpush1.msra.mxu0 %v2615
      %3326 = vmatprep.subr.mxu0 %v2619
      %3327 = vmatpush1.msra.mxu0 %v2618
      %3328 = vmatprep.subr.mxu0 %v2622
      %3329 = vmatpush1.msra.mxu0 %v2621
      %3330 = vmatprep.subr.mxu0 %v2625
      %3331 = vmatpush1.msra.mxu0 %v2624
      %3332 = vmatprep.subr.mxu0 %v2628
      %3333 = vmatpush1.msra.mxu0 %v2627
      %3334 = vmatprep.subr.mxu0 %v2631
      %3335 = vmatpush1.msra.mxu0 %v2630
      %3336 = vmatprep.subr.mxu0 %v2634
      %3337 = vmatpush1.msra.mxu0 %v2633
      %3338 = vmatprep.subr.mxu0 %v2637
      %3339 = vmatpush1.msra.mxu0 %v2636
      %3340 = vmatprep.subr.mxu0 %v2640
      %3341 = vmatpush1.msra.mxu0 %v2639
      %3342 = vmatprep.subr.mxu0 %v2643
      %3343 = vmatpush1.msra.mxu0 %v2642
      %3344 = vmatprep.subr.mxu0 %v2646
      %3345 = vmatpush1.msra.mxu0 %v2645
      %3346 = vmatprep.subr.mxu0 %v2649
      %3347 = vmatpush1.msra.mxu0 %v2648
      %3348 = vmatprep.subr.mxu0 %v2652
      %3349 = vmatpush1.msra.mxu0 %v2651
      %3350 = vmatprep.subr.mxu0 %v2655
      %3351 = vmatpush1.msra.mxu0 %v2654
      %3352 = vmatprep.subr.mxu0 %v2658
      %3353 = vmatpush1.msra.mxu0 %v2657
      %3354 = vmatprep.subr.mxu0 %v2661
      %3355 = vmatpush1.msra.mxu0 %v2660
      %3356 = vmatprep.subr.mxu0 %v2664
      %3357 = vmatpush1.msra.mxu0 %v2663
      %3358 = vmatprep.subr.mxu0 %v2667
      %3359 = vmatpush1.msra.mxu0 %v2666
      %3360 = vmatprep.subr.mxu0 %v2670
      %3361 = vmatpush1.msra.mxu0 %v2669
      %3362 = vmatprep.subr.mxu0 %v2673
      %3363 = vmatpush1.msra.mxu0 %v2672
      %3364 = vmatprep.subr.mxu0 %v2676
      %3365 = vmatpush1.msra.mxu0 %v2675
      %3366 = vmatprep.subr.mxu0 %v2679
      %3367 = vmatpush1.msra.mxu0 %v2678
      %3368 = vmatprep.subr.mxu0 %v2682
      %3369 = vmatpush1.msra.mxu0 %v2681
      %3370 = vmatprep.subr.mxu0 %v2685
      %3371 = vmatpush1.msra.mxu0 %v2684
      %3372 = vmatprep.subr.mxu0 %v2688
      %3373 = vmatpush1.msra.mxu0 %v2687
      %3374 = vmatprep.subr.mxu0 %v2691
      %3375 = vmatpush1.msra.mxu0 %v2690
      %3376 = vmatprep.subr.mxu0 %v2694
      %3377 = vmatpush1.msra.mxu0 %v2693
      %3378 = vmatprep.mubr.f32.mxu0 %v2440
      %3379 = vmatmul.mubr.f32.gmra.mrb[0].mxu0 %v2376
      %v3380 = vpop.f32.mrb[0].mxu0
      %v3381 = vadd.f32 %v2932, %v3380
      %v3382 = vpop.f32.mrb[0].mxu0
      %v3383 = vadd.f32 %v2934, %v3382
      %3384 = vmatprep.mubr.f32.mxu0 %v2441
      %3385 = vmatmul.mubr.f32.gmra.mrb[0].mxu0 %v2377
      %v3386 = vpop.f32.mrb[0].mxu0
      %v3387 = vadd.f32 %v2938, %v3386
      %v3388 = vpop.f32.mrb[0].mxu0
      %v3389 = vadd.f32 %v2940, %v3388
      %3390 = vmatprep.mubr.f32.mxu0 %v2442
      %3391 = vmatmul.mubr.f32.gmra.mrb[0].mxu0 %v2378
      %v3392 = vpop.f32.mrb[0].mxu0
      %v3393 = vadd.f32 %v2944, %v3392
      %v3394 = vpop.f32.mrb[0].mxu0
      %v3395 = vadd.f32 %v2946, %v3394
      %3396 = vmatprep.mubr.f32.mxu0 %v2443
      %3397 = vmatmul.mubr.f32.gmra.mrb[0].mxu0 %v2379
      %v3398 = vpop.f32.mrb[0].mxu0
      %v3399 = vadd.f32 %v2950, %v3398
      %v3400 = vpop.f32.mrb[0].mxu0
      %v3401 = vadd.f32 %v2952, %v3400
      %3402 = vmatprep.mubr.f32.mxu0 %v2444
      %3403 = vmatmul.mubr.f32.gmra.mrb[0].mxu0 %v2380
      %v3404 = vpop.f32.mrb[0].mxu0
      %v3405 = vadd.f32 %v2956, %v3404
      %v3406 = vpop.f32.mrb[0].mxu0
      %v3407 = vadd.f32 %v2958, %v3406
      %3408 = vmatprep.mubr.f32.mxu0 %v2445
      %3409 = vmatmul.mubr.f32.gmra.mrb[0].mxu0 %v2381
      %v3410 = vpop.f32.mrb[0].mxu0
      %v3411 = vadd.f32 %v2962, %v3410
      %v3412 = vpop.f32.mrb[0].mxu0
      %v3413 = vadd.f32 %v2964, %v3412
      %3414 = vmatprep.mubr.f32.mxu0 %v2446
      %3415 = vmatmul.mubr.f32.gmra.mrb[0].mxu0 %v2382
      %v3416 = vpop.f32.mrb[0].mxu0
      %v3417 = vadd.f32 %v2968, %v3416
      %v3418 = vpop.f32.mrb[0].mxu0
      %v3419 = vadd.f32 %v2970, %v3418
      %3420 = vmatprep.mubr.f32.mxu0 %v2447
      %3421 = vmatmul.mubr.f32.gmra.mrb[0].mxu0 %v2383
      %v3422 = vpop.f32.mrb[0].mxu0
      %v3423 = vadd.f32 %v2974, %v3422
      %v3424 = vpop.f32.mrb[0].mxu0
      %v3425 = vadd.f32 %v2976, %v3424
      %3426 = vmatprep.mubr.f32.mxu0 %v2448
      %3427 = vmatmul.mubr.f32.gmra.mrb[0].mxu0 %v2384
      %v3428 = vpop.f32.mrb[0].mxu0
      %v3429 = vadd.f32 %v2980, %v3428
      %v3430 = vpop.f32.mrb[0].mxu0
      %v3431 = vadd.f32 %v2982, %v3430
      %3432 = vmatprep.mubr.f32.mxu0 %v2449
      %3433 = vmatmul.mubr.f32.gmra.mrb[0].mxu0 %v2385
      %v3434 = vpop.f32.mrb[0].mxu0
      %v3435 = vadd.f32 %v2986, %v3434
      %v3436 = vpop.f32.mrb[0].mxu0
      %v3437 = vadd.f32 %v2988, %v3436
      %3438 = vmatprep.mubr.f32.mxu0 %v2450
      %3439 = vmatmul.mubr.f32.gmra.mrb[0].mxu0 %v2386
      %v3440 = vpop.f32.mrb[0].mxu0
      %v3441 = vadd.f32 %v2992, %v3440
      %v3442 = vpop.f32.mrb[0].mxu0
      %v3443 = vadd.f32 %v2994, %v3442
      %3444 = vmatprep.mubr.f32.mxu0 %v2451
      %3445 = vmatmul.mubr.f32.gmra.mrb[0].mxu0 %v2387
      %v3446 = vpop.f32.mrb[0].mxu0
      %v3447 = vadd.f32 %v2998, %v3446
      %v3448 = vpop.f32.mrb[0].mxu0
      %v3449 = vadd.f32 %v3000, %v3448
      %3450 = vmatprep.mubr.f32.mxu0 %v2452
      %3451 = vmatmul.mubr.f32.gmra.mrb[0].mxu0 %v2388
      %v3452 = vpop.f32.mrb[0].mxu0
      %v3453 = vadd.f32 %v3004, %v3452
      %v3454 = vpop.f32.mrb[0].mxu0
      %v3455 = vadd.f32 %v3006, %v3454
      %3456 = vmatprep.mubr.f32.mxu0 %v2453
      %3457 = vmatmul.mubr.f32.gmra.mrb[0].mxu0 %v2389
      %v3458 = vpop.f32.mrb[0].mxu0
      %v3459 = vadd.f32 %v3010, %v3458
      %v3460 = vpop.f32.mrb[0].mxu0
      %v3461 = vadd.f32 %v3012, %v3460
      %3462 = vmatprep.mubr.f32.mxu0 %v2454
      %3463 = vmatmul.mubr.f32.gmra.mrb[0].mxu0 %v2390
      %v3464 = vpop.f32.mrb[0].mxu0
      %v3465 = vadd.f32 %v3016, %v3464
      %v3466 = vpop.f32.mrb[0].mxu0
      %v3467 = vadd.f32 %v3018, %v3466
      %3468 = vmatprep.mubr.f32.mxu0 %v2455
      %3469 = vmatmul.mubr.f32.gmra.mrb[0].mxu0 %v2391
      %v3470 = vpop.f32.mrb[0].mxu0
      %v3471 = vadd.f32 %v3022, %v3470
      %v3472 = vpop.f32.mrb[0].mxu0
      %v3473 = vadd.f32 %v3024, %v3472
      %3474 = vmatprep.mubr.f32.mxu0 %v2456
      %3475 = vmatmul.mubr.f32.gmra.mrb[0].mxu0 %v2392
      %v3476 = vpop.f32.mrb[0].mxu0
      %v3477 = vadd.f32 %v3028, %v3476
      %v3478 = vpop.f32.mrb[0].mxu0
      %v3479 = vadd.f32 %v3030, %v3478
      %3480 = vmatprep.mubr.f32.mxu0 %v2457
      %3481 = vmatmul.mubr.f32.gmra.mrb[0].mxu0 %v2393
      %v3482 = vpop.f32.mrb[0].mxu0
      %v3483 = vadd.f32 %v3034, %v3482
      %v3484 = vpop.f32.mrb[0].mxu0
      %v3485 = vadd.f32 %v3036, %v3484
      %3486 = vmatprep.mubr.f32.mxu0 %v2458
      %3487 = vmatmul.mubr.f32.gmra.mrb[0].mxu0 %v2394
      %v3488 = vpop.f32.mrb[0].mxu0
      %v3489 = vadd.f32 %v3040, %v3488
      %v3490 = vpop.f32.mrb[0].mxu0
      %v3491 = vadd.f32 %v3042, %v3490
      %3492 = vmatprep.mubr.f32.mxu0 %v2459
      %3493 = vmatmul.mubr.f32.gmra.mrb[0].mxu0 %v2395
      %v3494 = vpop.f32.mrb[0].mxu0
      %v3495 = vadd.f32 %v3046, %v3494
      %v3496 = vpop.f32.mrb[0].mxu0
      %v3497 = vadd.f32 %v3048, %v3496
      %3498 = vmatprep.mubr.f32.mxu0 %v2460
      %3499 = vmatmul.mubr.f32.gmra.mrb[0].mxu0 %v2396
      %v3500 = vpop.f32.mrb[0].mxu0
      %v3501 = vadd.f32 %v3052, %v3500
      %v3502 = vpop.f32.mrb[0].mxu0
      %v3503 = vadd.f32 %v3054, %v3502
      %3504 = vmatprep.mubr.f32.mxu0 %v2461
      %3505 = vmatmul.mubr.f32.gmra.mrb[0].mxu0 %v2397
      %v3506 = vpop.f32.mrb[0].mxu0
      %v3507 = vadd.f32 %v3058, %v3506
      %v3508 = vpop.f32.mrb[0].mxu0
      %v3509 = vadd.f32 %v3060, %v3508
      %3510 = vmatprep.mubr.f32.mxu0 %v2462
      %3511 = vmatmul.mubr.f32.gmra.mrb[0].mxu0 %v2398
      %v3512 = vpop.f32.mrb[0].mxu0
      %v3513 = vadd.f32 %v3064, %v3512
      %v3514 = vpop.f32.mrb[0].mxu0
      %v3515 = vadd.f32 %v3066, %v3514
      %3516 = vmatprep.mubr.f32.mxu0 %v2463
      %3517 = vmatmul.mubr.f32.gmra.mrb[0].mxu0 %v2399
      %v3518 = vpop.f32.mrb[0].mxu0
      %v3519 = vadd.f32 %v3070, %v3518
      %v3520 = vpop.f32.mrb[0].mxu0
      %v3521 = vadd.f32 %v3072, %v3520
      %3522 = vmatprep.mubr.f32.mxu0 %v2464
      %3523 = vmatmul.mubr.f32.gmra.mrb[0].mxu0 %v2400
      %v3524 = vpop.f32.mrb[0].mxu0
      %v3525 = vadd.f32 %v3076, %v3524
      %v3526 = vpop.f32.mrb[0].mxu0
      %v3527 = vadd.f32 %v3078, %v3526
      %3528 = vmatprep.mubr.f32.mxu0 %v2465
      %3529 = vmatmul.mubr.f32.gmra.mrb[0].mxu0 %v2401
      %v3530 = vpop.f32.mrb[0].mxu0
      %v3531 = vadd.f32 %v3082, %v3530
      %v3532 = vpop.f32.mrb[0].mxu0
      %v3533 = vadd.f32 %v3084, %v3532
      %3534 = vmatprep.mubr.f32.mxu0 %v2466
      %3535 = vmatmul.mubr.f32.gmra.mrb[0].mxu0 %v2402
      %v3536 = vpop.f32.mrb[0].mxu0
      %v3537 = vadd.f32 %v3088, %v3536
      %v3538 = vpop.f32.mrb[0].mxu0
      %v3539 = vadd.f32 %v3090, %v3538
      %3540 = vmatprep.mubr.f32.mxu0 %v2467
      %3541 = vmatmul.mubr.f32.gmra.mrb[0].mxu0 %v2403
      %v3542 = vpop.f32.mrb[0].mxu0
      %v3543 = vadd.f32 %v3094, %v3542
      %v3544 = vpop.f32.mrb[0].mxu0
      %v3545 = vadd.f32 %v3096, %v3544
      %3546 = vmatprep.mubr.f32.mxu0 %v2468
      %3547 = vmatmul.mubr.f32.gmra.mrb[0].mxu0 %v2404
      %v3548 = vpop.f32.mrb[0].mxu0
      %v3549 = vadd.f32 %v3100, %v3548
      %v3550 = vpop.f32.mrb[0].mxu0
      %v3551 = vadd.f32 %v3102, %v3550
      %3552 = vmatprep.mubr.f32.mxu0 %v2469
      %3553 = vmatmul.mubr.f32.gmra.mrb[0].mxu0 %v2405
      %v3554 = vpop.f32.mrb[0].mxu0
      %v3555 = vadd.f32 %v3106, %v3554
      %v3556 = vpop.f32.mrb[0].mxu0
      %v3557 = vadd.f32 %v3108, %v3556
      %3558 = vmatprep.mubr.f32.mxu0 %v2470
      %3559 = vmatmul.mubr.f32.gmra.mrb[0].mxu0 %v2406
      %v3560 = vpop.f32.mrb[0].mxu0
      %v3561 = vadd.f32 %v3112, %v3560
      %v3562 = vpop.f32.mrb[0].mxu0
      %v3563 = vadd.f32 %v3114, %v3562
      %3564 = vmatprep.mubr.f32.mxu0 %v2471
      %3565 = vmatmul.mubr.f32.gmra.mrb[0].mxu0 %v2407
      %v3566 = vpop.f32.mrb[0].mxu0
      %v3567 = vadd.f32 %v3118, %v3566
      %v3568 = vpop.f32.mrb[0].mxu0
      %v3569 = vadd.f32 %v3120, %v3568
      %3570 = vmatprep.mubr.f32.mxu0 %v2472
      %3571 = vmatmul.mubr.f32.gmra.mrb[0].mxu0 %v2408
      %v3572 = vpop.f32.mrb[0].mxu0
      %v3573 = vadd.f32 %v3124, %v3572
      %v3574 = vpop.f32.mrb[0].mxu0
      %v3575 = vadd.f32 %v3126, %v3574
      %3576 = vmatprep.mubr.f32.mxu0 %v2473
      %3577 = vmatmul.mubr.f32.gmra.mrb[0].mxu0 %v2409
      %v3578 = vpop.f32.mrb[0].mxu0
      %v3579 = vadd.f32 %v3130, %v3578
      %v3580 = vpop.f32.mrb[0].mxu0
      %v3581 = vadd.f32 %v3132, %v3580
      %3582 = vmatprep.mubr.f32.mxu0 %v2474
      %3583 = vmatmul.mubr.f32.gmra.mrb[0].mxu0 %v2410
      %v3584 = vpop.f32.mrb[0].mxu0
      %v3585 = vadd.f32 %v3136, %v3584
      %v3586 = vpop.f32.mrb[0].mxu0
      %v3587 = vadd.f32 %v3138, %v3586
      %3588 = vmatprep.mubr.f32.mxu0 %v2475
      %3589 = vmatmul.mubr.f32.gmra.mrb[0].mxu0 %v2411
      %v3590 = vpop.f32.mrb[0].mxu0
      %v3591 = vadd.f32 %v3142, %v3590
      %v3592 = vpop.f32.mrb[0].mxu0
      %v3593 = vadd.f32 %v3144, %v3592
      %3594 = vmatprep.mubr.f32.mxu0 %v2476
      %3595 = vmatmul.mubr.f32.gmra.mrb[0].mxu0 %v2412
      %v3596 = vpop.f32.mrb[0].mxu0
      %v3597 = vadd.f32 %v3148, %v3596
      %v3598 = vpop.f32.mrb[0].mxu0
      %v3599 = vadd.f32 %v3150, %v3598
      %3600 = vmatprep.mubr.f32.mxu0 %v2477
      %3601 = vmatmul.mubr.f32.gmra.mrb[0].mxu0 %v2413
      %v3602 = vpop.f32.mrb[0].mxu0
      %v3603 = vadd.f32 %v3154, %v3602
      %v3604 = vpop.f32.mrb[0].mxu0
      %v3605 = vadd.f32 %v3156, %v3604
      %3606 = vmatprep.mubr.f32.mxu0 %v2478
      %3607 = vmatmul.mubr.f32.gmra.mrb[0].mxu0 %v2414
      %v3608 = vpop.f32.mrb[0].mxu0
      %v3609 = vadd.f32 %v3160, %v3608
      %v3610 = vpop.f32.mrb[0].mxu0
      %v3611 = vadd.f32 %v3162, %v3610
      %3612 = vmatprep.mubr.f32.mxu0 %v2479
      %3613 = vmatmul.mubr.f32.gmra.mrb[0].mxu0 %v2415
      %v3614 = vpop.f32.mrb[0].mxu0
      %v3615 = vadd.f32 %v3166, %v3614
      %v3616 = vpop.f32.mrb[0].mxu0
      %v3617 = vadd.f32 %v3168, %v3616
      %3618 = vmatprep.mubr.f32.mxu0 %v2480
      %3619 = vmatmul.mubr.f32.gmra.mrb[0].mxu0 %v2416
      %v3620 = vpop.f32.mrb[0].mxu0
      %v3621 = vadd.f32 %v3172, %v3620
      %v3622 = vpop.f32.mrb[0].mxu0
      %v3623 = vadd.f32 %v3174, %v3622
      %3624 = vmatprep.mubr.f32.mxu0 %v2481
      %3625 = vmatmul.mubr.f32.gmra.mrb[0].mxu0 %v2417
      %v3626 = vpop.f32.mrb[0].mxu0
      %v3627 = vadd.f32 %v3178, %v3626
      %v3628 = vpop.f32.mrb[0].mxu0
      %v3629 = vadd.f32 %v3180, %v3628
      %3630 = vmatprep.mubr.f32.mxu0 %v2482
      %3631 = vmatmul.mubr.f32.gmra.mrb[0].mxu0 %v2418
      %v3632 = vpop.f32.mrb[0].mxu0
      %v3633 = vadd.f32 %v3184, %v3632
      %v3634 = vpop.f32.mrb[0].mxu0
      %v3635 = vadd.f32 %v3186, %v3634
      %3636 = vmatprep.mubr.f32.mxu0 %v2483
      %3637 = vmatmul.mubr.f32.gmra.mrb[0].mxu0 %v2419
      %v3638 = vpop.f32.mrb[0].mxu0
      %v3639 = vadd.f32 %v3190, %v3638
      %v3640 = vpop.f32.mrb[0].mxu0
      %v3641 = vadd.f32 %v3192, %v3640
      %3642 = vmatprep.mubr.f32.mxu0 %v2484
      %3643 = vmatmul.mubr.f32.gmra.mrb[0].mxu0 %v2420
      %v3644 = vpop.f32.mrb[0].mxu0
      %v3645 = vadd.f32 %v3196, %v3644
      %v3646 = vpop.f32.mrb[0].mxu0
      %v3647 = vadd.f32 %v3198, %v3646
      %3648 = vmatprep.mubr.f32.mxu0 %v2485
      %3649 = vmatmul.mubr.f32.gmra.mrb[0].mxu0 %v2421
      %v3650 = vpop.f32.mrb[0].mxu0
      %v3651 = vadd.f32 %v3202, %v3650
      %v3652 = vpop.f32.mrb[0].mxu0
      %v3653 = vadd.f32 %v3204, %v3652
      %3654 = vmatprep.mubr.f32.mxu0 %v2486
      %3655 = vmatmul.mubr.f32.gmra.mrb[0].mxu0 %v2422
      %v3656 = vpop.f32.mrb[0].mxu0
      %v3657 = vadd.f32 %v3208, %v3656
      %v3658 = vpop.f32.mrb[0].mxu0
      %v3659 = vadd.f32 %v3210, %v3658
      %3660 = vmatprep.mubr.f32.mxu0 %v2487
      %3661 = vmatmul.mubr.f32.gmra.mrb[0].mxu0 %v2423
      %v3662 = vpop.f32.mrb[0].mxu0
      %v3663 = vadd.f32 %v3214, %v3662
      %v3664 = vpop.f32.mrb[0].mxu0
      %v3665 = vadd.f32 %v3216, %v3664
      %3666 = vmatprep.mubr.f32.mxu0 %v2488
      %3667 = vmatmul.mubr.f32.gmra.mrb[0].mxu0 %v2424
      %v3668 = vpop.f32.mrb[0].mxu0
      %v3669 = vadd.f32 %v3220, %v3668
      %v3670 = vpop.f32.mrb[0].mxu0
      %v3671 = vadd.f32 %v3222, %v3670
      %3672 = vmatprep.mubr.f32.mxu0 %v2489
      %3673 = vmatmul.mubr.f32.gmra.mrb[0].mxu0 %v2425
      %v3674 = vpop.f32.mrb[0].mxu0
      %v3675 = vadd.f32 %v3226, %v3674
      %v3676 = vpop.f32.mrb[0].mxu0
      %v3677 = vadd.f32 %v3228, %v3676
      %3678 = vmatprep.mubr.f32.mxu0 %v2490
      %3679 = vmatmul.mubr.f32.gmra.mrb[0].mxu0 %v2426
      %v3680 = vpop.f32.mrb[0].mxu0
      %v3681 = vadd.f32 %v3232, %v3680
      %v3682 = vpop.f32.mrb[0].mxu0
      %v3683 = vadd.f32 %v3234, %v3682
      %3684 = vmatprep.mubr.f32.mxu0 %v2491
      %3685 = vmatmul.mubr.f32.gmra.mrb[0].mxu0 %v2427
      %v3686 = vpop.f32.mrb[0].mxu0
      %v3687 = vadd.f32 %v3238, %v3686
      %v3688 = vpop.f32.mrb[0].mxu0
      %v3689 = vadd.f32 %v3240, %v3688
      %3690 = vmatprep.mubr.f32.mxu0 %v2492
      %3691 = vmatmul.mubr.f32.gmra.mrb[0].mxu0 %v2428
      %v3692 = vpop.f32.mrb[0].mxu0
      %v3693 = vadd.f32 %v3244, %v3692
      %v3694 = vpop.f32.mrb[0].mxu0
      %v3695 = vadd.f32 %v3246, %v3694
      %3696 = vmatprep.mubr.f32.mxu0 %v2493
      %3697 = vmatmul.mubr.f32.gmra.mrb[0].mxu0 %v2429
      %v3698 = vpop.f32.mrb[0].mxu0
      %v3699 = vadd.f32 %v3250, %v3698
      %v3700 = vpop.f32.mrb[0].mxu0
      %v3701 = vadd.f32 %v3252, %v3700
      %3702 = vmatprep.mubr.f32.mxu0 %v2494
      %3703 = vmatmul.mubr.f32.gmra.mrb[0].mxu0 %v2430
      %v3704 = vpop.f32.mrb[0].mxu0
      %v3705 = vadd.f32 %v3256, %v3704
      %v3706 = vpop.f32.mrb[0].mxu0
      %v3707 = vadd.f32 %v3258, %v3706
      %3708 = vmatprep.mubr.f32.mxu0 %v2495
      %3709 = vmatmul.mubr.f32.gmra.mrb[0].mxu0 %v2431
      %v3710 = vpop.f32.mrb[0].mxu0
      %v3711 = vadd.f32 %v3262, %v3710
      %v3712 = vpop.f32.mrb[0].mxu0
      %v3713 = vadd.f32 %v3264, %v3712
      %3714 = vmatprep.mubr.f32.mxu0 %v2496
      %3715 = vmatmul.mubr.f32.gmra.mrb[0].mxu0 %v2432
      %v3716 = vpop.f32.mrb[0].mxu0
      %v3717 = vadd.f32 %v3268, %v3716
      %v3718 = vpop.f32.mrb[0].mxu0
      %v3719 = vadd.f32 %v3270, %v3718
      %3720 = vmatprep.mubr.f32.mxu0 %v2497
      %3721 = vmatmul.mubr.f32.gmra.mrb[0].mxu0 %v2433
      %v3722 = vpop.f32.mrb[0].mxu0
      %v3723 = vadd.f32 %v3274, %v3722
      %v3724 = vpop.f32.mrb[0].mxu0
      %v3725 = vadd.f32 %v3276, %v3724
      %3726 = vmatprep.mubr.f32.mxu0 %v2498
      %3727 = vmatmul.mubr.f32.gmra.mrb[0].mxu0 %v2434
      %v3728 = vpop.f32.mrb[0].mxu0
      %v3729 = vadd.f32 %v3280, %v3728
      %v3730 = vpop.f32.mrb[0].mxu0
      %v3731 = vadd.f32 %v3282, %v3730
      %3732 = vmatprep.mubr.f32.mxu0 %v2499
      %3733 = vmatmul.mubr.f32.gmra.mrb[0].mxu0 %v2435
      %v3734 = vpop.f32.mrb[0].mxu0
      %v3735 = vadd.f32 %v3286, %v3734
      %v3736 = vpop.f32.mrb[0].mxu0
      %v3737 = vadd.f32 %v3288, %v3736
      %3738 = vmatprep.mubr.f32.mxu0 %v2500
      %3739 = vmatmul.mubr.f32.gmra.mrb[0].mxu0 %v2436
      %v3740 = vpop.f32.mrb[0].mxu0
      %v3741 = vadd.f32 %v3292, %v3740
      %v3742 = vpop.f32.mrb[0].mxu0
      %v3743 = vadd.f32 %v3294, %v3742
      %3744 = vmatprep.mubr.f32.mxu0 %v2501
      %3745 = vmatmul.mubr.f32.gmra.mrb[0].mxu0 %v2437
      %v3746 = vpop.f32.mrb[0].mxu0
      %v3747 = vadd.f32 %v3298, %v3746
      %v3748 = vpop.f32.mrb[0].mxu0
      %v3749 = vadd.f32 %v3300, %v3748
      %3750 = vmatprep.mubr.f32.mxu0 %v2502
      %3751 = vmatmul.mubr.f32.gmra.mrb[0].mxu0 %v2438
      %v3752 = vpop.f32.mrb[0].mxu0
      %v3753 = vadd.f32 %v3304, %v3752
      %v3754 = vpop.f32.mrb[0].mxu0
      %v3755 = vadd.f32 %v3306, %v3754
      %3756 = vmatprep.mubr.f32.mxu0 %v2503
      %3757 = vmatmul.mubr.f32.gmra.mrb[0].mxu0 %v2439
      %v3758 = vpop.f32.mrb[0].mxu0
      %v3759 = vadd.f32 %v3310, %v3758
      %v3760 = vpop.f32.mrb[0].mxu0
      %v3761 = vadd.f32 %v3312, %v3760
      %3762 = vdwg.mxu0
      %3763 = vmatprep.subr.mxu0 %v2697
      %3764 = vmatpush1.msra.mxu0 %v2696
      %3765 = vmatprep.subr.mxu0 %v2700
      %3766 = vmatpush1.msra.mxu0 %v2699
      %3767 = vmatprep.subr.mxu0 %v2703
      %3768 = vmatpush1.msra.mxu0 %v2702
      %3769 = vmatprep.subr.mxu0 %v2706
      %3770 = vmatpush1.msra.mxu0 %v2705
      %3771 = vmatprep.subr.mxu0 %v2709
      %3772 = vmatpush1.msra.mxu0 %v2708
      %3773 = vmatprep.subr.mxu0 %v2712
      %3774 = vmatpush1.msra.mxu0 %v2711
      %3775 = vmatprep.subr.mxu0 %v2715
      %3776 = vmatpush1.msra.mxu0 %v2714
      %3777 = vmatprep.subr.mxu0 %v2718
      %3778 = vmatpush1.msra.mxu0 %v2717
      %3779 = vmatprep.subr.mxu0 0.0
      %3780 = vmatpush1.msra.mxu0 0.0
      %3781 = vmatprep.subr.mxu0 0.0
      %3782 = vmatpush1.msra.mxu0 0.0
      %3783 = vmatprep.subr.mxu0 0.0
      %3784 = vmatpush1.msra.mxu0 0.0
      %3785 = vmatprep.subr.mxu0 0.0
      %3786 = vmatpush1.msra.mxu0 0.0
      %3787 = vmatprep.subr.mxu0 0.0
      %3788 = vmatpush1.msra.mxu0 0.0
      %3789 = vmatprep.subr.mxu0 0.0
      %3790 = vmatpush1.msra.mxu0 0.0
      %3791 = vmatprep.subr.mxu0 0.0
      %3792 = vmatpush1.msra.mxu0 0.0
      %3793 = vmatprep.subr.mxu0 0.0
      %3794 = vmatpush1.msra.mxu0 0.0
      %3795 = vmatprep.subr.mxu0 0.0
      %3796 = vmatpush1.msra.mxu0 0.0
      %3797 = vmatprep.subr.mxu0 0.0
      %3798 = vmatpush1.msra.mxu0 0.0
      %3799 = vmatprep.subr.mxu0 0.0
      %3800 = vmatpush1.msra.mxu0 0.0
      %3801 = vmatprep.subr.mxu0 0.0
      %3802 = vmatpush1.msra.mxu0 0.0
      %3803 = vmatprep.subr.mxu0 0.0
      %3804 = vmatpush1.msra.mxu0 0.0
      %3805 = vmatprep.subr.mxu0 0.0
      %3806 = vmatpush1.msra.mxu0 0.0
      %3807 = vmatprep.subr.mxu0 0.0
      %3808 = vmatpush1.msra.mxu0 0.0
      %3809 = vmatprep.subr.mxu0 0.0
      %3810 = vmatpush1.msra.mxu0 0.0
      %3811 = vmatprep.subr.mxu0 0.0
      %3812 = vmatpush1.msra.mxu0 0.0
      %3813 = vmatprep.subr.mxu0 0.0
      %3814 = vmatpush1.msra.mxu0 0.0
      %3815 = vmatprep.subr.mxu0 0.0
      %3816 = vmatpush1.msra.mxu0 0.0
      %3817 = vmatprep.subr.mxu0 0.0
      %3818 = vmatpush1.msra.mxu0 0.0
      %3819 = vmatprep.subr.mxu0 0.0
      %3820 = vmatpush1.msra.mxu0 0.0
      %3821 = vmatprep.subr.mxu0 0.0
      %3822 = vmatpush1.msra.mxu0 0.0
      %3823 = vmatprep.subr.mxu0 0.0
      %3824 = vmatpush1.msra.mxu0 0.0
      %3825 = vmatprep.subr.mxu0 0.0
      %3826 = vmatpush1.msra.mxu0 0.0
      %3827 = vmatprep.mubr.f32.mxu0 0.0
      %3828 = vmatmul.mubr.f32.gmra.mrb[0].mxu0 %v2737
      %v3829 = vpop.f32.mrb[0].mxu0
      %v3830 = vadd.f32 %v3381, %v3829
      %v3831 = vpop.f32.mrb[0].mxu0
      %v3832 = vadd.f32 %v3383, %v3831
      %3833 = vmatprep.mubr.f32.mxu0 0.0
      %3834 = vmatmul.mubr.f32.gmra.mrb[0].mxu0 %v2739
      %v3835 = vpop.f32.mrb[0].mxu0
      %v3836 = vadd.f32 %v3387, %v3835
      %v3837 = vpop.f32.mrb[0].mxu0
      %v3838 = vadd.f32 %v3389, %v3837
      %3839 = vmatprep.mubr.f32.mxu0 0.0
      %3840 = vmatmul.mubr.f32.gmra.mrb[0].mxu0 %v2741
      %v3841 = vpop.f32.mrb[0].mxu0
      %v3842 = vadd.f32 %v3393, %v3841
      %v3843 = vpop.f32.mrb[0].mxu0
      %v3844 = vadd.f32 %v3395, %v3843
      %3845 = vmatprep.mubr.f32.mxu0 0.0
      %3846 = vmatmul.mubr.f32.gmra.mrb[0].mxu0 %v2743
      %v3847 = vpop.f32.mrb[0].mxu0
      %v3848 = vadd.f32 %v3399, %v3847
      %v3849 = vpop.f32.mrb[0].mxu0
      %v3850 = vadd.f32 %v3401, %v3849
      %3851 = vmatprep.mubr.f32.mxu0 0.0
      %3852 = vmatmul.mubr.f32.gmra.mrb[0].mxu0 %v2745
      %v3853 = vpop.f32.mrb[0].mxu0
      %v3854 = vadd.f32 %v3405, %v3853
      %v3855 = vpop.f32.mrb[0].mxu0
      %v3856 = vadd.f32 %v3407, %v3855
      %3857 = vmatprep.mubr.f32.mxu0 0.0
      %3858 = vmatmul.mubr.f32.gmra.mrb[0].mxu0 %v2747
      %v3859 = vpop.f32.mrb[0].mxu0
      %v3860 = vadd.f32 %v3411, %v3859
      %v3861 = vpop.f32.mrb[0].mxu0
      %v3862 = vadd.f32 %v3413, %v3861
      %3863 = vmatprep.mubr.f32.mxu0 0.0
      %3864 = vmatmul.mubr.f32.gmra.mrb[0].mxu0 %v2749
      %v3865 = vpop.f32.mrb[0].mxu0
      %v3866 = vadd.f32 %v3417, %v3865
      %v3867 = vpop.f32.mrb[0].mxu0
      %v3868 = vadd.f32 %v3419, %v3867
      %3869 = vmatprep.mubr.f32.mxu0 0.0
      %3870 = vmatmul.mubr.f32.gmra.mrb[0].mxu0 %v2751
      %v3871 = vpop.f32.mrb[0].mxu0
      %v3872 = vadd.f32 %v3423, %v3871
      %v3873 = vpop.f32.mrb[0].mxu0
      %v3874 = vadd.f32 %v3425, %v3873
      %3875 = vmatprep.mubr.f32.mxu0 0.0
      %3876 = vmatmul.mubr.f32.gmra.mrb[0].mxu0 %v2753
      %v3877 = vpop.f32.mrb[0].mxu0
      %v3878 = vadd.f32 %v3429, %v3877
      %v3879 = vpop.f32.mrb[0].mxu0
      %v3880 = vadd.f32 %v3431, %v3879
      %3881 = vmatprep.mubr.f32.mxu0 0.0
      %3882 = vmatmul.mubr.f32.gmra.mrb[0].mxu0 %v2755
      %v3883 = vpop.f32.mrb[0].mxu0
      %v3884 = vadd.f32 %v3435, %v3883
      %v3885 = vpop.f32.mrb[0].mxu0
      %v3886 = vadd.f32 %v3437, %v3885
      %3887 = vmatprep.mubr.f32.mxu0 0.0
      %3888 = vmatmul.mubr.f32.gmra.mrb[0].mxu0 %v2757
      %v3889 = vpop.f32.mrb[0].mxu0
      %v3890 = vadd.f32 %v3441, %v3889
      %v3891 = vpop.f32.mrb[0].mxu0
      %v3892 = vadd.f32 %v3443, %v3891
      %3893 = vmatprep.mubr.f32.mxu0 0.0
      %3894 = vmatmul.mubr.f32.gmra.mrb[0].mxu0 %v2759
      %v3895 = vpop.f32.mrb[0].mxu0
      %v3896 = vadd.f32 %v3447, %v3895
      %v3897 = vpop.f32.mrb[0].mxu0
      %v3898 = vadd.f32 %v3449, %v3897
      %3899 = vmatprep.mubr.f32.mxu0 0.0
      %3900 = vmatmul.mubr.f32.gmra.mrb[0].mxu0 %v2761
      %v3901 = vpop.f32.mrb[0].mxu0
      %v3902 = vadd.f32 %v3453, %v3901
      %v3903 = vpop.f32.mrb[0].mxu0
      %v3904 = vadd.f32 %v3455, %v3903
      %3905 = vmatprep.mubr.f32.mxu0 0.0
      %3906 = vmatmul.mubr.f32.gmra.mrb[0].mxu0 %v2763
      %v3907 = vpop.f32.mrb[0].mxu0
      %v3908 = vadd.f32 %v3459, %v3907
      %v3909 = vpop.f32.mrb[0].mxu0
      %v3910 = vadd.f32 %v3461, %v3909
      %3911 = vmatprep.mubr.f32.mxu0 0.0
      %3912 = vmatmul.mubr.f32.gmra.mrb[0].mxu0 %v2765
      %v3913 = vpop.f32.mrb[0].mxu0
      %v3914 = vadd.f32 %v3465, %v3913
      %v3915 = vpop.f32.mrb[0].mxu0
      %v3916 = vadd.f32 %v3467, %v3915
      %3917 = vmatprep.mubr.f32.mxu0 0.0
      %3918 = vmatmul.mubr.f32.gmra.mrb[0].mxu0 %v2767
      %v3919 = vpop.f32.mrb[0].mxu0
      %v3920 = vadd.f32 %v3471, %v3919
      %v3921 = vpop.f32.mrb[0].mxu0
      %v3922 = vadd.f32 %v3473, %v3921
      %3923 = vmatprep.mubr.f32.mxu0 0.0
      %3924 = vmatmul.mubr.f32.gmra.mrb[0].mxu0 %v2769
      %v3925 = vpop.f32.mrb[0].mxu0
      %v3926 = vadd.f32 %v3477, %v3925
      %v3927 = vpop.f32.mrb[0].mxu0
      %v3928 = vadd.f32 %v3479, %v3927
      %3929 = vmatprep.mubr.f32.mxu0 0.0
      %3930 = vmatmul.mubr.f32.gmra.mrb[0].mxu0 %v2771
      %v3931 = vpop.f32.mrb[0].mxu0
      %v3932 = vadd.f32 %v3483, %v3931
      %v3933 = vpop.f32.mrb[0].mxu0
      %v3934 = vadd.f32 %v3485, %v3933
      %3935 = vmatprep.mubr.f32.mxu0 0.0
      %3936 = vmatmul.mubr.f32.gmra.mrb[0].mxu0 %v2773
      %v3937 = vpop.f32.mrb[0].mxu0
      %v3938 = vadd.f32 %v3489, %v3937
      %v3939 = vpop.f32.mrb[0].mxu0
      %v3940 = vadd.f32 %v3491, %v3939
      %3941 = vmatprep.mubr.f32.mxu0 0.0
      %3942 = vmatmul.mubr.f32.gmra.mrb[0].mxu0 %v2775
      %v3943 = vpop.f32.mrb[0].mxu0
      %v3944 = vadd.f32 %v3495, %v3943
      %v3945 = vpop.f32.mrb[0].mxu0
      %v3946 = vadd.f32 %v3497, %v3945
      %3947 = vmatprep.mubr.f32.mxu0 0.0
      %3948 = vmatmul.mubr.f32.gmra.mrb[0].mxu0 %v2777
      %v3949 = vpop.f32.mrb[0].mxu0
      %v3950 = vadd.f32 %v3501, %v3949
      %v3951 = vpop.f32.mrb[0].mxu0
      %v3952 = vadd.f32 %v3503, %v3951
      %3953 = vmatprep.mubr.f32.mxu0 0.0
      %3954 = vmatmul.mubr.f32.gmra.mrb[0].mxu0 %v2779
      %v3955 = vpop.f32.mrb[0].mxu0
      %v3956 = vadd.f32 %v3507, %v3955
      %v3957 = vpop.f32.mrb[0].mxu0
      %v3958 = vadd.f32 %v3509, %v3957
      %3959 = vmatprep.mubr.f32.mxu0 0.0
      %3960 = vmatmul.mubr.f32.gmra.mrb[0].mxu0 %v2781
      %v3961 = vpop.f32.mrb[0].mxu0
      %v3962 = vadd.f32 %v3513, %v3961
      %v3963 = vpop.f32.mrb[0].mxu0
      %v3964 = vadd.f32 %v3515, %v3963
      %3965 = vmatprep.mubr.f32.mxu0 0.0
      %3966 = vmatmul.mubr.f32.gmra.mrb[0].mxu0 %v2783
      %v3967 = vpop.f32.mrb[0].mxu0
      %v3968 = vadd.f32 %v3519, %v3967
      %v3969 = vpop.f32.mrb[0].mxu0
      %v3970 = vadd.f32 %v3521, %v3969
      %3971 = vmatprep.mubr.f32.mxu0 0.0
      %3972 = vmatmul.mubr.f32.gmra.mrb[0].mxu0 %v2785
      %v3973 = vpop.f32.mrb[0].mxu0
      %v3974 = vadd.f32 %v3525, %v3973
      %v3975 = vpop.f32.mrb[0].mxu0
      %v3976 = vadd.f32 %v3527, %v3975
      %3977 = vmatprep.mubr.f32.mxu0 0.0
      %3978 = vmatmul.mubr.f32.gmra.mrb[0].mxu0 %v2787
      %v3979 = vpop.f32.mrb[0].mxu0
      %v3980 = vadd.f32 %v3531, %v3979
      %v3981 = vpop.f32.mrb[0].mxu0
      %v3982 = vadd.f32 %v3533, %v3981
      %3983 = vmatprep.mubr.f32.mxu0 0.0
      %3984 = vmatmul.mubr.f32.gmra.mrb[0].mxu0 %v2789
      %v3985 = vpop.f32.mrb[0].mxu0
      %v3986 = vadd.f32 %v3537, %v3985
      %v3987 = vpop.f32.mrb[0].mxu0
      %v3988 = vadd.f32 %v3539, %v3987
      %3989 = vmatprep.mubr.f32.mxu0 0.0
      %3990 = vmatmul.mubr.f32.gmra.mrb[0].mxu0 %v2791
      %v3991 = vpop.f32.mrb[0].mxu0
      %v3992 = vadd.f32 %v3543, %v3991
      %v3993 = vpop.f32.mrb[0].mxu0
      %v3994 = vadd.f32 %v3545, %v3993
      %3995 = vmatprep.mubr.f32.mxu0 0.0
      %3996 = vmatmul.mubr.f32.gmra.mrb[0].mxu0 %v2793
      %v3997 = vpop.f32.mrb[0].mxu0
      %v3998 = vadd.f32 %v3549, %v3997
      %v3999 = vpop.f32.mrb[0].mxu0
      %v4000 = vadd.f32 %v3551, %v3999
      %4001 = vmatprep.mubr.f32.mxu0 0.0
      %4002 = vmatmul.mubr.f32.gmra.mrb[0].mxu0 %v2795
      %v4003 = vpop.f32.mrb[0].mxu0
      %v4004 = vadd.f32 %v3555, %v4003
      %v4005 = vpop.f32.mrb[0].mxu0
      %v4006 = vadd.f32 %v3557, %v4005
      %4007 = vmatprep.mubr.f32.mxu0 0.0
      %4008 = vmatmul.mubr.f32.gmra.mrb[0].mxu0 %v2797
      %v4009 = vpop.f32.mrb[0].mxu0
      %v4010 = vadd.f32 %v3561, %v4009
      %v4011 = vpop.f32.mrb[0].mxu0
      %v4012 = vadd.f32 %v3563, %v4011
      %4013 = vmatprep.mubr.f32.mxu0 0.0
      %4014 = vmatmul.mubr.f32.gmra.mrb[0].mxu0 %v2799
      %v4015 = vpop.f32.mrb[0].mxu0
      %v4016 = vadd.f32 %v3567, %v4015
      %v4017 = vpop.f32.mrb[0].mxu0
      %v4018 = vadd.f32 %v3569, %v4017
      %4019 = vmatprep.mubr.f32.mxu0 0.0
      %4020 = vmatmul.mubr.f32.gmra.mrb[0].mxu0 %v2801
      %v4021 = vpop.f32.mrb[0].mxu0
      %v4022 = vadd.f32 %v3573, %v4021
      %v4023 = vpop.f32.mrb[0].mxu0
      %v4024 = vadd.f32 %v3575, %v4023
      %4025 = vmatprep.mubr.f32.mxu0 0.0
      %4026 = vmatmul.mubr.f32.gmra.mrb[0].mxu0 %v2803
      %v4027 = vpop.f32.mrb[0].mxu0
      %v4028 = vadd.f32 %v3579, %v4027
      %v4029 = vpop.f32.mrb[0].mxu0
      %v4030 = vadd.f32 %v3581, %v4029
      %4031 = vmatprep.mubr.f32.mxu0 0.0
      %4032 = vmatmul.mubr.f32.gmra.mrb[0].mxu0 %v2805
      %v4033 = vpop.f32.mrb[0].mxu0
      %v4034 = vadd.f32 %v3585, %v4033
      %v4035 = vpop.f32.mrb[0].mxu0
      %v4036 = vadd.f32 %v3587, %v4035
      %4037 = vmatprep.mubr.f32.mxu0 0.0
      %4038 = vmatmul.mubr.f32.gmra.mrb[0].mxu0 %v2807
      %v4039 = vpop.f32.mrb[0].mxu0
      %v4040 = vadd.f32 %v3591, %v4039
      %v4041 = vpop.f32.mrb[0].mxu0
      %v4042 = vadd.f32 %v3593, %v4041
      %4043 = vmatprep.mubr.f32.mxu0 0.0
      %4044 = vmatmul.mubr.f32.gmra.mrb[0].mxu0 %v2809
      %v4045 = vpop.f32.mrb[0].mxu0
      %v4046 = vadd.f32 %v3597, %v4045
      %v4047 = vpop.f32.mrb[0].mxu0
      %v4048 = vadd.f32 %v3599, %v4047
      %4049 = vmatprep.mubr.f32.mxu0 0.0
      %4050 = vmatmul.mubr.f32.gmra.mrb[0].mxu0 %v2811
      %v4051 = vpop.f32.mrb[0].mxu0
      %v4052 = vadd.f32 %v3603, %v4051
      %v4053 = vpop.f32.mrb[0].mxu0
      %v4054 = vadd.f32 %v3605, %v4053
      %4055 = vmatprep.mubr.f32.mxu0 0.0
      %4056 = vmatmul.mubr.f32.gmra.mrb[0].mxu0 %v2813
      %v4057 = vpop.f32.mrb[0].mxu0
      %v4058 = vadd.f32 %v3609, %v4057
      %v4059 = vpop.f32.mrb[0].mxu0
      %v4060 = vadd.f32 %v3611, %v4059
      %4061 = vmatprep.mubr.f32.mxu0 0.0
      %4062 = vmatmul.mubr.f32.gmra.mrb[0].mxu0 %v2815
      %v4063 = vpop.f32.mrb[0].mxu0
      %v4064 = vadd.f32 %v3615, %v4063
      %v4065 = vpop.f32.mrb[0].mxu0
      %v4066 = vadd.f32 %v3617, %v4065
      %4067 = vmatprep.mubr.f32.mxu0 0.0
      %4068 = vmatmul.mubr.f32.gmra.mrb[0].mxu0 %v2817
      %v4069 = vpop.f32.mrb[0].mxu0
      %v4070 = vadd.f32 %v3621, %v4069
      %v4071 = vpop.f32.mrb[0].mxu0
      %v4072 = vadd.f32 %v3623, %v4071
      %4073 = vmatprep.mubr.f32.mxu0 0.0
      %4074 = vmatmul.mubr.f32.gmra.mrb[0].mxu0 %v2819
      %v4075 = vpop.f32.mrb[0].mxu0
      %v4076 = vadd.f32 %v3627, %v4075
      %v4077 = vpop.f32.mrb[0].mxu0
      %v4078 = vadd.f32 %v3629, %v4077
      %4079 = vmatprep.mubr.f32.mxu0 0.0
      %4080 = vmatmul.mubr.f32.gmra.mrb[0].mxu0 %v2821
      %v4081 = vpop.f32.mrb[0].mxu0
      %v4082 = vadd.f32 %v3633, %v4081
      %v4083 = vpop.f32.mrb[0].mxu0
      %v4084 = vadd.f32 %v3635, %v4083
      %4085 = vmatprep.mubr.f32.mxu0 0.0
      %4086 = vmatmul.mubr.f32.gmra.mrb[0].mxu0 %v2823
      %v4087 = vpop.f32.mrb[0].mxu0
      %v4088 = vadd.f32 %v3639, %v4087
      %v4089 = vpop.f32.mrb[0].mxu0
      %v4090 = vadd.f32 %v3641, %v4089
      %4091 = vmatprep.mubr.f32.mxu0 0.0
      %4092 = vmatmul.mubr.f32.gmra.mrb[0].mxu0 %v2825
      %v4093 = vpop.f32.mrb[0].mxu0
      %v4094 = vadd.f32 %v3645, %v4093
      %v4095 = vpop.f32.mrb[0].mxu0
      %v4096 = vadd.f32 %v3647, %v4095
      %4097 = vmatprep.mubr.f32.mxu0 0.0
      %4098 = vmatmul.mubr.f32.gmra.mrb[0].mxu0 %v2827
      %v4099 = vpop.f32.mrb[0].mxu0
      %v4100 = vadd.f32 %v3651, %v4099
      %v4101 = vpop.f32.mrb[0].mxu0
      %v4102 = vadd.f32 %v3653, %v4101
      %4103 = vmatprep.mubr.f32.mxu0 0.0
      %4104 = vmatmul.mubr.f32.gmra.mrb[0].mxu0 %v2829
      %v4105 = vpop.f32.mrb[0].mxu0
      %v4106 = vadd.f32 %v3657, %v4105
      %v4107 = vpop.f32.mrb[0].mxu0
      %v4108 = vadd.f32 %v3659, %v4107
      %4109 = vmatprep.mubr.f32.mxu0 0.0
      %4110 = vmatmul.mubr.f32.gmra.mrb[0].mxu0 %v2831
      %v4111 = vpop.f32.mrb[0].mxu0
      %v4112 = vadd.f32 %v3663, %v4111
      %v4113 = vpop.f32.mrb[0].mxu0
      %v4114 = vadd.f32 %v3665, %v4113
      %4115 = vmatprep.mubr.f32.mxu0 0.0
      %4116 = vmatmul.mubr.f32.gmra.mrb[0].mxu0 %v2833
      %v4117 = vpop.f32.mrb[0].mxu0
      %v4118 = vadd.f32 %v3669, %v4117
      %v4119 = vpop.f32.mrb[0].mxu0
      %v4120 = vadd.f32 %v3671, %v4119
      %4121 = vmatprep.mubr.f32.mxu0 0.0
      %4122 = vmatmul.mubr.f32.gmra.mrb[0].mxu0 %v2835
      %v4123 = vpop.f32.mrb[0].mxu0
      %v4124 = vadd.f32 %v3675, %v4123
      %v4125 = vpop.f32.mrb[0].mxu0
      %v4126 = vadd.f32 %v3677, %v4125
      %4127 = vmatprep.mubr.f32.mxu0 0.0
      %4128 = vmatmul.mubr.f32.gmra.mrb[0].mxu0 %v2837
      %v4129 = vpop.f32.mrb[0].mxu0
      %v4130 = vadd.f32 %v3681, %v4129
      %v4131 = vpop.f32.mrb[0].mxu0
      %v4132 = vadd.f32 %v3683, %v4131
      %4133 = vmatprep.mubr.f32.mxu0 0.0
      %4134 = vmatmul.mubr.f32.gmra.mrb[0].mxu0 %v2839
      %v4135 = vpop.f32.mrb[0].mxu0
      %v4136 = vadd.f32 %v3687, %v4135
      %v4137 = vpop.f32.mrb[0].mxu0
      %v4138 = vadd.f32 %v3689, %v4137
      %4139 = vmatprep.mubr.f32.mxu0 0.0
      %4140 = vmatmul.mubr.f32.gmra.mrb[0].mxu0 %v2841
      %v4141 = vpop.f32.mrb[0].mxu0
      %v4142 = vadd.f32 %v3693, %v4141
      %v4143 = vpop.f32.mrb[0].mxu0
      %v4144 = vadd.f32 %v3695, %v4143
      %4145 = vmatprep.mubr.f32.mxu0 0.0
      %4146 = vmatmul.mubr.f32.gmra.mrb[0].mxu0 %v2843
      %v4147 = vpop.f32.mrb[0].mxu0
      %v4148 = vadd.f32 %v3699, %v4147
      %v4149 = vpop.f32.mrb[0].mxu0
      %v4150 = vadd.f32 %v3701, %v4149
      %4151 = vmatprep.mubr.f32.mxu0 0.0
      %4152 = vmatmul.mubr.f32.gmra.mrb[0].mxu0 %v2845
      %v4153 = vpop.f32.mrb[0].mxu0
      %v4154 = vadd.f32 %v3705, %v4153
      %v4155 = vpop.f32.mrb[0].mxu0
      %v4156 = vadd.f32 %v3707, %v4155
      %4157 = vmatprep.mubr.f32.mxu0 0.0
      %4158 = vmatmul.mubr.f32.gmra.mrb[0].mxu0 %v2847
      %v4159 = vpop.f32.mrb[0].mxu0
      %v4160 = vadd.f32 %v3711, %v4159
      %v4161 = vpop.f32.mrb[0].mxu0
      %v4162 = vadd.f32 %v3713, %v4161
      %4163 = vmatprep.mubr.f32.mxu0 0.0
      %4164 = vmatmul.mubr.f32.gmra.mrb[0].mxu0 %v2849
      %v4165 = vpop.f32.mrb[0].mxu0
      %v4166 = vadd.f32 %v3717, %v4165
      %v4167 = vpop.f32.mrb[0].mxu0
      %v4168 = vadd.f32 %v3719, %v4167
      %4169 = vmatprep.mubr.f32.mxu0 0.0
      %4170 = vmatmul.mubr.f32.gmra.mrb[0].mxu0 %v2851
      %v4171 = vpop.f32.mrb[0].mxu0
      %v4172 = vadd.f32 %v3723, %v4171
      %v4173 = vpop.f32.mrb[0].mxu0
      %v4174 = vadd.f32 %v3725, %v4173
      %4175 = vmatprep.mubr.f32.mxu0 0.0
      %4176 = vmatmul.mubr.f32.gmra.mrb[0].mxu0 %v2853
      %v4177 = vpop.f32.mrb[0].mxu0
      %v4178 = vadd.f32 %v3729, %v4177
      %v4179 = vpop.f32.mrb[0].mxu0
      %v4180 = vadd.f32 %v3731, %v4179
      %4181 = vmatprep.mubr.f32.mxu0 0.0
      %4182 = vmatmul.mubr.f32.gmra.mrb[0].mxu0 %v2855
      %v4183 = vpop.f32.mrb[0].mxu0
      %v4184 = vadd.f32 %v3735, %v4183
      %v4185 = vpop.f32.mrb[0].mxu0
      %v4186 = vadd.f32 %v3737, %v4185
      %4187 = vmatprep.mubr.f32.mxu0 0.0
      %4188 = vmatmul.mubr.f32.gmra.mrb[0].mxu0 %v2857
      %v4189 = vpop.f32.mrb[0].mxu0
      %v4190 = vadd.f32 %v3741, %v4189
      %v4191 = vpop.f32.mrb[0].mxu0
      %v4192 = vadd.f32 %v3743, %v4191
      %4193 = vmatprep.mubr.f32.mxu0 0.0
      %4194 = vmatmul.mubr.f32.gmra.mrb[0].mxu0 %v2859
      %v4195 = vpop.f32.mrb[0].mxu0
      %v4196 = vadd.f32 %v3747, %v4195
      %v4197 = vpop.f32.mrb[0].mxu0
      %v4198 = vadd.f32 %v3749, %v4197
      %4199 = vmatprep.mubr.f32.mxu0 0.0
      %4200 = vmatmul.mubr.f32.gmra.mrb[0].mxu0 %v2861
      %v4201 = vpop.f32.mrb[0].mxu0
      %v4202 = vadd.f32 %v3753, %v4201
      %v4203 = vpop.f32.mrb[0].mxu0
      %v4204 = vadd.f32 %v3755, %v4203
      %4205 = vmatprep.mubr.f32.mxu0 0.0
      %4206 = vmatmul.mubr.f32.gmra.mrb[0].mxu0 %v2863
      %v4207 = vpop.f32.mrb[0].mxu0
      %v4208 = vadd.f32 %v3759, %v4207
      %v4209 = vpop.f32.mrb[0].mxu0
      %v4210 = vadd.f32 %v3761, %v4209
      %4211 = vdwg.mxu0
      %4212 = vmatprep.subr.mxu0 0.0
      %4213 = vmatpush1.msra.mxu0 %v2506
      %4214 = vmatprep.subr.mxu0 0.0
      %4215 = vmatpush1.msra.mxu0 %v2509
      %4216 = vmatprep.subr.mxu0 0.0
      %4217 = vmatpush1.msra.mxu0 %v2512
      %4218 = vmatprep.subr.mxu0 0.0
      %4219 = vmatpush1.msra.mxu0 %v2515
      %4220 = vmatprep.subr.mxu0 0.0
      %4221 = vmatpush1.msra.mxu0 %v2518
      %4222 = vmatprep.subr.mxu0 0.0
      %4223 = vmatpush1.msra.mxu0 %v2521
      %4224 = vmatprep.subr.mxu0 0.0
      %4225 = vmatpush1.msra.mxu0 %v2524
      %4226 = vmatprep.subr.mxu0 0.0
      %4227 = vmatpush1.msra.mxu0 %v2527
      %4228 = vmatprep.subr.mxu0 0.0
      %4229 = vmatpush1.msra.mxu0 %v2530
      %4230 = vmatprep.subr.mxu0 0.0
      %4231 = vmatpush1.msra.mxu0 %v2533
      %4232 = vmatprep.subr.mxu0 0.0
      %4233 = vmatpush1.msra.mxu0 %v2536
      %4234 = vmatprep.subr.mxu0 0.0
      %4235 = vmatpush1.msra.mxu0 %v2539
      %4236 = vmatprep.subr.mxu0 0.0
      %4237 = vmatpush1.msra.mxu0 %v2542
      %4238 = vmatprep.subr.mxu0 0.0
      %4239 = vmatpush1.msra.mxu0 %v2545
      %4240 = vmatprep.subr.mxu0 0.0
      %4241 = vmatpush1.msra.mxu0 %v2548
      %4242 = vmatprep.subr.mxu0 0.0
      %4243 = vmatpush1.msra.mxu0 %v2551
      %4244 = vmatprep.subr.mxu0 0.0
      %4245 = vmatpush1.msra.mxu0 %v2554
      %4246 = vmatprep.subr.mxu0 0.0
      %4247 = vmatpush1.msra.mxu0 %v2557
      %4248 = vmatprep.subr.mxu0 0.0
      %4249 = vmatpush1.msra.mxu0 %v2560
      %4250 = vmatprep.subr.mxu0 0.0
      %4251 = vmatpush1.msra.mxu0 %v2563
      %4252 = vmatprep.subr.mxu0 0.0
      %4253 = vmatpush1.msra.mxu0 %v2566
      %4254 = vmatprep.subr.mxu0 0.0
      %4255 = vmatpush1.msra.mxu0 %v2569
      %4256 = vmatprep.subr.mxu0 0.0
      %4257 = vmatpush1.msra.mxu0 %v2572
      %4258 = vmatprep.subr.mxu0 0.0
      %4259 = vmatpush1.msra.mxu0 %v2575
      %4260 = vmatprep.subr.mxu0 0.0
      %4261 = vmatpush1.msra.mxu0 %v2578
      %4262 = vmatprep.subr.mxu0 0.0
      %4263 = vmatpush1.msra.mxu0 %v2581
      %4264 = vmatprep.subr.mxu0 0.0
      %4265 = vmatpush1.msra.mxu0 %v2584
      %4266 = vmatprep.subr.mxu0 0.0
      %4267 = vmatpush1.msra.mxu0 %v2587
      %4268 = vmatprep.subr.mxu0 0.0
      %4269 = vmatpush1.msra.mxu0 %v2590
      %4270 = vmatprep.subr.mxu0 0.0
      %4271 = vmatpush1.msra.mxu0 %v2593
      %4272 = vmatprep.subr.mxu0 0.0
      %4273 = vmatpush1.msra.mxu0 %v2596
      %4274 = vmatprep.subr.mxu0 0.0
      %4275 = vmatpush1.msra.mxu0 %v2599
      %4276 = vmatprep.mubr.f32.mxu0 %v2312
      %4277 = vmatmul.mubr.f32.gmra.mrb[0].mxu0 %v2248
      %v4278 = vpop.f32.mrb[0].mxu0
      %v4279 = vadd.f32 %v2733, %v4278
      %v4280 = vpop.f32.mrb[0].mxu0
      %4281 = vmatprep.mubr.f32.mxu0 %v2313
      %4282 = vmatmul.mubr.f32.gmra.mrb[0].mxu0 %v2249
      %v4283 = vpop.f32.mrb[0].mxu0
      %v4284 = vadd.f32 %v2733, %v4283
      %v4285 = vpop.f32.mrb[0].mxu0
      %4286 = vmatprep.mubr.f32.mxu0 %v2314
      %4287 = vmatmul.mubr.f32.gmra.mrb[0].mxu0 %v2250
      %v4288 = vpop.f32.mrb[0].mxu0
      %v4289 = vadd.f32 %v2733, %v4288
      %v4290 = vpop.f32.mrb[0].mxu0
      %4291 = vmatprep.mubr.f32.mxu0 %v2315
      %4292 = vmatmul.mubr.f32.gmra.mrb[0].mxu0 %v2251
      %v4293 = vpop.f32.mrb[0].mxu0
      %v4294 = vadd.f32 %v2733, %v4293
      %v4295 = vpop.f32.mrb[0].mxu0
      %4296 = vmatprep.mubr.f32.mxu0 %v2316
      %4297 = vmatmul.mubr.f32.gmra.mrb[0].mxu0 %v2252
      %v4298 = vpop.f32.mrb[0].mxu0
      %v4299 = vadd.f32 %v2733, %v4298
      %v4300 = vpop.f32.mrb[0].mxu0
      %4301 = vmatprep.mubr.f32.mxu0 %v2317
      %4302 = vmatmul.mubr.f32.gmra.mrb[0].mxu0 %v2253
      %v4303 = vpop.f32.mrb[0].mxu0
      %v4304 = vadd.f32 %v2733, %v4303
      %v4305 = vpop.f32.mrb[0].mxu0
      %4306 = vmatprep.mubr.f32.mxu0 %v2318
      %4307 = vmatmul.mubr.f32.gmra.mrb[0].mxu0 %v2254
      %v4308 = vpop.f32.mrb[0].mxu0
      %v4309 = vadd.f32 %v2733, %v4308
      %v4310 = vpop.f32.mrb[0].mxu0
      %4311 = vmatprep.mubr.f32.mxu0 %v2319
      %4312 = vmatmul.mubr.f32.gmra.mrb[0].mxu0 %v2255
      %v4313 = vpop.f32.mrb[0].mxu0
      %v4314 = vadd.f32 %v2733, %v4313
      %v4315 = vpop.f32.mrb[0].mxu0
      %4316 = vmatprep.mubr.f32.mxu0 %v2320
      %4317 = vmatmul.mubr.f32.gmra.mrb[0].mxu0 %v2256
      %v4318 = vpop.f32.mrb[0].mxu0
      %v4319 = vadd.f32 %v2733, %v4318
      %v4320 = vpop.f32.mrb[0].mxu0
      %4321 = vmatprep.mubr.f32.mxu0 %v2321
      %4322 = vmatmul.mubr.f32.gmra.mrb[0].mxu0 %v2257
      %v4323 = vpop.f32.mrb[0].mxu0
      %v4324 = vadd.f32 %v2733, %v4323
      %v4325 = vpop.f32.mrb[0].mxu0
      %4326 = vmatprep.mubr.f32.mxu0 %v2322
      %4327 = vmatmul.mubr.f32.gmra.mrb[0].mxu0 %v2258
      %v4328 = vpop.f32.mrb[0].mxu0
      %v4329 = vadd.f32 %v2733, %v4328
      %v4330 = vpop.f32.mrb[0].mxu0
      %4331 = vmatprep.mubr.f32.mxu0 %v2323
      %4332 = vmatmul.mubr.f32.gmra.mrb[0].mxu0 %v2259
      %v4333 = vpop.f32.mrb[0].mxu0
      %v4334 = vadd.f32 %v2733, %v4333
      %v4335 = vpop.f32.mrb[0].mxu0
      %4336 = vmatprep.mubr.f32.mxu0 %v2324
      %4337 = vmatmul.mubr.f32.gmra.mrb[0].mxu0 %v2260
      %v4338 = vpop.f32.mrb[0].mxu0
      %v4339 = vadd.f32 %v2733, %v4338
      %v4340 = vpop.f32.mrb[0].mxu0
      %4341 = vmatprep.mubr.f32.mxu0 %v2325
      %4342 = vmatmul.mubr.f32.gmra.mrb[0].mxu0 %v2261
      %v4343 = vpop.f32.mrb[0].mxu0
      %v4344 = vadd.f32 %v2733, %v4343
      %v4345 = vpop.f32.mrb[0].mxu0
      %4346 = vmatprep.mubr.f32.mxu0 %v2326
      %4347 = vmatmul.mubr.f32.gmra.mrb[0].mxu0 %v2262
      %v4348 = vpop.f32.mrb[0].mxu0
      %v4349 = vadd.f32 %v2733, %v4348
      %v4350 = vpop.f32.mrb[0].mxu0
      %4351 = vmatprep.mubr.f32.mxu0 %v2327
      %4352 = vmatmul.mubr.f32.gmra.mrb[0].mxu0 %v2263
      %v4353 = vpop.f32.mrb[0].mxu0
      %v4354 = vadd.f32 %v2733, %v4353
      %v4355 = vpop.f32.mrb[0].mxu0
      %4356 = vmatprep.mubr.f32.mxu0 %v2328
      %4357 = vmatmul.mubr.f32.gmra.mrb[0].mxu0 %v2264
      %v4358 = vpop.f32.mrb[0].mxu0
      %v4359 = vadd.f32 %v2733, %v4358
      %v4360 = vpop.f32.mrb[0].mxu0
      %4361 = vmatprep.mubr.f32.mxu0 %v2329
      %4362 = vmatmul.mubr.f32.gmra.mrb[0].mxu0 %v2265
      %v4363 = vpop.f32.mrb[0].mxu0
      %v4364 = vadd.f32 %v2733, %v4363
      %v4365 = vpop.f32.mrb[0].mxu0
      %4366 = vmatprep.mubr.f32.mxu0 %v2330
      %4367 = vmatmul.mubr.f32.gmra.mrb[0].mxu0 %v2266
      %v4368 = vpop.f32.mrb[0].mxu0
      %v4369 = vadd.f32 %v2733, %v4368
      %v4370 = vpop.f32.mrb[0].mxu0
      %4371 = vmatprep.mubr.f32.mxu0 %v2331
      %4372 = vmatmul.mubr.f32.gmra.mrb[0].mxu0 %v2267
      %v4373 = vpop.f32.mrb[0].mxu0
      %v4374 = vadd.f32 %v2733, %v4373
      %v4375 = vpop.f32.mrb[0].mxu0
      %4376 = vmatprep.mubr.f32.mxu0 %v2332
      %4377 = vmatmul.mubr.f32.gmra.mrb[0].mxu0 %v2268
      %v4378 = vpop.f32.mrb[0].mxu0
      %v4379 = vadd.f32 %v2733, %v4378
      %v4380 = vpop.f32.mrb[0].mxu0
      %4381 = vmatprep.mubr.f32.mxu0 %v2333
      %4382 = vmatmul.mubr.f32.gmra.mrb[0].mxu0 %v2269
      %v4383 = vpop.f32.mrb[0].mxu0
      %v4384 = vadd.f32 %v2733, %v4383
      %v4385 = vpop.f32.mrb[0].mxu0
      %4386 = vmatprep.mubr.f32.mxu0 %v2334
      %4387 = vmatmul.mubr.f32.gmra.mrb[0].mxu0 %v2270
      %v4388 = vpop.f32.mrb[0].mxu0
      %v4389 = vadd.f32 %v2733, %v4388
      %v4390 = vpop.f32.mrb[0].mxu0
      %4391 = vmatprep.mubr.f32.mxu0 %v2335
      %4392 = vmatmul.mubr.f32.gmra.mrb[0].mxu0 %v2271
      %v4393 = vpop.f32.mrb[0].mxu0
      %v4394 = vadd.f32 %v2733, %v4393
      %v4395 = vpop.f32.mrb[0].mxu0
      %4396 = vmatprep.mubr.f32.mxu0 %v2336
      %4397 = vmatmul.mubr.f32.gmra.mrb[0].mxu0 %v2272
      %v4398 = vpop.f32.mrb[0].mxu0
      %v4399 = vadd.f32 %v2733, %v4398
      %v4400 = vpop.f32.mrb[0].mxu0
      %4401 = vmatprep.mubr.f32.mxu0 %v2337
      %4402 = vmatmul.mubr.f32.gmra.mrb[0].mxu0 %v2273
      %v4403 = vpop.f32.mrb[0].mxu0
      %v4404 = vadd.f32 %v2733, %v4403
      %v4405 = vpop.f32.mrb[0].mxu0
      %4406 = vmatprep.mubr.f32.mxu0 %v2338
      %4407 = vmatmul.mubr.f32.gmra.mrb[0].mxu0 %v2274
      %v4408 = vpop.f32.mrb[0].mxu0
      %v4409 = vadd.f32 %v2733, %v4408
      %v4410 = vpop.f32.mrb[0].mxu0
      %4411 = vmatprep.mubr.f32.mxu0 %v2339
      %4412 = vmatmul.mubr.f32.gmra.mrb[0].mxu0 %v2275
      %v4413 = vpop.f32.mrb[0].mxu0
      %v4414 = vadd.f32 %v2733, %v4413
      %v4415 = vpop.f32.mrb[0].mxu0
      %4416 = vmatprep.mubr.f32.mxu0 %v2340
      %4417 = vmatmul.mubr.f32.gmra.mrb[0].mxu0 %v2276
      %v4418 = vpop.f32.mrb[0].mxu0
      %v4419 = vadd.f32 %v2733, %v4418
      %v4420 = vpop.f32.mrb[0].mxu0
      %4421 = vmatprep.mubr.f32.mxu0 %v2341
      %4422 = vmatmul.mubr.f32.gmra.mrb[0].mxu0 %v2277
      %v4423 = vpop.f32.mrb[0].mxu0
      %v4424 = vadd.f32 %v2733, %v4423
      %v4425 = vpop.f32.mrb[0].mxu0
      %4426 = vmatprep.mubr.f32.mxu0 %v2342
      %4427 = vmatmul.mubr.f32.gmra.mrb[0].mxu0 %v2278
      %v4428 = vpop.f32.mrb[0].mxu0
      %v4429 = vadd.f32 %v2733, %v4428
      %v4430 = vpop.f32.mrb[0].mxu0
      %4431 = vmatprep.mubr.f32.mxu0 %v2343
      %4432 = vmatmul.mubr.f32.gmra.mrb[0].mxu0 %v2279
      %v4433 = vpop.f32.mrb[0].mxu0
      %v4434 = vadd.f32 %v2733, %v4433
      %v4435 = vpop.f32.mrb[0].mxu0
      %4436 = vmatprep.mubr.f32.mxu0 %v2344
      %4437 = vmatmul.mubr.f32.gmra.mrb[0].mxu0 %v2280
      %v4438 = vpop.f32.mrb[0].mxu0
      %v4439 = vadd.f32 %v2733, %v4438
      %v4440 = vpop.f32.mrb[0].mxu0
      %4441 = vmatprep.mubr.f32.mxu0 %v2345
      %4442 = vmatmul.mubr.f32.gmra.mrb[0].mxu0 %v2281
      %v4443 = vpop.f32.mrb[0].mxu0
      %v4444 = vadd.f32 %v2733, %v4443
      %v4445 = vpop.f32.mrb[0].mxu0
      %4446 = vmatprep.mubr.f32.mxu0 %v2346
      %4447 = vmatmul.mubr.f32.gmra.mrb[0].mxu0 %v2282
      %v4448 = vpop.f32.mrb[0].mxu0
      %v4449 = vadd.f32 %v2733, %v4448
      %v4450 = vpop.f32.mrb[0].mxu0
      %4451 = vmatprep.mubr.f32.mxu0 %v2347
      %4452 = vmatmul.mubr.f32.gmra.mrb[0].mxu0 %v2283
      %v4453 = vpop.f32.mrb[0].mxu0
      %v4454 = vadd.f32 %v2733, %v4453
      %v4455 = vpop.f32.mrb[0].mxu0
      %4456 = vmatprep.mubr.f32.mxu0 %v2348
      %4457 = vmatmul.mubr.f32.gmra.mrb[0].mxu0 %v2284
      %v4458 = vpop.f32.mrb[0].mxu0
      %v4459 = vadd.f32 %v2733, %v4458
      %v4460 = vpop.f32.mrb[0].mxu0
      %4461 = vmatprep.mubr.f32.mxu0 %v2349
      %4462 = vmatmul.mubr.f32.gmra.mrb[0].mxu0 %v2285
      %v4463 = vpop.f32.mrb[0].mxu0
      %v4464 = vadd.f32 %v2733, %v4463
      %v4465 = vpop.f32.mrb[0].mxu0
      %4466 = vmatprep.mubr.f32.mxu0 %v2350
      %4467 = vmatmul.mubr.f32.gmra.mrb[0].mxu0 %v2286
      %v4468 = vpop.f32.mrb[0].mxu0
      %v4469 = vadd.f32 %v2733, %v4468
      %v4470 = vpop.f32.mrb[0].mxu0
      %4471 = vmatprep.mubr.f32.mxu0 %v2351
      %4472 = vmatmul.mubr.f32.gmra.mrb[0].mxu0 %v2287
      %v4473 = vpop.f32.mrb[0].mxu0
      %v4474 = vadd.f32 %v2733, %v4473
      %v4475 = vpop.f32.mrb[0].mxu0
      %4476 = vmatprep.mubr.f32.mxu0 %v2352
      %4477 = vmatmul.mubr.f32.gmra.mrb[0].mxu0 %v2288
      %v4478 = vpop.f32.mrb[0].mxu0
      %v4479 = vadd.f32 %v2733, %v4478
      %v4480 = vpop.f32.mrb[0].mxu0
      %4481 = vmatprep.mubr.f32.mxu0 %v2353
      %4482 = vmatmul.mubr.f32.gmra.mrb[0].mxu0 %v2289
      %v4483 = vpop.f32.mrb[0].mxu0
      %v4484 = vadd.f32 %v2733, %v4483
      %v4485 = vpop.f32.mrb[0].mxu0
      %4486 = vmatprep.mubr.f32.mxu0 %v2354
      %4487 = vmatmul.mubr.f32.gmra.mrb[0].mxu0 %v2290
      %v4488 = vpop.f32.mrb[0].mxu0
      %v4489 = vadd.f32 %v2733, %v4488
      %v4490 = vpop.f32.mrb[0].mxu0
      %4491 = vmatprep.mubr.f32.mxu0 %v2355
      %4492 = vmatmul.mubr.f32.gmra.mrb[0].mxu0 %v2291
      %v4493 = vpop.f32.mrb[0].mxu0
      %v4494 = vadd.f32 %v2733, %v4493
      %v4495 = vpop.f32.mrb[0].mxu0
      %4496 = vmatprep.mubr.f32.mxu0 %v2356
      %4497 = vmatmul.mubr.f32.gmra.mrb[0].mxu0 %v2292
      %v4498 = vpop.f32.mrb[0].mxu0
      %v4499 = vadd.f32 %v2733, %v4498
      %v4500 = vpop.f32.mrb[0].mxu0
      %4501 = vmatprep.mubr.f32.mxu0 %v2357
      %4502 = vmatmul.mubr.f32.gmra.mrb[0].mxu0 %v2293
      %v4503 = vpop.f32.mrb[0].mxu0
      %v4504 = vadd.f32 %v2733, %v4503
      %v4505 = vpop.f32.mrb[0].mxu0
      %4506 = vmatprep.mubr.f32.mxu0 %v2358
      %4507 = vmatmul.mubr.f32.gmra.mrb[0].mxu0 %v2294
      %v4508 = vpop.f32.mrb[0].mxu0
      %v4509 = vadd.f32 %v2733, %v4508
      %v4510 = vpop.f32.mrb[0].mxu0
      %4511 = vmatprep.mubr.f32.mxu0 %v2359
      %4512 = vmatmul.mubr.f32.gmra.mrb[0].mxu0 %v2295
      %v4513 = vpop.f32.mrb[0].mxu0
      %v4514 = vadd.f32 %v2733, %v4513
      %v4515 = vpop.f32.mrb[0].mxu0
      %4516 = vmatprep.mubr.f32.mxu0 %v2360
      %4517 = vmatmul.mubr.f32.gmra.mrb[0].mxu0 %v2296
      %v4518 = vpop.f32.mrb[0].mxu0
      %v4519 = vadd.f32 %v2733, %v4518
      %v4520 = vpop.f32.mrb[0].mxu0
      %4521 = vmatprep.mubr.f32.mxu0 %v2361
      %4522 = vmatmul.mubr.f32.gmra.mrb[0].mxu0 %v2297
      %v4523 = vpop.f32.mrb[0].mxu0
      %v4524 = vadd.f32 %v2733, %v4523
      %v4525 = vpop.f32.mrb[0].mxu0
      %4526 = vmatprep.mubr.f32.mxu0 %v2362
      %4527 = vmatmul.mubr.f32.gmra.mrb[0].mxu0 %v2298
      %v4528 = vpop.f32.mrb[0].mxu0
      %v4529 = vadd.f32 %v2733, %v4528
      %v4530 = vpop.f32.mrb[0].mxu0
      %4531 = vmatprep.mubr.f32.mxu0 %v2363
      %4532 = vmatmul.mubr.f32.gmra.mrb[0].mxu0 %v2299
      %v4533 = vpop.f32.mrb[0].mxu0
      %v4534 = vadd.f32 %v2733, %v4533
      %v4535 = vpop.f32.mrb[0].mxu0
      %4536 = vmatprep.mubr.f32.mxu0 %v2364
      %4537 = vmatmul.mubr.f32.gmra.mrb[0].mxu0 %v2300
      %v4538 = vpop.f32.mrb[0].mxu0
      %v4539 = vadd.f32 %v2733, %v4538
      %v4540 = vpop.f32.mrb[0].mxu0
      %4541 = vmatprep.mubr.f32.mxu0 %v2365
      %4542 = vmatmul.mubr.f32.gmra.mrb[0].mxu0 %v2301
      %v4543 = vpop.f32.mrb[0].mxu0
      %v4544 = vadd.f32 %v2733, %v4543
      %v4545 = vpop.f32.mrb[0].mxu0
      %4546 = vmatprep.mubr.f32.mxu0 %v2366
      %4547 = vmatmul.mubr.f32.gmra.mrb[0].mxu0 %v2302
      %v4548 = vpop.f32.mrb[0].mxu0
      %v4549 = vadd.f32 %v2733, %v4548
      %v4550 = vpop.f32.mrb[0].mxu0
      %4551 = vmatprep.mubr.f32.mxu0 %v2367
      %4552 = vmatmul.mubr.f32.gmra.mrb[0].mxu0 %v2303
      %v4553 = vpop.f32.mrb[0].mxu0
      %v4554 = vadd.f32 %v2733, %v4553
      %v4555 = vpop.f32.mrb[0].mxu0
      %4556 = vmatprep.mubr.f32.mxu0 %v2368
      %4557 = vmatmul.mubr.f32.gmra.mrb[0].mxu0 %v2304
      %v4558 = vpop.f32.mrb[0].mxu0
      %v4559 = vadd.f32 %v2733, %v4558
      %v4560 = vpop.f32.mrb[0].mxu0
      %4561 = vmatprep.mubr.f32.mxu0 %v2369
      %4562 = vmatmul.mubr.f32.gmra.mrb[0].mxu0 %v2305
      %v4563 = vpop.f32.mrb[0].mxu0
      %v4564 = vadd.f32 %v2733, %v4563
      %v4565 = vpop.f32.mrb[0].mxu0
      %4566 = vmatprep.mubr.f32.mxu0 %v2370
      %4567 = vmatmul.mubr.f32.gmra.mrb[0].mxu0 %v2306
      %v4568 = vpop.f32.mrb[0].mxu0
      %v4569 = vadd.f32 %v2733, %v4568
      %v4570 = vpop.f32.mrb[0].mxu0
      %4571 = vmatprep.mubr.f32.mxu0 %v2371
      %4572 = vmatmul.mubr.f32.gmra.mrb[0].mxu0 %v2307
      %v4573 = vpop.f32.mrb[0].mxu0
      %v4574 = vadd.f32 %v2733, %v4573
      %v4575 = vpop.f32.mrb[0].mxu0
      %4576 = vmatprep.mubr.f32.mxu0 %v2372
      %4577 = vmatmul.mubr.f32.gmra.mrb[0].mxu0 %v2308
      %v4578 = vpop.f32.mrb[0].mxu0
      %v4579 = vadd.f32 %v2733, %v4578
      %v4580 = vpop.f32.mrb[0].mxu0
      %4581 = vmatprep.mubr.f32.mxu0 %v2373
      %4582 = vmatmul.mubr.f32.gmra.mrb[0].mxu0 %v2309
      %v4583 = vpop.f32.mrb[0].mxu0
      %v4584 = vadd.f32 %v2733, %v4583
      %v4585 = vpop.f32.mrb[0].mxu0
      %4586 = vmatprep.mubr.f32.mxu0 %v2374
      %4587 = vmatmul.mubr.f32.gmra.mrb[0].mxu0 %v2310
      %v4588 = vpop.f32.mrb[0].mxu0
      %v4589 = vadd.f32 %v2733, %v4588
      %v4590 = vpop.f32.mrb[0].mxu0
      %4591 = vmatprep.mubr.f32.mxu0 %v2375
      %4592 = vmatmul.mubr.f32.gmra.mrb[0].mxu0 %v2311
      %v4593 = vpop.f32.mrb[0].mxu0
      %v4594 = vadd.f32 %v2733, %v4593
      %v4595 = vpop.f32.mrb[0].mxu0
      %4596 = vdwg.mxu0
      %4597 = vmatprep.subr.mxu0 0.0
      %4598 = vmatpush1.msra.mxu0 %v2602
      %4599 = vmatprep.subr.mxu0 0.0
      %4600 = vmatpush1.msra.mxu0 %v2605
      %4601 = vmatprep.subr.mxu0 0.0
      %4602 = vmatpush1.msra.mxu0 %v2608
      %4603 = vmatprep.subr.mxu0 0.0
      %4604 = vmatpush1.msra.mxu0 %v2611
      %4605 = vmatprep.subr.mxu0 0.0
      %4606 = vmatpush1.msra.mxu0 %v2614
      %4607 = vmatprep.subr.mxu0 0.0
      %4608 = vmatpush1.msra.mxu0 %v2617
      %4609 = vmatprep.subr.mxu0 0.0
      %4610 = vmatpush1.msra.mxu0 %v2620
      %4611 = vmatprep.subr.mxu0 0.0
      %4612 = vmatpush1.msra.mxu0 %v2623
      %4613 = vmatprep.subr.mxu0 0.0
      %4614 = vmatpush1.msra.mxu0 %v2626
      %4615 = vmatprep.subr.mxu0 0.0
      %4616 = vmatpush1.msra.mxu0 %v2629
      %4617 = vmatprep.subr.mxu0 0.0
      %4618 = vmatpush1.msra.mxu0 %v2632
      %4619 = vmatprep.subr.mxu0 0.0
      %4620 = vmatpush1.msra.mxu0 %v2635
      %4621 = vmatprep.subr.mxu0 0.0
      %4622 = vmatpush1.msra.mxu0 %v2638
      %4623 = vmatprep.subr.mxu0 0.0
      %4624 = vmatpush1.msra.mxu0 %v2641
      %4625 = vmatprep.subr.mxu0 0.0
      %4626 = vmatpush1.msra.mxu0 %v2644
      %4627 = vmatprep.subr.mxu0 0.0
      %4628 = vmatpush1.msra.mxu0 %v2647
      %4629 = vmatprep.subr.mxu0 0.0
      %4630 = vmatpush1.msra.mxu0 %v2650
      %4631 = vmatprep.subr.mxu0 0.0
      %4632 = vmatpush1.msra.mxu0 %v2653
      %4633 = vmatprep.subr.mxu0 0.0
      %4634 = vmatpush1.msra.mxu0 %v2656
      %4635 = vmatprep.subr.mxu0 0.0
      %4636 = vmatpush1.msra.mxu0 %v2659
      %4637 = vmatprep.subr.mxu0 0.0
      %4638 = vmatpush1.msra.mxu0 %v2662
      %4639 = vmatprep.subr.mxu0 0.0
      %4640 = vmatpush1.msra.mxu0 %v2665
      %4641 = vmatprep.subr.mxu0 0.0
      %4642 = vmatpush1.msra.mxu0 %v2668
      %4643 = vmatprep.subr.mxu0 0.0
      %4644 = vmatpush1.msra.mxu0 %v2671
      %4645 = vmatprep.subr.mxu0 0.0
      %4646 = vmatpush1.msra.mxu0 %v2674
      %4647 = vmatprep.subr.mxu0 0.0
      %4648 = vmatpush1.msra.mxu0 %v2677
      %4649 = vmatprep.subr.mxu0 0.0
      %4650 = vmatpush1.msra.mxu0 %v2680
      %4651 = vmatprep.subr.mxu0 0.0
      %4652 = vmatpush1.msra.mxu0 %v2683
      %4653 = vmatprep.subr.mxu0 0.0
      %4654 = vmatpush1.msra.mxu0 %v2686
      %4655 = vmatprep.subr.mxu0 0.0
      %4656 = vmatpush1.msra.mxu0 %v2689
      %4657 = vmatprep.subr.mxu0 0.0
      %4658 = vmatpush1.msra.mxu0 %v2692
      %4659 = vmatprep.subr.mxu0 0.0
      %4660 = vmatpush1.msra.mxu0 %v2695
      %4661 = vmatprep.mubr.f32.mxu0 %v2440
      %4662 = vmatmul.mubr.f32.gmra.mrb[0].mxu0 %v2376
      %v4663 = vpop.f32.mrb[0].mxu0
      %v4664 = vadd.f32 %v4279, %v4663
      %v4665 = vpop.f32.mrb[0].mxu0
      %4666 = vmatprep.mubr.f32.mxu0 %v2441
      %4667 = vmatmul.mubr.f32.gmra.mrb[0].mxu0 %v2377
      %v4668 = vpop.f32.mrb[0].mxu0
      %v4669 = vadd.f32 %v4284, %v4668
      %v4670 = vpop.f32.mrb[0].mxu0
      %4671 = vmatprep.mubr.f32.mxu0 %v2442
      %4672 = vmatmul.mubr.f32.gmra.mrb[0].mxu0 %v2378
      %v4673 = vpop.f32.mrb[0].mxu0
      %v4674 = vadd.f32 %v4289, %v4673
      %v4675 = vpop.f32.mrb[0].mxu0
      %4676 = vmatprep.mubr.f32.mxu0 %v2443
      %4677 = vmatmul.mubr.f32.gmra.mrb[0].mxu0 %v2379
      %v4678 = vpop.f32.mrb[0].mxu0
      %v4679 = vadd.f32 %v4294, %v4678
      %v4680 = vpop.f32.mrb[0].mxu0
      %4681 = vmatprep.mubr.f32.mxu0 %v2444
      %4682 = vmatmul.mubr.f32.gmra.mrb[0].mxu0 %v2380
      %v4683 = vpop.f32.mrb[0].mxu0
      %v4684 = vadd.f32 %v4299, %v4683
      %v4685 = vpop.f32.mrb[0].mxu0
      %4686 = vmatprep.mubr.f32.mxu0 %v2445
      %4687 = vmatmul.mubr.f32.gmra.mrb[0].mxu0 %v2381
      %v4688 = vpop.f32.mrb[0].mxu0
      %v4689 = vadd.f32 %v4304, %v4688
      %v4690 = vpop.f32.mrb[0].mxu0
      %4691 = vmatprep.mubr.f32.mxu0 %v2446
      %4692 = vmatmul.mubr.f32.gmra.mrb[0].mxu0 %v2382
      %v4693 = vpop.f32.mrb[0].mxu0
      %v4694 = vadd.f32 %v4309, %v4693
      %v4695 = vpop.f32.mrb[0].mxu0
      %4696 = vmatprep.mubr.f32.mxu0 %v2447
      %4697 = vmatmul.mubr.f32.gmra.mrb[0].mxu0 %v2383
      %v4698 = vpop.f32.mrb[0].mxu0
      %v4699 = vadd.f32 %v4314, %v4698
      %v4700 = vpop.f32.mrb[0].mxu0
      %4701 = vmatprep.mubr.f32.mxu0 %v2448
      %4702 = vmatmul.mubr.f32.gmra.mrb[0].mxu0 %v2384
      %v4703 = vpop.f32.mrb[0].mxu0
      %v4704 = vadd.f32 %v4319, %v4703
      %v4705 = vpop.f32.mrb[0].mxu0
      %4706 = vmatprep.mubr.f32.mxu0 %v2449
      %4707 = vmatmul.mubr.f32.gmra.mrb[0].mxu0 %v2385
      %v4708 = vpop.f32.mrb[0].mxu0
      %v4709 = vadd.f32 %v4324, %v4708
      %v4710 = vpop.f32.mrb[0].mxu0
      %4711 = vmatprep.mubr.f32.mxu0 %v2450
      %4712 = vmatmul.mubr.f32.gmra.mrb[0].mxu0 %v2386
      %v4713 = vpop.f32.mrb[0].mxu0
      %v4714 = vadd.f32 %v4329, %v4713
      %v4715 = vpop.f32.mrb[0].mxu0
      %4716 = vmatprep.mubr.f32.mxu0 %v2451
      %4717 = vmatmul.mubr.f32.gmra.mrb[0].mxu0 %v2387
      %v4718 = vpop.f32.mrb[0].mxu0
      %v4719 = vadd.f32 %v4334, %v4718
      %v4720 = vpop.f32.mrb[0].mxu0
      %4721 = vmatprep.mubr.f32.mxu0 %v2452
      %4722 = vmatmul.mubr.f32.gmra.mrb[0].mxu0 %v2388
      %v4723 = vpop.f32.mrb[0].mxu0
      %v4724 = vadd.f32 %v4339, %v4723
      %v4725 = vpop.f32.mrb[0].mxu0
      %4726 = vmatprep.mubr.f32.mxu0 %v2453
      %4727 = vmatmul.mubr.f32.gmra.mrb[0].mxu0 %v2389
      %v4728 = vpop.f32.mrb[0].mxu0
      %v4729 = vadd.f32 %v4344, %v4728
      %v4730 = vpop.f32.mrb[0].mxu0
      %4731 = vmatprep.mubr.f32.mxu0 %v2454
      %4732 = vmatmul.mubr.f32.gmra.mrb[0].mxu0 %v2390
      %v4733 = vpop.f32.mrb[0].mxu0
      %v4734 = vadd.f32 %v4349, %v4733
      %v4735 = vpop.f32.mrb[0].mxu0
      %4736 = vmatprep.mubr.f32.mxu0 %v2455
      %4737 = vmatmul.mubr.f32.gmra.mrb[0].mxu0 %v2391
      %v4738 = vpop.f32.mrb[0].mxu0
      %v4739 = vadd.f32 %v4354, %v4738
      %v4740 = vpop.f32.mrb[0].mxu0
      %4741 = vmatprep.mubr.f32.mxu0 %v2456
      %4742 = vmatmul.mubr.f32.gmra.mrb[0].mxu0 %v2392
      %v4743 = vpop.f32.mrb[0].mxu0
      %v4744 = vadd.f32 %v4359, %v4743
      %v4745 = vpop.f32.mrb[0].mxu0
      %4746 = vmatprep.mubr.f32.mxu0 %v2457
      %4747 = vmatmul.mubr.f32.gmra.mrb[0].mxu0 %v2393
      %v4748 = vpop.f32.mrb[0].mxu0
      %v4749 = vadd.f32 %v4364, %v4748
      %v4750 = vpop.f32.mrb[0].mxu0
      %4751 = vmatprep.mubr.f32.mxu0 %v2458
      %4752 = vmatmul.mubr.f32.gmra.mrb[0].mxu0 %v2394
      %v4753 = vpop.f32.mrb[0].mxu0
      %v4754 = vadd.f32 %v4369, %v4753
      %v4755 = vpop.f32.mrb[0].mxu0
      %4756 = vmatprep.mubr.f32.mxu0 %v2459
      %4757 = vmatmul.mubr.f32.gmra.mrb[0].mxu0 %v2395
      %v4758 = vpop.f32.mrb[0].mxu0
      %v4759 = vadd.f32 %v4374, %v4758
      %v4760 = vpop.f32.mrb[0].mxu0
      %4761 = vmatprep.mubr.f32.mxu0 %v2460
      %4762 = vmatmul.mubr.f32.gmra.mrb[0].mxu0 %v2396
      %v4763 = vpop.f32.mrb[0].mxu0
      %v4764 = vadd.f32 %v4379, %v4763
      %v4765 = vpop.f32.mrb[0].mxu0
      %4766 = vmatprep.mubr.f32.mxu0 %v2461
      %4767 = vmatmul.mubr.f32.gmra.mrb[0].mxu0 %v2397
      %v4768 = vpop.f32.mrb[0].mxu0
      %v4769 = vadd.f32 %v4384, %v4768
      %v4770 = vpop.f32.mrb[0].mxu0
      %4771 = vmatprep.mubr.f32.mxu0 %v2462
      %4772 = vmatmul.mubr.f32.gmra.mrb[0].mxu0 %v2398
      %v4773 = vpop.f32.mrb[0].mxu0
      %v4774 = vadd.f32 %v4389, %v4773
      %v4775 = vpop.f32.mrb[0].mxu0
      %4776 = vmatprep.mubr.f32.mxu0 %v2463
      %4777 = vmatmul.mubr.f32.gmra.mrb[0].mxu0 %v2399
      %v4778 = vpop.f32.mrb[0].mxu0
      %v4779 = vadd.f32 %v4394, %v4778
      %v4780 = vpop.f32.mrb[0].mxu0
      %4781 = vmatprep.mubr.f32.mxu0 %v2464
      %4782 = vmatmul.mubr.f32.gmra.mrb[0].mxu0 %v2400
      %v4783 = vpop.f32.mrb[0].mxu0
      %v4784 = vadd.f32 %v4399, %v4783
      %v4785 = vpop.f32.mrb[0].mxu0
      %4786 = vmatprep.mubr.f32.mxu0 %v2465
      %4787 = vmatmul.mubr.f32.gmra.mrb[0].mxu0 %v2401
      %v4788 = vpop.f32.mrb[0].mxu0
      %v4789 = vadd.f32 %v4404, %v4788
      %v4790 = vpop.f32.mrb[0].mxu0
      %4791 = vmatprep.mubr.f32.mxu0 %v2466
      %4792 = vmatmul.mubr.f32.gmra.mrb[0].mxu0 %v2402
      %v4793 = vpop.f32.mrb[0].mxu0
      %v4794 = vadd.f32 %v4409, %v4793
      %v4795 = vpop.f32.mrb[0].mxu0
      %4796 = vmatprep.mubr.f32.mxu0 %v2467
      %4797 = vmatmul.mubr.f32.gmra.mrb[0].mxu0 %v2403
      %v4798 = vpop.f32.mrb[0].mxu0
      %v4799 = vadd.f32 %v4414, %v4798
      %v4800 = vpop.f32.mrb[0].mxu0
      %4801 = vmatprep.mubr.f32.mxu0 %v2468
      %4802 = vmatmul.mubr.f32.gmra.mrb[0].mxu0 %v2404
      %v4803 = vpop.f32.mrb[0].mxu0
      %v4804 = vadd.f32 %v4419, %v4803
      %v4805 = vpop.f32.mrb[0].mxu0
      %4806 = vmatprep.mubr.f32.mxu0 %v2469
      %4807 = vmatmul.mubr.f32.gmra.mrb[0].mxu0 %v2405
      %v4808 = vpop.f32.mrb[0].mxu0
      %v4809 = vadd.f32 %v4424, %v4808
      %v4810 = vpop.f32.mrb[0].mxu0
      %4811 = vmatprep.mubr.f32.mxu0 %v2470
      %4812 = vmatmul.mubr.f32.gmra.mrb[0].mxu0 %v2406
      %v4813 = vpop.f32.mrb[0].mxu0
      %v4814 = vadd.f32 %v4429, %v4813
      %v4815 = vpop.f32.mrb[0].mxu0
      %4816 = vmatprep.mubr.f32.mxu0 %v2471
      %4817 = vmatmul.mubr.f32.gmra.mrb[0].mxu0 %v2407
      %v4818 = vpop.f32.mrb[0].mxu0
      %v4819 = vadd.f32 %v4434, %v4818
      %v4820 = vpop.f32.mrb[0].mxu0
      %4821 = vmatprep.mubr.f32.mxu0 %v2472
      %4822 = vmatmul.mubr.f32.gmra.mrb[0].mxu0 %v2408
      %v4823 = vpop.f32.mrb[0].mxu0
      %v4824 = vadd.f32 %v4439, %v4823
      %v4825 = vpop.f32.mrb[0].mxu0
      %4826 = vmatprep.mubr.f32.mxu0 %v2473
      %4827 = vmatmul.mubr.f32.gmra.mrb[0].mxu0 %v2409
      %v4828 = vpop.f32.mrb[0].mxu0
      %v4829 = vadd.f32 %v4444, %v4828
      %v4830 = vpop.f32.mrb[0].mxu0
      %4831 = vmatprep.mubr.f32.mxu0 %v2474
      %4832 = vmatmul.mubr.f32.gmra.mrb[0].mxu0 %v2410
      %v4833 = vpop.f32.mrb[0].mxu0
      %v4834 = vadd.f32 %v4449, %v4833
      %v4835 = vpop.f32.mrb[0].mxu0
      %4836 = vmatprep.mubr.f32.mxu0 %v2475
      %4837 = vmatmul.mubr.f32.gmra.mrb[0].mxu0 %v2411
      %v4838 = vpop.f32.mrb[0].mxu0
      %v4839 = vadd.f32 %v4454, %v4838
      %v4840 = vpop.f32.mrb[0].mxu0
      %4841 = vmatprep.mubr.f32.mxu0 %v2476
      %4842 = vmatmul.mubr.f32.gmra.mrb[0].mxu0 %v2412
      %v4843 = vpop.f32.mrb[0].mxu0
      %v4844 = vadd.f32 %v4459, %v4843
      %v4845 = vpop.f32.mrb[0].mxu0
      %4846 = vmatprep.mubr.f32.mxu0 %v2477
      %4847 = vmatmul.mubr.f32.gmra.mrb[0].mxu0 %v2413
      %v4848 = vpop.f32.mrb[0].mxu0
      %v4849 = vadd.f32 %v4464, %v4848
      %v4850 = vpop.f32.mrb[0].mxu0
      %4851 = vmatprep.mubr.f32.mxu0 %v2478
      %4852 = vmatmul.mubr.f32.gmra.mrb[0].mxu0 %v2414
      %v4853 = vpop.f32.mrb[0].mxu0
      %v4854 = vadd.f32 %v4469, %v4853
      %v4855 = vpop.f32.mrb[0].mxu0
      %4856 = vmatprep.mubr.f32.mxu0 %v2479
      %4857 = vmatmul.mubr.f32.gmra.mrb[0].mxu0 %v2415
      %v4858 = vpop.f32.mrb[0].mxu0
      %v4859 = vadd.f32 %v4474, %v4858
      %v4860 = vpop.f32.mrb[0].mxu0
      %4861 = vmatprep.mubr.f32.mxu0 %v2480
      %4862 = vmatmul.mubr.f32.gmra.mrb[0].mxu0 %v2416
      %v4863 = vpop.f32.mrb[0].mxu0
      %v4864 = vadd.f32 %v4479, %v4863
      %v4865 = vpop.f32.mrb[0].mxu0
      %4866 = vmatprep.mubr.f32.mxu0 %v2481
      %4867 = vmatmul.mubr.f32.gmra.mrb[0].mxu0 %v2417
      %v4868 = vpop.f32.mrb[0].mxu0
      %v4869 = vadd.f32 %v4484, %v4868
      %v4870 = vpop.f32.mrb[0].mxu0
      %4871 = vmatprep.mubr.f32.mxu0 %v2482
      %4872 = vmatmul.mubr.f32.gmra.mrb[0].mxu0 %v2418
      %v4873 = vpop.f32.mrb[0].mxu0
      %v4874 = vadd.f32 %v4489, %v4873
      %v4875 = vpop.f32.mrb[0].mxu0
      %4876 = vmatprep.mubr.f32.mxu0 %v2483
      %4877 = vmatmul.mubr.f32.gmra.mrb[0].mxu0 %v2419
      %v4878 = vpop.f32.mrb[0].mxu0
      %v4879 = vadd.f32 %v4494, %v4878
      %v4880 = vpop.f32.mrb[0].mxu0
      %4881 = vmatprep.mubr.f32.mxu0 %v2484
      %4882 = vmatmul.mubr.f32.gmra.mrb[0].mxu0 %v2420
      %v4883 = vpop.f32.mrb[0].mxu0
      %v4884 = vadd.f32 %v4499, %v4883
      %v4885 = vpop.f32.mrb[0].mxu0
      %4886 = vmatprep.mubr.f32.mxu0 %v2485
      %4887 = vmatmul.mubr.f32.gmra.mrb[0].mxu0 %v2421
      %v4888 = vpop.f32.mrb[0].mxu0
      %v4889 = vadd.f32 %v4504, %v4888
      %v4890 = vpop.f32.mrb[0].mxu0
      %4891 = vmatprep.mubr.f32.mxu0 %v2486
      %4892 = vmatmul.mubr.f32.gmra.mrb[0].mxu0 %v2422
      %v4893 = vpop.f32.mrb[0].mxu0
      %v4894 = vadd.f32 %v4509, %v4893
      %v4895 = vpop.f32.mrb[0].mxu0
      %4896 = vmatprep.mubr.f32.mxu0 %v2487
      %4897 = vmatmul.mubr.f32.gmra.mrb[0].mxu0 %v2423
      %v4898 = vpop.f32.mrb[0].mxu0
      %v4899 = vadd.f32 %v4514, %v4898
      %v4900 = vpop.f32.mrb[0].mxu0
      %4901 = vmatprep.mubr.f32.mxu0 %v2488
      %4902 = vmatmul.mubr.f32.gmra.mrb[0].mxu0 %v2424
      %v4903 = vpop.f32.mrb[0].mxu0
      %v4904 = vadd.f32 %v4519, %v4903
      %v4905 = vpop.f32.mrb[0].mxu0
      %4906 = vmatprep.mubr.f32.mxu0 %v2489
      %4907 = vmatmul.mubr.f32.gmra.mrb[0].mxu0 %v2425
      %v4908 = vpop.f32.mrb[0].mxu0
      %v4909 = vadd.f32 %v4524, %v4908
      %v4910 = vpop.f32.mrb[0].mxu0
      %4911 = vmatprep.mubr.f32.mxu0 %v2490
      %4912 = vmatmul.mubr.f32.gmra.mrb[0].mxu0 %v2426
      %v4913 = vpop.f32.mrb[0].mxu0
      %v4914 = vadd.f32 %v4529, %v4913
      %v4915 = vpop.f32.mrb[0].mxu0
      %4916 = vmatprep.mubr.f32.mxu0 %v2491
      %4917 = vmatmul.mubr.f32.gmra.mrb[0].mxu0 %v2427
      %v4918 = vpop.f32.mrb[0].mxu0
      %v4919 = vadd.f32 %v4534, %v4918
      %v4920 = vpop.f32.mrb[0].mxu0
      %4921 = vmatprep.mubr.f32.mxu0 %v2492
      %4922 = vmatmul.mubr.f32.gmra.mrb[0].mxu0 %v2428
      %v4923 = vpop.f32.mrb[0].mxu0
      %v4924 = vadd.f32 %v4539, %v4923
      %v4925 = vpop.f32.mrb[0].mxu0
      %4926 = vmatprep.mubr.f32.mxu0 %v2493
      %4927 = vmatmul.mubr.f32.gmra.mrb[0].mxu0 %v2429
      %v4928 = vpop.f32.mrb[0].mxu0
      %v4929 = vadd.f32 %v4544, %v4928
      %v4930 = vpop.f32.mrb[0].mxu0
      %4931 = vmatprep.mubr.f32.mxu0 %v2494
      %4932 = vmatmul.mubr.f32.gmra.mrb[0].mxu0 %v2430
      %v4933 = vpop.f32.mrb[0].mxu0
      %v4934 = vadd.f32 %v4549, %v4933
      %v4935 = vpop.f32.mrb[0].mxu0
      %4936 = vmatprep.mubr.f32.mxu0 %v2495
      %4937 = vmatmul.mubr.f32.gmra.mrb[0].mxu0 %v2431
      %v4938 = vpop.f32.mrb[0].mxu0
      %v4939 = vadd.f32 %v4554, %v4938
      %v4940 = vpop.f32.mrb[0].mxu0
      %4941 = vmatprep.mubr.f32.mxu0 %v2496
      %4942 = vmatmul.mubr.f32.gmra.mrb[0].mxu0 %v2432
      %v4943 = vpop.f32.mrb[0].mxu0
      %v4944 = vadd.f32 %v4559, %v4943
      %v4945 = vpop.f32.mrb[0].mxu0
      %4946 = vmatprep.mubr.f32.mxu0 %v2497
      %4947 = vmatmul.mubr.f32.gmra.mrb[0].mxu0 %v2433
      %v4948 = vpop.f32.mrb[0].mxu0
      %v4949 = vadd.f32 %v4564, %v4948
      %v4950 = vpop.f32.mrb[0].mxu0
      %4951 = vmatprep.mubr.f32.mxu0 %v2498
      %4952 = vmatmul.mubr.f32.gmra.mrb[0].mxu0 %v2434
      %v4953 = vpop.f32.mrb[0].mxu0
      %v4954 = vadd.f32 %v4569, %v4953
      %v4955 = vpop.f32.mrb[0].mxu0
      %4956 = vmatprep.mubr.f32.mxu0 %v2499
      %4957 = vmatmul.mubr.f32.gmra.mrb[0].mxu0 %v2435
      %v4958 = vpop.f32.mrb[0].mxu0
      %v4959 = vadd.f32 %v4574, %v4958
      %v4960 = vpop.f32.mrb[0].mxu0
      %4961 = vmatprep.mubr.f32.mxu0 %v2500
      %4962 = vmatmul.mubr.f32.gmra.mrb[0].mxu0 %v2436
      %v4963 = vpop.f32.mrb[0].mxu0
      %v4964 = vadd.f32 %v4579, %v4963
      %v4965 = vpop.f32.mrb[0].mxu0
      %4966 = vmatprep.mubr.f32.mxu0 %v2501
      %4967 = vmatmul.mubr.f32.gmra.mrb[0].mxu0 %v2437
      %v4968 = vpop.f32.mrb[0].mxu0
      %v4969 = vadd.f32 %v4584, %v4968
      %v4970 = vpop.f32.mrb[0].mxu0
      %4971 = vmatprep.mubr.f32.mxu0 %v2502
      %4972 = vmatmul.mubr.f32.gmra.mrb[0].mxu0 %v2438
      %v4973 = vpop.f32.mrb[0].mxu0
      %v4974 = vadd.f32 %v4589, %v4973
      %v4975 = vpop.f32.mrb[0].mxu0
      %4976 = vmatprep.mubr.f32.mxu0 %v2503
      %4977 = vmatmul.mubr.f32.gmra.mrb[0].mxu0 %v2439
      %v4978 = vpop.f32.mrb[0].mxu0
      %v4979 = vadd.f32 %v4594, %v4978
      %v4980 = vpop.f32.mrb[0].mxu0
      %4981 = vdwg.mxu0
      %4982 = vmatprep.subr.mxu0 0.0
      %4983 = vmatpush1.msra.mxu0 %v2698
      %4984 = vmatprep.subr.mxu0 0.0
      %4985 = vmatpush1.msra.mxu0 %v2701
      %4986 = vmatprep.subr.mxu0 0.0
      %4987 = vmatpush1.msra.mxu0 %v2704
      %4988 = vmatprep.subr.mxu0 0.0
      %4989 = vmatpush1.msra.mxu0 %v2707
      %4990 = vmatprep.subr.mxu0 0.0
      %4991 = vmatpush1.msra.mxu0 %v2710
      %4992 = vmatprep.subr.mxu0 0.0
      %4993 = vmatpush1.msra.mxu0 %v2713
      %4994 = vmatprep.subr.mxu0 0.0
      %4995 = vmatpush1.msra.mxu0 %v2716
      %4996 = vmatprep.subr.mxu0 0.0
      %4997 = vmatpush1.msra.mxu0 %v2719
      %4998 = vmatprep.subr.mxu0 0.0
      %4999 = vmatpush1.msra.mxu0 0.0
      %5000 = vmatprep.subr.mxu0 0.0
      %5001 = vmatpush1.msra.mxu0 0.0
      %5002 = vmatprep.subr.mxu0 0.0
      %5003 = vmatpush1.msra.mxu0 0.0
      %5004 = vmatprep.subr.mxu0 0.0
      %5005 = vmatpush1.msra.mxu0 0.0
      %5006 = vmatprep.subr.mxu0 0.0
      %5007 = vmatpush1.msra.mxu0 0.0
      %5008 = vmatprep.subr.mxu0 0.0
      %5009 = vmatpush1.msra.mxu0 0.0
      %5010 = vmatprep.subr.mxu0 0.0
      %5011 = vmatpush1.msra.mxu0 0.0
      %5012 = vmatprep.subr.mxu0 0.0
      %5013 = vmatpush1.msra.mxu0 0.0
      %5014 = vmatprep.subr.mxu0 0.0
      %5015 = vmatpush1.msra.mxu0 0.0
      %5016 = vmatprep.subr.mxu0 0.0
      %5017 = vmatpush1.msra.mxu0 0.0
      %5018 = vmatprep.subr.mxu0 0.0
      %5019 = vmatpush1.msra.mxu0 0.0
      %5020 = vmatprep.subr.mxu0 0.0
      %5021 = vmatpush1.msra.mxu0 0.0
      %5022 = vmatprep.subr.mxu0 0.0
      %5023 = vmatpush1.msra.mxu0 0.0
      %5024 = vmatprep.subr.mxu0 0.0
      %5025 = vmatpush1.msra.mxu0 0.0
      %5026 = vmatprep.subr.mxu0 0.0
      %5027 = vmatpush1.msra.mxu0 0.0
      %5028 = vmatprep.subr.mxu0 0.0
      %5029 = vmatpush1.msra.mxu0 0.0
      %5030 = vmatprep.subr.mxu0 0.0
      %5031 = vmatpush1.msra.mxu0 0.0
      %5032 = vmatprep.subr.mxu0 0.0
      %5033 = vmatpush1.msra.mxu0 0.0
      %5034 = vmatprep.subr.mxu0 0.0
      %5035 = vmatpush1.msra.mxu0 0.0
      %5036 = vmatprep.subr.mxu0 0.0
      %5037 = vmatpush1.msra.mxu0 0.0
      %5038 = vmatprep.subr.mxu0 0.0
      %5039 = vmatpush1.msra.mxu0 0.0
      %5040 = vmatprep.subr.mxu0 0.0
      %5041 = vmatpush1.msra.mxu0 0.0
      %5042 = vmatprep.subr.mxu0 0.0
      %5043 = vmatpush1.msra.mxu0 0.0
      %5044 = vmatprep.subr.mxu0 0.0
      %5045 = vmatpush1.msra.mxu0 0.0
      %5046 = vmatprep.mubr.f32.mxu0 0.0
      %5047 = vmatmul.mubr.f32.gmra.mrb[0].mxu0 %v2737
      %v5048 = vpop.f32.mrb[0].mxu0
      %v5049 = vadd.f32 %v4664, %v5048
      %v5050 = vpop.f32.mrb[0].mxu0
      %5051 = vmatprep.mubr.f32.mxu0 0.0
      %5052 = vmatmul.mubr.f32.gmra.mrb[0].mxu0 %v2739
      %v5053 = vpop.f32.mrb[0].mxu0
      %v5054 = vadd.f32 %v4669, %v5053
      %v5055 = vpop.f32.mrb[0].mxu0
      %5056 = vmatprep.mubr.f32.mxu0 0.0
      %5057 = vmatmul.mubr.f32.gmra.mrb[0].mxu0 %v2741
      %v5058 = vpop.f32.mrb[0].mxu0
      %v5059 = vadd.f32 %v4674, %v5058
      %v5060 = vpop.f32.mrb[0].mxu0
      %5061 = vmatprep.mubr.f32.mxu0 0.0
      %5062 = vmatmul.mubr.f32.gmra.mrb[0].mxu0 %v2743
      %v5063 = vpop.f32.mrb[0].mxu0
      %v5064 = vadd.f32 %v4679, %v5063
      %v5065 = vpop.f32.mrb[0].mxu0
      %5066 = vmatprep.mubr.f32.mxu0 0.0
      %5067 = vmatmul.mubr.f32.gmra.mrb[0].mxu0 %v2745
      %v5068 = vpop.f32.mrb[0].mxu0
      %v5069 = vadd.f32 %v4684, %v5068
      %v5070 = vpop.f32.mrb[0].mxu0
      %5071 = vmatprep.mubr.f32.mxu0 0.0
      %5072 = vmatmul.mubr.f32.gmra.mrb[0].mxu0 %v2747
      %v5073 = vpop.f32.mrb[0].mxu0
      %v5074 = vadd.f32 %v4689, %v5073
      %v5075 = vpop.f32.mrb[0].mxu0
      %5076 = vmatprep.mubr.f32.mxu0 0.0
      %5077 = vmatmul.mubr.f32.gmra.mrb[0].mxu0 %v2749
      %v5078 = vpop.f32.mrb[0].mxu0
      %v5079 = vadd.f32 %v4694, %v5078
      %v5080 = vpop.f32.mrb[0].mxu0
      %5081 = vmatprep.mubr.f32.mxu0 0.0
      %5082 = vmatmul.mubr.f32.gmra.mrb[0].mxu0 %v2751
      %v5083 = vpop.f32.mrb[0].mxu0
      %v5084 = vadd.f32 %v4699, %v5083
      %v5085 = vpop.f32.mrb[0].mxu0
      %5086 = vmatprep.mubr.f32.mxu0 0.0
      %5087 = vmatmul.mubr.f32.gmra.mrb[0].mxu0 %v2753
      %v5088 = vpop.f32.mrb[0].mxu0
      %v5089 = vadd.f32 %v4704, %v5088
      %v5090 = vpop.f32.mrb[0].mxu0
      %5091 = vmatprep.mubr.f32.mxu0 0.0
      %5092 = vmatmul.mubr.f32.gmra.mrb[0].mxu0 %v2755
      %v5093 = vpop.f32.mrb[0].mxu0
      %v5094 = vadd.f32 %v4709, %v5093
      %v5095 = vpop.f32.mrb[0].mxu0
      %5096 = vmatprep.mubr.f32.mxu0 0.0
      %5097 = vmatmul.mubr.f32.gmra.mrb[0].mxu0 %v2757
      %v5098 = vpop.f32.mrb[0].mxu0
      %v5099 = vadd.f32 %v4714, %v5098
      %v5100 = vpop.f32.mrb[0].mxu0
      %5101 = vmatprep.mubr.f32.mxu0 0.0
      %5102 = vmatmul.mubr.f32.gmra.mrb[0].mxu0 %v2759
      %v5103 = vpop.f32.mrb[0].mxu0
      %v5104 = vadd.f32 %v4719, %v5103
      %v5105 = vpop.f32.mrb[0].mxu0
      %5106 = vmatprep.mubr.f32.mxu0 0.0
      %5107 = vmatmul.mubr.f32.gmra.mrb[0].mxu0 %v2761
      %v5108 = vpop.f32.mrb[0].mxu0
      %v5109 = vadd.f32 %v4724, %v5108
      %v5110 = vpop.f32.mrb[0].mxu0
      %5111 = vmatprep.mubr.f32.mxu0 0.0
      %5112 = vmatmul.mubr.f32.gmra.mrb[0].mxu0 %v2763
      %v5113 = vpop.f32.mrb[0].mxu0
      %v5114 = vadd.f32 %v4729, %v5113
      %v5115 = vpop.f32.mrb[0].mxu0
      %5116 = vmatprep.mubr.f32.mxu0 0.0
      %5117 = vmatmul.mubr.f32.gmra.mrb[0].mxu0 %v2765
      %v5118 = vpop.f32.mrb[0].mxu0
      %v5119 = vadd.f32 %v4734, %v5118
      %v5120 = vpop.f32.mrb[0].mxu0
      %5121 = vmatprep.mubr.f32.mxu0 0.0
      %5122 = vmatmul.mubr.f32.gmra.mrb[0].mxu0 %v2767
      %v5123 = vpop.f32.mrb[0].mxu0
      %v5124 = vadd.f32 %v4739, %v5123
      %v5125 = vpop.f32.mrb[0].mxu0
      %5126 = vmatprep.mubr.f32.mxu0 0.0
      %5127 = vmatmul.mubr.f32.gmra.mrb[0].mxu0 %v2769
      %v5128 = vpop.f32.mrb[0].mxu0
      %v5129 = vadd.f32 %v4744, %v5128
      %v5130 = vpop.f32.mrb[0].mxu0
      %5131 = vmatprep.mubr.f32.mxu0 0.0
      %5132 = vmatmul.mubr.f32.gmra.mrb[0].mxu0 %v2771
      %v5133 = vpop.f32.mrb[0].mxu0
      %v5134 = vadd.f32 %v4749, %v5133
      %v5135 = vpop.f32.mrb[0].mxu0
      %5136 = vmatprep.mubr.f32.mxu0 0.0
      %5137 = vmatmul.mubr.f32.gmra.mrb[0].mxu0 %v2773
      %v5138 = vpop.f32.mrb[0].mxu0
      %v5139 = vadd.f32 %v4754, %v5138
      %v5140 = vpop.f32.mrb[0].mxu0
      %5141 = vmatprep.mubr.f32.mxu0 0.0
      %5142 = vmatmul.mubr.f32.gmra.mrb[0].mxu0 %v2775
      %v5143 = vpop.f32.mrb[0].mxu0
      %v5144 = vadd.f32 %v4759, %v5143
      %v5145 = vpop.f32.mrb[0].mxu0
      %5146 = vmatprep.mubr.f32.mxu0 0.0
      %5147 = vmatmul.mubr.f32.gmra.mrb[0].mxu0 %v2777
      %v5148 = vpop.f32.mrb[0].mxu0
      %v5149 = vadd.f32 %v4764, %v5148
      %v5150 = vpop.f32.mrb[0].mxu0
      %5151 = vmatprep.mubr.f32.mxu0 0.0
      %5152 = vmatmul.mubr.f32.gmra.mrb[0].mxu0 %v2779
      %v5153 = vpop.f32.mrb[0].mxu0
      %v5154 = vadd.f32 %v4769, %v5153
      %v5155 = vpop.f32.mrb[0].mxu0
      %5156 = vmatprep.mubr.f32.mxu0 0.0
      %5157 = vmatmul.mubr.f32.gmra.mrb[0].mxu0 %v2781
      %v5158 = vpop.f32.mrb[0].mxu0
      %v5159 = vadd.f32 %v4774, %v5158
      %v5160 = vpop.f32.mrb[0].mxu0
      %5161 = vmatprep.mubr.f32.mxu0 0.0
      %5162 = vmatmul.mubr.f32.gmra.mrb[0].mxu0 %v2783
      %v5163 = vpop.f32.mrb[0].mxu0
      %v5164 = vadd.f32 %v4779, %v5163
      %v5165 = vpop.f32.mrb[0].mxu0
      %5166 = vmatprep.mubr.f32.mxu0 0.0
      %5167 = vmatmul.mubr.f32.gmra.mrb[0].mxu0 %v2785
      %v5168 = vpop.f32.mrb[0].mxu0
      %v5169 = vadd.f32 %v4784, %v5168
      %v5170 = vpop.f32.mrb[0].mxu0
      %5171 = vmatprep.mubr.f32.mxu0 0.0
      %5172 = vmatmul.mubr.f32.gmra.mrb[0].mxu0 %v2787
      %v5173 = vpop.f32.mrb[0].mxu0
      %v5174 = vadd.f32 %v4789, %v5173
      %v5175 = vpop.f32.mrb[0].mxu0
      %5176 = vmatprep.mubr.f32.mxu0 0.0
      %5177 = vmatmul.mubr.f32.gmra.mrb[0].mxu0 %v2789
      %v5178 = vpop.f32.mrb[0].mxu0
      %v5179 = vadd.f32 %v4794, %v5178
      %v5180 = vpop.f32.mrb[0].mxu0
      %5181 = vmatprep.mubr.f32.mxu0 0.0
      %5182 = vmatmul.mubr.f32.gmra.mrb[0].mxu0 %v2791
      %v5183 = vpop.f32.mrb[0].mxu0
      %v5184 = vadd.f32 %v4799, %v5183
      %v5185 = vpop.f32.mrb[0].mxu0
      %5186 = vmatprep.mubr.f32.mxu0 0.0
      %5187 = vmatmul.mubr.f32.gmra.mrb[0].mxu0 %v2793
      %v5188 = vpop.f32.mrb[0].mxu0
      %v5189 = vadd.f32 %v4804, %v5188
      %v5190 = vpop.f32.mrb[0].mxu0
      %5191 = vmatprep.mubr.f32.mxu0 0.0
      %5192 = vmatmul.mubr.f32.gmra.mrb[0].mxu0 %v2795
      %v5193 = vpop.f32.mrb[0].mxu0
      %v5194 = vadd.f32 %v4809, %v5193
      %v5195 = vpop.f32.mrb[0].mxu0
      %5196 = vmatprep.mubr.f32.mxu0 0.0
      %5197 = vmatmul.mubr.f32.gmra.mrb[0].mxu0 %v2797
      %v5198 = vpop.f32.mrb[0].mxu0
      %v5199 = vadd.f32 %v4814, %v5198
      %v5200 = vpop.f32.mrb[0].mxu0
      %5201 = vmatprep.mubr.f32.mxu0 0.0
      %5202 = vmatmul.mubr.f32.gmra.mrb[0].mxu0 %v2799
      %v5203 = vpop.f32.mrb[0].mxu0
      %v5204 = vadd.f32 %v4819, %v5203
      %v5205 = vpop.f32.mrb[0].mxu0
      %5206 = vmatprep.mubr.f32.mxu0 0.0
      %5207 = vmatmul.mubr.f32.gmra.mrb[0].mxu0 %v2801
      %v5208 = vpop.f32.mrb[0].mxu0
      %v5209 = vadd.f32 %v4824, %v5208
      %v5210 = vpop.f32.mrb[0].mxu0
      %5211 = vmatprep.mubr.f32.mxu0 0.0
      %5212 = vmatmul.mubr.f32.gmra.mrb[0].mxu0 %v2803
      %v5213 = vpop.f32.mrb[0].mxu0
      %v5214 = vadd.f32 %v4829, %v5213
      %v5215 = vpop.f32.mrb[0].mxu0
      %5216 = vmatprep.mubr.f32.mxu0 0.0
      %5217 = vmatmul.mubr.f32.gmra.mrb[0].mxu0 %v2805
      %v5218 = vpop.f32.mrb[0].mxu0
      %v5219 = vadd.f32 %v4834, %v5218
      %v5220 = vpop.f32.mrb[0].mxu0
      %5221 = vmatprep.mubr.f32.mxu0 0.0
      %5222 = vmatmul.mubr.f32.gmra.mrb[0].mxu0 %v2807
      %v5223 = vpop.f32.mrb[0].mxu0
      %v5224 = vadd.f32 %v4839, %v5223
      %v5225 = vpop.f32.mrb[0].mxu0
      %5226 = vmatprep.mubr.f32.mxu0 0.0
      %5227 = vmatmul.mubr.f32.gmra.mrb[0].mxu0 %v2809
      %v5228 = vpop.f32.mrb[0].mxu0
      %v5229 = vadd.f32 %v4844, %v5228
      %v5230 = vpop.f32.mrb[0].mxu0
      %5231 = vmatprep.mubr.f32.mxu0 0.0
      %5232 = vmatmul.mubr.f32.gmra.mrb[0].mxu0 %v2811
      %v5233 = vpop.f32.mrb[0].mxu0
      %v5234 = vadd.f32 %v4849, %v5233
      %v5235 = vpop.f32.mrb[0].mxu0
      %5236 = vmatprep.mubr.f32.mxu0 0.0
      %5237 = vmatmul.mubr.f32.gmra.mrb[0].mxu0 %v2813
      %v5238 = vpop.f32.mrb[0].mxu0
      %v5239 = vadd.f32 %v4854, %v5238
      %v5240 = vpop.f32.mrb[0].mxu0
      %5241 = vmatprep.mubr.f32.mxu0 0.0
      %5242 = vmatmul.mubr.f32.gmra.mrb[0].mxu0 %v2815
      %v5243 = vpop.f32.mrb[0].mxu0
      %v5244 = vadd.f32 %v4859, %v5243
      %v5245 = vpop.f32.mrb[0].mxu0
      %5246 = vmatprep.mubr.f32.mxu0 0.0
      %5247 = vmatmul.mubr.f32.gmra.mrb[0].mxu0 %v2817
      %v5248 = vpop.f32.mrb[0].mxu0
      %v5249 = vadd.f32 %v4864, %v5248
      %v5250 = vpop.f32.mrb[0].mxu0
      %5251 = vmatprep.mubr.f32.mxu0 0.0
      %5252 = vmatmul.mubr.f32.gmra.mrb[0].mxu0 %v2819
      %v5253 = vpop.f32.mrb[0].mxu0
      %v5254 = vadd.f32 %v4869, %v5253
      %v5255 = vpop.f32.mrb[0].mxu0
      %5256 = vmatprep.mubr.f32.mxu0 0.0
      %5257 = vmatmul.mubr.f32.gmra.mrb[0].mxu0 %v2821
      %v5258 = vpop.f32.mrb[0].mxu0
      %v5259 = vadd.f32 %v4874, %v5258
      %v5260 = vpop.f32.mrb[0].mxu0
      %5261 = vmatprep.mubr.f32.mxu0 0.0
      %5262 = vmatmul.mubr.f32.gmra.mrb[0].mxu0 %v2823
      %v5263 = vpop.f32.mrb[0].mxu0
      %v5264 = vadd.f32 %v4879, %v5263
      %v5265 = vpop.f32.mrb[0].mxu0
      %5266 = vmatprep.mubr.f32.mxu0 0.0
      %5267 = vmatmul.mubr.f32.gmra.mrb[0].mxu0 %v2825
      %v5268 = vpop.f32.mrb[0].mxu0
      %v5269 = vadd.f32 %v4884, %v5268
      %v5270 = vpop.f32.mrb[0].mxu0
      %5271 = vmatprep.mubr.f32.mxu0 0.0
      %5272 = vmatmul.mubr.f32.gmra.mrb[0].mxu0 %v2827
      %v5273 = vpop.f32.mrb[0].mxu0
      %v5274 = vadd.f32 %v4889, %v5273
      %v5275 = vpop.f32.mrb[0].mxu0
      %5276 = vmatprep.mubr.f32.mxu0 0.0
      %5277 = vmatmul.mubr.f32.gmra.mrb[0].mxu0 %v2829
      %v5278 = vpop.f32.mrb[0].mxu0
      %v5279 = vadd.f32 %v4894, %v5278
      %v5280 = vpop.f32.mrb[0].mxu0
      %5281 = vmatprep.mubr.f32.mxu0 0.0
      %5282 = vmatmul.mubr.f32.gmra.mrb[0].mxu0 %v2831
      %v5283 = vpop.f32.mrb[0].mxu0
      %v5284 = vadd.f32 %v4899, %v5283
      %v5285 = vpop.f32.mrb[0].mxu0
      %5286 = vmatprep.mubr.f32.mxu0 0.0
      %5287 = vmatmul.mubr.f32.gmra.mrb[0].mxu0 %v2833
      %v5288 = vpop.f32.mrb[0].mxu0
      %v5289 = vadd.f32 %v4904, %v5288
      %v5290 = vpop.f32.mrb[0].mxu0
      %5291 = vmatprep.mubr.f32.mxu0 0.0
      %5292 = vmatmul.mubr.f32.gmra.mrb[0].mxu0 %v2835
      %v5293 = vpop.f32.mrb[0].mxu0
      %v5294 = vadd.f32 %v4909, %v5293
      %v5295 = vpop.f32.mrb[0].mxu0
      %5296 = vmatprep.mubr.f32.mxu0 0.0
      %5297 = vmatmul.mubr.f32.gmra.mrb[0].mxu0 %v2837
      %v5298 = vpop.f32.mrb[0].mxu0
      %v5299 = vadd.f32 %v4914, %v5298
      %v5300 = vpop.f32.mrb[0].mxu0
      %5301 = vmatprep.mubr.f32.mxu0 0.0
      %5302 = vmatmul.mubr.f32.gmra.mrb[0].mxu0 %v2839
      %v5303 = vpop.f32.mrb[0].mxu0
      %v5304 = vadd.f32 %v4919, %v5303
      %v5305 = vpop.f32.mrb[0].mxu0
      %5306 = vmatprep.mubr.f32.mxu0 0.0
      %5307 = vmatmul.mubr.f32.gmra.mrb[0].mxu0 %v2841
      %v5308 = vpop.f32.mrb[0].mxu0
      %v5309 = vadd.f32 %v4924, %v5308
      %v5310 = vpop.f32.mrb[0].mxu0
      %5311 = vmatprep.mubr.f32.mxu0 0.0
      %5312 = vmatmul.mubr.f32.gmra.mrb[0].mxu0 %v2843
      %v5313 = vpop.f32.mrb[0].mxu0
      %v5314 = vadd.f32 %v4929, %v5313
      %v5315 = vpop.f32.mrb[0].mxu0
      %5316 = vmatprep.mubr.f32.mxu0 0.0
      %5317 = vmatmul.mubr.f32.gmra.mrb[0].mxu0 %v2845
      %v5318 = vpop.f32.mrb[0].mxu0
      %v5319 = vadd.f32 %v4934, %v5318
      %v5320 = vpop.f32.mrb[0].mxu0
      %5321 = vmatprep.mubr.f32.mxu0 0.0
      %5322 = vmatmul.mubr.f32.gmra.mrb[0].mxu0 %v2847
      %v5323 = vpop.f32.mrb[0].mxu0
      %v5324 = vadd.f32 %v4939, %v5323
      %v5325 = vpop.f32.mrb[0].mxu0
      %5326 = vmatprep.mubr.f32.mxu0 0.0
      %5327 = vmatmul.mubr.f32.gmra.mrb[0].mxu0 %v2849
      %v5328 = vpop.f32.mrb[0].mxu0
      %v5329 = vadd.f32 %v4944, %v5328
      %v5330 = vpop.f32.mrb[0].mxu0
      %5331 = vmatprep.mubr.f32.mxu0 0.0
      %5332 = vmatmul.mubr.f32.gmra.mrb[0].mxu0 %v2851
      %v5333 = vpop.f32.mrb[0].mxu0
      %v5334 = vadd.f32 %v4949, %v5333
      %v5335 = vpop.f32.mrb[0].mxu0
      %5336 = vmatprep.mubr.f32.mxu0 0.0
      %5337 = vmatmul.mubr.f32.gmra.mrb[0].mxu0 %v2853
      %v5338 = vpop.f32.mrb[0].mxu0
      %v5339 = vadd.f32 %v4954, %v5338
      %v5340 = vpop.f32.mrb[0].mxu0
      %5341 = vmatprep.mubr.f32.mxu0 0.0
      %5342 = vmatmul.mubr.f32.gmra.mrb[0].mxu0 %v2855
      %v5343 = vpop.f32.mrb[0].mxu0
      %v5344 = vadd.f32 %v4959, %v5343
      %v5345 = vpop.f32.mrb[0].mxu0
      %5346 = vmatprep.mubr.f32.mxu0 0.0
      %5347 = vmatmul.mubr.f32.gmra.mrb[0].mxu0 %v2857
      %v5348 = vpop.f32.mrb[0].mxu0
      %v5349 = vadd.f32 %v4964, %v5348
      %v5350 = vpop.f32.mrb[0].mxu0
      %5351 = vmatprep.mubr.f32.mxu0 0.0
      %5352 = vmatmul.mubr.f32.gmra.mrb[0].mxu0 %v2859
      %v5353 = vpop.f32.mrb[0].mxu0
      %v5354 = vadd.f32 %v4969, %v5353
      %v5355 = vpop.f32.mrb[0].mxu0
      %5356 = vmatprep.mubr.f32.mxu0 0.0
      %5357 = vmatmul.mubr.f32.gmra.mrb[0].mxu0 %v2861
      %v5358 = vpop.f32.mrb[0].mxu0
      %v5359 = vadd.f32 %v4974, %v5358
      %v5360 = vpop.f32.mrb[0].mxu0
      %5361 = vmatprep.mubr.f32.mxu0 0.0
      %5362 = vmatmul.mubr.f32.gmra.mrb[0].mxu0 %v2863
      %v5363 = vpop.f32.mrb[0].mxu0
      %v5364 = vadd.f32 %v4979, %v5363
      %v5365 = vpop.f32.mrb[0].mxu0
      %5366 = vdwg.mxu0
      %v5367 = vxor.u32 %v3830, 2147483648
      %v5368 = vxor.u32 %v3832, 2147483648
      %v5369 = vxor.u32 %v5049, 2147483648
      %v5370 = vxor.u32 %v3836, 2147483648
      %v5371 = vxor.u32 %v3838, 2147483648
      %v5372 = vxor.u32 %v5054, 2147483648
      %v5373 = vxor.u32 %v3842, 2147483648
      %v5374 = vxor.u32 %v3844, 2147483648
      %v5375 = vxor.u32 %v5059, 2147483648
      %v5376 = vxor.u32 %v3848, 2147483648
      %v5377 = vxor.u32 %v3850, 2147483648
      %v5378 = vxor.u32 %v5064, 2147483648
      %v5379 = vxor.u32 %v3854, 2147483648
      %v5380 = vxor.u32 %v3856, 2147483648
      %v5381 = vxor.u32 %v5069, 2147483648
      %v5382 = vxor.u32 %v3860, 2147483648
      %v5383 = vxor.u32 %v3862, 2147483648
      %v5384 = vxor.u32 %v5074, 2147483648
      %v5385 = vxor.u32 %v3866, 2147483648
      %v5386 = vxor.u32 %v3868, 2147483648
      %v5387 = vxor.u32 %v5079, 2147483648
      %v5388 = vxor.u32 %v3872, 2147483648
      %v5389 = vxor.u32 %v3874, 2147483648
      %v5390 = vxor.u32 %v5084, 2147483648
      %v5391 = vxor.u32 %v3878, 2147483648
      %v5392 = vxor.u32 %v3880, 2147483648
      %v5393 = vxor.u32 %v5089, 2147483648
      %v5394 = vxor.u32 %v3884, 2147483648
      %v5395 = vxor.u32 %v3886, 2147483648
      %v5396 = vxor.u32 %v5094, 2147483648
      %v5397 = vxor.u32 %v3890, 2147483648
      %v5398 = vxor.u32 %v3892, 2147483648
      %v5399 = vxor.u32 %v5099, 2147483648
      %v5400 = vxor.u32 %v3896, 2147483648
      %v5401 = vxor.u32 %v3898, 2147483648
      %v5402 = vxor.u32 %v5104, 2147483648
      %v5403 = vxor.u32 %v3902, 2147483648
      %v5404 = vxor.u32 %v3904, 2147483648
      %v5405 = vxor.u32 %v5109, 2147483648
      %v5406 = vxor.u32 %v3908, 2147483648
      %v5407 = vxor.u32 %v3910, 2147483648
      %v5408 = vxor.u32 %v5114, 2147483648
      %v5409 = vxor.u32 %v3914, 2147483648
      %v5410 = vxor.u32 %v3916, 2147483648
      %v5411 = vxor.u32 %v5119, 2147483648
      %v5412 = vxor.u32 %v3920, 2147483648
      %v5413 = vxor.u32 %v3922, 2147483648
      %v5414 = vxor.u32 %v5124, 2147483648
      %v5415 = vxor.u32 %v3926, 2147483648
      %v5416 = vxor.u32 %v3928, 2147483648
      %v5417 = vxor.u32 %v5129, 2147483648
      %v5418 = vxor.u32 %v3932, 2147483648
      %v5419 = vxor.u32 %v3934, 2147483648
      %v5420 = vxor.u32 %v5134, 2147483648
      %v5421 = vxor.u32 %v3938, 2147483648
      %v5422 = vxor.u32 %v3940, 2147483648
      %v5423 = vxor.u32 %v5139, 2147483648
      %v5424 = vxor.u32 %v3944, 2147483648
      %v5425 = vxor.u32 %v3946, 2147483648
      %v5426 = vxor.u32 %v5144, 2147483648
      %v5427 = vxor.u32 %v3950, 2147483648
      %v5428 = vxor.u32 %v3952, 2147483648
      %v5429 = vxor.u32 %v5149, 2147483648
      %v5430 = vxor.u32 %v3956, 2147483648
      %v5431 = vxor.u32 %v3958, 2147483648
      %v5432 = vxor.u32 %v5154, 2147483648
      %v5433 = vxor.u32 %v3962, 2147483648
      %v5434 = vxor.u32 %v3964, 2147483648
      %v5435 = vxor.u32 %v5159, 2147483648
      %v5436 = vxor.u32 %v3968, 2147483648
      %v5437 = vxor.u32 %v3970, 2147483648
      %v5438 = vxor.u32 %v5164, 2147483648
      %v5439 = vxor.u32 %v3974, 2147483648
      %v5440 = vxor.u32 %v3976, 2147483648
      %v5441 = vxor.u32 %v5169, 2147483648
      %v5442 = vxor.u32 %v3980, 2147483648
      %v5443 = vxor.u32 %v3982, 2147483648
      %v5444 = vxor.u32 %v5174, 2147483648
      %v5445 = vxor.u32 %v3986, 2147483648
      %v5446 = vxor.u32 %v3988, 2147483648
      %v5447 = vxor.u32 %v5179, 2147483648
      %v5448 = vxor.u32 %v3992, 2147483648
      %v5449 = vxor.u32 %v3994, 2147483648
      %v5450 = vxor.u32 %v5184, 2147483648
      %v5451 = vxor.u32 %v3998, 2147483648
      %v5452 = vxor.u32 %v4000, 2147483648
      %v5453 = vxor.u32 %v5189, 2147483648
      %v5454 = vxor.u32 %v4004, 2147483648
      %v5455 = vxor.u32 %v4006, 2147483648
      %v5456 = vxor.u32 %v5194, 2147483648
      %v5457 = vxor.u32 %v4010, 2147483648
      %v5458 = vxor.u32 %v4012, 2147483648
      %v5459 = vxor.u32 %v5199, 2147483648
      %v5460 = vxor.u32 %v4016, 2147483648
      %v5461 = vxor.u32 %v4018, 2147483648
      %v5462 = vxor.u32 %v5204, 2147483648
      %v5463 = vxor.u32 %v4022, 2147483648
      %v5464 = vxor.u32 %v4024, 2147483648
      %v5465 = vxor.u32 %v5209, 2147483648
      %v5466 = vxor.u32 %v4028, 2147483648
      %v5467 = vxor.u32 %v4030, 2147483648
      %v5468 = vxor.u32 %v5214, 2147483648
      %v5469 = vxor.u32 %v4034, 2147483648
      %v5470 = vxor.u32 %v4036, 2147483648
      %v5471 = vxor.u32 %v5219, 2147483648
      %v5472 = vxor.u32 %v4040, 2147483648
      %v5473 = vxor.u32 %v4042, 2147483648
      %v5474 = vxor.u32 %v5224, 2147483648
      %v5475 = vxor.u32 %v4046, 2147483648
      %v5476 = vxor.u32 %v4048, 2147483648
      %v5477 = vxor.u32 %v5229, 2147483648
      %v5478 = vxor.u32 %v4052, 2147483648
      %v5479 = vxor.u32 %v4054, 2147483648
      %v5480 = vxor.u32 %v5234, 2147483648
      %v5481 = vxor.u32 %v4058, 2147483648
      %v5482 = vxor.u32 %v4060, 2147483648
      %v5483 = vxor.u32 %v5239, 2147483648
      %v5484 = vxor.u32 %v4064, 2147483648
      %v5485 = vxor.u32 %v4066, 2147483648
      %v5486 = vxor.u32 %v5244, 2147483648
      %v5487 = vxor.u32 %v4070, 2147483648
      %v5488 = vxor.u32 %v4072, 2147483648
      %v5489 = vxor.u32 %v5249, 2147483648
      %v5490 = vxor.u32 %v4076, 2147483648
      %v5491 = vxor.u32 %v4078, 2147483648
      %v5492 = vxor.u32 %v5254, 2147483648
      %v5493 = vxor.u32 %v4082, 2147483648
      %v5494 = vxor.u32 %v4084, 2147483648
      %v5495 = vxor.u32 %v5259, 2147483648
      %v5496 = vxor.u32 %v4088, 2147483648
      %v5497 = vxor.u32 %v4090, 2147483648
      %v5498 = vxor.u32 %v5264, 2147483648
      %v5499 = vxor.u32 %v4094, 2147483648
      %v5500 = vxor.u32 %v4096, 2147483648
      %v5501 = vxor.u32 %v5269, 2147483648
      %v5502 = vxor.u32 %v4100, 2147483648
      %v5503 = vxor.u32 %v4102, 2147483648
      %v5504 = vxor.u32 %v5274, 2147483648
      %v5505 = vxor.u32 %v4106, 2147483648
      %v5506 = vxor.u32 %v4108, 2147483648
      %v5507 = vxor.u32 %v5279, 2147483648
      %v5508 = vxor.u32 %v4112, 2147483648
      %v5509 = vxor.u32 %v4114, 2147483648
      %v5510 = vxor.u32 %v5284, 2147483648
      %v5511 = vxor.u32 %v4118, 2147483648
      %v5512 = vxor.u32 %v4120, 2147483648
      %v5513 = vxor.u32 %v5289, 2147483648
      %v5514 = vxor.u32 %v4124, 2147483648
      %v5515 = vxor.u32 %v4126, 2147483648
      %v5516 = vxor.u32 %v5294, 2147483648
      %v5517 = vxor.u32 %v4130, 2147483648
      %v5518 = vxor.u32 %v4132, 2147483648
      %v5519 = vxor.u32 %v5299, 2147483648
      %v5520 = vxor.u32 %v4136, 2147483648
      %v5521 = vxor.u32 %v4138, 2147483648
      %v5522 = vxor.u32 %v5304, 2147483648
      %v5523 = vxor.u32 %v4142, 2147483648
      %v5524 = vxor.u32 %v4144, 2147483648
      %v5525 = vxor.u32 %v5309, 2147483648
      %v5526 = vxor.u32 %v4148, 2147483648
      %v5527 = vxor.u32 %v4150, 2147483648
      %v5528 = vxor.u32 %v5314, 2147483648
      %v5529 = vxor.u32 %v4154, 2147483648
      %v5530 = vxor.u32 %v4156, 2147483648
      %v5531 = vxor.u32 %v5319, 2147483648
      %v5532 = vxor.u32 %v4160, 2147483648
      %v5533 = vxor.u32 %v4162, 2147483648
      %v5534 = vxor.u32 %v5324, 2147483648
      %v5535 = vxor.u32 %v4166, 2147483648
      %v5536 = vxor.u32 %v4168, 2147483648
      %v5537 = vxor.u32 %v5329, 2147483648
      %v5538 = vxor.u32 %v4172, 2147483648
      %v5539 = vxor.u32 %v4174, 2147483648
      %v5540 = vxor.u32 %v5334, 2147483648
      %v5541 = vxor.u32 %v4178, 2147483648
      %v5542 = vxor.u32 %v4180, 2147483648
      %v5543 = vxor.u32 %v5339, 2147483648
      %v5544 = vxor.u32 %v4184, 2147483648
      %v5545 = vxor.u32 %v4186, 2147483648
      %v5546 = vxor.u32 %v5344, 2147483648
      %v5547 = vxor.u32 %v4190, 2147483648
      %v5548 = vxor.u32 %v4192, 2147483648
      %v5549 = vxor.u32 %v5349, 2147483648
      %v5550 = vxor.u32 %v4196, 2147483648
      %v5551 = vxor.u32 %v4198, 2147483648
      %v5552 = vxor.u32 %v5354, 2147483648
      %v5553 = vxor.u32 %v4202, 2147483648
      %v5554 = vxor.u32 %v4204, 2147483648
      %v5555 = vxor.u32 %v5359, 2147483648
      %v5556 = vxor.u32 %v4208, 2147483648
      %v5557 = vxor.u32 %v4210, 2147483648
      %v5558 = vxor.u32 %v5364, 2147483648
      %v5559 = vmul.f32 %v5367, 1.442695
      %v5560 = vpow.pop %v5559
      %v5561 = vmul.f32 %v5368, 1.442695
      %v5562 = vpow.pop %v5561
      %v5563 = vmul.f32 %v5369, 1.442695
      %v5564 = vpow.pop %v5563
      %v5565 = vmul.f32 %v5370, 1.442695
      %v5566 = vpow.pop %v5565
      %v5567 = vmul.f32 %v5371, 1.442695
      %v5568 = vpow.pop %v5567
      %v5569 = vmul.f32 %v5372, 1.442695
      %v5570 = vpow.pop %v5569
      %v5571 = vmul.f32 %v5373, 1.442695
      %v5572 = vpow.pop %v5571
      %v5573 = vmul.f32 %v5374, 1.442695
      %v5574 = vpow.pop %v5573
      %v5575 = vmul.f32 %v5375, 1.442695
      %v5576 = vpow.pop %v5575
      %v5577 = vmul.f32 %v5376, 1.442695
      %v5578 = vpow.pop %v5577
      %v5579 = vmul.f32 %v5377, 1.442695
      %v5580 = vpow.pop %v5579
      %v5581 = vmul.f32 %v5378, 1.442695
      %v5582 = vpow.pop %v5581
      %v5583 = vmul.f32 %v5379, 1.442695
      %v5584 = vpow.pop %v5583
      %v5585 = vmul.f32 %v5380, 1.442695
      %v5586 = vpow.pop %v5585
      %v5587 = vmul.f32 %v5381, 1.442695
      %v5588 = vpow.pop %v5587
      %v5589 = vmul.f32 %v5382, 1.442695
      %v5590 = vpow.pop %v5589
      %v5591 = vmul.f32 %v5383, 1.442695
      %v5592 = vpow.pop %v5591
      %v5593 = vmul.f32 %v5384, 1.442695
      %v5594 = vpow.pop %v5593
      %v5595 = vmul.f32 %v5385, 1.442695
      %v5596 = vpow.pop %v5595
      %v5597 = vmul.f32 %v5386, 1.442695
      %v5598 = vpow.pop %v5597
      %v5599 = vmul.f32 %v5387, 1.442695
      %v5600 = vpow.pop %v5599
      %v5601 = vmul.f32 %v5388, 1.442695
      %v5602 = vpow.pop %v5601
      %v5603 = vmul.f32 %v5389, 1.442695
      %v5604 = vpow.pop %v5603
      %v5605 = vmul.f32 %v5390, 1.442695
      %v5606 = vpow.pop %v5605
      %v5607 = vmul.f32 %v5391, 1.442695
      %v5608 = vpow.pop %v5607
      %v5609 = vmul.f32 %v5392, 1.442695
      %v5610 = vpow.pop %v5609
      %v5611 = vmul.f32 %v5393, 1.442695
      %v5612 = vpow.pop %v5611
      %v5613 = vmul.f32 %v5394, 1.442695
      %v5614 = vpow.pop %v5613
      %v5615 = vmul.f32 %v5395, 1.442695
      %v5616 = vpow.pop %v5615
      %v5617 = vmul.f32 %v5396, 1.442695
      %v5618 = vpow.pop %v5617
      %v5619 = vmul.f32 %v5397, 1.442695
      %v5620 = vpow.pop %v5619
      %v5621 = vmul.f32 %v5398, 1.442695
      %v5622 = vpow.pop %v5621
      %v5623 = vmul.f32 %v5399, 1.442695
      %v5624 = vpow.pop %v5623
      %v5625 = vmul.f32 %v5400, 1.442695
      %v5626 = vpow.pop %v5625
      %v5627 = vmul.f32 %v5401, 1.442695
      %v5628 = vpow.pop %v5627
      %v5629 = vmul.f32 %v5402, 1.442695
      %v5630 = vpow.pop %v5629
      %v5631 = vmul.f32 %v5403, 1.442695
      %v5632 = vpow.pop %v5631
      %v5633 = vmul.f32 %v5404, 1.442695
      %v5634 = vpow.pop %v5633
      %v5635 = vmul.f32 %v5405, 1.442695
      %v5636 = vpow.pop %v5635
      %v5637 = vmul.f32 %v5406, 1.442695
      %v5638 = vpow.pop %v5637
      %v5639 = vmul.f32 %v5407, 1.442695
      %v5640 = vpow.pop %v5639
      %v5641 = vmul.f32 %v5408, 1.442695
      %v5642 = vpow.pop %v5641
      %v5643 = vmul.f32 %v5409, 1.442695
      %v5644 = vpow.pop %v5643
      %v5645 = vmul.f32 %v5410, 1.442695
      %v5646 = vpow.pop %v5645
      %v5647 = vmul.f32 %v5411, 1.442695
      %v5648 = vpow.pop %v5647
      %v5649 = vmul.f32 %v5412, 1.442695
      %v5650 = vpow.pop %v5649
      %v5651 = vmul.f32 %v5413, 1.442695
      %v5652 = vpow.pop %v5651
      %v5653 = vmul.f32 %v5414, 1.442695
      %v5654 = vpow.pop %v5653
      %v5655 = vmul.f32 %v5415, 1.442695
      %v5656 = vpow.pop %v5655
      %v5657 = vmul.f32 %v5416, 1.442695
      %v5658 = vpow.pop %v5657
      %v5659 = vmul.f32 %v5417, 1.442695
      %v5660 = vpow.pop %v5659
      %v5661 = vmul.f32 %v5418, 1.442695
      %v5662 = vpow.pop %v5661
      %v5663 = vmul.f32 %v5419, 1.442695
      %v5664 = vpow.pop %v5663
      %v5665 = vmul.f32 %v5420, 1.442695
      %v5666 = vpow.pop %v5665
      %v5667 = vmul.f32 %v5421, 1.442695
      %v5668 = vpow.pop %v5667
      %v5669 = vmul.f32 %v5422, 1.442695
      %v5670 = vpow.pop %v5669
      %v5671 = vmul.f32 %v5423, 1.442695
      %v5672 = vpow.pop %v5671
      %v5673 = vmul.f32 %v5424, 1.442695
      %v5674 = vpow.pop %v5673
      %v5675 = vmul.f32 %v5425, 1.442695
      %v5676 = vpow.pop %v5675
      %v5677 = vmul.f32 %v5426, 1.442695
      %v5678 = vpow.pop %v5677
      %v5679 = vmul.f32 %v5427, 1.442695
      %v5680 = vpow.pop %v5679
      %v5681 = vmul.f32 %v5428, 1.442695
      %v5682 = vpow.pop %v5681
      %v5683 = vmul.f32 %v5429, 1.442695
      %v5684 = vpow.pop %v5683
      %v5685 = vmul.f32 %v5430, 1.442695
      %v5686 = vpow.pop %v5685
      %v5687 = vmul.f32 %v5431, 1.442695
      %v5688 = vpow.pop %v5687
      %v5689 = vmul.f32 %v5432, 1.442695
      %v5690 = vpow.pop %v5689
      %v5691 = vmul.f32 %v5433, 1.442695
      %v5692 = vpow.pop %v5691
      %v5693 = vmul.f32 %v5434, 1.442695
      %v5694 = vpow.pop %v5693
      %v5695 = vmul.f32 %v5435, 1.442695
      %v5696 = vpow.pop %v5695
      %v5697 = vmul.f32 %v5436, 1.442695
      %v5698 = vpow.pop %v5697
      %v5699 = vmul.f32 %v5437, 1.442695
      %v5700 = vpow.pop %v5699
      %v5701 = vmul.f32 %v5438, 1.442695
      %v5702 = vpow.pop %v5701
      %v5703 = vmul.f32 %v5439, 1.442695
      %v5704 = vpow.pop %v5703
      %v5705 = vmul.f32 %v5440, 1.442695
      %v5706 = vpow.pop %v5705
      %v5707 = vmul.f32 %v5441, 1.442695
      %v5708 = vpow.pop %v5707
      %v5709 = vmul.f32 %v5442, 1.442695
      %v5710 = vpow.pop %v5709
      %v5711 = vmul.f32 %v5443, 1.442695
      %v5712 = vpow.pop %v5711
      %v5713 = vmul.f32 %v5444, 1.442695
      %v5714 = vpow.pop %v5713
      %v5715 = vmul.f32 %v5445, 1.442695
      %v5716 = vpow.pop %v5715
      %v5717 = vmul.f32 %v5446, 1.442695
      %v5718 = vpow.pop %v5717
      %v5719 = vmul.f32 %v5447, 1.442695
      %v5720 = vpow.pop %v5719
      %v5721 = vmul.f32 %v5448, 1.442695
      %v5722 = vpow.pop %v5721
      %v5723 = vmul.f32 %v5449, 1.442695
      %v5724 = vpow.pop %v5723
      %v5725 = vmul.f32 %v5450, 1.442695
      %v5726 = vpow.pop %v5725
      %v5727 = vmul.f32 %v5451, 1.442695
      %v5728 = vpow.pop %v5727
      %v5729 = vmul.f32 %v5452, 1.442695
      %v5730 = vpow.pop %v5729
      %v5731 = vmul.f32 %v5453, 1.442695
      %v5732 = vpow.pop %v5731
      %v5733 = vmul.f32 %v5454, 1.442695
      %v5734 = vpow.pop %v5733
      %v5735 = vmul.f32 %v5455, 1.442695
      %v5736 = vpow.pop %v5735
      %v5737 = vmul.f32 %v5456, 1.442695
      %v5738 = vpow.pop %v5737
      %v5739 = vmul.f32 %v5457, 1.442695
      %v5740 = vpow.pop %v5739
      %v5741 = vmul.f32 %v5458, 1.442695
      %v5742 = vpow.pop %v5741
      %v5743 = vmul.f32 %v5459, 1.442695
      %v5744 = vpow.pop %v5743
      %v5745 = vmul.f32 %v5460, 1.442695
      %v5746 = vpow.pop %v5745
      %v5747 = vmul.f32 %v5461, 1.442695
      %v5748 = vpow.pop %v5747
      %v5749 = vmul.f32 %v5462, 1.442695
      %v5750 = vpow.pop %v5749
      %v5751 = vmul.f32 %v5463, 1.442695
      %v5752 = vpow.pop %v5751
      %v5753 = vmul.f32 %v5464, 1.442695
      %v5754 = vpow.pop %v5753
      %v5755 = vmul.f32 %v5465, 1.442695
      %v5756 = vpow.pop %v5755
      %v5757 = vmul.f32 %v5466, 1.442695
      %v5758 = vpow.pop %v5757
      %v5759 = vmul.f32 %v5467, 1.442695
      %v5760 = vpow.pop %v5759
      %v5761 = vmul.f32 %v5468, 1.442695
      %v5762 = vpow.pop %v5761
      %v5763 = vmul.f32 %v5469, 1.442695
      %v5764 = vpow.pop %v5763
      %v5765 = vmul.f32 %v5470, 1.442695
      %v5766 = vpow.pop %v5765
      %v5767 = vmul.f32 %v5471, 1.442695
      %v5768 = vpow.pop %v5767
      %v5769 = vmul.f32 %v5472, 1.442695
      %v5770 = vpow.pop %v5769
      %v5771 = vmul.f32 %v5473, 1.442695
      %v5772 = vpow.pop %v5771
      %v5773 = vmul.f32 %v5474, 1.442695
      %v5774 = vpow.pop %v5773
      %v5775 = vmul.f32 %v5475, 1.442695
      %v5776 = vpow.pop %v5775
      %v5777 = vmul.f32 %v5476, 1.442695
      %v5778 = vpow.pop %v5777
      %v5779 = vmul.f32 %v5477, 1.442695
      %v5780 = vpow.pop %v5779
      %v5781 = vmul.f32 %v5478, 1.442695
      %v5782 = vpow.pop %v5781
      %v5783 = vmul.f32 %v5479, 1.442695
      %v5784 = vpow.pop %v5783
      %v5785 = vmul.f32 %v5480, 1.442695
      %v5786 = vpow.pop %v5785
      %v5787 = vmul.f32 %v5481, 1.442695
      %v5788 = vpow.pop %v5787
      %v5789 = vmul.f32 %v5482, 1.442695
      %v5790 = vpow.pop %v5789
      %v5791 = vmul.f32 %v5483, 1.442695
      %v5792 = vpow.pop %v5791
      %v5793 = vmul.f32 %v5484, 1.442695
      %v5794 = vpow.pop %v5793
      %v5795 = vmul.f32 %v5485, 1.442695
      %v5796 = vpow.pop %v5795
      %v5797 = vmul.f32 %v5486, 1.442695
      %v5798 = vpow.pop %v5797
      %v5799 = vmul.f32 %v5487, 1.442695
      %v5800 = vpow.pop %v5799
      %v5801 = vmul.f32 %v5488, 1.442695
      %v5802 = vpow.pop %v5801
      %v5803 = vmul.f32 %v5489, 1.442695
      %v5804 = vpow.pop %v5803
      %v5805 = vmul.f32 %v5490, 1.442695
      %v5806 = vpow.pop %v5805
      %v5807 = vmul.f32 %v5491, 1.442695
      %v5808 = vpow.pop %v5807
      %v5809 = vmul.f32 %v5492, 1.442695
      %v5810 = vpow.pop %v5809
      %v5811 = vmul.f32 %v5493, 1.442695
      %v5812 = vpow.pop %v5811
      %v5813 = vmul.f32 %v5494, 1.442695
      %v5814 = vpow.pop %v5813
      %v5815 = vmul.f32 %v5495, 1.442695
      %v5816 = vpow.pop %v5815
      %v5817 = vmul.f32 %v5496, 1.442695
      %v5818 = vpow.pop %v5817
      %v5819 = vmul.f32 %v5497, 1.442695
      %v5820 = vpow.pop %v5819
      %v5821 = vmul.f32 %v5498, 1.442695
      %v5822 = vpow.pop %v5821
      %v5823 = vmul.f32 %v5499, 1.442695
      %v5824 = vpow.pop %v5823
      %v5825 = vmul.f32 %v5500, 1.442695
      %v5826 = vpow.pop %v5825
      %v5827 = vmul.f32 %v5501, 1.442695
      %v5828 = vpow.pop %v5827
      %v5829 = vmul.f32 %v5502, 1.442695
      %v5830 = vpow.pop %v5829
      %v5831 = vmul.f32 %v5503, 1.442695
      %v5832 = vpow.pop %v5831
      %v5833 = vmul.f32 %v5504, 1.442695
      %v5834 = vpow.pop %v5833
      %v5835 = vmul.f32 %v5505, 1.442695
      %v5836 = vpow.pop %v5835
      %v5837 = vmul.f32 %v5506, 1.442695
      %v5838 = vpow.pop %v5837
      %v5839 = vmul.f32 %v5507, 1.442695
      %v5840 = vpow.pop %v5839
      %v5841 = vmul.f32 %v5508, 1.442695
      %v5842 = vpow.pop %v5841
      %v5843 = vmul.f32 %v5509, 1.442695
      %v5844 = vpow.pop %v5843
      %v5845 = vmul.f32 %v5510, 1.442695
      %v5846 = vpow.pop %v5845
      %v5847 = vmul.f32 %v5511, 1.442695
      %v5848 = vpow.pop %v5847
      %v5849 = vmul.f32 %v5512, 1.442695
      %v5850 = vpow.pop %v5849
      %v5851 = vmul.f32 %v5513, 1.442695
      %v5852 = vpow.pop %v5851
      %v5853 = vmul.f32 %v5514, 1.442695
      %v5854 = vpow.pop %v5853
      %v5855 = vmul.f32 %v5515, 1.442695
      %v5856 = vpow.pop %v5855
      %v5857 = vmul.f32 %v5516, 1.442695
      %v5858 = vpow.pop %v5857
      %v5859 = vmul.f32 %v5517, 1.442695
      %v5860 = vpow.pop %v5859
      %v5861 = vmul.f32 %v5518, 1.442695
      %v5862 = vpow.pop %v5861
      %v5863 = vmul.f32 %v5519, 1.442695
      %v5864 = vpow.pop %v5863
      %v5865 = vmul.f32 %v5520, 1.442695
      %v5866 = vpow.pop %v5865
      %v5867 = vmul.f32 %v5521, 1.442695
      %v5868 = vpow.pop %v5867
      %v5869 = vmul.f32 %v5522, 1.442695
      %v5870 = vpow.pop %v5869
      %v5871 = vmul.f32 %v5523, 1.442695
      %v5872 = vpow.pop %v5871
      %v5873 = vmul.f32 %v5524, 1.442695
      %v5874 = vpow.pop %v5873
      %v5875 = vmul.f32 %v5525, 1.442695
      %v5876 = vpow.pop %v5875
      %v5877 = vmul.f32 %v5526, 1.442695
      %v5878 = vpow.pop %v5877
      %v5879 = vmul.f32 %v5527, 1.442695
      %v5880 = vpow.pop %v5879
      %v5881 = vmul.f32 %v5528, 1.442695
      %v5882 = vpow.pop %v5881
      %v5883 = vmul.f32 %v5529, 1.442695
      %v5884 = vpow.pop %v5883
      %v5885 = vmul.f32 %v5530, 1.442695
      %v5886 = vpow.pop %v5885
      %v5887 = vmul.f32 %v5531, 1.442695
      %v5888 = vpow.pop %v5887
      %v5889 = vmul.f32 %v5532, 1.442695
      %v5890 = vpow.pop %v5889
      %v5891 = vmul.f32 %v5533, 1.442695
      %v5892 = vpow.pop %v5891
      %v5893 = vmul.f32 %v5534, 1.442695
      %v5894 = vpow.pop %v5893
      %v5895 = vmul.f32 %v5535, 1.442695
      %v5896 = vpow.pop %v5895
      %v5897 = vmul.f32 %v5536, 1.442695
      %v5898 = vpow.pop %v5897
      %v5899 = vmul.f32 %v5537, 1.442695
      %v5900 = vpow.pop %v5899
      %v5901 = vmul.f32 %v5538, 1.442695
      %v5902 = vpow.pop %v5901
      %v5903 = vmul.f32 %v5539, 1.442695
      %v5904 = vpow.pop %v5903
      %v5905 = vmul.f32 %v5540, 1.442695
      %v5906 = vpow.pop %v5905
      %v5907 = vmul.f32 %v5541, 1.442695
      %v5908 = vpow.pop %v5907
      %v5909 = vmul.f32 %v5542, 1.442695
      %v5910 = vpow.pop %v5909
      %v5911 = vmul.f32 %v5543, 1.442695
      %v5912 = vpow.pop %v5911
      %v5913 = vmul.f32 %v5544, 1.442695
      %v5914 = vpow.pop %v5913
      %v5915 = vmul.f32 %v5545, 1.442695
      %v5916 = vpow.pop %v5915
      %v5917 = vmul.f32 %v5546, 1.442695
      %v5918 = vpow.pop %v5917
      %v5919 = vmul.f32 %v5547, 1.442695
      %v5920 = vpow.pop %v5919
      %v5921 = vmul.f32 %v5548, 1.442695
      %v5922 = vpow.pop %v5921
      %v5923 = vmul.f32 %v5549, 1.442695
      %v5924 = vpow.pop %v5923
      %v5925 = vmul.f32 %v5550, 1.442695
      %v5926 = vpow.pop %v5925
      %v5927 = vmul.f32 %v5551, 1.442695
      %v5928 = vpow.pop %v5927
      %v5929 = vmul.f32 %v5552, 1.442695
      %v5930 = vpow.pop %v5929
      %v5931 = vmul.f32 %v5553, 1.442695
      %v5932 = vpow.pop %v5931
      %v5933 = vmul.f32 %v5554, 1.442695
      %v5934 = vpow.pop %v5933
      %v5935 = vmul.f32 %v5555, 1.442695
      %v5936 = vpow.pop %v5935
      %v5937 = vmul.f32 %v5556, 1.442695
      %v5938 = vpow.pop %v5937
      %v5939 = vmul.f32 %v5557, 1.442695
      %v5940 = vpow.pop %v5939
      %v5941 = vmul.f32 %v5558, 1.442695
      %v5942 = vpow.pop %v5941
      %v5943 = vadd.f32 %v5560, 1.0
      %v5944 = vadd.f32 %v5562, 1.0
      %v5945 = vadd.f32 %v5564, 1.0
      %v5946 = vadd.f32 %v5566, 1.0
      %v5947 = vadd.f32 %v5568, 1.0
      %v5948 = vadd.f32 %v5570, 1.0
      %v5949 = vadd.f32 %v5572, 1.0
      %v5950 = vadd.f32 %v5574, 1.0
      %v5951 = vadd.f32 %v5576, 1.0
      %v5952 = vadd.f32 %v5578, 1.0
      %v5953 = vadd.f32 %v5580, 1.0
      %v5954 = vadd.f32 %v5582, 1.0
      %v5955 = vadd.f32 %v5584, 1.0
      %v5956 = vadd.f32 %v5586, 1.0
      %v5957 = vadd.f32 %v5588, 1.0
      %v5958 = vadd.f32 %v5590, 1.0
      %v5959 = vadd.f32 %v5592, 1.0
      %v5960 = vadd.f32 %v5594, 1.0
      %v5961 = vadd.f32 %v5596, 1.0
      %v5962 = vadd.f32 %v5598, 1.0
      %v5963 = vadd.f32 %v5600, 1.0
      %v5964 = vadd.f32 %v5602, 1.0
      %v5965 = vadd.f32 %v5604, 1.0
      %v5966 = vadd.f32 %v5606, 1.0
      %v5967 = vadd.f32 %v5608, 1.0
      %v5968 = vadd.f32 %v5610, 1.0
      %v5969 = vadd.f32 %v5612, 1.0
      %v5970 = vadd.f32 %v5614, 1.0
      %v5971 = vadd.f32 %v5616, 1.0
      %v5972 = vadd.f32 %v5618, 1.0
      %v5973 = vadd.f32 %v5620, 1.0
      %v5974 = vadd.f32 %v5622, 1.0
      %v5975 = vadd.f32 %v5624, 1.0
      %v5976 = vadd.f32 %v5626, 1.0
      %v5977 = vadd.f32 %v5628, 1.0
      %v5978 = vadd.f32 %v5630, 1.0
      %v5979 = vadd.f32 %v5632, 1.0
      %v5980 = vadd.f32 %v5634, 1.0
      %v5981 = vadd.f32 %v5636, 1.0
      %v5982 = vadd.f32 %v5638, 1.0
      %v5983 = vadd.f32 %v5640, 1.0
      %v5984 = vadd.f32 %v5642, 1.0
      %v5985 = vadd.f32 %v5644, 1.0
      %v5986 = vadd.f32 %v5646, 1.0
      %v5987 = vadd.f32 %v5648, 1.0
      %v5988 = vadd.f32 %v5650, 1.0
      %v5989 = vadd.f32 %v5652, 1.0
      %v5990 = vadd.f32 %v5654, 1.0
      %v5991 = vadd.f32 %v5656, 1.0
      %v5992 = vadd.f32 %v5658, 1.0
      %v5993 = vadd.f32 %v5660, 1.0
      %v5994 = vadd.f32 %v5662, 1.0
      %v5995 = vadd.f32 %v5664, 1.0
      %v5996 = vadd.f32 %v5666, 1.0
      %v5997 = vadd.f32 %v5668, 1.0
      %v5998 = vadd.f32 %v5670, 1.0
      %v5999 = vadd.f32 %v5672, 1.0
      %v6000 = vadd.f32 %v5674, 1.0
      %v6001 = vadd.f32 %v5676, 1.0
      %v6002 = vadd.f32 %v5678, 1.0
      %v6003 = vadd.f32 %v5680, 1.0
      %v6004 = vadd.f32 %v5682, 1.0
      %v6005 = vadd.f32 %v5684, 1.0
      %v6006 = vadd.f32 %v5686, 1.0
      %v6007 = vadd.f32 %v5688, 1.0
      %v6008 = vadd.f32 %v5690, 1.0
      %v6009 = vadd.f32 %v5692, 1.0
      %v6010 = vadd.f32 %v5694, 1.0
      %v6011 = vadd.f32 %v5696, 1.0
      %v6012 = vadd.f32 %v5698, 1.0
      %v6013 = vadd.f32 %v5700, 1.0
      %v6014 = vadd.f32 %v5702, 1.0
      %v6015 = vadd.f32 %v5704, 1.0
      %v6016 = vadd.f32 %v5706, 1.0
      %v6017 = vadd.f32 %v5708, 1.0
      %v6018 = vadd.f32 %v5710, 1.0
      %v6019 = vadd.f32 %v5712, 1.0
      %v6020 = vadd.f32 %v5714, 1.0
      %v6021 = vadd.f32 %v5716, 1.0
      %v6022 = vadd.f32 %v5718, 1.0
      %v6023 = vadd.f32 %v5720, 1.0
      %v6024 = vadd.f32 %v5722, 1.0
      %v6025 = vadd.f32 %v5724, 1.0
      %v6026 = vadd.f32 %v5726, 1.0
      %v6027 = vadd.f32 %v5728, 1.0
      %v6028 = vadd.f32 %v5730, 1.0
      %v6029 = vadd.f32 %v5732, 1.0
      %v6030 = vadd.f32 %v5734, 1.0
      %v6031 = vadd.f32 %v5736, 1.0
      %v6032 = vadd.f32 %v5738, 1.0
      %v6033 = vadd.f32 %v5740, 1.0
      %v6034 = vadd.f32 %v5742, 1.0
      %v6035 = vadd.f32 %v5744, 1.0
      %v6036 = vadd.f32 %v5746, 1.0
      %v6037 = vadd.f32 %v5748, 1.0
      %v6038 = vadd.f32 %v5750, 1.0
      %v6039 = vadd.f32 %v5752, 1.0
      %v6040 = vadd.f32 %v5754, 1.0
      %v6041 = vadd.f32 %v5756, 1.0
      %v6042 = vadd.f32 %v5758, 1.0
      %v6043 = vadd.f32 %v5760, 1.0
      %v6044 = vadd.f32 %v5762, 1.0
      %v6045 = vadd.f32 %v5764, 1.0
      %v6046 = vadd.f32 %v5766, 1.0
      %v6047 = vadd.f32 %v5768, 1.0
      %v6048 = vadd.f32 %v5770, 1.0
      %v6049 = vadd.f32 %v5772, 1.0
      %v6050 = vadd.f32 %v5774, 1.0
      %v6051 = vadd.f32 %v5776, 1.0
      %v6052 = vadd.f32 %v5778, 1.0
      %v6053 = vadd.f32 %v5780, 1.0
      %v6054 = vadd.f32 %v5782, 1.0
      %v6055 = vadd.f32 %v5784, 1.0
      %v6056 = vadd.f32 %v5786, 1.0
      %v6057 = vadd.f32 %v5788, 1.0
      %v6058 = vadd.f32 %v5790, 1.0
      %v6059 = vadd.f32 %v5792, 1.0
      %v6060 = vadd.f32 %v5794, 1.0
      %v6061 = vadd.f32 %v5796, 1.0
      %v6062 = vadd.f32 %v5798, 1.0
      %v6063 = vadd.f32 %v5800, 1.0
      %v6064 = vadd.f32 %v5802, 1.0
      %v6065 = vadd.f32 %v5804, 1.0
      %v6066 = vadd.f32 %v5806, 1.0
      %v6067 = vadd.f32 %v5808, 1.0
      %v6068 = vadd.f32 %v5810, 1.0
      %v6069 = vadd.f32 %v5812, 1.0
      %v6070 = vadd.f32 %v5814, 1.0
      %v6071 = vadd.f32 %v5816, 1.0
      %v6072 = vadd.f32 %v5818, 1.0
      %v6073 = vadd.f32 %v5820, 1.0
      %v6074 = vadd.f32 %v5822, 1.0
      %v6075 = vadd.f32 %v5824, 1.0
      %v6076 = vadd.f32 %v5826, 1.0
      %v6077 = vadd.f32 %v5828, 1.0
      %v6078 = vadd.f32 %v5830, 1.0
      %v6079 = vadd.f32 %v5832, 1.0
      %v6080 = vadd.f32 %v5834, 1.0
      %v6081 = vadd.f32 %v5836, 1.0
      %v6082 = vadd.f32 %v5838, 1.0
      %v6083 = vadd.f32 %v5840, 1.0
      %v6084 = vadd.f32 %v5842, 1.0
      %v6085 = vadd.f32 %v5844, 1.0
      %v6086 = vadd.f32 %v5846, 1.0
      %v6087 = vadd.f32 %v5848, 1.0
      %v6088 = vadd.f32 %v5850, 1.0
      %v6089 = vadd.f32 %v5852, 1.0
      %v6090 = vadd.f32 %v5854, 1.0
      %v6091 = vadd.f32 %v5856, 1.0
      %v6092 = vadd.f32 %v5858, 1.0
      %v6093 = vadd.f32 %v5860, 1.0
      %v6094 = vadd.f32 %v5862, 1.0
      %v6095 = vadd.f32 %v5864, 1.0
      %v6096 = vadd.f32 %v5866, 1.0
      %v6097 = vadd.f32 %v5868, 1.0
      %v6098 = vadd.f32 %v5870, 1.0
      %v6099 = vadd.f32 %v5872, 1.0
      %v6100 = vadd.f32 %v5874, 1.0
      %v6101 = vadd.f32 %v5876, 1.0
      %v6102 = vadd.f32 %v5878, 1.0
      %v6103 = vadd.f32 %v5880, 1.0
      %v6104 = vadd.f32 %v5882, 1.0
      %v6105 = vadd.f32 %v5884, 1.0
      %v6106 = vadd.f32 %v5886, 1.0
      %v6107 = vadd.f32 %v5888, 1.0
      %v6108 = vadd.f32 %v5890, 1.0
      %v6109 = vadd.f32 %v5892, 1.0
      %v6110 = vadd.f32 %v5894, 1.0
      %v6111 = vadd.f32 %v5896, 1.0
      %v6112 = vadd.f32 %v5898, 1.0
      %v6113 = vadd.f32 %v5900, 1.0
      %v6114 = vadd.f32 %v5902, 1.0
      %v6115 = vadd.f32 %v5904, 1.0
      %v6116 = vadd.f32 %v5906, 1.0
      %v6117 = vadd.f32 %v5908, 1.0
      %v6118 = vadd.f32 %v5910, 1.0
      %v6119 = vadd.f32 %v5912, 1.0
      %v6120 = vadd.f32 %v5914, 1.0
      %v6121 = vadd.f32 %v5916, 1.0
      %v6122 = vadd.f32 %v5918, 1.0
      %v6123 = vadd.f32 %v5920, 1.0
      %v6124 = vadd.f32 %v5922, 1.0
      %v6125 = vadd.f32 %v5924, 1.0
      %v6126 = vadd.f32 %v5926, 1.0
      %v6127 = vadd.f32 %v5928, 1.0
      %v6128 = vadd.f32 %v5930, 1.0
      %v6129 = vadd.f32 %v5932, 1.0
      %v6130 = vadd.f32 %v5934, 1.0
      %v6131 = vadd.f32 %v5936, 1.0
      %v6132 = vadd.f32 %v5938, 1.0
      %v6133 = vadd.f32 %v5940, 1.0
      %v6134 = vadd.f32 %v5942, 1.0
      %v6135 = vrcp.pop %v5943
      %v6136 = vmul.f32 1.0, %v6135
      %v6137 = vrcp.pop %v5944
      %v6138 = vmul.f32 1.0, %v6137
      %v6139 = vrcp.pop %v5945
      %v6140 = vmul.f32 1.0, %v6139
      %v6141 = vrcp.pop %v5946
      %v6142 = vmul.f32 1.0, %v6141
      %v6143 = vrcp.pop %v5947
      %v6144 = vmul.f32 1.0, %v6143
      %v6145 = vrcp.pop %v5948
      %v6146 = vmul.f32 1.0, %v6145
      %v6147 = vrcp.pop %v5949
      %v6148 = vmul.f32 1.0, %v6147
      %v6149 = vrcp.pop %v5950
      %v6150 = vmul.f32 1.0, %v6149
      %v6151 = vrcp.pop %v5951
      %v6152 = vmul.f32 1.0, %v6151
      %v6153 = vrcp.pop %v5952
      %v6154 = vmul.f32 1.0, %v6153
      %v6155 = vrcp.pop %v5953
      %v6156 = vmul.f32 1.0, %v6155
      %v6157 = vrcp.pop %v5954
      %v6158 = vmul.f32 1.0, %v6157
      %v6159 = vrcp.pop %v5955
      %v6160 = vmul.f32 1.0, %v6159
      %v6161 = vrcp.pop %v5956
      %v6162 = vmul.f32 1.0, %v6161
      %v6163 = vrcp.pop %v5957
      %v6164 = vmul.f32 1.0, %v6163
      %v6165 = vrcp.pop %v5958
      %v6166 = vmul.f32 1.0, %v6165
      %v6167 = vrcp.pop %v5959
      %v6168 = vmul.f32 1.0, %v6167
      %v6169 = vrcp.pop %v5960
      %v6170 = vmul.f32 1.0, %v6169
      %v6171 = vrcp.pop %v5961
      %v6172 = vmul.f32 1.0, %v6171
      %v6173 = vrcp.pop %v5962
      %v6174 = vmul.f32 1.0, %v6173
      %v6175 = vrcp.pop %v5963
      %v6176 = vmul.f32 1.0, %v6175
      %v6177 = vrcp.pop %v5964
      %v6178 = vmul.f32 1.0, %v6177
      %v6179 = vrcp.pop %v5965
      %v6180 = vmul.f32 1.0, %v6179
      %v6181 = vrcp.pop %v5966
      %v6182 = vmul.f32 1.0, %v6181
      %v6183 = vrcp.pop %v5967
      %v6184 = vmul.f32 1.0, %v6183
      %v6185 = vrcp.pop %v5968
      %v6186 = vmul.f32 1.0, %v6185
      %v6187 = vrcp.pop %v5969
      %v6188 = vmul.f32 1.0, %v6187
      %v6189 = vrcp.pop %v5970
      %v6190 = vmul.f32 1.0, %v6189
      %v6191 = vrcp.pop %v5971
      %v6192 = vmul.f32 1.0, %v6191
      %v6193 = vrcp.pop %v5972
      %v6194 = vmul.f32 1.0, %v6193
      %v6195 = vrcp.pop %v5973
      %v6196 = vmul.f32 1.0, %v6195
      %v6197 = vrcp.pop %v5974
      %v6198 = vmul.f32 1.0, %v6197
      %v6199 = vrcp.pop %v5975
      %v6200 = vmul.f32 1.0, %v6199
      %v6201 = vrcp.pop %v5976
      %v6202 = vmul.f32 1.0, %v6201
      %v6203 = vrcp.pop %v5977
      %v6204 = vmul.f32 1.0, %v6203
      %v6205 = vrcp.pop %v5978
      %v6206 = vmul.f32 1.0, %v6205
      %v6207 = vrcp.pop %v5979
      %v6208 = vmul.f32 1.0, %v6207
      %v6209 = vrcp.pop %v5980
      %v6210 = vmul.f32 1.0, %v6209
      %v6211 = vrcp.pop %v5981
      %v6212 = vmul.f32 1.0, %v6211
      %v6213 = vrcp.pop %v5982
      %v6214 = vmul.f32 1.0, %v6213
      %v6215 = vrcp.pop %v5983
      %v6216 = vmul.f32 1.0, %v6215
      %v6217 = vrcp.pop %v5984
      %v6218 = vmul.f32 1.0, %v6217
      %v6219 = vrcp.pop %v5985
      %v6220 = vmul.f32 1.0, %v6219
      %v6221 = vrcp.pop %v5986
      %v6222 = vmul.f32 1.0, %v6221
      %v6223 = vrcp.pop %v5987
      %v6224 = vmul.f32 1.0, %v6223
      %v6225 = vrcp.pop %v5988
      %v6226 = vmul.f32 1.0, %v6225
      %v6227 = vrcp.pop %v5989
      %v6228 = vmul.f32 1.0, %v6227
      %v6229 = vrcp.pop %v5990
      %v6230 = vmul.f32 1.0, %v6229
      %v6231 = vrcp.pop %v5991
      %v6232 = vmul.f32 1.0, %v6231
      %v6233 = vrcp.pop %v5992
      %v6234 = vmul.f32 1.0, %v6233
      %v6235 = vrcp.pop %v5993
      %v6236 = vmul.f32 1.0, %v6235
      %v6237 = vrcp.pop %v5994
      %v6238 = vmul.f32 1.0, %v6237
      %v6239 = vrcp.pop %v5995
      %v6240 = vmul.f32 1.0, %v6239
      %v6241 = vrcp.pop %v5996
      %v6242 = vmul.f32 1.0, %v6241
      %v6243 = vrcp.pop %v5997
      %v6244 = vmul.f32 1.0, %v6243
      %v6245 = vrcp.pop %v5998
      %v6246 = vmul.f32 1.0, %v6245
      %v6247 = vrcp.pop %v5999
      %v6248 = vmul.f32 1.0, %v6247
      %v6249 = vrcp.pop %v6000
      %v6250 = vmul.f32 1.0, %v6249
      %v6251 = vrcp.pop %v6001
      %v6252 = vmul.f32 1.0, %v6251
      %v6253 = vrcp.pop %v6002
      %v6254 = vmul.f32 1.0, %v6253
      %v6255 = vrcp.pop %v6003
      %v6256 = vmul.f32 1.0, %v6255
      %v6257 = vrcp.pop %v6004
      %v6258 = vmul.f32 1.0, %v6257
      %v6259 = vrcp.pop %v6005
      %v6260 = vmul.f32 1.0, %v6259
      %v6261 = vrcp.pop %v6006
      %v6262 = vmul.f32 1.0, %v6261
      %v6263 = vrcp.pop %v6007
      %v6264 = vmul.f32 1.0, %v6263
      %v6265 = vrcp.pop %v6008
      %v6266 = vmul.f32 1.0, %v6265
      %v6267 = vrcp.pop %v6009
      %v6268 = vmul.f32 1.0, %v6267
      %v6269 = vrcp.pop %v6010
      %v6270 = vmul.f32 1.0, %v6269
      %v6271 = vrcp.pop %v6011
      %v6272 = vmul.f32 1.0, %v6271
      %v6273 = vrcp.pop %v6012
      %v6274 = vmul.f32 1.0, %v6273
      %v6275 = vrcp.pop %v6013
      %v6276 = vmul.f32 1.0, %v6275
      %v6277 = vrcp.pop %v6014
      %v6278 = vmul.f32 1.0, %v6277
      %v6279 = vrcp.pop %v6015
      %v6280 = vmul.f32 1.0, %v6279
      %v6281 = vrcp.pop %v6016
      %v6282 = vmul.f32 1.0, %v6281
      %v6283 = vrcp.pop %v6017
      %v6284 = vmul.f32 1.0, %v6283
      %v6285 = vrcp.pop %v6018
      %v6286 = vmul.f32 1.0, %v6285
      %v6287 = vrcp.pop %v6019
      %v6288 = vmul.f32 1.0, %v6287
      %v6289 = vrcp.pop %v6020
      %v6290 = vmul.f32 1.0, %v6289
      %v6291 = vrcp.pop %v6021
      %v6292 = vmul.f32 1.0, %v6291
      %v6293 = vrcp.pop %v6022
      %v6294 = vmul.f32 1.0, %v6293
      %v6295 = vrcp.pop %v6023
      %v6296 = vmul.f32 1.0, %v6295
      %v6297 = vrcp.pop %v6024
      %v6298 = vmul.f32 1.0, %v6297
      %v6299 = vrcp.pop %v6025
      %v6300 = vmul.f32 1.0, %v6299
      %v6301 = vrcp.pop %v6026
      %v6302 = vmul.f32 1.0, %v6301
      %v6303 = vrcp.pop %v6027
      %v6304 = vmul.f32 1.0, %v6303
      %v6305 = vrcp.pop %v6028
      %v6306 = vmul.f32 1.0, %v6305
      %v6307 = vrcp.pop %v6029
      %v6308 = vmul.f32 1.0, %v6307
      %v6309 = vrcp.pop %v6030
      %v6310 = vmul.f32 1.0, %v6309
      %v6311 = vrcp.pop %v6031
      %v6312 = vmul.f32 1.0, %v6311
      %v6313 = vrcp.pop %v6032
      %v6314 = vmul.f32 1.0, %v6313
      %v6315 = vrcp.pop %v6033
      %v6316 = vmul.f32 1.0, %v6315
      %v6317 = vrcp.pop %v6034
      %v6318 = vmul.f32 1.0, %v6317
      %v6319 = vrcp.pop %v6035
      %v6320 = vmul.f32 1.0, %v6319
      %v6321 = vrcp.pop %v6036
      %v6322 = vmul.f32 1.0, %v6321
      %v6323 = vrcp.pop %v6037
      %v6324 = vmul.f32 1.0, %v6323
      %v6325 = vrcp.pop %v6038
      %v6326 = vmul.f32 1.0, %v6325
      %v6327 = vrcp.pop %v6039
      %v6328 = vmul.f32 1.0, %v6327
      %v6329 = vrcp.pop %v6040
      %v6330 = vmul.f32 1.0, %v6329
      %v6331 = vrcp.pop %v6041
      %v6332 = vmul.f32 1.0, %v6331
      %v6333 = vrcp.pop %v6042
      %v6334 = vmul.f32 1.0, %v6333
      %v6335 = vrcp.pop %v6043
      %v6336 = vmul.f32 1.0, %v6335
      %v6337 = vrcp.pop %v6044
      %v6338 = vmul.f32 1.0, %v6337
      %v6339 = vrcp.pop %v6045
      %v6340 = vmul.f32 1.0, %v6339
      %v6341 = vrcp.pop %v6046
      %v6342 = vmul.f32 1.0, %v6341
      %v6343 = vrcp.pop %v6047
      %v6344 = vmul.f32 1.0, %v6343
      %v6345 = vrcp.pop %v6048
      %v6346 = vmul.f32 1.0, %v6345
      %v6347 = vrcp.pop %v6049
      %v6348 = vmul.f32 1.0, %v6347
      %v6349 = vrcp.pop %v6050
      %v6350 = vmul.f32 1.0, %v6349
      %v6351 = vrcp.pop %v6051
      %v6352 = vmul.f32 1.0, %v6351
      %v6353 = vrcp.pop %v6052
      %v6354 = vmul.f32 1.0, %v6353
      %v6355 = vrcp.pop %v6053
      %v6356 = vmul.f32 1.0, %v6355
      %v6357 = vrcp.pop %v6054
      %v6358 = vmul.f32 1.0, %v6357
      %v6359 = vrcp.pop %v6055
      %v6360 = vmul.f32 1.0, %v6359
      %v6361 = vrcp.pop %v6056
      %v6362 = vmul.f32 1.0, %v6361
      %v6363 = vrcp.pop %v6057
      %v6364 = vmul.f32 1.0, %v6363
      %v6365 = vrcp.pop %v6058
      %v6366 = vmul.f32 1.0, %v6365
      %v6367 = vrcp.pop %v6059
      %v6368 = vmul.f32 1.0, %v6367
      %v6369 = vrcp.pop %v6060
      %v6370 = vmul.f32 1.0, %v6369
      %v6371 = vrcp.pop %v6061
      %v6372 = vmul.f32 1.0, %v6371
      %v6373 = vrcp.pop %v6062
      %v6374 = vmul.f32 1.0, %v6373
      %v6375 = vrcp.pop %v6063
      %v6376 = vmul.f32 1.0, %v6375
      %v6377 = vrcp.pop %v6064
      %v6378 = vmul.f32 1.0, %v6377
      %v6379 = vrcp.pop %v6065
      %v6380 = vmul.f32 1.0, %v6379
      %v6381 = vrcp.pop %v6066
      %v6382 = vmul.f32 1.0, %v6381
      %v6383 = vrcp.pop %v6067
      %v6384 = vmul.f32 1.0, %v6383
      %v6385 = vrcp.pop %v6068
      %v6386 = vmul.f32 1.0, %v6385
      %v6387 = vrcp.pop %v6069
      %v6388 = vmul.f32 1.0, %v6387
      %v6389 = vrcp.pop %v6070
      %v6390 = vmul.f32 1.0, %v6389
      %v6391 = vrcp.pop %v6071
      %v6392 = vmul.f32 1.0, %v6391
      %v6393 = vrcp.pop %v6072
      %v6394 = vmul.f32 1.0, %v6393
      %v6395 = vrcp.pop %v6073
      %v6396 = vmul.f32 1.0, %v6395
      %v6397 = vrcp.pop %v6074
      %v6398 = vmul.f32 1.0, %v6397
      %v6399 = vrcp.pop %v6075
      %v6400 = vmul.f32 1.0, %v6399
      %v6401 = vrcp.pop %v6076
      %v6402 = vmul.f32 1.0, %v6401
      %v6403 = vrcp.pop %v6077
      %v6404 = vmul.f32 1.0, %v6403
      %v6405 = vrcp.pop %v6078
      %v6406 = vmul.f32 1.0, %v6405
      %v6407 = vrcp.pop %v6079
      %v6408 = vmul.f32 1.0, %v6407
      %v6409 = vrcp.pop %v6080
      %v6410 = vmul.f32 1.0, %v6409
      %v6411 = vrcp.pop %v6081
      %v6412 = vmul.f32 1.0, %v6411
      %v6413 = vrcp.pop %v6082
      %v6414 = vmul.f32 1.0, %v6413
      %v6415 = vrcp.pop %v6083
      %v6416 = vmul.f32 1.0, %v6415
      %v6417 = vrcp.pop %v6084
      %v6418 = vmul.f32 1.0, %v6417
      %v6419 = vrcp.pop %v6085
      %v6420 = vmul.f32 1.0, %v6419
      %v6421 = vrcp.pop %v6086
      %v6422 = vmul.f32 1.0, %v6421
      %v6423 = vrcp.pop %v6087
      %v6424 = vmul.f32 1.0, %v6423
      %v6425 = vrcp.pop %v6088
      %v6426 = vmul.f32 1.0, %v6425
      %v6427 = vrcp.pop %v6089
      %v6428 = vmul.f32 1.0, %v6427
      %v6429 = vrcp.pop %v6090
      %v6430 = vmul.f32 1.0, %v6429
      %v6431 = vrcp.pop %v6091
      %v6432 = vmul.f32 1.0, %v6431
      %v6433 = vrcp.pop %v6092
      %v6434 = vmul.f32 1.0, %v6433
      %v6435 = vrcp.pop %v6093
      %v6436 = vmul.f32 1.0, %v6435
      %v6437 = vrcp.pop %v6094
      %v6438 = vmul.f32 1.0, %v6437
      %v6439 = vrcp.pop %v6095
      %v6440 = vmul.f32 1.0, %v6439
      %v6441 = vrcp.pop %v6096
      %v6442 = vmul.f32 1.0, %v6441
      %v6443 = vrcp.pop %v6097
      %v6444 = vmul.f32 1.0, %v6443
      %v6445 = vrcp.pop %v6098
      %v6446 = vmul.f32 1.0, %v6445
      %v6447 = vrcp.pop %v6099
      %v6448 = vmul.f32 1.0, %v6447
      %v6449 = vrcp.pop %v6100
      %v6450 = vmul.f32 1.0, %v6449
      %v6451 = vrcp.pop %v6101
      %v6452 = vmul.f32 1.0, %v6451
      %v6453 = vrcp.pop %v6102
      %v6454 = vmul.f32 1.0, %v6453
      %v6455 = vrcp.pop %v6103
      %v6456 = vmul.f32 1.0, %v6455
      %v6457 = vrcp.pop %v6104
      %v6458 = vmul.f32 1.0, %v6457
      %v6459 = vrcp.pop %v6105
      %v6460 = vmul.f32 1.0, %v6459
      %v6461 = vrcp.pop %v6106
      %v6462 = vmul.f32 1.0, %v6461
      %v6463 = vrcp.pop %v6107
      %v6464 = vmul.f32 1.0, %v6463
      %v6465 = vrcp.pop %v6108
      %v6466 = vmul.f32 1.0, %v6465
      %v6467 = vrcp.pop %v6109
      %v6468 = vmul.f32 1.0, %v6467
      %v6469 = vrcp.pop %v6110
      %v6470 = vmul.f32 1.0, %v6469
      %v6471 = vrcp.pop %v6111
      %v6472 = vmul.f32 1.0, %v6471
      %v6473 = vrcp.pop %v6112
      %v6474 = vmul.f32 1.0, %v6473
      %v6475 = vrcp.pop %v6113
      %v6476 = vmul.f32 1.0, %v6475
      %v6477 = vrcp.pop %v6114
      %v6478 = vmul.f32 1.0, %v6477
      %v6479 = vrcp.pop %v6115
      %v6480 = vmul.f32 1.0, %v6479
      %v6481 = vrcp.pop %v6116
      %v6482 = vmul.f32 1.0, %v6481
      %v6483 = vrcp.pop %v6117
      %v6484 = vmul.f32 1.0, %v6483
      %v6485 = vrcp.pop %v6118
      %v6486 = vmul.f32 1.0, %v6485
      %v6487 = vrcp.pop %v6119
      %v6488 = vmul.f32 1.0, %v6487
      %v6489 = vrcp.pop %v6120
      %v6490 = vmul.f32 1.0, %v6489
      %v6491 = vrcp.pop %v6121
      %v6492 = vmul.f32 1.0, %v6491
      %v6493 = vrcp.pop %v6122
      %v6494 = vmul.f32 1.0, %v6493
      %v6495 = vrcp.pop %v6123
      %v6496 = vmul.f32 1.0, %v6495
      %v6497 = vrcp.pop %v6124
      %v6498 = vmul.f32 1.0, %v6497
      %v6499 = vrcp.pop %v6125
      %v6500 = vmul.f32 1.0, %v6499
      %v6501 = vrcp.pop %v6126
      %v6502 = vmul.f32 1.0, %v6501
      %v6503 = vrcp.pop %v6127
      %v6504 = vmul.f32 1.0, %v6503
      %v6505 = vrcp.pop %v6128
      %v6506 = vmul.f32 1.0, %v6505
      %v6507 = vrcp.pop %v6129
      %v6508 = vmul.f32 1.0, %v6507
      %v6509 = vrcp.pop %v6130
      %v6510 = vmul.f32 1.0, %v6509
      %v6511 = vrcp.pop %v6131
      %v6512 = vmul.f32 1.0, %v6511
      %v6513 = vrcp.pop %v6132
      %v6514 = vmul.f32 1.0, %v6513
      %v6515 = vrcp.pop %v6133
      %v6516 = vmul.f32 1.0, %v6515
      %v6517 = vrcp.pop %v6134
      %v6518 = vmul.f32 1.0, %v6517
      %v6519 = vmul.f32 %v3830, %v6136
      %v6520 = vmul.f32 %v3832, %v6138
      %v6521 = vmul.f32 %v5049, %v6140
      %v6522 = vmul.f32 %v3836, %v6142
      %v6523 = vmul.f32 %v3838, %v6144
      %v6524 = vmul.f32 %v5054, %v6146
      %v6525 = vmul.f32 %v3842, %v6148
      %v6526 = vmul.f32 %v3844, %v6150
      %v6527 = vmul.f32 %v5059, %v6152
      %v6528 = vmul.f32 %v3848, %v6154
      %v6529 = vmul.f32 %v3850, %v6156
      %v6530 = vmul.f32 %v5064, %v6158
      %v6531 = vmul.f32 %v3854, %v6160
      %v6532 = vmul.f32 %v3856, %v6162
      %v6533 = vmul.f32 %v5069, %v6164
      %v6534 = vmul.f32 %v3860, %v6166
      %v6535 = vmul.f32 %v3862, %v6168
      %v6536 = vmul.f32 %v5074, %v6170
      %v6537 = vmul.f32 %v3866, %v6172
      %v6538 = vmul.f32 %v3868, %v6174
      %v6539 = vmul.f32 %v5079, %v6176
      %v6540 = vmul.f32 %v3872, %v6178
      %v6541 = vmul.f32 %v3874, %v6180
      %v6542 = vmul.f32 %v5084, %v6182
      %v6543 = vmul.f32 %v3878, %v6184
      %v6544 = vmul.f32 %v3880, %v6186
      %v6545 = vmul.f32 %v5089, %v6188
      %v6546 = vmul.f32 %v3884, %v6190
      %v6547 = vmul.f32 %v3886, %v6192
      %v6548 = vmul.f32 %v5094, %v6194
      %v6549 = vmul.f32 %v3890, %v6196
      %v6550 = vmul.f32 %v3892, %v6198
      %v6551 = vmul.f32 %v5099, %v6200
      %v6552 = vmul.f32 %v3896, %v6202
      %v6553 = vmul.f32 %v3898, %v6204
      %v6554 = vmul.f32 %v5104, %v6206
      %v6555 = vmul.f32 %v3902, %v6208
      %v6556 = vmul.f32 %v3904, %v6210
      %v6557 = vmul.f32 %v5109, %v6212
      %v6558 = vmul.f32 %v3908, %v6214
      %v6559 = vmul.f32 %v3910, %v6216
      %v6560 = vmul.f32 %v5114, %v6218
      %v6561 = vmul.f32 %v3914, %v6220
      %v6562 = vmul.f32 %v3916, %v6222
      %v6563 = vmul.f32 %v5119, %v6224
      %v6564 = vmul.f32 %v3920, %v6226
      %v6565 = vmul.f32 %v3922, %v6228
      %v6566 = vmul.f32 %v5124, %v6230
      %v6567 = vmul.f32 %v3926, %v6232
      %v6568 = vmul.f32 %v3928, %v6234
      %v6569 = vmul.f32 %v5129, %v6236
      %v6570 = vmul.f32 %v3932, %v6238
      %v6571 = vmul.f32 %v3934, %v6240
      %v6572 = vmul.f32 %v5134, %v6242
      %v6573 = vmul.f32 %v3938, %v6244
      %v6574 = vmul.f32 %v3940, %v6246
      %v6575 = vmul.f32 %v5139, %v6248
      %v6576 = vmul.f32 %v3944, %v6250
      %v6577 = vmul.f32 %v3946, %v6252
      %v6578 = vmul.f32 %v5144, %v6254
      %v6579 = vmul.f32 %v3950, %v6256
      %v6580 = vmul.f32 %v3952, %v6258
      %v6581 = vmul.f32 %v5149, %v6260
      %v6582 = vmul.f32 %v3956, %v6262
      %v6583 = vmul.f32 %v3958, %v6264
      %v6584 = vmul.f32 %v5154, %v6266
      %v6585 = vmul.f32 %v3962, %v6268
      %v6586 = vmul.f32 %v3964, %v6270
      %v6587 = vmul.f32 %v5159, %v6272
      %v6588 = vmul.f32 %v3968, %v6274
      %v6589 = vmul.f32 %v3970, %v6276
      %v6590 = vmul.f32 %v5164, %v6278
      %v6591 = vmul.f32 %v3974, %v6280
      %v6592 = vmul.f32 %v3976, %v6282
      %v6593 = vmul.f32 %v5169, %v6284
      %v6594 = vmul.f32 %v3980, %v6286
      %v6595 = vmul.f32 %v3982, %v6288
      %v6596 = vmul.f32 %v5174, %v6290
      %v6597 = vmul.f32 %v3986, %v6292
      %v6598 = vmul.f32 %v3988, %v6294
      %v6599 = vmul.f32 %v5179, %v6296
      %v6600 = vmul.f32 %v3992, %v6298
      %v6601 = vmul.f32 %v3994, %v6300
      %v6602 = vmul.f32 %v5184, %v6302
      %v6603 = vmul.f32 %v3998, %v6304
      %v6604 = vmul.f32 %v4000, %v6306
      %v6605 = vmul.f32 %v5189, %v6308
      %v6606 = vmul.f32 %v4004, %v6310
      %v6607 = vmul.f32 %v4006, %v6312
      %v6608 = vmul.f32 %v5194, %v6314
      %v6609 = vmul.f32 %v4010, %v6316
      %v6610 = vmul.f32 %v4012, %v6318
      %v6611 = vmul.f32 %v5199, %v6320
      %v6612 = vmul.f32 %v4016, %v6322
      %v6613 = vmul.f32 %v4018, %v6324
      %v6614 = vmul.f32 %v5204, %v6326
      %v6615 = vmul.f32 %v4022, %v6328
      %v6616 = vmul.f32 %v4024, %v6330
      %v6617 = vmul.f32 %v5209, %v6332
      %v6618 = vmul.f32 %v4028, %v6334
      %v6619 = vmul.f32 %v4030, %v6336
      %v6620 = vmul.f32 %v5214, %v6338
      %v6621 = vmul.f32 %v4034, %v6340
      %v6622 = vmul.f32 %v4036, %v6342
      %v6623 = vmul.f32 %v5219, %v6344
      %v6624 = vmul.f32 %v4040, %v6346
      %v6625 = vmul.f32 %v4042, %v6348
      %v6626 = vmul.f32 %v5224, %v6350
      %v6627 = vmul.f32 %v4046, %v6352
      %v6628 = vmul.f32 %v4048, %v6354
      %v6629 = vmul.f32 %v5229, %v6356
      %v6630 = vmul.f32 %v4052, %v6358
      %v6631 = vmul.f32 %v4054, %v6360
      %v6632 = vmul.f32 %v5234, %v6362
      %v6633 = vmul.f32 %v4058, %v6364
      %v6634 = vmul.f32 %v4060, %v6366
      %v6635 = vmul.f32 %v5239, %v6368
      %v6636 = vmul.f32 %v4064, %v6370
      %v6637 = vmul.f32 %v4066, %v6372
      %v6638 = vmul.f32 %v5244, %v6374
      %v6639 = vmul.f32 %v4070, %v6376
      %v6640 = vmul.f32 %v4072, %v6378
      %v6641 = vmul.f32 %v5249, %v6380
      %v6642 = vmul.f32 %v4076, %v6382
      %v6643 = vmul.f32 %v4078, %v6384
      %v6644 = vmul.f32 %v5254, %v6386
      %v6645 = vmul.f32 %v4082, %v6388
      %v6646 = vmul.f32 %v4084, %v6390
      %v6647 = vmul.f32 %v5259, %v6392
      %v6648 = vmul.f32 %v4088, %v6394
      %v6649 = vmul.f32 %v4090, %v6396
      %v6650 = vmul.f32 %v5264, %v6398
      %v6651 = vmul.f32 %v4094, %v6400
      %v6652 = vmul.f32 %v4096, %v6402
      %v6653 = vmul.f32 %v5269, %v6404
      %v6654 = vmul.f32 %v4100, %v6406
      %v6655 = vmul.f32 %v4102, %v6408
      %v6656 = vmul.f32 %v5274, %v6410
      %v6657 = vmul.f32 %v4106, %v6412
      %v6658 = vmul.f32 %v4108, %v6414
      %v6659 = vmul.f32 %v5279, %v6416
      %v6660 = vmul.f32 %v4112, %v6418
      %v6661 = vmul.f32 %v4114, %v6420
      %v6662 = vmul.f32 %v5284, %v6422
      %v6663 = vmul.f32 %v4118, %v6424
      %v6664 = vmul.f32 %v4120, %v6426
      %v6665 = vmul.f32 %v5289, %v6428
      %v6666 = vmul.f32 %v4124, %v6430
      %v6667 = vmul.f32 %v4126, %v6432
      %v6668 = vmul.f32 %v5294, %v6434
      %v6669 = vmul.f32 %v4130, %v6436
      %v6670 = vmul.f32 %v4132, %v6438
      %v6671 = vmul.f32 %v5299, %v6440
      %v6672 = vmul.f32 %v4136, %v6442
      %v6673 = vmul.f32 %v4138, %v6444
      %v6674 = vmul.f32 %v5304, %v6446
      %v6675 = vmul.f32 %v4142, %v6448
      %v6676 = vmul.f32 %v4144, %v6450
      %v6677 = vmul.f32 %v5309, %v6452
      %v6678 = vmul.f32 %v4148, %v6454
      %v6679 = vmul.f32 %v4150, %v6456
      %v6680 = vmul.f32 %v5314, %v6458
      %v6681 = vmul.f32 %v4154, %v6460
      %v6682 = vmul.f32 %v4156, %v6462
      %v6683 = vmul.f32 %v5319, %v6464
      %v6684 = vmul.f32 %v4160, %v6466
      %v6685 = vmul.f32 %v4162, %v6468
      %v6686 = vmul.f32 %v5324, %v6470
      %v6687 = vmul.f32 %v4166, %v6472
      %v6688 = vmul.f32 %v4168, %v6474
      %v6689 = vmul.f32 %v5329, %v6476
      %v6690 = vmul.f32 %v4172, %v6478
      %v6691 = vmul.f32 %v4174, %v6480
      %v6692 = vmul.f32 %v5334, %v6482
      %v6693 = vmul.f32 %v4178, %v6484
      %v6694 = vmul.f32 %v4180, %v6486
      %v6695 = vmul.f32 %v5339, %v6488
      %v6696 = vmul.f32 %v4184, %v6490
      %v6697 = vmul.f32 %v4186, %v6492
      %v6698 = vmul.f32 %v5344, %v6494
      %v6699 = vmul.f32 %v4190, %v6496
      %v6700 = vmul.f32 %v4192, %v6498
      %v6701 = vmul.f32 %v5349, %v6500
      %v6702 = vmul.f32 %v4196, %v6502
      %v6703 = vmul.f32 %v4198, %v6504
      %v6704 = vmul.f32 %v5354, %v6506
      %v6705 = vmul.f32 %v4202, %v6508
      %v6706 = vmul.f32 %v4204, %v6510
      %v6707 = vmul.f32 %v5359, %v6512
      %v6708 = vmul.f32 %v4208, %v6514
      %v6709 = vmul.f32 %v4210, %v6516
      %v6710 = vmul.f32 %v5364, %v6518
      %v6711 = vld [vmem:[%s4] sm:$0xff]
      %v6712 = vld [vmem:[%s4 + $0x8] sm:$0xff]
      %v6713 = vld [vmem:[%s4 + $0x10] sm:$0xff]
      %v6714 = vld [vmem:[%s4 + $0x18] sm:$0xff]
      %v6715 = vld [vmem:[%s4 + $0x20] sm:$0xff]
      %v6716 = vld [vmem:[%s4 + $0x28] sm:$0xff]
      %v6717 = vld [vmem:[%s4 + $0x30] sm:$0xff]
      %v6718 = vld [vmem:[%s4 + $0x38] sm:$0xff]
      %v6719 = vld [vmem:[%s4 + $0x40] sm:$0xff]
      %v6720 = vld [vmem:[%s4 + $0x48] sm:$0xff]
      %v6721 = vld [vmem:[%s4 + $0x50] sm:$0xff]
      %v6722 = vld [vmem:[%s4 + $0x58] sm:$0xff]
      %v6723 = vld [vmem:[%s4 + $0x60] sm:$0xff]
      %v6724 = vld [vmem:[%s4 + $0x68] sm:$0xff]
      %v6725 = vld [vmem:[%s4 + $0x70] sm:$0xff]
      %v6726 = vld [vmem:[%s4 + $0x78] sm:$0xff]
      %v6727 = vld [vmem:[%s4 + $0x80] sm:$0xff]
      %v6728 = vld [vmem:[%s4 + $0x88] sm:$0xff]
      %v6729 = vld [vmem:[%s4 + $0x90] sm:$0xff]
      %v6730 = vld [vmem:[%s4 + $0x98] sm:$0xff]
      %v6731 = vld [vmem:[%s4 + $0xa0] sm:$0xff]
      %v6732 = vld [vmem:[%s4 + $0xa8] sm:$0xff]
      %v6733 = vld [vmem:[%s4 + $0xb0] sm:$0xff]
      %v6734 = vld [vmem:[%s4 + $0xb8] sm:$0xff]
      %v6735 = vld [vmem:[%s4 + $0xc0] sm:$0xff]
      %v6736 = vld [vmem:[%s4 + $0xc8] sm:$0xff]
      %v6737 = vld [vmem:[%s4 + $0xd0] sm:$0xff]
      %v6738 = vld [vmem:[%s4 + $0xd8] sm:$0xff]
      %v6739 = vld [vmem:[%s4 + $0xe0] sm:$0xff]
      %v6740 = vld [vmem:[%s4 + $0xe8] sm:$0xff]
      %v6741 = vld [vmem:[%s4 + $0xf0] sm:$0xff]
      %v6742 = vld [vmem:[%s4 + $0xf8] sm:$0xff]
      %v6743 = vld [vmem:[%s4 + $0x100] sm:$0xff]
      %v6744 = vld [vmem:[%s4 + $0x108] sm:$0xff]
      %v6745 = vld [vmem:[%s4 + $0x110] sm:$0xff]
      %v6746 = vld [vmem:[%s4 + $0x118] sm:$0xff]
      %v6747 = vld [vmem:[%s4 + $0x120] sm:$0xff]
      %v6748 = vld [vmem:[%s4 + $0x128] sm:$0xff]
      %v6749 = vld [vmem:[%s4 + $0x130] sm:$0xff]
      %v6750 = vld [vmem:[%s4 + $0x138] sm:$0xff]
      %v6751 = vld [vmem:[%s4 + $0x140] sm:$0xff]
      %v6752 = vld [vmem:[%s4 + $0x148] sm:$0xff]
      %v6753 = vld [vmem:[%s4 + $0x150] sm:$0xff]
      %v6754 = vld [vmem:[%s4 + $0x158] sm:$0xff]
      %v6755 = vld [vmem:[%s4 + $0x160] sm:$0xff]
      %v6756 = vld [vmem:[%s4 + $0x168] sm:$0xff]
      %v6757 = vld [vmem:[%s4 + $0x170] sm:$0xff]
      %v6758 = vld [vmem:[%s4 + $0x178] sm:$0xff]
      %v6759 = vld [vmem:[%s5] sm:$0x1]
      %v6761 = vlaneseq
      %v6762 = vshrl.u32 %v6761, 7
      %v6763 = vsub.s32 0, %v6762
      %v6764 = vrot.slane %v6759, %v6763
      %6766 = vmatprep.subr.mxu0 0.0
      %6767 = vmatpush1.msra.mxu0 %v6711
      %6768 = vmatprep.subr.mxu0 0.0
      %6769 = vmatpush1.msra.mxu0 %v6712
      %6770 = vmatprep.subr.mxu0 0.0
      %6771 = vmatpush1.msra.mxu0 %v6713
      %6772 = vmatprep.subr.mxu0 0.0
      %6773 = vmatpush1.msra.mxu0 %v6714
      %6774 = vmatprep.subr.mxu0 0.0
      %6775 = vmatpush1.msra.mxu0 %v6715
      %6776 = vmatprep.subr.mxu0 0.0
      %6777 = vmatpush1.msra.mxu0 %v6716
      %6778 = vmatprep.subr.mxu0 0.0
      %6779 = vmatpush1.msra.mxu0 %v6717
      %6780 = vmatprep.subr.mxu0 0.0
      %6781 = vmatpush1.msra.mxu0 %v6718
      %6782 = vmatprep.subr.mxu0 0.0
      %6783 = vmatpush1.msra.mxu0 %v6719
      %6784 = vmatprep.subr.mxu0 0.0
      %6785 = vmatpush1.msra.mxu0 %v6720
      %6786 = vmatprep.subr.mxu0 0.0
      %6787 = vmatpush1.msra.mxu0 %v6721
      %6788 = vmatprep.subr.mxu0 0.0
      %6789 = vmatpush1.msra.mxu0 %v6722
      %6790 = vmatprep.subr.mxu0 0.0
      %6791 = vmatpush1.msra.mxu0 %v6723
      %6792 = vmatprep.subr.mxu0 0.0
      %6793 = vmatpush1.msra.mxu0 %v6724
      %6794 = vmatprep.subr.mxu0 0.0
      %6795 = vmatpush1.msra.mxu0 %v6725
      %6796 = vmatprep.subr.mxu0 0.0
      %6797 = vmatpush1.msra.mxu0 %v6726
      %6798 = vmatprep.subr.mxu0 0.0
      %6799 = vmatpush1.msra.mxu0 %v6727
      %6800 = vmatprep.subr.mxu0 0.0
      %6801 = vmatpush1.msra.mxu0 %v6728
      %6802 = vmatprep.subr.mxu0 0.0
      %6803 = vmatpush1.msra.mxu0 %v6729
      %6804 = vmatprep.subr.mxu0 0.0
      %6805 = vmatpush1.msra.mxu0 %v6730
      %6806 = vmatprep.subr.mxu0 0.0
      %6807 = vmatpush1.msra.mxu0 %v6731
      %6808 = vmatprep.subr.mxu0 0.0
      %6809 = vmatpush1.msra.mxu0 %v6732
      %6810 = vmatprep.subr.mxu0 0.0
      %6811 = vmatpush1.msra.mxu0 %v6733
      %6812 = vmatprep.subr.mxu0 0.0
      %6813 = vmatpush1.msra.mxu0 %v6734
      %6814 = vmatprep.subr.mxu0 0.0
      %6815 = vmatpush1.msra.mxu0 %v6735
      %6816 = vmatprep.subr.mxu0 0.0
      %6817 = vmatpush1.msra.mxu0 %v6736
      %6818 = vmatprep.subr.mxu0 0.0
      %6819 = vmatpush1.msra.mxu0 %v6737
      %6820 = vmatprep.subr.mxu0 0.0
      %6821 = vmatpush1.msra.mxu0 %v6738
      %6822 = vmatprep.subr.mxu0 0.0
      %6823 = vmatpush1.msra.mxu0 %v6739
      %6824 = vmatprep.subr.mxu0 0.0
      %6825 = vmatpush1.msra.mxu0 %v6740
      %6826 = vmatprep.subr.mxu0 0.0
      %6827 = vmatpush1.msra.mxu0 %v6741
      %6828 = vmatprep.subr.mxu0 0.0
      %6829 = vmatpush1.msra.mxu0 %v6742
      %6830 = vmatprep.mubr.f32.mxu0 %v6520
      %6831 = vmatmul.mubr.f32.gmra.mrb[0].mxu0 %v6519
      %v6832 = vpop.f32.mrb[0].mxu0
      %v6833 = vadd.f32 %v6764, %v6832
      %v6834 = vpop.f32.mrb[0].mxu0
      %6835 = vmatprep.mubr.f32.mxu0 %v6523
      %6836 = vmatmul.mubr.f32.gmra.mrb[0].mxu0 %v6522
      %v6837 = vpop.f32.mrb[0].mxu0
      %v6838 = vadd.f32 %v6764, %v6837
      %v6839 = vpop.f32.mrb[0].mxu0
      %6840 = vmatprep.mubr.f32.mxu0 %v6526
      %6841 = vmatmul.mubr.f32.gmra.mrb[0].mxu0 %v6525
      %v6842 = vpop.f32.mrb[0].mxu0
      %v6843 = vadd.f32 %v6764, %v6842
      %v6844 = vpop.f32.mrb[0].mxu0
      %6845 = vmatprep.mubr.f32.mxu0 %v6529
      %6846 = vmatmul.mubr.f32.gmra.mrb[0].mxu0 %v6528
      %v6847 = vpop.f32.mrb[0].mxu0
      %v6848 = vadd.f32 %v6764, %v6847
      %v6849 = vpop.f32.mrb[0].mxu0
      %6850 = vmatprep.mubr.f32.mxu0 %v6532
      %6851 = vmatmul.mubr.f32.gmra.mrb[0].mxu0 %v6531
      %v6852 = vpop.f32.mrb[0].mxu0
      %v6853 = vadd.f32 %v6764, %v6852
      %v6854 = vpop.f32.mrb[0].mxu0
      %6855 = vmatprep.mubr.f32.mxu0 %v6535
      %6856 = vmatmul.mubr.f32.gmra.mrb[0].mxu0 %v6534
      %v6857 = vpop.f32.mrb[0].mxu0
      %v6858 = vadd.f32 %v6764, %v6857
      %v6859 = vpop.f32.mrb[0].mxu0
      %6860 = vmatprep.mubr.f32.mxu0 %v6538
      %6861 = vmatmul.mubr.f32.gmra.mrb[0].mxu0 %v6537
      %v6862 = vpop.f32.mrb[0].mxu0
      %v6863 = vadd.f32 %v6764, %v6862
      %v6864 = vpop.f32.mrb[0].mxu0
      %6865 = vmatprep.mubr.f32.mxu0 %v6541
      %6866 = vmatmul.mubr.f32.gmra.mrb[0].mxu0 %v6540
      %v6867 = vpop.f32.mrb[0].mxu0
      %v6868 = vadd.f32 %v6764, %v6867
      %v6869 = vpop.f32.mrb[0].mxu0
      %6870 = vmatprep.mubr.f32.mxu0 %v6544
      %6871 = vmatmul.mubr.f32.gmra.mrb[0].mxu0 %v6543
      %v6872 = vpop.f32.mrb[0].mxu0
      %v6873 = vadd.f32 %v6764, %v6872
      %v6874 = vpop.f32.mrb[0].mxu0
      %6875 = vmatprep.mubr.f32.mxu0 %v6547
      %6876 = vmatmul.mubr.f32.gmra.mrb[0].mxu0 %v6546
      %v6877 = vpop.f32.mrb[0].mxu0
      %v6878 = vadd.f32 %v6764, %v6877
      %v6879 = vpop.f32.mrb[0].mxu0
      %6880 = vmatprep.mubr.f32.mxu0 %v6550
      %6881 = vmatmul.mubr.f32.gmra.mrb[0].mxu0 %v6549
      %v6882 = vpop.f32.mrb[0].mxu0
      %v6883 = vadd.f32 %v6764, %v6882
      %v6884 = vpop.f32.mrb[0].mxu0
      %6885 = vmatprep.mubr.f32.mxu0 %v6553
      %6886 = vmatmul.mubr.f32.gmra.mrb[0].mxu0 %v6552
      %v6887 = vpop.f32.mrb[0].mxu0
      %v6888 = vadd.f32 %v6764, %v6887
      %v6889 = vpop.f32.mrb[0].mxu0
      %6890 = vmatprep.mubr.f32.mxu0 %v6556
      %6891 = vmatmul.mubr.f32.gmra.mrb[0].mxu0 %v6555
      %v6892 = vpop.f32.mrb[0].mxu0
      %v6893 = vadd.f32 %v6764, %v6892
      %v6894 = vpop.f32.mrb[0].mxu0
      %6895 = vmatprep.mubr.f32.mxu0 %v6559
      %6896 = vmatmul.mubr.f32.gmra.mrb[0].mxu0 %v6558
      %v6897 = vpop.f32.mrb[0].mxu0
      %v6898 = vadd.f32 %v6764, %v6897
      %v6899 = vpop.f32.mrb[0].mxu0
      %6900 = vmatprep.mubr.f32.mxu0 %v6562
      %6901 = vmatmul.mubr.f32.gmra.mrb[0].mxu0 %v6561
      %v6902 = vpop.f32.mrb[0].mxu0
      %v6903 = vadd.f32 %v6764, %v6902
      %v6904 = vpop.f32.mrb[0].mxu0
      %6905 = vmatprep.mubr.f32.mxu0 %v6565
      %6906 = vmatmul.mubr.f32.gmra.mrb[0].mxu0 %v6564
      %v6907 = vpop.f32.mrb[0].mxu0
      %v6908 = vadd.f32 %v6764, %v6907
      %v6909 = vpop.f32.mrb[0].mxu0
      %6910 = vmatprep.mubr.f32.mxu0 %v6568
      %6911 = vmatmul.mubr.f32.gmra.mrb[0].mxu0 %v6567
      %v6912 = vpop.f32.mrb[0].mxu0
      %v6913 = vadd.f32 %v6764, %v6912
      %v6914 = vpop.f32.mrb[0].mxu0
      %6915 = vmatprep.mubr.f32.mxu0 %v6571
      %6916 = vmatmul.mubr.f32.gmra.mrb[0].mxu0 %v6570
      %v6917 = vpop.f32.mrb[0].mxu0
      %v6918 = vadd.f32 %v6764, %v6917
      %v6919 = vpop.f32.mrb[0].mxu0
      %6920 = vmatprep.mubr.f32.mxu0 %v6574
      %6921 = vmatmul.mubr.f32.gmra.mrb[0].mxu0 %v6573
      %v6922 = vpop.f32.mrb[0].mxu0
      %v6923 = vadd.f32 %v6764, %v6922
      %v6924 = vpop.f32.mrb[0].mxu0
      %6925 = vmatprep.mubr.f32.mxu0 %v6577
      %6926 = vmatmul.mubr.f32.gmra.mrb[0].mxu0 %v6576
      %v6927 = vpop.f32.mrb[0].mxu0
      %v6928 = vadd.f32 %v6764, %v6927
      %v6929 = vpop.f32.mrb[0].mxu0
      %6930 = vmatprep.mubr.f32.mxu0 %v6580
      %6931 = vmatmul.mubr.f32.gmra.mrb[0].mxu0 %v6579
      %v6932 = vpop.f32.mrb[0].mxu0
      %v6933 = vadd.f32 %v6764, %v6932
      %v6934 = vpop.f32.mrb[0].mxu0
      %6935 = vmatprep.mubr.f32.mxu0 %v6583
      %6936 = vmatmul.mubr.f32.gmra.mrb[0].mxu0 %v6582
      %v6937 = vpop.f32.mrb[0].mxu0
      %v6938 = vadd.f32 %v6764, %v6937
      %v6939 = vpop.f32.mrb[0].mxu0
      %6940 = vmatprep.mubr.f32.mxu0 %v6586
      %6941 = vmatmul.mubr.f32.gmra.mrb[0].mxu0 %v6585
      %v6942 = vpop.f32.mrb[0].mxu0
      %v6943 = vadd.f32 %v6764, %v6942
      %v6944 = vpop.f32.mrb[0].mxu0
      %6945 = vmatprep.mubr.f32.mxu0 %v6589
      %6946 = vmatmul.mubr.f32.gmra.mrb[0].mxu0 %v6588
      %v6947 = vpop.f32.mrb[0].mxu0
      %v6948 = vadd.f32 %v6764, %v6947
      %v6949 = vpop.f32.mrb[0].mxu0
      %6950 = vmatprep.mubr.f32.mxu0 %v6592
      %6951 = vmatmul.mubr.f32.gmra.mrb[0].mxu0 %v6591
      %v6952 = vpop.f32.mrb[0].mxu0
      %v6953 = vadd.f32 %v6764, %v6952
      %v6954 = vpop.f32.mrb[0].mxu0
      %6955 = vmatprep.mubr.f32.mxu0 %v6595
      %6956 = vmatmul.mubr.f32.gmra.mrb[0].mxu0 %v6594
      %v6957 = vpop.f32.mrb[0].mxu0
      %v6958 = vadd.f32 %v6764, %v6957
      %v6959 = vpop.f32.mrb[0].mxu0
      %6960 = vmatprep.mubr.f32.mxu0 %v6598
      %6961 = vmatmul.mubr.f32.gmra.mrb[0].mxu0 %v6597
      %v6962 = vpop.f32.mrb[0].mxu0
      %v6963 = vadd.f32 %v6764, %v6962
      %v6964 = vpop.f32.mrb[0].mxu0
      %6965 = vmatprep.mubr.f32.mxu0 %v6601
      %6966 = vmatmul.mubr.f32.gmra.mrb[0].mxu0 %v6600
      %v6967 = vpop.f32.mrb[0].mxu0
      %v6968 = vadd.f32 %v6764, %v6967
      %v6969 = vpop.f32.mrb[0].mxu0
      %6970 = vmatprep.mubr.f32.mxu0 %v6604
      %6971 = vmatmul.mubr.f32.gmra.mrb[0].mxu0 %v6603
      %v6972 = vpop.f32.mrb[0].mxu0
      %v6973 = vadd.f32 %v6764, %v6972
      %v6974 = vpop.f32.mrb[0].mxu0
      %6975 = vmatprep.mubr.f32.mxu0 %v6607
      %6976 = vmatmul.mubr.f32.gmra.mrb[0].mxu0 %v6606
      %v6977 = vpop.f32.mrb[0].mxu0
      %v6978 = vadd.f32 %v6764, %v6977
      %v6979 = vpop.f32.mrb[0].mxu0
      %6980 = vmatprep.mubr.f32.mxu0 %v6610
      %6981 = vmatmul.mubr.f32.gmra.mrb[0].mxu0 %v6609
      %v6982 = vpop.f32.mrb[0].mxu0
      %v6983 = vadd.f32 %v6764, %v6982
      %v6984 = vpop.f32.mrb[0].mxu0
      %6985 = vmatprep.mubr.f32.mxu0 %v6613
      %6986 = vmatmul.mubr.f32.gmra.mrb[0].mxu0 %v6612
      %v6987 = vpop.f32.mrb[0].mxu0
      %v6988 = vadd.f32 %v6764, %v6987
      %v6989 = vpop.f32.mrb[0].mxu0
      %6990 = vmatprep.mubr.f32.mxu0 %v6616
      %6991 = vmatmul.mubr.f32.gmra.mrb[0].mxu0 %v6615
      %v6992 = vpop.f32.mrb[0].mxu0
      %v6993 = vadd.f32 %v6764, %v6992
      %v6994 = vpop.f32.mrb[0].mxu0
      %6995 = vmatprep.mubr.f32.mxu0 %v6619
      %6996 = vmatmul.mubr.f32.gmra.mrb[0].mxu0 %v6618
      %v6997 = vpop.f32.mrb[0].mxu0
      %v6998 = vadd.f32 %v6764, %v6997
      %v6999 = vpop.f32.mrb[0].mxu0
      %7000 = vmatprep.mubr.f32.mxu0 %v6622
      %7001 = vmatmul.mubr.f32.gmra.mrb[0].mxu0 %v6621
      %v7002 = vpop.f32.mrb[0].mxu0
      %v7003 = vadd.f32 %v6764, %v7002
      %v7004 = vpop.f32.mrb[0].mxu0
      %7005 = vmatprep.mubr.f32.mxu0 %v6625
      %7006 = vmatmul.mubr.f32.gmra.mrb[0].mxu0 %v6624
      %v7007 = vpop.f32.mrb[0].mxu0
      %v7008 = vadd.f32 %v6764, %v7007
      %v7009 = vpop.f32.mrb[0].mxu0
      %7010 = vmatprep.mubr.f32.mxu0 %v6628
      %7011 = vmatmul.mubr.f32.gmra.mrb[0].mxu0 %v6627
      %v7012 = vpop.f32.mrb[0].mxu0
      %v7013 = vadd.f32 %v6764, %v7012
      %v7014 = vpop.f32.mrb[0].mxu0
      %7015 = vmatprep.mubr.f32.mxu0 %v6631
      %7016 = vmatmul.mubr.f32.gmra.mrb[0].mxu0 %v6630
      %v7017 = vpop.f32.mrb[0].mxu0
      %v7018 = vadd.f32 %v6764, %v7017
      %v7019 = vpop.f32.mrb[0].mxu0
      %7020 = vmatprep.mubr.f32.mxu0 %v6634
      %7021 = vmatmul.mubr.f32.gmra.mrb[0].mxu0 %v6633
      %v7022 = vpop.f32.mrb[0].mxu0
      %v7023 = vadd.f32 %v6764, %v7022
      %v7024 = vpop.f32.mrb[0].mxu0
      %7025 = vmatprep.mubr.f32.mxu0 %v6637
      %7026 = vmatmul.mubr.f32.gmra.mrb[0].mxu0 %v6636
      %v7027 = vpop.f32.mrb[0].mxu0
      %v7028 = vadd.f32 %v6764, %v7027
      %v7029 = vpop.f32.mrb[0].mxu0
      %7030 = vmatprep.mubr.f32.mxu0 %v6640
      %7031 = vmatmul.mubr.f32.gmra.mrb[0].mxu0 %v6639
      %v7032 = vpop.f32.mrb[0].mxu0
      %v7033 = vadd.f32 %v6764, %v7032
      %v7034 = vpop.f32.mrb[0].mxu0
      %7035 = vmatprep.mubr.f32.mxu0 %v6643
      %7036 = vmatmul.mubr.f32.gmra.mrb[0].mxu0 %v6642
      %v7037 = vpop.f32.mrb[0].mxu0
      %v7038 = vadd.f32 %v6764, %v7037
      %v7039 = vpop.f32.mrb[0].mxu0
      %7040 = vmatprep.mubr.f32.mxu0 %v6646
      %7041 = vmatmul.mubr.f32.gmra.mrb[0].mxu0 %v6645
      %v7042 = vpop.f32.mrb[0].mxu0
      %v7043 = vadd.f32 %v6764, %v7042
      %v7044 = vpop.f32.mrb[0].mxu0
      %7045 = vmatprep.mubr.f32.mxu0 %v6649
      %7046 = vmatmul.mubr.f32.gmra.mrb[0].mxu0 %v6648
      %v7047 = vpop.f32.mrb[0].mxu0
      %v7048 = vadd.f32 %v6764, %v7047
      %v7049 = vpop.f32.mrb[0].mxu0
      %7050 = vmatprep.mubr.f32.mxu0 %v6652
      %7051 = vmatmul.mubr.f32.gmra.mrb[0].mxu0 %v6651
      %v7052 = vpop.f32.mrb[0].mxu0
      %v7053 = vadd.f32 %v6764, %v7052
      %v7054 = vpop.f32.mrb[0].mxu0
      %7055 = vmatprep.mubr.f32.mxu0 %v6655
      %7056 = vmatmul.mubr.f32.gmra.mrb[0].mxu0 %v6654
      %v7057 = vpop.f32.mrb[0].mxu0
      %v7058 = vadd.f32 %v6764, %v7057
      %v7059 = vpop.f32.mrb[0].mxu0
      %7060 = vmatprep.mubr.f32.mxu0 %v6658
      %7061 = vmatmul.mubr.f32.gmra.mrb[0].mxu0 %v6657
      %v7062 = vpop.f32.mrb[0].mxu0
      %v7063 = vadd.f32 %v6764, %v7062
      %v7064 = vpop.f32.mrb[0].mxu0
      %7065 = vmatprep.mubr.f32.mxu0 %v6661
      %7066 = vmatmul.mubr.f32.gmra.mrb[0].mxu0 %v6660
      %v7067 = vpop.f32.mrb[0].mxu0
      %v7068 = vadd.f32 %v6764, %v7067
      %v7069 = vpop.f32.mrb[0].mxu0
      %7070 = vmatprep.mubr.f32.mxu0 %v6664
      %7071 = vmatmul.mubr.f32.gmra.mrb[0].mxu0 %v6663
      %v7072 = vpop.f32.mrb[0].mxu0
      %v7073 = vadd.f32 %v6764, %v7072
      %v7074 = vpop.f32.mrb[0].mxu0
      %7075 = vmatprep.mubr.f32.mxu0 %v6667
      %7076 = vmatmul.mubr.f32.gmra.mrb[0].mxu0 %v6666
      %v7077 = vpop.f32.mrb[0].mxu0
      %v7078 = vadd.f32 %v6764, %v7077
      %v7079 = vpop.f32.mrb[0].mxu0
      %7080 = vmatprep.mubr.f32.mxu0 %v6670
      %7081 = vmatmul.mubr.f32.gmra.mrb[0].mxu0 %v6669
      %v7082 = vpop.f32.mrb[0].mxu0
      %v7083 = vadd.f32 %v6764, %v7082
      %v7084 = vpop.f32.mrb[0].mxu0
      %7085 = vmatprep.mubr.f32.mxu0 %v6673
      %7086 = vmatmul.mubr.f32.gmra.mrb[0].mxu0 %v6672
      %v7087 = vpop.f32.mrb[0].mxu0
      %v7088 = vadd.f32 %v6764, %v7087
      %v7089 = vpop.f32.mrb[0].mxu0
      %7090 = vmatprep.mubr.f32.mxu0 %v6676
      %7091 = vmatmul.mubr.f32.gmra.mrb[0].mxu0 %v6675
      %v7092 = vpop.f32.mrb[0].mxu0
      %v7093 = vadd.f32 %v6764, %v7092
      %v7094 = vpop.f32.mrb[0].mxu0
      %7095 = vmatprep.mubr.f32.mxu0 %v6679
      %7096 = vmatmul.mubr.f32.gmra.mrb[0].mxu0 %v6678
      %v7097 = vpop.f32.mrb[0].mxu0
      %v7098 = vadd.f32 %v6764, %v7097
      %v7099 = vpop.f32.mrb[0].mxu0
      %7100 = vmatprep.mubr.f32.mxu0 %v6682
      %7101 = vmatmul.mubr.f32.gmra.mrb[0].mxu0 %v6681
      %v7102 = vpop.f32.mrb[0].mxu0
      %v7103 = vadd.f32 %v6764, %v7102
      %v7104 = vpop.f32.mrb[0].mxu0
      %7105 = vmatprep.mubr.f32.mxu0 %v6685
      %7106 = vmatmul.mubr.f32.gmra.mrb[0].mxu0 %v6684
      %v7107 = vpop.f32.mrb[0].mxu0
      %v7108 = vadd.f32 %v6764, %v7107
      %v7109 = vpop.f32.mrb[0].mxu0
      %7110 = vmatprep.mubr.f32.mxu0 %v6688
      %7111 = vmatmul.mubr.f32.gmra.mrb[0].mxu0 %v6687
      %v7112 = vpop.f32.mrb[0].mxu0
      %v7113 = vadd.f32 %v6764, %v7112
      %v7114 = vpop.f32.mrb[0].mxu0
      %7115 = vmatprep.mubr.f32.mxu0 %v6691
      %7116 = vmatmul.mubr.f32.gmra.mrb[0].mxu0 %v6690
      %v7117 = vpop.f32.mrb[0].mxu0
      %v7118 = vadd.f32 %v6764, %v7117
      %v7119 = vpop.f32.mrb[0].mxu0
      %7120 = vmatprep.mubr.f32.mxu0 %v6694
      %7121 = vmatmul.mubr.f32.gmra.mrb[0].mxu0 %v6693
      %v7122 = vpop.f32.mrb[0].mxu0
      %v7123 = vadd.f32 %v6764, %v7122
      %v7124 = vpop.f32.mrb[0].mxu0
      %7125 = vmatprep.mubr.f32.mxu0 %v6697
      %7126 = vmatmul.mubr.f32.gmra.mrb[0].mxu0 %v6696
      %v7127 = vpop.f32.mrb[0].mxu0
      %v7128 = vadd.f32 %v6764, %v7127
      %v7129 = vpop.f32.mrb[0].mxu0
      %7130 = vmatprep.mubr.f32.mxu0 %v6700
      %7131 = vmatmul.mubr.f32.gmra.mrb[0].mxu0 %v6699
      %v7132 = vpop.f32.mrb[0].mxu0
      %v7133 = vadd.f32 %v6764, %v7132
      %v7134 = vpop.f32.mrb[0].mxu0
      %7135 = vmatprep.mubr.f32.mxu0 %v6703
      %7136 = vmatmul.mubr.f32.gmra.mrb[0].mxu0 %v6702
      %v7137 = vpop.f32.mrb[0].mxu0
      %v7138 = vadd.f32 %v6764, %v7137
      %v7139 = vpop.f32.mrb[0].mxu0
      %7140 = vmatprep.mubr.f32.mxu0 %v6706
      %7141 = vmatmul.mubr.f32.gmra.mrb[0].mxu0 %v6705
      %v7142 = vpop.f32.mrb[0].mxu0
      %v7143 = vadd.f32 %v6764, %v7142
      %v7144 = vpop.f32.mrb[0].mxu0
      %7145 = vmatprep.mubr.f32.mxu0 %v6709
      %7146 = vmatmul.mubr.f32.gmra.mrb[0].mxu0 %v6708
      %v7147 = vpop.f32.mrb[0].mxu0
      %v7148 = vadd.f32 %v6764, %v7147
      %v7149 = vpop.f32.mrb[0].mxu0
      %7150 = vdwg.mxu0
      %7151 = vmatprep.subr.mxu0 0.0
      %7152 = vmatpush1.msra.mxu0 %v6743
      %7153 = vmatprep.subr.mxu0 0.0
      %7154 = vmatpush1.msra.mxu0 %v6744
      %7155 = vmatprep.subr.mxu0 0.0
      %7156 = vmatpush1.msra.mxu0 %v6745
      %7157 = vmatprep.subr.mxu0 0.0
      %7158 = vmatpush1.msra.mxu0 %v6746
      %7159 = vmatprep.subr.mxu0 0.0
      %7160 = vmatpush1.msra.mxu0 %v6747
      %7161 = vmatprep.subr.mxu0 0.0
      %7162 = vmatpush1.msra.mxu0 %v6748
      %7163 = vmatprep.subr.mxu0 0.0
      %7164 = vmatpush1.msra.mxu0 %v6749
      %7165 = vmatprep.subr.mxu0 0.0
      %7166 = vmatpush1.msra.mxu0 %v6750
      %7167 = vmatprep.subr.mxu0 0.0
      %7168 = vmatpush1.msra.mxu0 %v6751
      %7169 = vmatprep.subr.mxu0 0.0
      %7170 = vmatpush1.msra.mxu0 %v6752
      %7171 = vmatprep.subr.mxu0 0.0
      %7172 = vmatpush1.msra.mxu0 %v6753
      %7173 = vmatprep.subr.mxu0 0.0
      %7174 = vmatpush1.msra.mxu0 %v6754
      %7175 = vmatprep.subr.mxu0 0.0
      %7176 = vmatpush1.msra.mxu0 %v6755
      %7177 = vmatprep.subr.mxu0 0.0
      %7178 = vmatpush1.msra.mxu0 %v6756
      %7179 = vmatprep.subr.mxu0 0.0
      %7180 = vmatpush1.msra.mxu0 %v6757
      %7181 = vmatprep.subr.mxu0 0.0
      %7182 = vmatpush1.msra.mxu0 %v6758
      %7183 = vmatprep.subr.mxu0 0.0
      %7184 = vmatpush1.msra.mxu0 0.0
      %7185 = vmatprep.subr.mxu0 0.0
      %7186 = vmatpush1.msra.mxu0 0.0
      %7187 = vmatprep.subr.mxu0 0.0
      %7188 = vmatpush1.msra.mxu0 0.0
      %7189 = vmatprep.subr.mxu0 0.0
      %7190 = vmatpush1.msra.mxu0 0.0
      %7191 = vmatprep.subr.mxu0 0.0
      %7192 = vmatpush1.msra.mxu0 0.0
      %7193 = vmatprep.subr.mxu0 0.0
      %7194 = vmatpush1.msra.mxu0 0.0
      %7195 = vmatprep.subr.mxu0 0.0
      %7196 = vmatpush1.msra.mxu0 0.0
      %7197 = vmatprep.subr.mxu0 0.0
      %7198 = vmatpush1.msra.mxu0 0.0
      %7199 = vmatprep.subr.mxu0 0.0
      %7200 = vmatpush1.msra.mxu0 0.0
      %7201 = vmatprep.subr.mxu0 0.0
      %7202 = vmatpush1.msra.mxu0 0.0
      %7203 = vmatprep.subr.mxu0 0.0
      %7204 = vmatpush1.msra.mxu0 0.0
      %7205 = vmatprep.subr.mxu0 0.0
      %7206 = vmatpush1.msra.mxu0 0.0
      %7207 = vmatprep.subr.mxu0 0.0
      %7208 = vmatpush1.msra.mxu0 0.0
      %7209 = vmatprep.subr.mxu0 0.0
      %7210 = vmatpush1.msra.mxu0 0.0
      %7211 = vmatprep.subr.mxu0 0.0
      %7212 = vmatpush1.msra.mxu0 0.0
      %7213 = vmatprep.subr.mxu0 0.0
      %7214 = vmatpush1.msra.mxu0 0.0
      %7215 = vmatprep.mubr.f32.mxu0 0.0
      %7216 = vmatmul.mubr.f32.gmra.mrb[0].mxu0 %v6521
      %v7217 = vpop.f32.mrb[0].mxu0
      %v7218 = vadd.f32 %v6833, %v7217
      %v7219 = vpop.f32.mrb[0].mxu0
      %7220 = vmatprep.mubr.f32.mxu0 0.0
      %7221 = vmatmul.mubr.f32.gmra.mrb[0].mxu0 %v6524
      %v7222 = vpop.f32.mrb[0].mxu0
      %v7223 = vadd.f32 %v6838, %v7222
      %v7224 = vpop.f32.mrb[0].mxu0
      %7225 = vmatprep.mubr.f32.mxu0 0.0
      %7226 = vmatmul.mubr.f32.gmra.mrb[0].mxu0 %v6527
      %v7227 = vpop.f32.mrb[0].mxu0
      %v7228 = vadd.f32 %v6843, %v7227
      %v7229 = vpop.f32.mrb[0].mxu0
      %7230 = vmatprep.mubr.f32.mxu0 0.0
      %7231 = vmatmul.mubr.f32.gmra.mrb[0].mxu0 %v6530
      %v7232 = vpop.f32.mrb[0].mxu0
      %v7233 = vadd.f32 %v6848, %v7232
      %v7234 = vpop.f32.mrb[0].mxu0
      %7235 = vmatprep.mubr.f32.mxu0 0.0
      %7236 = vmatmul.mubr.f32.gmra.mrb[0].mxu0 %v6533
      %v7237 = vpop.f32.mrb[0].mxu0
      %v7238 = vadd.f32 %v6853, %v7237
      %v7239 = vpop.f32.mrb[0].mxu0
      %7240 = vmatprep.mubr.f32.mxu0 0.0
      %7241 = vmatmul.mubr.f32.gmra.mrb[0].mxu0 %v6536
      %v7242 = vpop.f32.mrb[0].mxu0
      %v7243 = vadd.f32 %v6858, %v7242
      %v7244 = vpop.f32.mrb[0].mxu0
      %7245 = vmatprep.mubr.f32.mxu0 0.0
      %7246 = vmatmul.mubr.f32.gmra.mrb[0].mxu0 %v6539
      %v7247 = vpop.f32.mrb[0].mxu0
      %v7248 = vadd.f32 %v6863, %v7247
      %v7249 = vpop.f32.mrb[0].mxu0
      %7250 = vmatprep.mubr.f32.mxu0 0.0
      %7251 = vmatmul.mubr.f32.gmra.mrb[0].mxu0 %v6542
      %v7252 = vpop.f32.mrb[0].mxu0
      %v7253 = vadd.f32 %v6868, %v7252
      %v7254 = vpop.f32.mrb[0].mxu0
      %7255 = vmatprep.mubr.f32.mxu0 0.0
      %7256 = vmatmul.mubr.f32.gmra.mrb[0].mxu0 %v6545
      %v7257 = vpop.f32.mrb[0].mxu0
      %v7258 = vadd.f32 %v6873, %v7257
      %v7259 = vpop.f32.mrb[0].mxu0
      %7260 = vmatprep.mubr.f32.mxu0 0.0
      %7261 = vmatmul.mubr.f32.gmra.mrb[0].mxu0 %v6548
      %v7262 = vpop.f32.mrb[0].mxu0
      %v7263 = vadd.f32 %v6878, %v7262
      %v7264 = vpop.f32.mrb[0].mxu0
      %7265 = vmatprep.mubr.f32.mxu0 0.0
      %7266 = vmatmul.mubr.f32.gmra.mrb[0].mxu0 %v6551
      %v7267 = vpop.f32.mrb[0].mxu0
      %v7268 = vadd.f32 %v6883, %v7267
      %v7269 = vpop.f32.mrb[0].mxu0
      %7270 = vmatprep.mubr.f32.mxu0 0.0
      %7271 = vmatmul.mubr.f32.gmra.mrb[0].mxu0 %v6554
      %v7272 = vpop.f32.mrb[0].mxu0
      %v7273 = vadd.f32 %v6888, %v7272
      %v7274 = vpop.f32.mrb[0].mxu0
      %7275 = vmatprep.mubr.f32.mxu0 0.0
      %7276 = vmatmul.mubr.f32.gmra.mrb[0].mxu0 %v6557
      %v7277 = vpop.f32.mrb[0].mxu0
      %v7278 = vadd.f32 %v6893, %v7277
      %v7279 = vpop.f32.mrb[0].mxu0
      %7280 = vmatprep.mubr.f32.mxu0 0.0
      %7281 = vmatmul.mubr.f32.gmra.mrb[0].mxu0 %v6560
      %v7282 = vpop.f32.mrb[0].mxu0
      %v7283 = vadd.f32 %v6898, %v7282
      %v7284 = vpop.f32.mrb[0].mxu0
      %7285 = vmatprep.mubr.f32.mxu0 0.0
      %7286 = vmatmul.mubr.f32.gmra.mrb[0].mxu0 %v6563
      %v7287 = vpop.f32.mrb[0].mxu0
      %v7288 = vadd.f32 %v6903, %v7287
      %v7289 = vpop.f32.mrb[0].mxu0
      %7290 = vmatprep.mubr.f32.mxu0 0.0
      %7291 = vmatmul.mubr.f32.gmra.mrb[0].mxu0 %v6566
      %v7292 = vpop.f32.mrb[0].mxu0
      %v7293 = vadd.f32 %v6908, %v7292
      %v7294 = vpop.f32.mrb[0].mxu0
      %7295 = vmatprep.mubr.f32.mxu0 0.0
      %7296 = vmatmul.mubr.f32.gmra.mrb[0].mxu0 %v6569
      %v7297 = vpop.f32.mrb[0].mxu0
      %v7298 = vadd.f32 %v6913, %v7297
      %v7299 = vpop.f32.mrb[0].mxu0
      %7300 = vmatprep.mubr.f32.mxu0 0.0
      %7301 = vmatmul.mubr.f32.gmra.mrb[0].mxu0 %v6572
      %v7302 = vpop.f32.mrb[0].mxu0
      %v7303 = vadd.f32 %v6918, %v7302
      %v7304 = vpop.f32.mrb[0].mxu0
      %7305 = vmatprep.mubr.f32.mxu0 0.0
      %7306 = vmatmul.mubr.f32.gmra.mrb[0].mxu0 %v6575
      %v7307 = vpop.f32.mrb[0].mxu0
      %v7308 = vadd.f32 %v6923, %v7307
      %v7309 = vpop.f32.mrb[0].mxu0
      %7310 = vmatprep.mubr.f32.mxu0 0.0
      %7311 = vmatmul.mubr.f32.gmra.mrb[0].mxu0 %v6578
      %v7312 = vpop.f32.mrb[0].mxu0
      %v7313 = vadd.f32 %v6928, %v7312
      %v7314 = vpop.f32.mrb[0].mxu0
      %7315 = vmatprep.mubr.f32.mxu0 0.0
      %7316 = vmatmul.mubr.f32.gmra.mrb[0].mxu0 %v6581
      %v7317 = vpop.f32.mrb[0].mxu0
      %v7318 = vadd.f32 %v6933, %v7317
      %v7319 = vpop.f32.mrb[0].mxu0
      %7320 = vmatprep.mubr.f32.mxu0 0.0
      %7321 = vmatmul.mubr.f32.gmra.mrb[0].mxu0 %v6584
      %v7322 = vpop.f32.mrb[0].mxu0
      %v7323 = vadd.f32 %v6938, %v7322
      %v7324 = vpop.f32.mrb[0].mxu0
      %7325 = vmatprep.mubr.f32.mxu0 0.0
      %7326 = vmatmul.mubr.f32.gmra.mrb[0].mxu0 %v6587
      %v7327 = vpop.f32.mrb[0].mxu0
      %v7328 = vadd.f32 %v6943, %v7327
      %v7329 = vpop.f32.mrb[0].mxu0
      %7330 = vmatprep.mubr.f32.mxu0 0.0
      %7331 = vmatmul.mubr.f32.gmra.mrb[0].mxu0 %v6590
      %v7332 = vpop.f32.mrb[0].mxu0
      %v7333 = vadd.f32 %v6948, %v7332
      %v7334 = vpop.f32.mrb[0].mxu0
      %7335 = vmatprep.mubr.f32.mxu0 0.0
      %7336 = vmatmul.mubr.f32.gmra.mrb[0].mxu0 %v6593
      %v7337 = vpop.f32.mrb[0].mxu0
      %v7338 = vadd.f32 %v6953, %v7337
      %v7339 = vpop.f32.mrb[0].mxu0
      %7340 = vmatprep.mubr.f32.mxu0 0.0
      %7341 = vmatmul.mubr.f32.gmra.mrb[0].mxu0 %v6596
      %v7342 = vpop.f32.mrb[0].mxu0
      %v7343 = vadd.f32 %v6958, %v7342
      %v7344 = vpop.f32.mrb[0].mxu0
      %7345 = vmatprep.mubr.f32.mxu0 0.0
      %7346 = vmatmul.mubr.f32.gmra.mrb[0].mxu0 %v6599
      %v7347 = vpop.f32.mrb[0].mxu0
      %v7348 = vadd.f32 %v6963, %v7347
      %v7349 = vpop.f32.mrb[0].mxu0
      %7350 = vmatprep.mubr.f32.mxu0 0.0
      %7351 = vmatmul.mubr.f32.gmra.mrb[0].mxu0 %v6602
      %v7352 = vpop.f32.mrb[0].mxu0
      %v7353 = vadd.f32 %v6968, %v7352
      %v7354 = vpop.f32.mrb[0].mxu0
      %7355 = vmatprep.mubr.f32.mxu0 0.0
      %7356 = vmatmul.mubr.f32.gmra.mrb[0].mxu0 %v6605
      %v7357 = vpop.f32.mrb[0].mxu0
      %v7358 = vadd.f32 %v6973, %v7357
      %v7359 = vpop.f32.mrb[0].mxu0
      %7360 = vmatprep.mubr.f32.mxu0 0.0
      %7361 = vmatmul.mubr.f32.gmra.mrb[0].mxu0 %v6608
      %v7362 = vpop.f32.mrb[0].mxu0
      %v7363 = vadd.f32 %v6978, %v7362
      %v7364 = vpop.f32.mrb[0].mxu0
      %7365 = vmatprep.mubr.f32.mxu0 0.0
      %7366 = vmatmul.mubr.f32.gmra.mrb[0].mxu0 %v6611
      %v7367 = vpop.f32.mrb[0].mxu0
      %v7368 = vadd.f32 %v6983, %v7367
      %v7369 = vpop.f32.mrb[0].mxu0
      %7370 = vmatprep.mubr.f32.mxu0 0.0
      %7371 = vmatmul.mubr.f32.gmra.mrb[0].mxu0 %v6614
      %v7372 = vpop.f32.mrb[0].mxu0
      %v7373 = vadd.f32 %v6988, %v7372
      %v7374 = vpop.f32.mrb[0].mxu0
      %7375 = vmatprep.mubr.f32.mxu0 0.0
      %7376 = vmatmul.mubr.f32.gmra.mrb[0].mxu0 %v6617
      %v7377 = vpop.f32.mrb[0].mxu0
      %v7378 = vadd.f32 %v6993, %v7377
      %v7379 = vpop.f32.mrb[0].mxu0
      %7380 = vmatprep.mubr.f32.mxu0 0.0
      %7381 = vmatmul.mubr.f32.gmra.mrb[0].mxu0 %v6620
      %v7382 = vpop.f32.mrb[0].mxu0
      %v7383 = vadd.f32 %v6998, %v7382
      %v7384 = vpop.f32.mrb[0].mxu0
      %7385 = vmatprep.mubr.f32.mxu0 0.0
      %7386 = vmatmul.mubr.f32.gmra.mrb[0].mxu0 %v6623
      %v7387 = vpop.f32.mrb[0].mxu0
      %v7388 = vadd.f32 %v7003, %v7387
      %v7389 = vpop.f32.mrb[0].mxu0
      %7390 = vmatprep.mubr.f32.mxu0 0.0
      %7391 = vmatmul.mubr.f32.gmra.mrb[0].mxu0 %v6626
      %v7392 = vpop.f32.mrb[0].mxu0
      %v7393 = vadd.f32 %v7008, %v7392
      %v7394 = vpop.f32.mrb[0].mxu0
      %7395 = vmatprep.mubr.f32.mxu0 0.0
      %7396 = vmatmul.mubr.f32.gmra.mrb[0].mxu0 %v6629
      %v7397 = vpop.f32.mrb[0].mxu0
      %v7398 = vadd.f32 %v7013, %v7397
      %v7399 = vpop.f32.mrb[0].mxu0
      %7400 = vmatprep.mubr.f32.mxu0 0.0
      %7401 = vmatmul.mubr.f32.gmra.mrb[0].mxu0 %v6632
      %v7402 = vpop.f32.mrb[0].mxu0
      %v7403 = vadd.f32 %v7018, %v7402
      %v7404 = vpop.f32.mrb[0].mxu0
      %7405 = vmatprep.mubr.f32.mxu0 0.0
      %7406 = vmatmul.mubr.f32.gmra.mrb[0].mxu0 %v6635
      %v7407 = vpop.f32.mrb[0].mxu0
      %v7408 = vadd.f32 %v7023, %v7407
      %v7409 = vpop.f32.mrb[0].mxu0
      %7410 = vmatprep.mubr.f32.mxu0 0.0
      %7411 = vmatmul.mubr.f32.gmra.mrb[0].mxu0 %v6638
      %v7412 = vpop.f32.mrb[0].mxu0
      %v7413 = vadd.f32 %v7028, %v7412
      %v7414 = vpop.f32.mrb[0].mxu0
      %7415 = vmatprep.mubr.f32.mxu0 0.0
      %7416 = vmatmul.mubr.f32.gmra.mrb[0].mxu0 %v6641
      %v7417 = vpop.f32.mrb[0].mxu0
      %v7418 = vadd.f32 %v7033, %v7417
      %v7419 = vpop.f32.mrb[0].mxu0
      %7420 = vmatprep.mubr.f32.mxu0 0.0
      %7421 = vmatmul.mubr.f32.gmra.mrb[0].mxu0 %v6644
      %v7422 = vpop.f32.mrb[0].mxu0
      %v7423 = vadd.f32 %v7038, %v7422
      %v7424 = vpop.f32.mrb[0].mxu0
      %7425 = vmatprep.mubr.f32.mxu0 0.0
      %7426 = vmatmul.mubr.f32.gmra.mrb[0].mxu0 %v6647
      %v7427 = vpop.f32.mrb[0].mxu0
      %v7428 = vadd.f32 %v7043, %v7427
      %v7429 = vpop.f32.mrb[0].mxu0
      %7430 = vmatprep.mubr.f32.mxu0 0.0
      %7431 = vmatmul.mubr.f32.gmra.mrb[0].mxu0 %v6650
      %v7432 = vpop.f32.mrb[0].mxu0
      %v7433 = vadd.f32 %v7048, %v7432
      %v7434 = vpop.f32.mrb[0].mxu0
      %7435 = vmatprep.mubr.f32.mxu0 0.0
      %7436 = vmatmul.mubr.f32.gmra.mrb[0].mxu0 %v6653
      %v7437 = vpop.f32.mrb[0].mxu0
      %v7438 = vadd.f32 %v7053, %v7437
      %v7439 = vpop.f32.mrb[0].mxu0
      %7440 = vmatprep.mubr.f32.mxu0 0.0
      %7441 = vmatmul.mubr.f32.gmra.mrb[0].mxu0 %v6656
      %v7442 = vpop.f32.mrb[0].mxu0
      %v7443 = vadd.f32 %v7058, %v7442
      %v7444 = vpop.f32.mrb[0].mxu0
      %7445 = vmatprep.mubr.f32.mxu0 0.0
      %7446 = vmatmul.mubr.f32.gmra.mrb[0].mxu0 %v6659
      %v7447 = vpop.f32.mrb[0].mxu0
      %v7448 = vadd.f32 %v7063, %v7447
      %v7449 = vpop.f32.mrb[0].mxu0
      %7450 = vmatprep.mubr.f32.mxu0 0.0
      %7451 = vmatmul.mubr.f32.gmra.mrb[0].mxu0 %v6662
      %v7452 = vpop.f32.mrb[0].mxu0
      %v7453 = vadd.f32 %v7068, %v7452
      %v7454 = vpop.f32.mrb[0].mxu0
      %7455 = vmatprep.mubr.f32.mxu0 0.0
      %7456 = vmatmul.mubr.f32.gmra.mrb[0].mxu0 %v6665
      %v7457 = vpop.f32.mrb[0].mxu0
      %v7458 = vadd.f32 %v7073, %v7457
      %v7459 = vpop.f32.mrb[0].mxu0
      %7460 = vmatprep.mubr.f32.mxu0 0.0
      %7461 = vmatmul.mubr.f32.gmra.mrb[0].mxu0 %v6668
      %v7462 = vpop.f32.mrb[0].mxu0
      %v7463 = vadd.f32 %v7078, %v7462
      %v7464 = vpop.f32.mrb[0].mxu0
      %7465 = vmatprep.mubr.f32.mxu0 0.0
      %7466 = vmatmul.mubr.f32.gmra.mrb[0].mxu0 %v6671
      %v7467 = vpop.f32.mrb[0].mxu0
      %v7468 = vadd.f32 %v7083, %v7467
      %v7469 = vpop.f32.mrb[0].mxu0
      %7470 = vmatprep.mubr.f32.mxu0 0.0
      %7471 = vmatmul.mubr.f32.gmra.mrb[0].mxu0 %v6674
      %v7472 = vpop.f32.mrb[0].mxu0
      %v7473 = vadd.f32 %v7088, %v7472
      %v7474 = vpop.f32.mrb[0].mxu0
      %7475 = vmatprep.mubr.f32.mxu0 0.0
      %7476 = vmatmul.mubr.f32.gmra.mrb[0].mxu0 %v6677
      %v7477 = vpop.f32.mrb[0].mxu0
      %v7478 = vadd.f32 %v7093, %v7477
      %v7479 = vpop.f32.mrb[0].mxu0
      %7480 = vmatprep.mubr.f32.mxu0 0.0
      %7481 = vmatmul.mubr.f32.gmra.mrb[0].mxu0 %v6680
      %v7482 = vpop.f32.mrb[0].mxu0
      %v7483 = vadd.f32 %v7098, %v7482
      %v7484 = vpop.f32.mrb[0].mxu0
      %7485 = vmatprep.mubr.f32.mxu0 0.0
      %7486 = vmatmul.mubr.f32.gmra.mrb[0].mxu0 %v6683
      %v7487 = vpop.f32.mrb[0].mxu0
      %v7488 = vadd.f32 %v7103, %v7487
      %v7489 = vpop.f32.mrb[0].mxu0
      %7490 = vmatprep.mubr.f32.mxu0 0.0
      %7491 = vmatmul.mubr.f32.gmra.mrb[0].mxu0 %v6686
      %v7492 = vpop.f32.mrb[0].mxu0
      %v7493 = vadd.f32 %v7108, %v7492
      %v7494 = vpop.f32.mrb[0].mxu0
      %7495 = vmatprep.mubr.f32.mxu0 0.0
      %7496 = vmatmul.mubr.f32.gmra.mrb[0].mxu0 %v6689
      %v7497 = vpop.f32.mrb[0].mxu0
      %v7498 = vadd.f32 %v7113, %v7497
      %v7499 = vpop.f32.mrb[0].mxu0
      %7500 = vmatprep.mubr.f32.mxu0 0.0
      %7501 = vmatmul.mubr.f32.gmra.mrb[0].mxu0 %v6692
      %v7502 = vpop.f32.mrb[0].mxu0
      %v7503 = vadd.f32 %v7118, %v7502
      %v7504 = vpop.f32.mrb[0].mxu0
      %7505 = vmatprep.mubr.f32.mxu0 0.0
      %7506 = vmatmul.mubr.f32.gmra.mrb[0].mxu0 %v6695
      %v7507 = vpop.f32.mrb[0].mxu0
      %v7508 = vadd.f32 %v7123, %v7507
      %v7509 = vpop.f32.mrb[0].mxu0
      %7510 = vmatprep.mubr.f32.mxu0 0.0
      %7511 = vmatmul.mubr.f32.gmra.mrb[0].mxu0 %v6698
      %v7512 = vpop.f32.mrb[0].mxu0
      %v7513 = vadd.f32 %v7128, %v7512
      %v7514 = vpop.f32.mrb[0].mxu0
      %7515 = vmatprep.mubr.f32.mxu0 0.0
      %7516 = vmatmul.mubr.f32.gmra.mrb[0].mxu0 %v6701
      %v7517 = vpop.f32.mrb[0].mxu0
      %v7518 = vadd.f32 %v7133, %v7517
      %v7519 = vpop.f32.mrb[0].mxu0
      %7520 = vmatprep.mubr.f32.mxu0 0.0
      %7521 = vmatmul.mubr.f32.gmra.mrb[0].mxu0 %v6704
      %v7522 = vpop.f32.mrb[0].mxu0
      %v7523 = vadd.f32 %v7138, %v7522
      %v7524 = vpop.f32.mrb[0].mxu0
      %7525 = vmatprep.mubr.f32.mxu0 0.0
      %7526 = vmatmul.mubr.f32.gmra.mrb[0].mxu0 %v6707
      %v7527 = vpop.f32.mrb[0].mxu0
      %v7528 = vadd.f32 %v7143, %v7527
      %v7529 = vpop.f32.mrb[0].mxu0
      %7530 = vmatprep.mubr.f32.mxu0 0.0
      %7531 = vmatmul.mubr.f32.gmra.mrb[0].mxu0 %v6710
      %v7532 = vpop.f32.mrb[0].mxu0
      %v7533 = vadd.f32 %v7148, %v7532
      %v7534 = vpop.f32.mrb[0].mxu0
      %7535 = vdwg.mxu0
      %v7536 = vld [vmem:[%s6] sm:$0x1]
      %vm7537 = vcmp.gt.f32.partialorder %v7536, 0.5
      %v7538 = vxor.u32 %v7218, 2147483648
      %v7539 = vxor.u32 %v7223, 2147483648
      %v7540 = vxor.u32 %v7228, 2147483648
      %v7541 = vxor.u32 %v7233, 2147483648
      %v7542 = vxor.u32 %v7238, 2147483648
      %v7543 = vxor.u32 %v7243, 2147483648
      %v7544 = vxor.u32 %v7248, 2147483648
      %v7545 = vxor.u32 %v7253, 2147483648
      %v7546 = vxor.u32 %v7258, 2147483648
      %v7547 = vxor.u32 %v7263, 2147483648
      %v7548 = vxor.u32 %v7268, 2147483648
      %v7549 = vxor.u32 %v7273, 2147483648
      %v7550 = vxor.u32 %v7278, 2147483648
      %v7551 = vxor.u32 %v7283, 2147483648
      %v7552 = vxor.u32 %v7288, 2147483648
      %v7553 = vxor.u32 %v7293, 2147483648
      %v7554 = vxor.u32 %v7298, 2147483648
      %v7555 = vxor.u32 %v7303, 2147483648
      %v7556 = vxor.u32 %v7308, 2147483648
      %v7557 = vxor.u32 %v7313, 2147483648
      %v7558 = vxor.u32 %v7318, 2147483648
      %v7559 = vxor.u32 %v7323, 2147483648
      %v7560 = vxor.u32 %v7328, 2147483648
      %v7561 = vxor.u32 %v7333, 2147483648
      %v7562 = vxor.u32 %v7338, 2147483648
      %v7563 = vxor.u32 %v7343, 2147483648
      %v7564 = vxor.u32 %v7348, 2147483648
      %v7565 = vxor.u32 %v7353, 2147483648
      %v7566 = vxor.u32 %v7358, 2147483648
      %v7567 = vxor.u32 %v7363, 2147483648
      %v7568 = vxor.u32 %v7368, 2147483648
      %v7569 = vxor.u32 %v7373, 2147483648
      %v7570 = vxor.u32 %v7378, 2147483648
      %v7571 = vxor.u32 %v7383, 2147483648
      %v7572 = vxor.u32 %v7388, 2147483648
      %v7573 = vxor.u32 %v7393, 2147483648
      %v7574 = vxor.u32 %v7398, 2147483648
      %v7575 = vxor.u32 %v7403, 2147483648
      %v7576 = vxor.u32 %v7408, 2147483648
      %v7577 = vxor.u32 %v7413, 2147483648
      %v7578 = vxor.u32 %v7418, 2147483648
      %v7579 = vxor.u32 %v7423, 2147483648
      %v7580 = vxor.u32 %v7428, 2147483648
      %v7581 = vxor.u32 %v7433, 2147483648
      %v7582 = vxor.u32 %v7438, 2147483648
      %v7583 = vxor.u32 %v7443, 2147483648
      %v7584 = vxor.u32 %v7448, 2147483648
      %v7585 = vxor.u32 %v7453, 2147483648
      %v7586 = vxor.u32 %v7458, 2147483648
      %v7587 = vxor.u32 %v7463, 2147483648
      %v7588 = vxor.u32 %v7468, 2147483648
      %v7589 = vxor.u32 %v7473, 2147483648
      %v7590 = vxor.u32 %v7478, 2147483648
      %v7591 = vxor.u32 %v7483, 2147483648
      %v7592 = vxor.u32 %v7488, 2147483648
      %v7593 = vxor.u32 %v7493, 2147483648
      %v7594 = vxor.u32 %v7498, 2147483648
      %v7595 = vxor.u32 %v7503, 2147483648
      %v7596 = vxor.u32 %v7508, 2147483648
      %v7597 = vxor.u32 %v7513, 2147483648
      %v7598 = vxor.u32 %v7518, 2147483648
      %v7599 = vxor.u32 %v7523, 2147483648
      %v7600 = vxor.u32 %v7528, 2147483648
      %v7601 = vxor.u32 %v7533, 2147483648
      %v7602 = vmul.f32 %v7538, 1.442695
      %v7603 = vpow.pop %v7602
      %v7604 = vmul.f32 %v7539, 1.442695
      %v7605 = vpow.pop %v7604
      %v7606 = vmul.f32 %v7540, 1.442695
      %v7607 = vpow.pop %v7606
      %v7608 = vmul.f32 %v7541, 1.442695
      %v7609 = vpow.pop %v7608
      %v7610 = vmul.f32 %v7542, 1.442695
      %v7611 = vpow.pop %v7610
      %v7612 = vmul.f32 %v7543, 1.442695
      %v7613 = vpow.pop %v7612
      %v7614 = vmul.f32 %v7544, 1.442695
      %v7615 = vpow.pop %v7614
      %v7616 = vmul.f32 %v7545, 1.442695
      %v7617 = vpow.pop %v7616
      %v7618 = vmul.f32 %v7546, 1.442695
      %v7619 = vpow.pop %v7618
      %v7620 = vmul.f32 %v7547, 1.442695
      %v7621 = vpow.pop %v7620
      %v7622 = vmul.f32 %v7548, 1.442695
      %v7623 = vpow.pop %v7622
      %v7624 = vmul.f32 %v7549, 1.442695
      %v7625 = vpow.pop %v7624
      %v7626 = vmul.f32 %v7550, 1.442695
      %v7627 = vpow.pop %v7626
      %v7628 = vmul.f32 %v7551, 1.442695
      %v7629 = vpow.pop %v7628
      %v7630 = vmul.f32 %v7552, 1.442695
      %v7631 = vpow.pop %v7630
      %v7632 = vmul.f32 %v7553, 1.442695
      %v7633 = vpow.pop %v7632
      %v7634 = vmul.f32 %v7554, 1.442695
      %v7635 = vpow.pop %v7634
      %v7636 = vmul.f32 %v7555, 1.442695
      %v7637 = vpow.pop %v7636
      %v7638 = vmul.f32 %v7556, 1.442695
      %v7639 = vpow.pop %v7638
      %v7640 = vmul.f32 %v7557, 1.442695
      %v7641 = vpow.pop %v7640
      %v7642 = vmul.f32 %v7558, 1.442695
      %v7643 = vpow.pop %v7642
      %v7644 = vmul.f32 %v7559, 1.442695
      %v7645 = vpow.pop %v7644
      %v7646 = vmul.f32 %v7560, 1.442695
      %v7647 = vpow.pop %v7646
      %v7648 = vmul.f32 %v7561, 1.442695
      %v7649 = vpow.pop %v7648
      %v7650 = vmul.f32 %v7562, 1.442695
      %v7651 = vpow.pop %v7650
      %v7652 = vmul.f32 %v7563, 1.442695
      %v7653 = vpow.pop %v7652
      %v7654 = vmul.f32 %v7564, 1.442695
      %v7655 = vpow.pop %v7654
      %v7656 = vmul.f32 %v7565, 1.442695
      %v7657 = vpow.pop %v7656
      %v7658 = vmul.f32 %v7566, 1.442695
      %v7659 = vpow.pop %v7658
      %v7660 = vmul.f32 %v7567, 1.442695
      %v7661 = vpow.pop %v7660
      %v7662 = vmul.f32 %v7568, 1.442695
      %v7663 = vpow.pop %v7662
      %v7664 = vmul.f32 %v7569, 1.442695
      %v7665 = vpow.pop %v7664
      %v7666 = vmul.f32 %v7570, 1.442695
      %v7667 = vpow.pop %v7666
      %v7668 = vmul.f32 %v7571, 1.442695
      %v7669 = vpow.pop %v7668
      %v7670 = vmul.f32 %v7572, 1.442695
      %v7671 = vpow.pop %v7670
      %v7672 = vmul.f32 %v7573, 1.442695
      %v7673 = vpow.pop %v7672
      %v7674 = vmul.f32 %v7574, 1.442695
      %v7675 = vpow.pop %v7674
      %v7676 = vmul.f32 %v7575, 1.442695
      %v7677 = vpow.pop %v7676
      %v7678 = vmul.f32 %v7576, 1.442695
      %v7679 = vpow.pop %v7678
      %v7680 = vmul.f32 %v7577, 1.442695
      %v7681 = vpow.pop %v7680
      %v7682 = vmul.f32 %v7578, 1.442695
      %v7683 = vpow.pop %v7682
      %v7684 = vmul.f32 %v7579, 1.442695
      %v7685 = vpow.pop %v7684
      %v7686 = vmul.f32 %v7580, 1.442695
      %v7687 = vpow.pop %v7686
      %v7688 = vmul.f32 %v7581, 1.442695
      %v7689 = vpow.pop %v7688
      %v7690 = vmul.f32 %v7582, 1.442695
      %v7691 = vpow.pop %v7690
      %v7692 = vmul.f32 %v7583, 1.442695
      %v7693 = vpow.pop %v7692
      %v7694 = vmul.f32 %v7584, 1.442695
      %v7695 = vpow.pop %v7694
      %v7696 = vmul.f32 %v7585, 1.442695
      %v7697 = vpow.pop %v7696
      %v7698 = vmul.f32 %v7586, 1.442695
      %v7699 = vpow.pop %v7698
      %v7700 = vmul.f32 %v7587, 1.442695
      %v7701 = vpow.pop %v7700
      %v7702 = vmul.f32 %v7588, 1.442695
      %v7703 = vpow.pop %v7702
      %v7704 = vmul.f32 %v7589, 1.442695
      %v7705 = vpow.pop %v7704
      %v7706 = vmul.f32 %v7590, 1.442695
      %v7707 = vpow.pop %v7706
      %v7708 = vmul.f32 %v7591, 1.442695
      %v7709 = vpow.pop %v7708
      %v7710 = vmul.f32 %v7592, 1.442695
      %v7711 = vpow.pop %v7710
      %v7712 = vmul.f32 %v7593, 1.442695
      %v7713 = vpow.pop %v7712
      %v7714 = vmul.f32 %v7594, 1.442695
      %v7715 = vpow.pop %v7714
      %v7716 = vmul.f32 %v7595, 1.442695
      %v7717 = vpow.pop %v7716
      %v7718 = vmul.f32 %v7596, 1.442695
      %v7719 = vpow.pop %v7718
      %v7720 = vmul.f32 %v7597, 1.442695
      %v7721 = vpow.pop %v7720
      %v7722 = vmul.f32 %v7598, 1.442695
      %v7723 = vpow.pop %v7722
      %v7724 = vmul.f32 %v7599, 1.442695
      %v7725 = vpow.pop %v7724
      %v7726 = vmul.f32 %v7600, 1.442695
      %v7727 = vpow.pop %v7726
      %v7728 = vmul.f32 %v7601, 1.442695
      %v7729 = vpow.pop %v7728
      %v7730 = vadd.f32 %v7603, 1.0
      %v7731 = vadd.f32 %v7605, 1.0
      %v7732 = vadd.f32 %v7607, 1.0
      %v7733 = vadd.f32 %v7609, 1.0
      %v7734 = vadd.f32 %v7611, 1.0
      %v7735 = vadd.f32 %v7613, 1.0
      %v7736 = vadd.f32 %v7615, 1.0
      %v7737 = vadd.f32 %v7617, 1.0
      %v7738 = vadd.f32 %v7619, 1.0
      %v7739 = vadd.f32 %v7621, 1.0
      %v7740 = vadd.f32 %v7623, 1.0
      %v7741 = vadd.f32 %v7625, 1.0
      %v7742 = vadd.f32 %v7627, 1.0
      %v7743 = vadd.f32 %v7629, 1.0
      %v7744 = vadd.f32 %v7631, 1.0
      %v7745 = vadd.f32 %v7633, 1.0
      %v7746 = vadd.f32 %v7635, 1.0
      %v7747 = vadd.f32 %v7637, 1.0
      %v7748 = vadd.f32 %v7639, 1.0
      %v7749 = vadd.f32 %v7641, 1.0
      %v7750 = vadd.f32 %v7643, 1.0
      %v7751 = vadd.f32 %v7645, 1.0
      %v7752 = vadd.f32 %v7647, 1.0
      %v7753 = vadd.f32 %v7649, 1.0
      %v7754 = vadd.f32 %v7651, 1.0
      %v7755 = vadd.f32 %v7653, 1.0
      %v7756 = vadd.f32 %v7655, 1.0
      %v7757 = vadd.f32 %v7657, 1.0
      %v7758 = vadd.f32 %v7659, 1.0
      %v7759 = vadd.f32 %v7661, 1.0
      %v7760 = vadd.f32 %v7663, 1.0
      %v7761 = vadd.f32 %v7665, 1.0
      %v7762 = vadd.f32 %v7667, 1.0
      %v7763 = vadd.f32 %v7669, 1.0
      %v7764 = vadd.f32 %v7671, 1.0
      %v7765 = vadd.f32 %v7673, 1.0
      %v7766 = vadd.f32 %v7675, 1.0
      %v7767 = vadd.f32 %v7677, 1.0
      %v7768 = vadd.f32 %v7679, 1.0
      %v7769 = vadd.f32 %v7681, 1.0
      %v7770 = vadd.f32 %v7683, 1.0
      %v7771 = vadd.f32 %v7685, 1.0
      %v7772 = vadd.f32 %v7687, 1.0
      %v7773 = vadd.f32 %v7689, 1.0
      %v7774 = vadd.f32 %v7691, 1.0
      %v7775 = vadd.f32 %v7693, 1.0
      %v7776 = vadd.f32 %v7695, 1.0
      %v7777 = vadd.f32 %v7697, 1.0
      %v7778 = vadd.f32 %v7699, 1.0
      %v7779 = vadd.f32 %v7701, 1.0
      %v7780 = vadd.f32 %v7703, 1.0
      %v7781 = vadd.f32 %v7705, 1.0
      %v7782 = vadd.f32 %v7707, 1.0
      %v7783 = vadd.f32 %v7709, 1.0
      %v7784 = vadd.f32 %v7711, 1.0
      %v7785 = vadd.f32 %v7713, 1.0
      %v7786 = vadd.f32 %v7715, 1.0
      %v7787 = vadd.f32 %v7717, 1.0
      %v7788 = vadd.f32 %v7719, 1.0
      %v7789 = vadd.f32 %v7721, 1.0
      %v7790 = vadd.f32 %v7723, 1.0
      %v7791 = vadd.f32 %v7725, 1.0
      %v7792 = vadd.f32 %v7727, 1.0
      %v7793 = vadd.f32 %v7729, 1.0
      %v7794 = vrcp.pop %v7730
      %v7795 = vmul.f32 1.0, %v7794
      %v7796 = vrcp.pop %v7731
      %v7797 = vmul.f32 1.0, %v7796
      %v7798 = vrcp.pop %v7732
      %v7799 = vmul.f32 1.0, %v7798
      %v7800 = vrcp.pop %v7733
      %v7801 = vmul.f32 1.0, %v7800
      %v7802 = vrcp.pop %v7734
      %v7803 = vmul.f32 1.0, %v7802
      %v7804 = vrcp.pop %v7735
      %v7805 = vmul.f32 1.0, %v7804
      %v7806 = vrcp.pop %v7736
      %v7807 = vmul.f32 1.0, %v7806
      %v7808 = vrcp.pop %v7737
      %v7809 = vmul.f32 1.0, %v7808
      %v7810 = vrcp.pop %v7738
      %v7811 = vmul.f32 1.0, %v7810
      %v7812 = vrcp.pop %v7739
      %v7813 = vmul.f32 1.0, %v7812
      %v7814 = vrcp.pop %v7740
      %v7815 = vmul.f32 1.0, %v7814
      %v7816 = vrcp.pop %v7741
      %v7817 = vmul.f32 1.0, %v7816
      %v7818 = vrcp.pop %v7742
      %v7819 = vmul.f32 1.0, %v7818
      %v7820 = vrcp.pop %v7743
      %v7821 = vmul.f32 1.0, %v7820
      %v7822 = vrcp.pop %v7744
      %v7823 = vmul.f32 1.0, %v7822
      %v7824 = vrcp.pop %v7745
      %v7825 = vmul.f32 1.0, %v7824
      %v7826 = vrcp.pop %v7746
      %v7827 = vmul.f32 1.0, %v7826
      %v7828 = vrcp.pop %v7747
      %v7829 = vmul.f32 1.0, %v7828
      %v7830 = vrcp.pop %v7748
      %v7831 = vmul.f32 1.0, %v7830
      %v7832 = vrcp.pop %v7749
      %v7833 = vmul.f32 1.0, %v7832
      %v7834 = vrcp.pop %v7750
      %v7835 = vmul.f32 1.0, %v7834
      %v7836 = vrcp.pop %v7751
      %v7837 = vmul.f32 1.0, %v7836
      %v7838 = vrcp.pop %v7752
      %v7839 = vmul.f32 1.0, %v7838
      %v7840 = vrcp.pop %v7753
      %v7841 = vmul.f32 1.0, %v7840
      %v7842 = vrcp.pop %v7754
      %v7843 = vmul.f32 1.0, %v7842
      %v7844 = vrcp.pop %v7755
      %v7845 = vmul.f32 1.0, %v7844
      %v7846 = vrcp.pop %v7756
      %v7847 = vmul.f32 1.0, %v7846
      %v7848 = vrcp.pop %v7757
      %v7849 = vmul.f32 1.0, %v7848
      %v7850 = vrcp.pop %v7758
      %v7851 = vmul.f32 1.0, %v7850
      %v7852 = vrcp.pop %v7759
      %v7853 = vmul.f32 1.0, %v7852
      %v7854 = vrcp.pop %v7760
      %v7855 = vmul.f32 1.0, %v7854
      %v7856 = vrcp.pop %v7761
      %v7857 = vmul.f32 1.0, %v7856
      %v7858 = vrcp.pop %v7762
      %v7859 = vmul.f32 1.0, %v7858
      %v7860 = vrcp.pop %v7763
      %v7861 = vmul.f32 1.0, %v7860
      %v7862 = vrcp.pop %v7764
      %v7863 = vmul.f32 1.0, %v7862
      %v7864 = vrcp.pop %v7765
      %v7865 = vmul.f32 1.0, %v7864
      %v7866 = vrcp.pop %v7766
      %v7867 = vmul.f32 1.0, %v7866
      %v7868 = vrcp.pop %v7767
      %v7869 = vmul.f32 1.0, %v7868
      %v7870 = vrcp.pop %v7768
      %v7871 = vmul.f32 1.0, %v7870
      %v7872 = vrcp.pop %v7769
      %v7873 = vmul.f32 1.0, %v7872
      %v7874 = vrcp.pop %v7770
      %v7875 = vmul.f32 1.0, %v7874
      %v7876 = vrcp.pop %v7771
      %v7877 = vmul.f32 1.0, %v7876
      %v7878 = vrcp.pop %v7772
      %v7879 = vmul.f32 1.0, %v7878
      %v7880 = vrcp.pop %v7773
      %v7881 = vmul.f32 1.0, %v7880
      %v7882 = vrcp.pop %v7774
      %v7883 = vmul.f32 1.0, %v7882
      %v7884 = vrcp.pop %v7775
      %v7885 = vmul.f32 1.0, %v7884
      %v7886 = vrcp.pop %v7776
      %v7887 = vmul.f32 1.0, %v7886
      %v7888 = vrcp.pop %v7777
      %v7889 = vmul.f32 1.0, %v7888
      %v7890 = vrcp.pop %v7778
      %v7891 = vmul.f32 1.0, %v7890
      %v7892 = vrcp.pop %v7779
      %v7893 = vmul.f32 1.0, %v7892
      %v7894 = vrcp.pop %v7780
      %v7895 = vmul.f32 1.0, %v7894
      %v7896 = vrcp.pop %v7781
      %v7897 = vmul.f32 1.0, %v7896
      %v7898 = vrcp.pop %v7782
      %v7899 = vmul.f32 1.0, %v7898
      %v7900 = vrcp.pop %v7783
      %v7901 = vmul.f32 1.0, %v7900
      %v7902 = vrcp.pop %v7784
      %v7903 = vmul.f32 1.0, %v7902
      %v7904 = vrcp.pop %v7785
      %v7905 = vmul.f32 1.0, %v7904
      %v7906 = vrcp.pop %v7786
      %v7907 = vmul.f32 1.0, %v7906
      %v7908 = vrcp.pop %v7787
      %v7909 = vmul.f32 1.0, %v7908
      %v7910 = vrcp.pop %v7788
      %v7911 = vmul.f32 1.0, %v7910
      %v7912 = vrcp.pop %v7789
      %v7913 = vmul.f32 1.0, %v7912
      %v7914 = vrcp.pop %v7790
      %v7915 = vmul.f32 1.0, %v7914
      %v7916 = vrcp.pop %v7791
      %v7917 = vmul.f32 1.0, %v7916
      %v7918 = vrcp.pop %v7792
      %v7919 = vmul.f32 1.0, %v7918
      %v7920 = vrcp.pop %v7793
      %v7921 = vmul.f32 1.0, %v7920
      %v7922 = vsel %vm7537, 1, 0
      %v7923 = vlaneseq
      %v7924 = vshrl.u32 %v7923, 7
      %v7925 = vsub.s32 0, %v7924
      %v7926 = vrot.slane %v7922, %v7925
      %vm7927 = vcmp.eq.s32.totalorder %v7926, 1
      %v7928 = vsel %vm7927, %v7795, %v7218
      %v7929 = vsel %vm7927, %v7797, %v7223
      %v7930 = vsel %vm7927, %v7799, %v7228
      %v7931 = vsel %vm7927, %v7801, %v7233
      %v7932 = vsel %vm7927, %v7803, %v7238
      %v7933 = vsel %vm7927, %v7805, %v7243
      %v7934 = vsel %vm7927, %v7807, %v7248
      %v7935 = vsel %vm7927, %v7809, %v7253
      %v7936 = vsel %vm7927, %v7811, %v7258
      %v7937 = vsel %vm7927, %v7813, %v7263
      %v7938 = vsel %vm7927, %v7815, %v7268
      %v7939 = vsel %vm7927, %v7817, %v7273
      %v7940 = vsel %vm7927, %v7819, %v7278
      %v7941 = vsel %vm7927, %v7821, %v7283
      %v7942 = vsel %vm7927, %v7823, %v7288
      %v7943 = vsel %vm7927, %v7825, %v7293
      %v7944 = vsel %vm7927, %v7827, %v7298
      %v7945 = vsel %vm7927, %v7829, %v7303
      %v7946 = vsel %vm7927, %v7831, %v7308
      %v7947 = vsel %vm7927, %v7833, %v7313
      %v7948 = vsel %vm7927, %v7835, %v7318
      %v7949 = vsel %vm7927, %v7837, %v7323
      %v7950 = vsel %vm7927, %v7839, %v7328
      %v7951 = vsel %vm7927, %v7841, %v7333
      %v7952 = vsel %vm7927, %v7843, %v7338
      %v7953 = vsel %vm7927, %v7845, %v7343
      %v7954 = vsel %vm7927, %v7847, %v7348
      %v7955 = vsel %vm7927, %v7849, %v7353
      %v7956 = vsel %vm7927, %v7851, %v7358
      %v7957 = vsel %vm7927, %v7853, %v7363
      %v7958 = vsel %vm7927, %v7855, %v7368
      %v7959 = vsel %vm7927, %v7857, %v7373
      %v7960 = vsel %vm7927, %v7859, %v7378
      %v7961 = vsel %vm7927, %v7861, %v7383
      %v7962 = vsel %vm7927, %v7863, %v7388
      %v7963 = vsel %vm7927, %v7865, %v7393
      %v7964 = vsel %vm7927, %v7867, %v7398
      %v7965 = vsel %vm7927, %v7869, %v7403
      %v7966 = vsel %vm7927, %v7871, %v7408
      %v7967 = vsel %vm7927, %v7873, %v7413
      %v7968 = vsel %vm7927, %v7875, %v7418
      %v7969 = vsel %vm7927, %v7877, %v7423
      %v7970 = vsel %vm7927, %v7879, %v7428
      %v7971 = vsel %vm7927, %v7881, %v7433
      %v7972 = vsel %vm7927, %v7883, %v7438
      %v7973 = vsel %vm7927, %v7885, %v7443
      %v7974 = vsel %vm7927, %v7887, %v7448
      %v7975 = vsel %vm7927, %v7889, %v7453
      %v7976 = vsel %vm7927, %v7891, %v7458
      %v7977 = vsel %vm7927, %v7893, %v7463
      %v7978 = vsel %vm7927, %v7895, %v7468
      %v7979 = vsel %vm7927, %v7897, %v7473
      %v7980 = vsel %vm7927, %v7899, %v7478
      %v7981 = vsel %vm7927, %v7901, %v7483
      %v7982 = vsel %vm7927, %v7903, %v7488
      %v7983 = vsel %vm7927, %v7905, %v7493
      %v7984 = vsel %vm7927, %v7907, %v7498
      %v7985 = vsel %vm7927, %v7909, %v7503
      %v7986 = vsel %vm7927, %v7911, %v7508
      %v7987 = vsel %vm7927, %v7913, %v7513
      %v7988 = vsel %vm7927, %v7915, %v7518
      %v7989 = vsel %vm7927, %v7917, %v7523
      %v7990 = vsel %vm7927, %v7919, %v7528
      %v7991 = vsel %vm7927, %v7921, %v7533
      %7992 = vst [vmem:[%s359] sm:$0xff] %v7928
      %7993 = vst [vmem:[%s359 + $0x8] sm:$0xff] %v7929
      %7994 = vst [vmem:[%s359 + $0x10] sm:$0xff] %v7930
      %7995 = vst [vmem:[%s359 + $0x18] sm:$0xff] %v7931
      %7996 = vst [vmem:[%s359 + $0x20] sm:$0xff] %v7932
      %7997 = vst [vmem:[%s359 + $0x28] sm:$0xff] %v7933
      %7998 = vst [vmem:[%s359 + $0x30] sm:$0xff] %v7934
      %7999 = vst [vmem:[%s359 + $0x38] sm:$0xff] %v7935
      %8000 = vst [vmem:[%s359 + $0x40] sm:$0xff] %v7936
      %8001 = vst [vmem:[%s359 + $0x48] sm:$0xff] %v7937
      %8002 = vst [vmem:[%s359 + $0x50] sm:$0xff] %v7938
      %8003 = vst [vmem:[%s359 + $0x58] sm:$0xff] %v7939
      %8004 = vst [vmem:[%s359 + $0x60] sm:$0xff] %v7940
      %8005 = vst [vmem:[%s359 + $0x68] sm:$0xff] %v7941
      %8006 = vst [vmem:[%s359 + $0x70] sm:$0xff] %v7942
      %8007 = vst [vmem:[%s359 + $0x78] sm:$0xff] %v7943
      %8008 = vst [vmem:[%s359 + $0x80] sm:$0xff] %v7944
      %8009 = vst [vmem:[%s359 + $0x88] sm:$0xff] %v7945
      %8010 = vst [vmem:[%s359 + $0x90] sm:$0xff] %v7946
      %8011 = vst [vmem:[%s359 + $0x98] sm:$0xff] %v7947
      %8012 = vst [vmem:[%s359 + $0xa0] sm:$0xff] %v7948
      %8013 = vst [vmem:[%s359 + $0xa8] sm:$0xff] %v7949
      %8014 = vst [vmem:[%s359 + $0xb0] sm:$0xff] %v7950
      %8015 = vst [vmem:[%s359 + $0xb8] sm:$0xff] %v7951
      %8016 = vst [vmem:[%s359 + $0xc0] sm:$0xff] %v7952
      %8017 = vst [vmem:[%s359 + $0xc8] sm:$0xff] %v7953
      %8018 = vst [vmem:[%s359 + $0xd0] sm:$0xff] %v7954
      %8019 = vst [vmem:[%s359 + $0xd8] sm:$0xff] %v7955
      %8020 = vst [vmem:[%s359 + $0xe0] sm:$0xff] %v7956
      %8021 = vst [vmem:[%s359 + $0xe8] sm:$0xff] %v7957
      %8022 = vst [vmem:[%s359 + $0xf0] sm:$0xff] %v7958
      %8023 = vst [vmem:[%s359 + $0xf8] sm:$0xff] %v7959
      %8024 = vst [vmem:[%s359 + $0x100] sm:$0xff] %v7960
      %8025 = vst [vmem:[%s359 + $0x108] sm:$0xff] %v7961
      %8026 = vst [vmem:[%s359 + $0x110] sm:$0xff] %v7962
      %8027 = vst [vmem:[%s359 + $0x118] sm:$0xff] %v7963
      %8028 = vst [vmem:[%s359 + $0x120] sm:$0xff] %v7964
      %8029 = vst [vmem:[%s359 + $0x128] sm:$0xff] %v7965
      %8030 = vst [vmem:[%s359 + $0x130] sm:$0xff] %v7966
      %8031 = vst [vmem:[%s359 + $0x138] sm:$0xff] %v7967
      %8032 = vst [vmem:[%s359 + $0x140] sm:$0xff] %v7968
      %8033 = vst [vmem:[%s359 + $0x148] sm:$0xff] %v7969
      %8034 = vst [vmem:[%s359 + $0x150] sm:$0xff] %v7970
      %8035 = vst [vmem:[%s359 + $0x158] sm:$0xff] %v7971
      %8036 = vst [vmem:[%s359 + $0x160] sm:$0xff] %v7972
      %8037 = vst [vmem:[%s359 + $0x168] sm:$0xff] %v7973
      %8038 = vst [vmem:[%s359 + $0x170] sm:$0xff] %v7974
      %8039 = vst [vmem:[%s359 + $0x178] sm:$0xff] %v7975
      %8040 = vst [vmem:[%s359 + $0x180] sm:$0xff] %v7976
      %8041 = vst [vmem:[%s359 + $0x188] sm:$0xff] %v7977
      %8042 = vst [vmem:[%s359 + $0x190] sm:$0xff] %v7978
      %8043 = vst [vmem:[%s359 + $0x198] sm:$0xff] %v7979
      %8044 = vst [vmem:[%s359 + $0x1a0] sm:$0xff] %v7980
      %8045 = vst [vmem:[%s359 + $0x1a8] sm:$0xff] %v7981
      %8046 = vst [vmem:[%s359 + $0x1b0] sm:$0xff] %v7982
      %8047 = vst [vmem:[%s359 + $0x1b8] sm:$0xff] %v7983
      %8048 = vst [vmem:[%s359 + $0x1c0] sm:$0xff] %v7984
      %8049 = vst [vmem:[%s359 + $0x1c8] sm:$0xff] %v7985
      %8050 = vst [vmem:[%s359 + $0x1d0] sm:$0xff] %v7986
      %8051 = vst [vmem:[%s359 + $0x1d8] sm:$0xff] %v7987
      %8052 = vst [vmem:[%s359 + $0x1e0] sm:$0xff] %v7988
      %8053 = vst [vmem:[%s359 + $0x1e8] sm:$0xff] %v7989
      %8054 = vst [vmem:[%s359 + $0x1f0] sm:$0xff] %v7990
      %8055 = vst [vmem:[%s359 + $0x1f8] sm:$0xff] %v7991
      %s8056 = smul.u32 64, %s23
      %p8057 = scmp.lt.s32.totalorder %s22, 1
      %s8058 = scalar_select %p8057, %s22, 1
      %p8059 = scmp.lt.s32.totalorder %s8056, 63
      %s8060 = scalar_select %p8059, %s8056, 63
      %s8061 = smul.addr %s8058, 64
      %s8062 = sadd.s32 %s8060, %s8061
      %s8063 = smul.addr %s8062, 8
      %s8064 = scalar_lea.vmem %s7, %s8063
      // Predicated region
      $region49: #{centernet_head_forward.1} parent=47 // pred_check
        %p8065 = pneg %p213
      $region50: #{centernet_head_forward.1} parent=47 // pred_check_branch
        %8067 = sbr.rel (%p8065) target = $region52
      $region51: #{centernet_head_forward.1} parent=47 // pred_region
        %s8068 = smul.u32 64, %s23
      $region52: #{centernet_head_forward.1} parent=47 // pred_fallthru
        _
    $region48: #{centernet_head_forward.1} parent=5 // pred_fallthru
      _
    %p8069 = scmp.le.s32.totalorder 2, %s13
    // Predicated region
    $region53: #{centernet_head_forward.1} parent=5 // pred_check
      %p8070 = pneg %p8069
    $region54: #{centernet_head_forward.1} parent=5 // pred_check_branch
      %8072 = sbr.rel (%p8070) target = $region56
    $region55: #{centernet_head_forward.1} parent=5 // pred_region
      %s8073 = ssub.s32 %s13, 2
      // Predicated region
      $region57: #{centernet_head_forward.1} parent=55 // pred_check
        %p8074 = pneg %p219
      $region58: #{centernet_head_forward.1} parent=55 // pred_check_branch
        %8076 = sbr.rel (%p8074) target = $region60
      $region59: #{centernet_head_forward.1} parent=55 // pred_region
        %s8077 = smul.u32 64, %s25
        %p8078 = scmp.lt.s32.totalorder %s24, 1
        %s8079 = scalar_select %p8078, %s24, 1
        %p8080 = scmp.lt.s32.totalorder %s8077, 63
        %s8081 = scalar_select %p8080, %s8077, 63
        %s8082 = smul.addr %s8079, 64
        %s8083 = sadd.s32 %s8081, %s8082
        %s8084 = smul.addr %s8083, 8
        %s8085 = scalar_lea.vmem %s7, %s8084
      $region60: #{centernet_head_forward.1} parent=55 // pred_fallthru
        _
    $region56: #{centernet_head_forward.1} parent=5 // pred_fallthru
      _
  $region6: #{centernet_head_forward.1} parent=0 // loop_footer
    %s17 = sadd.s32 1, %s13
  $region7: #{centernet_head_forward.1} parent=0 // loop_footer_branch
    %12 = sbr.rel target = $region3
  $region8: #{centernet_head_forward.1} parent=0 // loop_exit
    _

</llo_original>
